<compile_context>
chip_gen: v6e
topology: v6e:2x2x1
jax: 0.10.0
libtpu: 0.0.40
codegen_flags: <defaults>
</compile_context>

<pallas_src>
import jax
import jax.numpy as jnp
from jax.experimental import pallas as pl
from jax.experimental.pallas import tpu as pltpu

IMG_SHAPE = (512, 7, 7)
IN_FEATURES = 512 * 7 * 7          # 25088
H1, H2, H3 = 512, 256, 1
TK = 6272                          # 49 * 128 ; 25088 / 6272 = 4 K steps
K_STEPS = IN_FEATURES // TK


def _disc_kernel(x_ref, w1_ref, b1_ref, w2_ref, b2_ref, w3_ref, b3_ref,
                 out_ref, acc_ref):
    """Fused MLP discriminator.

    Grid axis 0 walks the K dimension of the first (large) matmul; W1 is the
    only array that is re-DMA'd per step.  Layer-1 partial products accumulate
    (bias pre-folded) into a f32 VMEM scratch; on the last K step the two small
    layers, LeakyReLU activations and the sigmoid run as an epilogue.
    """
    k = pl.program_id(0)

    @pl.when(k == 0)
    def _():
        # Fold the layer-1 bias into the accumulator init (saves one VPU add).
        acc_ref[...] = jnp.broadcast_to(b1_ref[...], acc_ref.shape)

    # Layer-1 partial product on the MXU: (B, TK) bf16 @ (TK, 512) bf16 -> f32.
    start = pl.multiple_of(k * TK, 128)
    x_tile = x_ref[:, pl.ds(start, TK)]
    acc_ref[...] += jnp.dot(x_tile, w1_ref[...],
                            preferred_element_type=jnp.float32)

    @pl.when(k == pl.num_programs(0) - 1)
    def _():
        h1 = acc_ref[...]
        h1 = jnp.where(h1 > 0, h1, 0.2 * h1)                       # LeakyReLU(0.2)

        h2 = jnp.dot(h1, w2_ref[...],
                     preferred_element_type=jnp.float32) + b2_ref[...]
        h2 = jnp.where(h2 > 0, h2, 0.2 * h2)                       # LeakyReLU(0.2)

        h3 = jnp.dot(h2, w3_ref[...],
                     preferred_element_type=jnp.float32) + b3_ref[...]
        out_ref[...] = 1.0 / (1.0 + jnp.exp(-h3))                  # Sigmoid


@jax.jit
def discriminator_forward(img, w1, b1, w2, b2, w3, b3):
    B = img.shape[0]
    # bf16 streaming inputs for the large layer-1 matmul; f32 accumulation.
    x = img.reshape(B, -1).astype(jnp.bfloat16)                    # (B, 25088)
    w1_bf = w1.astype(jnp.bfloat16)                                # (25088, 512)

    return pl.pallas_call(
        _disc_kernel,
        out_shape=jax.ShapeDtypeStruct((B, H3), jnp.float32),
        grid_spec=pltpu.PrefetchScalarGridSpec(
            num_scalar_prefetch=0,
            grid=(K_STEPS,),
            in_specs=[
                pl.BlockSpec((B, IN_FEATURES), lambda k: (0, 0)),  # x (resident)
                pl.BlockSpec((TK, H1), lambda k: (k, 0)),          # W1 tile stream
                pl.BlockSpec((1, H1), lambda k: (0, 0)),           # b1 (resident)
                pl.BlockSpec((H1, H2), lambda k: (0, 0)),          # W2 (resident)
                pl.BlockSpec((1, H2), lambda k: (0, 0)),           # b2 (resident)
                pl.BlockSpec((H2, H3), lambda k: (0, 0)),          # W3 (resident)
                pl.BlockSpec((1, H3), lambda k: (0, 0)),           # b3 (resident)
            ],
            out_specs=pl.BlockSpec((B, H3), lambda k: (0, 0)),
            scratch_shapes=[pltpu.VMEM((B, H1), jnp.float32)],     # layer-1 acc
        ),
        compiler_params=pltpu.CompilerParams(
            dimension_semantics=("arbitrary",),                    # K reduction
            vmem_limit_bytes=48 << 20,                             # headroom on v7x
        ),
    )(x, w1_bf, b1, w2, b2, w3, b3)


def _init_params(key):
    """Deterministic synthetic params (Linear stored as (in, out))."""
    ks = jax.random.split(key, 6)

    def lin(kw, kb, fan_in, fan_out):
        bound = 1.0 / jnp.sqrt(fan_in)
        w = jax.random.uniform(kw, (fan_in, fan_out), jnp.float32, -bound, bound)
        b = jax.random.uniform(kb, (1, fan_out), jnp.float32, -bound, bound)
        return w, b

    w1, b1 = lin(ks[0], ks[1], IN_FEATURES, H1)
    w2, b2 = lin(ks[2], ks[3], H1, H2)
    w3, b3 = lin(ks[4], ks[5], H2, H3)
    return w1, b1, w2, b2, w3, b3


def _reference(img, w1, b1, w2, b2, w3, b3):
    # Reference with the same bf16 quantization of x / W1 (so the comparison
    # only sees MXU-vs-XLA summation-order differences, not the cast).
    x = img.reshape(img.shape[0], -1).astype(jnp.bfloat16).astype(jnp.float32)
    w1f = w1.astype(jnp.bfloat16).astype(jnp.float32)
    h = jnp.dot(x, w1f, precision=jax.lax.Precision.HIGHEST) + b1
    h = jnp.where(h > 0, h, 0.2 * h)
    h = jnp.dot(h, w2, precision=jax.lax.Precision.HIGHEST) + b2
    h = jnp.where(h > 0, h, 0.2 * h)
    h = jnp.dot(h, w3, precision=jax.lax.Precision.HIGHEST) + b3
    return jax.nn.sigmoid(h)


if __name__ == "__main__":
    key = jax.random.PRNGKey(0)
    k_img, k_params = jax.random.split(key)

    B = 2
    img = jax.random.normal(k_img, (B,) + IMG_SHAPE, jnp.float32)  # NCHW, like torch
    params = _init_params(k_params)

    out = discriminator_forward(img, *params)
    out = jax.block_until_ready(out)

    ref = _reference(img, *params)
    assert out.shape == (B, 1), out.shape
    assert jnp.allclose(out, ref, atol=1e-4, rtol=1e-4), (out, ref)

    print("KERNEL_OK")
</pallas_src>

<mosaic_0001>
module attributes {stable_mosaic.version = 11 : i64} {
  func.func @_disc_kernel(%arg0: i32, %arg1: memref<2x25088xbf16, #tpu.memory_space<vmem>>, %arg2: memref<6272x512xbf16, #tpu.memory_space<vmem>>, %arg3: memref<1x512xf32, #tpu.memory_space<vmem>>, %arg4: memref<512x256xf32, #tpu.memory_space<vmem>>, %arg5: memref<1x256xf32, #tpu.memory_space<vmem>>, %arg6: memref<256x1xf32, #tpu.memory_space<vmem>>, %arg7: memref<1x1xf32, #tpu.memory_space<vmem>>, %arg8: memref<2x1xf32, #tpu.memory_space<vmem>>, %arg9: memref<2x512xf32, #tpu.memory_space<vmem>>) attributes {dimension_semantics = [#tpu.dimension_semantics<arbitrary>], iteration_bounds = array<i64: 4>, scalar_prefetch = 0 : i64, scratch_operands = 1 : i64, tpu.core_type = #tpu.core_type<tc>, window_params = [{pipeline_mode = #tpu.pipeline_mode<synchronous>, transform_indices = @transform_0, window_bounds = array<i64: 2, 25088>}, {transform_indices = @transform_1, window_bounds = array<i64: 6272, 512>}, {pipeline_mode = #tpu.pipeline_mode<synchronous>, transform_indices = @transform_2, window_bounds = array<i64: 1, 512>}, {pipeline_mode = #tpu.pipeline_mode<synchronous>, transform_indices = @transform_3, window_bounds = array<i64: 512, 256>}, {pipeline_mode = #tpu.pipeline_mode<synchronous>, transform_indices = @transform_4, window_bounds = array<i64: 1, 256>}, {pipeline_mode = #tpu.pipeline_mode<synchronous>, transform_indices = @transform_5, window_bounds = array<i64: 256, 1>}, {pipeline_mode = #tpu.pipeline_mode<synchronous>, transform_indices = @transform_6, window_bounds = array<i64: 1, 1>}, {pipeline_mode = #tpu.pipeline_mode<synchronous>, transform_indices = @transform_7, window_bounds = array<i64: 2, 1>}]} {
    %c0_i32 = arith.constant 0 : i32
    %0 = arith.cmpi eq, %arg0, %c0_i32 : i32
    %1 = arith.extui %0 : i1 to i32
    %c0_i32_0 = arith.constant 0 : i32
    %2 = arith.cmpi ne, %1, %c0_i32_0 : i32
    scf.if %2 {
      %c0_8 = arith.constant 0 : index
      %c0_9 = arith.constant 0 : index
      %15 = vector.load %arg3[%c0_8, %c0_9] : memref<1x512xf32, #tpu.memory_space<vmem>>, vector<1x512xf32>
      %16 = vector.shape_cast %15 : vector<1x512xf32> to vector<1x512xf32>
      %17 = vector.broadcast %16 : vector<1x512xf32> to vector<2x512xf32>
      %c0_10 = arith.constant 0 : index
      %c0_11 = arith.constant 0 : index
      %18 = vector.load %arg9[%c0_10, %c0_11] : memref<2x512xf32, #tpu.memory_space<vmem>>, vector<2x512xf32>
      tpu.vector_store %arg9[%c0_10, %c0_11], %17 {strides = array<i32>} : memref<2x512xf32, #tpu.memory_space<vmem>>, vector<2x512xf32>,
    } else {
    }
    %c6272_i32 = arith.constant 6272 : i32
    %3 = arith.muli %arg0, %c6272_i32 : i32
    %4 = tpu.assume_multiple %3, 128 : i32
    %c0 = arith.constant 0 : index
    %5 = arith.index_cast %4 : i32 to index
    %6 = vector.load %arg1[%c0, %5] : memref<2x25088xbf16, #tpu.memory_space<vmem>>, vector<2x6272xbf16>
    %c0_1 = arith.constant 0 : index
    %c0_2 = arith.constant 0 : index
    %7 = vector.load %arg9[%c0_1, %c0_2] : memref<2x512xf32, #tpu.memory_space<vmem>>, vector<2x512xf32>
    %c0_3 = arith.constant 0 : index
    %c0_4 = arith.constant 0 : index
    %8 = vector.load %arg2[%c0_3, %c0_4] : memref<6272x512xbf16, #tpu.memory_space<vmem>>, vector<6272x512xbf16>
    %cst = arith.constant dense<0.000000e+00> : vector<2x512xf32>
    %9 = tpu.matmul %6, %8, %cst {dimension_numbers = #tpu.dot_dimension_numbers<[1], [0], [0], [1], [0, 0, 1, 1], [], []>} : vector<2x6272xbf16>, vector<6272x512xbf16>, vector<2x512xf32> -> vector<2x512xf32>
    %10 = arith.addf %7, %9 : vector<2x512xf32>
    %c0_5 = arith.constant 0 : index
    %c0_6 = arith.constant 0 : index
    %11 = vector.load %arg9[%c0_5, %c0_6] : memref<2x512xf32, #tpu.memory_space<vmem>>, vector<2x512xf32>
    tpu.vector_store %arg9[%c0_5, %c0_6], %10 {strides = array<i32>} : memref<2x512xf32, #tpu.memory_space<vmem>>, vector<2x512xf32>,
    %c3_i32 = arith.constant 3 : i32
    %12 = arith.cmpi eq, %arg0, %c3_i32 : i32
    %13 = arith.extui %12 : i1 to i32
    %c0_i32_7 = arith.constant 0 : i32
    %14 = arith.cmpi ne, %13, %c0_i32_7 : i32
    scf.if %14 {
      %c0_8 = arith.constant 0 : index
      %c0_9 = arith.constant 0 : index
      %15 = vector.load %arg9[%c0_8, %c0_9] : memref<2x512xf32, #tpu.memory_space<vmem>>, vector<2x512xf32>
      %cst_10 = arith.constant 0.000000e+00 : f32
      %16 = vector.broadcast %cst_10 : f32 to vector<2x512xf32>
      %17 = arith.cmpf ogt, %15, %16 : vector<2x512xf32>
      %cst_11 = arith.constant 2.000000e-01 : f32
      %18 = vector.broadcast %cst_11 : f32 to vector<2x512xf32>
      %19 = arith.mulf %18, %15 : vector<2x512xf32>
      %20 = arith.select %17, %15, %19 : vector<2x512xi1>, vector<2x512xf32>
      %c0_12 = arith.constant 0 : index
      %c0_13 = arith.constant 0 : index
      %21 = vector.load %arg4[%c0_12, %c0_13] : memref<512x256xf32, #tpu.memory_space<vmem>>, vector<512x256xf32>
      %cst_14 = arith.constant dense<0.000000e+00> : vector<2x256xf32>
      %22 = tpu.matmul %20, %21, %cst_14 {dimension_numbers = #tpu.dot_dimension_numbers<[1], [0], [0], [1], [0, 0, 1, 1], [], []>} : vector<2x512xf32>, vector<512x256xf32>, vector<2x256xf32> -> vector<2x256xf32>
      %c0_15 = arith.constant 0 : index
      %c0_16 = arith.constant 0 : index
      %23 = vector.load %arg5[%c0_15, %c0_16] : memref<1x256xf32, #tpu.memory_space<vmem>>, vector<1x256xf32>
      %24 = vector.broadcast %23 : vector<1x256xf32> to vector<2x256xf32>
      %25 = arith.addf %22, %24 : vector<2x256xf32>
      %cst_17 = arith.constant 0.000000e+00 : f32
      %26 = vector.broadcast %cst_17 : f32 to vector<2x256xf32>
      %27 = arith.cmpf ogt, %25, %26 : vector<2x256xf32>
      %cst_18 = arith.constant 2.000000e-01 : f32
      %28 = vector.broadcast %cst_18 : f32 to vector<2x256xf32>
      %29 = arith.mulf %28, %25 : vector<2x256xf32>
      %30 = arith.select %27, %25, %29 : vector<2x256xi1>, vector<2x256xf32>
      %c0_19 = arith.constant 0 : index
      %c0_20 = arith.constant 0 : index
      %31 = vector.load %arg6[%c0_19, %c0_20] : memref<256x1xf32, #tpu.memory_space<vmem>>, vector<256x1xf32>
      %cst_21 = arith.constant dense<0.000000e+00> : vector<2x1xf32>
      %32 = tpu.matmul %30, %31, %cst_21 {dimension_numbers = #tpu.dot_dimension_numbers<[1], [0], [0], [1], [0, 0, 1, 1], [], []>} : vector<2x256xf32>, vector<256x1xf32>, vector<2x1xf32> -> vector<2x1xf32>
      %c0_22 = arith.constant 0 : index
      %c0_23 = arith.constant 0 : index
      %33 = vector.load %arg7[%c0_22, %c0_23] : memref<1x1xf32, #tpu.memory_space<vmem>>, vector<1x1xf32>
      %34 = vector.broadcast %33 : vector<1x1xf32> to vector<2x1xf32>
      %35 = arith.addf %32, %34 : vector<2x1xf32>
      %cst_24 = arith.constant 0.000000e+00 : f32
      %36 = vector.broadcast %cst_24 : f32 to vector<2x1xf32>
      %37 = arith.subf %36, %35 : vector<2x1xf32>
      %38 = math.exp %37 : vector<2x1xf32>
      %cst_25 = arith.constant 1.000000e+00 : f32
      %39 = vector.broadcast %cst_25 : f32 to vector<2x1xf32>
      %40 = arith.addf %39, %38 : vector<2x1xf32>
      %cst_26 = arith.constant 1.000000e+00 : f32
      %41 = vector.broadcast %cst_26 : f32 to vector<2x1xf32>
      %42 = arith.divf %41, %40 : vector<2x1xf32>
      %c0_27 = arith.constant 0 : index
      %c0_28 = arith.constant 0 : index
      %43 = vector.load %arg8[%c0_27, %c0_28] : memref<2x1xf32, #tpu.memory_space<vmem>>, vector<2x1xf32>
      tpu.vector_store %arg8[%c0_27, %c0_28], %42 {strides = array<i32>} : memref<2x1xf32, #tpu.memory_space<vmem>>, vector<2x1xf32>,
    } else {
    }
    return
  }
  func.func @transform_0(%arg0: i32) -> (i32, i32) {
    %c0_i32 = arith.constant 0 : i32
    %c0_i32_0 = arith.constant 0 : i32
    %c0_i32_1 = arith.constant 0 : i32
    return %c0_i32, %c0_i32_0 : i32, i32
  }
  func.func @transform_1(%arg0: i32) -> (i32, i32) {
    %c0_i32 = arith.constant 0 : i32
    %c0_i32_0 = arith.constant 0 : i32
    return %arg0, %c0_i32 : i32, i32
  }
  func.func @transform_2(%arg0: i32) -> (i32, i32) {
    %c0_i32 = arith.constant 0 : i32
    %c0_i32_0 = arith.constant 0 : i32
    %c0_i32_1 = arith.constant 0 : i32
    return %c0_i32, %c0_i32_0 : i32, i32
  }
  func.func @transform_3(%arg0: i32) -> (i32, i32) {
    %c0_i32 = arith.constant 0 : i32
    %c0_i32_0 = arith.constant 0 : i32
    %c0_i32_1 = arith.constant 0 : i32
    return %c0_i32, %c0_i32_0 : i32, i32
  }
  func.func @transform_4(%arg0: i32) -> (i32, i32) {
    %c0_i32 = arith.constant 0 : i32
    %c0_i32_0 = arith.constant 0 : i32
    %c0_i32_1 = arith.constant 0 : i32
    return %c0_i32, %c0_i32_0 : i32, i32
  }
  func.func @transform_5(%arg0: i32) -> (i32, i32) {
    %c0_i32 = arith.constant 0 : i32
    %c0_i32_0 = arith.constant 0 : i32
    %c0_i32_1 = arith.constant 0 : i32
    return %c0_i32, %c0_i32_0 : i32, i32
  }
  func.func @transform_6(%arg0: i32) -> (i32, i32) {
    %c0_i32 = arith.constant 0 : i32
    %c0_i32_0 = arith.constant 0 : i32
    %c0_i32_1 = arith.constant 0 : i32
    return %c0_i32, %c0_i32_0 : i32, i32
  }
  func.func @transform_7(%arg0: i32) -> (i32, i32) {
    %c0_i32 = arith.constant 0 : i32
    %c0_i32_0 = arith.constant 0 : i32
    %c0_i32_1 = arith.constant 0 : i32
    return %c0_i32, %c0_i32_0 : i32, i32
  }
}

</mosaic_0001>

<llo_original>
// kernel: discriminator_forward.1
$region0: #{discriminator_forward.1}
  #allocation0 [shape = 'u32[]', space=smem, size = 0x4, offset = 0x4, fixed_abs, tag = 'smem constant byte address 0x4 - core index']
  #allocation1 [shape = 'u32[144,128]{1,0:T(1,128)}', space=vmem, size = 0x12000, scoped, tag = 'internal scratch']
  #allocation2 [shape = 'f32[2,512]{1,0:T(2,128)}', space=vmem, size = 0x1000, scoped, tag = 'scratch operand']
  #allocation3 [shape = 'f32[1,1]{1,0:T(1,128)S(1)}', space=vmem, size = 0x200, scoped, tag = 'scoped memory for discriminator_forward.1']
  %s0 = inlined_call_operand.vmem [shape: bf16[2,25088], index: 0, kind: input, shape index: {}]
  %s1 = inlined_call_operand.vmem [shape: bf16[25088,512], index: 1, kind: input, shape index: {}]
  %s2 = inlined_call_operand.vmem [shape: f32[1,512], index: 2, kind: input, shape index: {}]
  %s3 = inlined_call_operand.vmem [shape: f32[512,256], index: 3, kind: input, shape index: {}]
  %s4 = inlined_call_operand.vmem [shape: f32[1,256], index: 4, kind: input, shape index: {}]
  %s5 = inlined_call_operand.vmem [shape: f32[256,1], index: 5, kind: input, shape index: {}]
  %s6 = inlined_call_operand.<no memory space> [shape: f32[1,1], index: 6, kind: input, shape index: {}]
  %s7 = inlined_call_operand.vmem [shape: f32[2,1], index: 7, kind: output, shape index: {}]
  %s8 = sld [smem:[#allocation0]]
  $region69: #{discriminator_forward.1} parent=0
    _
  %s10 = ssub.s32 1, %s8
  %s11 = scalar_select 0, %s10, %s8
  %v12 = vstv %s6
  %13 = vst [vmem:[#allocation3] sm:$0x1] %v12
  loop: start=0, step=1, limit=6
  $region2: #{discriminator_forward.1} parent=0 // loop_pre_header
    _
  $region3: #{discriminator_forward.1} parent=0 // loop_header
    %s15 = sphi 0, %s19
    %p16 = scmp.ge.s32.totalorder %s15, 6
    %s23 = sphi 0, %s23
    %s25 = sphi 0, %s23
    %s26 = sphi 0, %s25
    %s40 = sphi 0, %s26
    %s46 = sphi 0, %s48
    %s49 = sphi 0, %s46
    %s50 = sphi 0, %s49
    %s66 = sphi 0, %s50
    %s70 = sphi 0, %s70
    %s72 = sphi 0, %s70
    %s73 = sphi 0, %s72
    %s87 = sphi 0, %s73
    %s91 = sphi 0, %s91
    %s93 = sphi 0, %s91
    %s94 = sphi 0, %s93
    %s108 = sphi 0, %s94
    %s112 = sphi 0, %s112
    %s114 = sphi 0, %s112
    %s115 = sphi 0, %s114
    %s129 = sphi 0, %s115
    %s133 = sphi 0, %s133
    %s135 = sphi 0, %s133
    %s136 = sphi 0, %s135
    %s150 = sphi 0, %s136
    %s154 = sphi 0, %s154
    %s156 = sphi 0, %s154
    %s157 = sphi 0, %s156
    %s171 = sphi 0, %s157
    %s175 = sphi 0, %s175
    %s177 = sphi 0, %s175
    %s178 = sphi 0, %s177
    %s192 = sphi 0, %s178
  $region4: #{discriminator_forward.1} parent=0 // loop_header_branch
    %18 = sbr.rel (%p16) target = $region8
  $region5: #{discriminator_forward.1} parent=0 // loop_body
    %s20 = ssub.s32 %s15, 1
    %s21 = ssub.s32 %s15, 2
    %s22 = sadd.s32 %s15, 1
    %s24 = sadd.s32 %s23, 1
    %p27 = scmp.eq.s32.totalorder %s15, 3
    %p28 = scmp.ne.s32.totalorder %s23, %s25
    %p29 = scmp.eq.s32.totalorder %s15, 0
    %p30 = por %p28, %p29
    %p31 = scmp.ne.s32.totalorder %s23, %s25
    %p32 = scmp.eq.s32.totalorder %s20, 3
    %p33 = por %p31, %p32
    %p34 = scmp.ne.s32.totalorder %s25, %s26
    %p35 = scmp.eq.s32.totalorder %s20, 0
    %p36 = por %p34, %p35
    %p37 = scmp.ne.s32.totalorder %s25, %s26
    %p38 = scmp.eq.s32.totalorder %s21, 3
    %p39 = por %p37, %p38
    %p41 = scmp.ne.s32.totalorder %s26, %s40
    %p42 = scmp.eq.s32.totalorder %s21, 0
    %p43 = por %p41, %p42
    %s44 = ssub.s32 %s15, %s22
    %p45 = scmp.eq.s32.totalorder %s44, 0
    %s47 = sadd.s32 %s46, 1
    %s48 = scalar_select %p45, %s46, %s47
    %p51 = pneg %p45
    %p52 = scmp.eq.s32.totalorder %s15, 3
    %p53 = por %p51, %p52
    %p54 = scmp.ne.s32.totalorder %s46, %s49
    %p55 = scmp.eq.s32.totalorder %s15, 0
    %p56 = por %p54, %p55
    %p57 = scmp.ne.s32.totalorder %s46, %s49
    %p58 = scmp.eq.s32.totalorder %s20, 3
    %p59 = por %p57, %p58
    %p60 = scmp.ne.s32.totalorder %s49, %s50
    %p61 = scmp.eq.s32.totalorder %s20, 0
    %p62 = por %p60, %p61
    %p63 = scmp.ne.s32.totalorder %s49, %s50
    %p64 = scmp.eq.s32.totalorder %s21, 3
    %p65 = por %p63, %p64
    %p67 = scmp.ne.s32.totalorder %s50, %s66
    %p68 = scmp.eq.s32.totalorder %s21, 0
    %p69 = por %p67, %p68
    %s71 = sadd.s32 %s70, 1
    %p74 = scmp.eq.s32.totalorder %s15, 3
    %p75 = scmp.ne.s32.totalorder %s70, %s72
    %p76 = scmp.eq.s32.totalorder %s15, 0
    %p77 = por %p75, %p76
    %p78 = scmp.ne.s32.totalorder %s70, %s72
    %p79 = scmp.eq.s32.totalorder %s20, 3
    %p80 = por %p78, %p79
    %p81 = scmp.ne.s32.totalorder %s72, %s73
    %p82 = scmp.eq.s32.totalorder %s20, 0
    %p83 = por %p81, %p82
    %p84 = scmp.ne.s32.totalorder %s72, %s73
    %p85 = scmp.eq.s32.totalorder %s21, 3
    %p86 = por %p84, %p85
    %p88 = scmp.ne.s32.totalorder %s73, %s87
    %p89 = scmp.eq.s32.totalorder %s21, 0
    %p90 = por %p88, %p89
    %s92 = sadd.s32 %s91, 1
    %p95 = scmp.eq.s32.totalorder %s15, 3
    %p96 = scmp.ne.s32.totalorder %s91, %s93
    %p97 = scmp.eq.s32.totalorder %s15, 0
    %p98 = por %p96, %p97
    %p99 = scmp.ne.s32.totalorder %s91, %s93
    %p100 = scmp.eq.s32.totalorder %s20, 3
    %p101 = por %p99, %p100
    %p102 = scmp.ne.s32.totalorder %s93, %s94
    %p103 = scmp.eq.s32.totalorder %s20, 0
    %p104 = por %p102, %p103
    %p105 = scmp.ne.s32.totalorder %s93, %s94
    %p106 = scmp.eq.s32.totalorder %s21, 3
    %p107 = por %p105, %p106
    %p109 = scmp.ne.s32.totalorder %s94, %s108
    %p110 = scmp.eq.s32.totalorder %s21, 0
    %p111 = por %p109, %p110
    %s113 = sadd.s32 %s112, 1
    %p116 = scmp.eq.s32.totalorder %s15, 3
    %p117 = scmp.ne.s32.totalorder %s112, %s114
    %p118 = scmp.eq.s32.totalorder %s15, 0
    %p119 = por %p117, %p118
    %p120 = scmp.ne.s32.totalorder %s112, %s114
    %p121 = scmp.eq.s32.totalorder %s20, 3
    %p122 = por %p120, %p121
    %p123 = scmp.ne.s32.totalorder %s114, %s115
    %p124 = scmp.eq.s32.totalorder %s20, 0
    %p125 = por %p123, %p124
    %p126 = scmp.ne.s32.totalorder %s114, %s115
    %p127 = scmp.eq.s32.totalorder %s21, 3
    %p128 = por %p126, %p127
    %p130 = scmp.ne.s32.totalorder %s115, %s129
    %p131 = scmp.eq.s32.totalorder %s21, 0
    %p132 = por %p130, %p131
    %s134 = sadd.s32 %s133, 1
    %p137 = scmp.eq.s32.totalorder %s15, 3
    %p138 = scmp.ne.s32.totalorder %s133, %s135
    %p139 = scmp.eq.s32.totalorder %s15, 0
    %p140 = por %p138, %p139
    %p141 = scmp.ne.s32.totalorder %s133, %s135
    %p142 = scmp.eq.s32.totalorder %s20, 3
    %p143 = por %p141, %p142
    %p144 = scmp.ne.s32.totalorder %s135, %s136
    %p145 = scmp.eq.s32.totalorder %s20, 0
    %p146 = por %p144, %p145
    %p147 = scmp.ne.s32.totalorder %s135, %s136
    %p148 = scmp.eq.s32.totalorder %s21, 3
    %p149 = por %p147, %p148
    %p151 = scmp.ne.s32.totalorder %s136, %s150
    %p152 = scmp.eq.s32.totalorder %s21, 0
    %p153 = por %p151, %p152
    %s155 = sadd.s32 %s154, 1
    %p158 = scmp.eq.s32.totalorder %s15, 3
    %p159 = scmp.ne.s32.totalorder %s154, %s156
    %p160 = scmp.eq.s32.totalorder %s15, 0
    %p161 = por %p159, %p160
    %p162 = scmp.ne.s32.totalorder %s154, %s156
    %p163 = scmp.eq.s32.totalorder %s20, 3
    %p164 = por %p162, %p163
    %p165 = scmp.ne.s32.totalorder %s156, %s157
    %p166 = scmp.eq.s32.totalorder %s20, 0
    %p167 = por %p165, %p166
    %p168 = scmp.ne.s32.totalorder %s156, %s157
    %p169 = scmp.eq.s32.totalorder %s21, 3
    %p170 = por %p168, %p169
    %p172 = scmp.ne.s32.totalorder %s157, %s171
    %p173 = scmp.eq.s32.totalorder %s21, 0
    %p174 = por %p172, %p173
    %s176 = sadd.s32 %s175, 1
    %p179 = scmp.eq.s32.totalorder %s15, 3
    %p180 = scmp.ne.s32.totalorder %s175, %s177
    %p181 = scmp.eq.s32.totalorder %s15, 0
    %p182 = por %p180, %p181
    %p183 = scmp.ne.s32.totalorder %s175, %s177
    %p184 = scmp.eq.s32.totalorder %s20, 3
    %p185 = por %p183, %p184
    %p186 = scmp.ne.s32.totalorder %s177, %s178
    %p187 = scmp.eq.s32.totalorder %s20, 0
    %p188 = por %p186, %p187
    %p189 = scmp.ne.s32.totalorder %s177, %s178
    %p190 = scmp.eq.s32.totalorder %s21, 3
    %p191 = por %p189, %p190
    %p193 = scmp.ne.s32.totalorder %s178, %s192
    %p194 = scmp.eq.s32.totalorder %s21, 0
    %p195 = por %p193, %p194
    %p196 = scmp.le.s32.totalorder 1, %s15
    %p197 = scmp.lt.s32.totalorder %s15, 5
    %p198 = pnand %p196, %p197
    %p199 = pneg %p198
    // Predicated region
    $region9: #{discriminator_forward.1} parent=5 // pred_check
      _
    $region10: #{discriminator_forward.1} parent=5 // pred_check_branch
      %201 = sbr.rel (%p198) target = $region12
    $region11: #{discriminator_forward.1} parent=5 // pred_region
      %s202 = ssub.s32 %s15, 1
      // Predicated region
      $region13: #{discriminator_forward.1} parent=11 // pred_check
        %p203 = pneg %p36
      $region14: #{discriminator_forward.1} parent=11 // pred_check_branch
        %205 = sbr.rel (%p203) target = $region16
      $region15: #{discriminator_forward.1} parent=11 // pred_region
        _
      $region16: #{discriminator_forward.1} parent=11 // pred_fallthru
        _
      // Predicated region
      $region17: #{discriminator_forward.1} parent=11 // pred_check
        %p206 = pneg %p83
      $region18: #{discriminator_forward.1} parent=11 // pred_check_branch
        %208 = sbr.rel (%p206) target = $region20
      $region19: #{discriminator_forward.1} parent=11 // pred_region
        _
      $region20: #{discriminator_forward.1} parent=11 // pred_fallthru
        _
      // Predicated region
      $region21: #{discriminator_forward.1} parent=11 // pred_check
        %p209 = pneg %p104
      $region22: #{discriminator_forward.1} parent=11 // pred_check_branch
        %211 = sbr.rel (%p209) target = $region24
      $region23: #{discriminator_forward.1} parent=11 // pred_region
        _
      $region24: #{discriminator_forward.1} parent=11 // pred_fallthru
        _
      // Predicated region
      $region25: #{discriminator_forward.1} parent=11 // pred_check
        %p212 = pneg %p125
      $region26: #{discriminator_forward.1} parent=11 // pred_check_branch
        %214 = sbr.rel (%p212) target = $region28
      $region27: #{discriminator_forward.1} parent=11 // pred_region
        _
      $region28: #{discriminator_forward.1} parent=11 // pred_fallthru
        _
      // Predicated region
      $region29: #{discriminator_forward.1} parent=11 // pred_check
        %p215 = pneg %p146
      $region30: #{discriminator_forward.1} parent=11 // pred_check_branch
        %217 = sbr.rel (%p215) target = $region32
      $region31: #{discriminator_forward.1} parent=11 // pred_region
        _
      $region32: #{discriminator_forward.1} parent=11 // pred_fallthru
        _
      // Predicated region
      $region33: #{discriminator_forward.1} parent=11 // pred_check
        %p218 = pneg %p167
      $region34: #{discriminator_forward.1} parent=11 // pred_check_branch
        %220 = sbr.rel (%p218) target = $region36
      $region35: #{discriminator_forward.1} parent=11 // pred_region
        _
      $region36: #{discriminator_forward.1} parent=11 // pred_fallthru
        _
    $region12: #{discriminator_forward.1} parent=5 // pred_fallthru
      _
    %p221 = scmp.lt.s32.totalorder %s15, 4
    // Predicated region
    $region37: #{discriminator_forward.1} parent=5 // pred_check
      %p222 = pneg %p221
    $region38: #{discriminator_forward.1} parent=5 // pred_check_branch
      %224 = sbr.rel (%p222) target = $region40
    $region39: #{discriminator_forward.1} parent=5 // pred_region
      // Predicated region
      $region41: #{discriminator_forward.1} parent=39 // pred_check
        %p225 = pneg %p56
      $region42: #{discriminator_forward.1} parent=39 // pred_check_branch
        %227 = sbr.rel (%p225) target = $region44
      $region43: #{discriminator_forward.1} parent=39 // pred_region
        %s228 = smul.u32 784, %s15
        %p229 = scmp.lt.s32.totalorder %s228, 3135
        %s230 = scalar_select %p229, %s228, 3135
        %s231 = smul.addr %s230, 4
        %s232 = smul.addr %s231, 4
        %s233 = scalar_lea.vmem %s1, %s232
        %s234 = smul.u32 784, %s15
      $region44: #{discriminator_forward.1} parent=39 // pred_fallthru
        _
    $region40: #{discriminator_forward.1} parent=5 // pred_fallthru
      _
    %p235 = scmp.le.s32.totalorder 1, %s15
    %p236 = scmp.lt.s32.totalorder %s15, 5
    %p237 = pnand %p235, %p236
    %p238 = pneg %p237
    // Predicated region
    $region45: #{discriminator_forward.1} parent=5 // pred_check
      _
    $region46: #{discriminator_forward.1} parent=5 // pred_check_branch
      %240 = sbr.rel (%p237) target = $region48
    $region47: #{discriminator_forward.1} parent=5 // pred_region
      %s241 = ssub.s32 %s15, 1
      %p242 = pneg %p36
      %p243 = pneg %p33
      %s244 = smul.u32 784, %s20
      %p245 = scmp.lt.s32.totalorder %s244, 3135
      %s246 = scalar_select %p245, %s244, 3135
      %s247 = smul.addr %s246, 4
      %s248 = smul.addr %s247, 4
      %s249 = scalar_lea.vmem %s1, %s248
      %p250 = pneg %p62
      %p251 = pneg %p59
      %p252 = pneg %p83
      %p253 = pneg %p80
      %p254 = pneg %p104
      %p255 = pneg %p101
      %p256 = pneg %p125
      %p257 = pneg %p122
      %p258 = pneg %p146
      %p259 = pneg %p143
      %p260 = pneg %p167
      %p261 = pneg %p164
      %p262 = pneg %p188
      %p263 = pneg %p185
      %s264 = smul.u32 784, %s20
      %p265 = scmp.lt.s32.totalorder %s264, 3135
      %s266 = scalar_select %p265, %s264, 3135
      %s267 = smul.addr %s266, 4
      %s268 = smul.addr %s267, 4
      %s269 = scalar_lea.vmem %s1, %s268
      %s270 = smul.u32 784, %s20
      %p272 = scmp.eq.s32.totalorder %s20, 0
      // Predicated region
      $region49: #{discriminator_forward.1} parent=47 // pred_check
        %p273 = pneg %p272
      $region50: #{discriminator_forward.1} parent=47 // pred_check_branch
        %275 = sbr.rel (%p273) target = $region52
      $region51: #{discriminator_forward.1} parent=47 // pred_region
        %v276 = vld [vmem:[%s2] sm:$0xf]
        %v278 = vlaneseq
        %v279 = vshrl.u32 %v278, 7
        %v280 = vsub.s32 0, %v279
        %v281 = vrot.slane %v276, %v280
        %v282 = vlaneseq
        %v283 = vshrl.u32 %v282, 7
        %v284 = vsub.s32 1, %v283
        %v285 = vrot.slane %v276, %v284
        %v286 = vlaneseq
        %v287 = vshrl.u32 %v286, 7
        %v288 = vsub.s32 2, %v287
        %v289 = vrot.slane %v276, %v288
        %v290 = vlaneseq
        %v291 = vshrl.u32 %v290, 7
        %v292 = vsub.s32 3, %v291
        %v293 = vrot.slane %v276, %v292
        %v294 = vcombine.low %v281, %v285
        %v295 = vcombine.low %v289, %v293
        %v297 = vunpack.c.l.s4 1983009808
        %v298 = vunpack.c.0.s8 %v297
        %v299 = vlaneseq
        %v300 = vshrl.u32 %v299, 7
        %v301 = vsub.s32 %v298, %v300
        %v302 = vrot.slane %v294, %v301
        %v304 = vunpack.c.l.s4 1983009808
        %v305 = vunpack.c.0.s8 %v304
        %v306 = vlaneseq
        %v307 = vshrl.u32 %v306, 7
        %v308 = vsub.s32 %v305, %v307
        %v309 = vrot.slane %v295, %v308
        %v310 = vcombine.low %v302, %v309
        %312 = vst [vmem:[#allocation2] sm:$0xff] %v310
      $region52: #{discriminator_forward.1} parent=47 // pred_fallthru
        _
      %s313 = smul.u32 %s20, 6272
      %s314 = sshra.s32 %s313, 7
      %s315 = sand.u32 %s313, 127
      %s316 = scalar_lea.vmem %s0, %s314
      %v317 = vld [vmem:[%s316] sm:$0xff]
      %v318 = vld [vmem:[%s316 + $0x8] sm:$0xff]
      %v319 = vld [vmem:[%s316 + $0x10] sm:$0xff]
      %v320 = vld [vmem:[%s316 + $0x18] sm:$0xff]
      %v321 = vld [vmem:[%s316 + $0x20] sm:$0xff]
      %v322 = vld [vmem:[%s316 + $0x28] sm:$0xff]
      %v323 = vld [vmem:[%s316 + $0x30] sm:$0x1]
      %v324 = vld [vmem:[#allocation2] sm:$0xff]
      %v325 = vld [vmem:[%s269] sm:$0xff]
      %v326 = vld [vmem:[%s269 + $0x8] sm:$0xff]
      %v327 = vld [vmem:[%s269 + $0x10] sm:$0xff]
      %v328 = vld [vmem:[%s269 + $0x18] sm:$0xff]
      %v329 = vld [vmem:[%s269 + $0x20] sm:$0xff]
      %v330 = vld [vmem:[%s269 + $0x28] sm:$0xff]
      %v331 = vld [vmem:[%s269 + $0x30] sm:$0xff]
      %v332 = vld [vmem:[%s269 + $0x38] sm:$0xff]
      %v333 = vld [vmem:[%s269 + $0x40] sm:$0xff]
      %v334 = vld [vmem:[%s269 + $0x48] sm:$0xff]
      %v335 = vld [vmem:[%s269 + $0x50] sm:$0xff]
      %v336 = vld [vmem:[%s269 + $0x58] sm:$0xff]
      %v337 = vld [vmem:[%s269 + $0x60] sm:$0xff]
      %v338 = vld [vmem:[%s269 + $0x68] sm:$0xff]
      %v339 = vld [vmem:[%s269 + $0x70] sm:$0xff]
      %v340 = vld [vmem:[%s269 + $0x78] sm:$0xff]
      %v341 = vld [vmem:[%s269 + $0x80] sm:$0xff]
      %v342 = vld [vmem:[%s269 + $0x88] sm:$0xff]
      %v343 = vld [vmem:[%s269 + $0x90] sm:$0xff]
      %v344 = vld [vmem:[%s269 + $0x98] sm:$0xff]
      %v345 = vld [vmem:[%s269 + $0xa0] sm:$0xff]
      %v346 = vld [vmem:[%s269 + $0xa8] sm:$0xff]
      %v347 = vld [vmem:[%s269 + $0xb0] sm:$0xff]
      %v348 = vld [vmem:[%s269 + $0xb8] sm:$0xff]
      %v349 = vld [vmem:[%s269 + $0xc0] sm:$0xff]
      %v350 = vld [vmem:[%s269 + $0xc8] sm:$0xff]
      %v351 = vld [vmem:[%s269 + $0xd0] sm:$0xff]
      %v352 = vld [vmem:[%s269 + $0xd8] sm:$0xff]
      %v353 = vld [vmem:[%s269 + $0xe0] sm:$0xff]
      %v354 = vld [vmem:[%s269 + $0xe8] sm:$0xff]
      %v355 = vld [vmem:[%s269 + $0xf0] sm:$0xff]
      %v356 = vld [vmem:[%s269 + $0xf8] sm:$0xff]
      %v357 = vld [vmem:[%s269 + $0x100] sm:$0xff]
      %v358 = vld [vmem:[%s269 + $0x108] sm:$0xff]
      %v359 = vld [vmem:[%s269 + $0x110] sm:$0xff]
      %v360 = vld [vmem:[%s269 + $0x118] sm:$0xff]
      %v361 = vld [vmem:[%s269 + $0x120] sm:$0xff]
      %v362 = vld [vmem:[%s269 + $0x128] sm:$0xff]
      %v363 = vld [vmem:[%s269 + $0x130] sm:$0xff]
      %v364 = vld [vmem:[%s269 + $0x138] sm:$0xff]
      %v365 = vld [vmem:[%s269 + $0x140] sm:$0xff]
      %v366 = vld [vmem:[%s269 + $0x148] sm:$0xff]
      %v367 = vld [vmem:[%s269 + $0x150] sm:$0xff]
      %v368 = vld [vmem:[%s269 + $0x158] sm:$0xff]
      %v369 = vld [vmem:[%s269 + $0x160] sm:$0xff]
      %v370 = vld [vmem:[%s269 + $0x168] sm:$0xff]
      %v371 = vld [vmem:[%s269 + $0x170] sm:$0xff]
      %v372 = vld [vmem:[%s269 + $0x178] sm:$0xff]
      %v373 = vld [vmem:[%s269 + $0x180] sm:$0xff]
      %v374 = vld [vmem:[%s269 + $0x188] sm:$0xff]
      %v375 = vld [vmem:[%s269 + $0x190] sm:$0xff]
      %v376 = vld [vmem:[%s269 + $0x198] sm:$0xff]
      %v377 = vld [vmem:[%s269 + $0x1a0] sm:$0xff]
      %v378 = vld [vmem:[%s269 + $0x1a8] sm:$0xff]
      %v379 = vld [vmem:[%s269 + $0x1b0] sm:$0xff]
      %v380 = vld [vmem:[%s269 + $0x1b8] sm:$0xff]
      %v381 = vld [vmem:[%s269 + $0x1c0] sm:$0xff]
      %v382 = vld [vmem:[%s269 + $0x1c8] sm:$0xff]
      %v383 = vld [vmem:[%s269 + $0x1d0] sm:$0xff]
      %v384 = vld [vmem:[%s269 + $0x1d8] sm:$0xff]
      %v385 = vld [vmem:[%s269 + $0x1e0] sm:$0xff]
      %v386 = vld [vmem:[%s269 + $0x1e8] sm:$0xff]
      %v387 = vld [vmem:[%s269 + $0x1f0] sm:$0xff]
      %v388 = vld [vmem:[%s269 + $0x1f8] sm:$0xff]
      %v389 = vld [vmem:[%s269 + $0x200] sm:$0xff]
      %v390 = vld [vmem:[%s269 + $0x208] sm:$0xff]
      %v391 = vld [vmem:[%s269 + $0x210] sm:$0xff]
      %v392 = vld [vmem:[%s269 + $0x218] sm:$0xff]
      %v393 = vld [vmem:[%s269 + $0x220] sm:$0xff]
      %v394 = vld [vmem:[%s269 + $0x228] sm:$0xff]
      %v395 = vld [vmem:[%s269 + $0x230] sm:$0xff]
      %v396 = vld [vmem:[%s269 + $0x238] sm:$0xff]
      %v397 = vld [vmem:[%s269 + $0x240] sm:$0xff]
      %v398 = vld [vmem:[%s269 + $0x248] sm:$0xff]
      %v399 = vld [vmem:[%s269 + $0x250] sm:$0xff]
      %v400 = vld [vmem:[%s269 + $0x258] sm:$0xff]
      %v401 = vld [vmem:[%s269 + $0x260] sm:$0xff]
      %v402 = vld [vmem:[%s269 + $0x268] sm:$0xff]
      %v403 = vld [vmem:[%s269 + $0x270] sm:$0xff]
      %v404 = vld [vmem:[%s269 + $0x278] sm:$0xff]
      %v405 = vld [vmem:[%s269 + $0x280] sm:$0xff]
      %v406 = vld [vmem:[%s269 + $0x288] sm:$0xff]
      %v407 = vld [vmem:[%s269 + $0x290] sm:$0xff]
      %v408 = vld [vmem:[%s269 + $0x298] sm:$0xff]
      %v409 = vld [vmem:[%s269 + $0x2a0] sm:$0xff]
      %v410 = vld [vmem:[%s269 + $0x2a8] sm:$0xff]
      %v411 = vld [vmem:[%s269 + $0x2b0] sm:$0xff]
      %v412 = vld [vmem:[%s269 + $0x2b8] sm:$0xff]
      %v413 = vld [vmem:[%s269 + $0x2c0] sm:$0xff]
      %v414 = vld [vmem:[%s269 + $0x2c8] sm:$0xff]
      %v415 = vld [vmem:[%s269 + $0x2d0] sm:$0xff]
      %v416 = vld [vmem:[%s269 + $0x2d8] sm:$0xff]
      %v417 = vld [vmem:[%s269 + $0x2e0] sm:$0xff]
      %v418 = vld [vmem:[%s269 + $0x2e8] sm:$0xff]
      %v419 = vld [vmem:[%s269 + $0x2f0] sm:$0xff]
      %v420 = vld [vmem:[%s269 + $0x2f8] sm:$0xff]
      %v421 = vld [vmem:[%s269 + $0x300] sm:$0xff]
      %v422 = vld [vmem:[%s269 + $0x308] sm:$0xff]
      %v423 = vld [vmem:[%s269 + $0x310] sm:$0xff]
      %v424 = vld [vmem:[%s269 + $0x318] sm:$0xff]
      %v425 = vld [vmem:[%s269 + $0x320] sm:$0xff]
      %v426 = vld [vmem:[%s269 + $0x328] sm:$0xff]
      %v427 = vld [vmem:[%s269 + $0x330] sm:$0xff]
      %v428 = vld [vmem:[%s269 + $0x338] sm:$0xff]
      %v429 = vld [vmem:[%s269 + $0x340] sm:$0xff]
      %v430 = vld [vmem:[%s269 + $0x348] sm:$0xff]
      %v431 = vld [vmem:[%s269 + $0x350] sm:$0xff]
      %v432 = vld [vmem:[%s269 + $0x358] sm:$0xff]
      %v433 = vld [vmem:[%s269 + $0x360] sm:$0xff]
      %v434 = vld [vmem:[%s269 + $0x368] sm:$0xff]
      %v435 = vld [vmem:[%s269 + $0x370] sm:$0xff]
      %v436 = vld [vmem:[%s269 + $0x378] sm:$0xff]
      %v437 = vld [vmem:[%s269 + $0x380] sm:$0xff]
      %v438 = vld [vmem:[%s269 + $0x388] sm:$0xff]
      %v439 = vld [vmem:[%s269 + $0x390] sm:$0xff]
      %v440 = vld [vmem:[%s269 + $0x398] sm:$0xff]
      %v441 = vld [vmem:[%s269 + $0x3a0] sm:$0xff]
      %v442 = vld [vmem:[%s269 + $0x3a8] sm:$0xff]
      %v443 = vld [vmem:[%s269 + $0x3b0] sm:$0xff]
      %v444 = vld [vmem:[%s269 + $0x3b8] sm:$0xff]
      %v445 = vld [vmem:[%s269 + $0x3c0] sm:$0xff]
      %v446 = vld [vmem:[%s269 + $0x3c8] sm:$0xff]
      %v447 = vld [vmem:[%s269 + $0x3d0] sm:$0xff]
      %v448 = vld [vmem:[%s269 + $0x3d8] sm:$0xff]
      %v449 = vld [vmem:[%s269 + $0x3e0] sm:$0xff]
      %v450 = vld [vmem:[%s269 + $0x3e8] sm:$0xff]
      %v451 = vld [vmem:[%s269 + $0x3f0] sm:$0xff]
      %v452 = vld [vmem:[%s269 + $0x3f8] sm:$0xff]
      %v453 = vld [vmem:[%s269 + $0x400] sm:$0xff]
      %v454 = vld [vmem:[%s269 + $0x408] sm:$0xff]
      %v455 = vld [vmem:[%s269 + $0x410] sm:$0xff]
      %v456 = vld [vmem:[%s269 + $0x418] sm:$0xff]
      %v457 = vld [vmem:[%s269 + $0x420] sm:$0xff]
      %v458 = vld [vmem:[%s269 + $0x428] sm:$0xff]
      %v459 = vld [vmem:[%s269 + $0x430] sm:$0xff]
      %v460 = vld [vmem:[%s269 + $0x438] sm:$0xff]
      %v461 = vld [vmem:[%s269 + $0x440] sm:$0xff]
      %v462 = vld [vmem:[%s269 + $0x448] sm:$0xff]
      %v463 = vld [vmem:[%s269 + $0x450] sm:$0xff]
      %v464 = vld [vmem:[%s269 + $0x458] sm:$0xff]
      %v465 = vld [vmem:[%s269 + $0x460] sm:$0xff]
      %v466 = vld [vmem:[%s269 + $0x468] sm:$0xff]
      %v467 = vld [vmem:[%s269 + $0x470] sm:$0xff]
      %v468 = vld [vmem:[%s269 + $0x478] sm:$0xff]
      %v469 = vld [vmem:[%s269 + $0x480] sm:$0xff]
      %v470 = vld [vmem:[%s269 + $0x488] sm:$0xff]
      %v471 = vld [vmem:[%s269 + $0x490] sm:$0xff]
      %v472 = vld [vmem:[%s269 + $0x498] sm:$0xff]
      %v473 = vld [vmem:[%s269 + $0x4a0] sm:$0xff]
      %v474 = vld [vmem:[%s269 + $0x4a8] sm:$0xff]
      %v475 = vld [vmem:[%s269 + $0x4b0] sm:$0xff]
      %v476 = vld [vmem:[%s269 + $0x4b8] sm:$0xff]
      %v477 = vld [vmem:[%s269 + $0x4c0] sm:$0xff]
      %v478 = vld [vmem:[%s269 + $0x4c8] sm:$0xff]
      %v479 = vld [vmem:[%s269 + $0x4d0] sm:$0xff]
      %v480 = vld [vmem:[%s269 + $0x4d8] sm:$0xff]
      %v481 = vld [vmem:[%s269 + $0x4e0] sm:$0xff]
      %v482 = vld [vmem:[%s269 + $0x4e8] sm:$0xff]
      %v483 = vld [vmem:[%s269 + $0x4f0] sm:$0xff]
      %v484 = vld [vmem:[%s269 + $0x4f8] sm:$0xff]
      %v485 = vld [vmem:[%s269 + $0x500] sm:$0xff]
      %v486 = vld [vmem:[%s269 + $0x508] sm:$0xff]
      %v487 = vld [vmem:[%s269 + $0x510] sm:$0xff]
      %v488 = vld [vmem:[%s269 + $0x518] sm:$0xff]
      %v489 = vld [vmem:[%s269 + $0x520] sm:$0xff]
      %v490 = vld [vmem:[%s269 + $0x528] sm:$0xff]
      %v491 = vld [vmem:[%s269 + $0x530] sm:$0xff]
      %v492 = vld [vmem:[%s269 + $0x538] sm:$0xff]
      %v493 = vld [vmem:[%s269 + $0x540] sm:$0xff]
      %v494 = vld [vmem:[%s269 + $0x548] sm:$0xff]
      %v495 = vld [vmem:[%s269 + $0x550] sm:$0xff]
      %v496 = vld [vmem:[%s269 + $0x558] sm:$0xff]
      %v497 = vld [vmem:[%s269 + $0x560] sm:$0xff]
      %v498 = vld [vmem:[%s269 + $0x568] sm:$0xff]
      %v499 = vld [vmem:[%s269 + $0x570] sm:$0xff]
      %v500 = vld [vmem:[%s269 + $0x578] sm:$0xff]
      %v501 = vld [vmem:[%s269 + $0x580] sm:$0xff]
      %v502 = vld [vmem:[%s269 + $0x588] sm:$0xff]
      %v503 = vld [vmem:[%s269 + $0x590] sm:$0xff]
      %v504 = vld [vmem:[%s269 + $0x598] sm:$0xff]
      %v505 = vld [vmem:[%s269 + $0x5a0] sm:$0xff]
      %v506 = vld [vmem:[%s269 + $0x5a8] sm:$0xff]
      %v507 = vld [vmem:[%s269 + $0x5b0] sm:$0xff]
      %v508 = vld [vmem:[%s269 + $0x5b8] sm:$0xff]
      %v509 = vld [vmem:[%s269 + $0x5c0] sm:$0xff]
      %v510 = vld [vmem:[%s269 + $0x5c8] sm:$0xff]
      %v511 = vld [vmem:[%s269 + $0x5d0] sm:$0xff]
      %v512 = vld [vmem:[%s269 + $0x5d8] sm:$0xff]
      %v513 = vld [vmem:[%s269 + $0x5e0] sm:$0xff]
      %v514 = vld [vmem:[%s269 + $0x5e8] sm:$0xff]
      %v515 = vld [vmem:[%s269 + $0x5f0] sm:$0xff]
      %v516 = vld [vmem:[%s269 + $0x5f8] sm:$0xff]
      %v517 = vld [vmem:[%s269 + $0x600] sm:$0xff]
      %v518 = vld [vmem:[%s269 + $0x608] sm:$0xff]
      %v519 = vld [vmem:[%s269 + $0x610] sm:$0xff]
      %v520 = vld [vmem:[%s269 + $0x618] sm:$0xff]
      %v521 = vld [vmem:[%s269 + $0x620] sm:$0xff]
      %v522 = vld [vmem:[%s269 + $0x628] sm:$0xff]
      %v523 = vld [vmem:[%s269 + $0x630] sm:$0xff]
      %v524 = vld [vmem:[%s269 + $0x638] sm:$0xff]
      %v525 = vld [vmem:[%s269 + $0x640] sm:$0xff]
      %v526 = vld [vmem:[%s269 + $0x648] sm:$0xff]
      %v527 = vld [vmem:[%s269 + $0x650] sm:$0xff]
      %v528 = vld [vmem:[%s269 + $0x658] sm:$0xff]
      %v529 = vld [vmem:[%s269 + $0x660] sm:$0xff]
      %v530 = vld [vmem:[%s269 + $0x668] sm:$0xff]
      %v531 = vld [vmem:[%s269 + $0x670] sm:$0xff]
      %v532 = vld [vmem:[%s269 + $0x678] sm:$0xff]
      %v533 = vld [vmem:[%s269 + $0x680] sm:$0xff]
      %v534 = vld [vmem:[%s269 + $0x688] sm:$0xff]
      %v535 = vld [vmem:[%s269 + $0x690] sm:$0xff]
      %v536 = vld [vmem:[%s269 + $0x698] sm:$0xff]
      %v537 = vld [vmem:[%s269 + $0x6a0] sm:$0xff]
      %v538 = vld [vmem:[%s269 + $0x6a8] sm:$0xff]
      %v539 = vld [vmem:[%s269 + $0x6b0] sm:$0xff]
      %v540 = vld [vmem:[%s269 + $0x6b8] sm:$0xff]
      %v541 = vld [vmem:[%s269 + $0x6c0] sm:$0xff]
      %v542 = vld [vmem:[%s269 + $0x6c8] sm:$0xff]
      %v543 = vld [vmem:[%s269 + $0x6d0] sm:$0xff]
      %v544 = vld [vmem:[%s269 + $0x6d8] sm:$0xff]
      %v545 = vld [vmem:[%s269 + $0x6e0] sm:$0xff]
      %v546 = vld [vmem:[%s269 + $0x6e8] sm:$0xff]
      %v547 = vld [vmem:[%s269 + $0x6f0] sm:$0xff]
      %v548 = vld [vmem:[%s269 + $0x6f8] sm:$0xff]
      %v549 = vld [vmem:[%s269 + $0x700] sm:$0xff]
      %v550 = vld [vmem:[%s269 + $0x708] sm:$0xff]
      %v551 = vld [vmem:[%s269 + $0x710] sm:$0xff]
      %v552 = vld [vmem:[%s269 + $0x718] sm:$0xff]
      %v553 = vld [vmem:[%s269 + $0x720] sm:$0xff]
      %v554 = vld [vmem:[%s269 + $0x728] sm:$0xff]
      %v555 = vld [vmem:[%s269 + $0x730] sm:$0xff]
      %v556 = vld [vmem:[%s269 + $0x738] sm:$0xff]
      %v557 = vld [vmem:[%s269 + $0x740] sm:$0xff]
      %v558 = vld [vmem:[%s269 + $0x748] sm:$0xff]
      %v559 = vld [vmem:[%s269 + $0x750] sm:$0xff]
      %v560 = vld [vmem:[%s269 + $0x758] sm:$0xff]
      %v561 = vld [vmem:[%s269 + $0x760] sm:$0xff]
      %v562 = vld [vmem:[%s269 + $0x768] sm:$0xff]
      %v563 = vld [vmem:[%s269 + $0x770] sm:$0xff]
      %v564 = vld [vmem:[%s269 + $0x778] sm:$0xff]
      %v565 = vld [vmem:[%s269 + $0x780] sm:$0xff]
      %v566 = vld [vmem:[%s269 + $0x788] sm:$0xff]
      %v567 = vld [vmem:[%s269 + $0x790] sm:$0xff]
      %v568 = vld [vmem:[%s269 + $0x798] sm:$0xff]
      %v569 = vld [vmem:[%s269 + $0x7a0] sm:$0xff]
      %v570 = vld [vmem:[%s269 + $0x7a8] sm:$0xff]
      %v571 = vld [vmem:[%s269 + $0x7b0] sm:$0xff]
      %v572 = vld [vmem:[%s269 + $0x7b8] sm:$0xff]
      %v573 = vld [vmem:[%s269 + $0x7c0] sm:$0xff]
      %v574 = vld [vmem:[%s269 + $0x7c8] sm:$0xff]
      %v575 = vld [vmem:[%s269 + $0x7d0] sm:$0xff]
      %v576 = vld [vmem:[%s269 + $0x7d8] sm:$0xff]
      %v577 = vld [vmem:[%s269 + $0x7e0] sm:$0xff]
      %v578 = vld [vmem:[%s269 + $0x7e8] sm:$0xff]
      %v579 = vld [vmem:[%s269 + $0x7f0] sm:$0xff]
      %v580 = vld [vmem:[%s269 + $0x7f8] sm:$0xff]
      %v581 = vld [vmem:[%s269 + $0x800] sm:$0xff]
      %v582 = vld [vmem:[%s269 + $0x808] sm:$0xff]
      %v583 = vld [vmem:[%s269 + $0x810] sm:$0xff]
      %v584 = vld [vmem:[%s269 + $0x818] sm:$0xff]
      %v585 = vld [vmem:[%s269 + $0x820] sm:$0xff]
      %v586 = vld [vmem:[%s269 + $0x828] sm:$0xff]
      %v587 = vld [vmem:[%s269 + $0x830] sm:$0xff]
      %v588 = vld [vmem:[%s269 + $0x838] sm:$0xff]
      %v589 = vld [vmem:[%s269 + $0x840] sm:$0xff]
      %v590 = vld [vmem:[%s269 + $0x848] sm:$0xff]
      %v591 = vld [vmem:[%s269 + $0x850] sm:$0xff]
      %v592 = vld [vmem:[%s269 + $0x858] sm:$0xff]
      %v593 = vld [vmem:[%s269 + $0x860] sm:$0xff]
      %v594 = vld [vmem:[%s269 + $0x868] sm:$0xff]
      %v595 = vld [vmem:[%s269 + $0x870] sm:$0xff]
      %v596 = vld [vmem:[%s269 + $0x878] sm:$0xff]
      %v597 = vld [vmem:[%s269 + $0x880] sm:$0xff]
      %v598 = vld [vmem:[%s269 + $0x888] sm:$0xff]
      %v599 = vld [vmem:[%s269 + $0x890] sm:$0xff]
      %v600 = vld [vmem:[%s269 + $0x898] sm:$0xff]
      %v601 = vld [vmem:[%s269 + $0x8a0] sm:$0xff]
      %v602 = vld [vmem:[%s269 + $0x8a8] sm:$0xff]
      %v603 = vld [vmem:[%s269 + $0x8b0] sm:$0xff]
      %v604 = vld [vmem:[%s269 + $0x8b8] sm:$0xff]
      %v605 = vld [vmem:[%s269 + $0x8c0] sm:$0xff]
      %v606 = vld [vmem:[%s269 + $0x8c8] sm:$0xff]
      %v607 = vld [vmem:[%s269 + $0x8d0] sm:$0xff]
      %v608 = vld [vmem:[%s269 + $0x8d8] sm:$0xff]
      %v609 = vld [vmem:[%s269 + $0x8e0] sm:$0xff]
      %v610 = vld [vmem:[%s269 + $0x8e8] sm:$0xff]
      %v611 = vld [vmem:[%s269 + $0x8f0] sm:$0xff]
      %v612 = vld [vmem:[%s269 + $0x8f8] sm:$0xff]
      %v613 = vld [vmem:[%s269 + $0x900] sm:$0xff]
      %v614 = vld [vmem:[%s269 + $0x908] sm:$0xff]
      %v615 = vld [vmem:[%s269 + $0x910] sm:$0xff]
      %v616 = vld [vmem:[%s269 + $0x918] sm:$0xff]
      %v617 = vld [vmem:[%s269 + $0x920] sm:$0xff]
      %v618 = vld [vmem:[%s269 + $0x928] sm:$0xff]
      %v619 = vld [vmem:[%s269 + $0x930] sm:$0xff]
      %v620 = vld [vmem:[%s269 + $0x938] sm:$0xff]
      %v621 = vld [vmem:[%s269 + $0x940] sm:$0xff]
      %v622 = vld [vmem:[%s269 + $0x948] sm:$0xff]
      %v623 = vld [vmem:[%s269 + $0x950] sm:$0xff]
      %v624 = vld [vmem:[%s269 + $0x958] sm:$0xff]
      %v625 = vld [vmem:[%s269 + $0x960] sm:$0xff]
      %v626 = vld [vmem:[%s269 + $0x968] sm:$0xff]
      %v627 = vld [vmem:[%s269 + $0x970] sm:$0xff]
      %v628 = vld [vmem:[%s269 + $0x978] sm:$0xff]
      %v629 = vld [vmem:[%s269 + $0x980] sm:$0xff]
      %v630 = vld [vmem:[%s269 + $0x988] sm:$0xff]
      %v631 = vld [vmem:[%s269 + $0x990] sm:$0xff]
      %v632 = vld [vmem:[%s269 + $0x998] sm:$0xff]
      %v633 = vld [vmem:[%s269 + $0x9a0] sm:$0xff]
      %v634 = vld [vmem:[%s269 + $0x9a8] sm:$0xff]
      %v635 = vld [vmem:[%s269 + $0x9b0] sm:$0xff]
      %v636 = vld [vmem:[%s269 + $0x9b8] sm:$0xff]
      %v637 = vld [vmem:[%s269 + $0x9c0] sm:$0xff]
      %v638 = vld [vmem:[%s269 + $0x9c8] sm:$0xff]
      %v639 = vld [vmem:[%s269 + $0x9d0] sm:$0xff]
      %v640 = vld [vmem:[%s269 + $0x9d8] sm:$0xff]
      %v641 = vld [vmem:[%s269 + $0x9e0] sm:$0xff]
      %v642 = vld [vmem:[%s269 + $0x9e8] sm:$0xff]
      %v643 = vld [vmem:[%s269 + $0x9f0] sm:$0xff]
      %v644 = vld [vmem:[%s269 + $0x9f8] sm:$0xff]
      %v645 = vld [vmem:[%s269 + $0xa00] sm:$0xff]
      %v646 = vld [vmem:[%s269 + $0xa08] sm:$0xff]
      %v647 = vld [vmem:[%s269 + $0xa10] sm:$0xff]
      %v648 = vld [vmem:[%s269 + $0xa18] sm:$0xff]
      %v649 = vld [vmem:[%s269 + $0xa20] sm:$0xff]
      %v650 = vld [vmem:[%s269 + $0xa28] sm:$0xff]
      %v651 = vld [vmem:[%s269 + $0xa30] sm:$0xff]
      %v652 = vld [vmem:[%s269 + $0xa38] sm:$0xff]
      %v653 = vld [vmem:[%s269 + $0xa40] sm:$0xff]
      %v654 = vld [vmem:[%s269 + $0xa48] sm:$0xff]
      %v655 = vld [vmem:[%s269 + $0xa50] sm:$0xff]
      %v656 = vld [vmem:[%s269 + $0xa58] sm:$0xff]
      %v657 = vld [vmem:[%s269 + $0xa60] sm:$0xff]
      %v658 = vld [vmem:[%s269 + $0xa68] sm:$0xff]
      %v659 = vld [vmem:[%s269 + $0xa70] sm:$0xff]
      %v660 = vld [vmem:[%s269 + $0xa78] sm:$0xff]
      %v661 = vld [vmem:[%s269 + $0xa80] sm:$0xff]
      %v662 = vld [vmem:[%s269 + $0xa88] sm:$0xff]
      %v663 = vld [vmem:[%s269 + $0xa90] sm:$0xff]
      %v664 = vld [vmem:[%s269 + $0xa98] sm:$0xff]
      %v665 = vld [vmem:[%s269 + $0xaa0] sm:$0xff]
      %v666 = vld [vmem:[%s269 + $0xaa8] sm:$0xff]
      %v667 = vld [vmem:[%s269 + $0xab0] sm:$0xff]
      %v668 = vld [vmem:[%s269 + $0xab8] sm:$0xff]
      %v669 = vld [vmem:[%s269 + $0xac0] sm:$0xff]
      %v670 = vld [vmem:[%s269 + $0xac8] sm:$0xff]
      %v671 = vld [vmem:[%s269 + $0xad0] sm:$0xff]
      %v672 = vld [vmem:[%s269 + $0xad8] sm:$0xff]
      %v673 = vld [vmem:[%s269 + $0xae0] sm:$0xff]
      %v674 = vld [vmem:[%s269 + $0xae8] sm:$0xff]
      %v675 = vld [vmem:[%s269 + $0xaf0] sm:$0xff]
      %v676 = vld [vmem:[%s269 + $0xaf8] sm:$0xff]
      %v677 = vld [vmem:[%s269 + $0xb00] sm:$0xff]
      %v678 = vld [vmem:[%s269 + $0xb08] sm:$0xff]
      %v679 = vld [vmem:[%s269 + $0xb10] sm:$0xff]
      %v680 = vld [vmem:[%s269 + $0xb18] sm:$0xff]
      %v681 = vld [vmem:[%s269 + $0xb20] sm:$0xff]
      %v682 = vld [vmem:[%s269 + $0xb28] sm:$0xff]
      %v683 = vld [vmem:[%s269 + $0xb30] sm:$0xff]
      %v684 = vld [vmem:[%s269 + $0xb38] sm:$0xff]
      %v685 = vld [vmem:[%s269 + $0xb40] sm:$0xff]
      %v686 = vld [vmem:[%s269 + $0xb48] sm:$0xff]
      %v687 = vld [vmem:[%s269 + $0xb50] sm:$0xff]
      %v688 = vld [vmem:[%s269 + $0xb58] sm:$0xff]
      %v689 = vld [vmem:[%s269 + $0xb60] sm:$0xff]
      %v690 = vld [vmem:[%s269 + $0xb68] sm:$0xff]
      %v691 = vld [vmem:[%s269 + $0xb70] sm:$0xff]
      %v692 = vld [vmem:[%s269 + $0xb78] sm:$0xff]
      %v693 = vld [vmem:[%s269 + $0xb80] sm:$0xff]
      %v694 = vld [vmem:[%s269 + $0xb88] sm:$0xff]
      %v695 = vld [vmem:[%s269 + $0xb90] sm:$0xff]
      %v696 = vld [vmem:[%s269 + $0xb98] sm:$0xff]
      %v697 = vld [vmem:[%s269 + $0xba0] sm:$0xff]
      %v698 = vld [vmem:[%s269 + $0xba8] sm:$0xff]
      %v699 = vld [vmem:[%s269 + $0xbb0] sm:$0xff]
      %v700 = vld [vmem:[%s269 + $0xbb8] sm:$0xff]
      %v701 = vld [vmem:[%s269 + $0xbc0] sm:$0xff]
      %v702 = vld [vmem:[%s269 + $0xbc8] sm:$0xff]
      %v703 = vld [vmem:[%s269 + $0xbd0] sm:$0xff]
      %v704 = vld [vmem:[%s269 + $0xbd8] sm:$0xff]
      %v705 = vld [vmem:[%s269 + $0xbe0] sm:$0xff]
      %v706 = vld [vmem:[%s269 + $0xbe8] sm:$0xff]
      %v707 = vld [vmem:[%s269 + $0xbf0] sm:$0xff]
      %v708 = vld [vmem:[%s269 + $0xbf8] sm:$0xff]
      %v709 = vld [vmem:[%s269 + $0xc00] sm:$0xff]
      %v710 = vld [vmem:[%s269 + $0xc08] sm:$0xff]
      %v711 = vld [vmem:[%s269 + $0xc10] sm:$0xff]
      %v712 = vld [vmem:[%s269 + $0xc18] sm:$0xff]
      %v713 = vld [vmem:[%s269 + $0xc20] sm:$0xff]
      %v714 = vld [vmem:[%s269 + $0xc28] sm:$0xff]
      %v715 = vld [vmem:[%s269 + $0xc30] sm:$0xff]
      %v716 = vld [vmem:[%s269 + $0xc38] sm:$0xff]
      %v717 = vld [vmem:[%s269 + $0xc40] sm:$0xff]
      %v718 = vld [vmem:[%s269 + $0xc48] sm:$0xff]
      %v719 = vld [vmem:[%s269 + $0xc50] sm:$0xff]
      %v720 = vld [vmem:[%s269 + $0xc58] sm:$0xff]
      %v721 = vld [vmem:[%s269 + $0xc60] sm:$0xff]
      %v722 = vld [vmem:[%s269 + $0xc68] sm:$0xff]
      %v723 = vld [vmem:[%s269 + $0xc70] sm:$0xff]
      %v724 = vld [vmem:[%s269 + $0xc78] sm:$0xff]
      %v725 = vld [vmem:[%s269 + $0xc80] sm:$0xff]
      %v726 = vld [vmem:[%s269 + $0xc88] sm:$0xff]
      %v727 = vld [vmem:[%s269 + $0xc90] sm:$0xff]
      %v728 = vld [vmem:[%s269 + $0xc98] sm:$0xff]
      %v729 = vld [vmem:[%s269 + $0xca0] sm:$0xff]
      %v730 = vld [vmem:[%s269 + $0xca8] sm:$0xff]
      %v731 = vld [vmem:[%s269 + $0xcb0] sm:$0xff]
      %v732 = vld [vmem:[%s269 + $0xcb8] sm:$0xff]
      %v733 = vld [vmem:[%s269 + $0xcc0] sm:$0xff]
      %v734 = vld [vmem:[%s269 + $0xcc8] sm:$0xff]
      %v735 = vld [vmem:[%s269 + $0xcd0] sm:$0xff]
      %v736 = vld [vmem:[%s269 + $0xcd8] sm:$0xff]
      %v737 = vld [vmem:[%s269 + $0xce0] sm:$0xff]
      %v738 = vld [vmem:[%s269 + $0xce8] sm:$0xff]
      %v739 = vld [vmem:[%s269 + $0xcf0] sm:$0xff]
      %v740 = vld [vmem:[%s269 + $0xcf8] sm:$0xff]
      %v741 = vld [vmem:[%s269 + $0xd00] sm:$0xff]
      %v742 = vld [vmem:[%s269 + $0xd08] sm:$0xff]
      %v743 = vld [vmem:[%s269 + $0xd10] sm:$0xff]
      %v744 = vld [vmem:[%s269 + $0xd18] sm:$0xff]
      %v745 = vld [vmem:[%s269 + $0xd20] sm:$0xff]
      %v746 = vld [vmem:[%s269 + $0xd28] sm:$0xff]
      %v747 = vld [vmem:[%s269 + $0xd30] sm:$0xff]
      %v748 = vld [vmem:[%s269 + $0xd38] sm:$0xff]
      %v749 = vld [vmem:[%s269 + $0xd40] sm:$0xff]
      %v750 = vld [vmem:[%s269 + $0xd48] sm:$0xff]
      %v751 = vld [vmem:[%s269 + $0xd50] sm:$0xff]
      %v752 = vld [vmem:[%s269 + $0xd58] sm:$0xff]
      %v753 = vld [vmem:[%s269 + $0xd60] sm:$0xff]
      %v754 = vld [vmem:[%s269 + $0xd68] sm:$0xff]
      %v755 = vld [vmem:[%s269 + $0xd70] sm:$0xff]
      %v756 = vld [vmem:[%s269 + $0xd78] sm:$0xff]
      %v757 = vld [vmem:[%s269 + $0xd80] sm:$0xff]
      %v758 = vld [vmem:[%s269 + $0xd88] sm:$0xff]
      %v759 = vld [vmem:[%s269 + $0xd90] sm:$0xff]
      %v760 = vld [vmem:[%s269 + $0xd98] sm:$0xff]
      %v761 = vld [vmem:[%s269 + $0xda0] sm:$0xff]
      %v762 = vld [vmem:[%s269 + $0xda8] sm:$0xff]
      %v763 = vld [vmem:[%s269 + $0xdb0] sm:$0xff]
      %v764 = vld [vmem:[%s269 + $0xdb8] sm:$0xff]
      %v765 = vld [vmem:[%s269 + $0xdc0] sm:$0xff]
      %v766 = vld [vmem:[%s269 + $0xdc8] sm:$0xff]
      %v767 = vld [vmem:[%s269 + $0xdd0] sm:$0xff]
      %v768 = vld [vmem:[%s269 + $0xdd8] sm:$0xff]
      %v769 = vld [vmem:[%s269 + $0xde0] sm:$0xff]
      %v770 = vld [vmem:[%s269 + $0xde8] sm:$0xff]
      %v771 = vld [vmem:[%s269 + $0xdf0] sm:$0xff]
      %v772 = vld [vmem:[%s269 + $0xdf8] sm:$0xff]
      %v773 = vld [vmem:[%s269 + $0xe00] sm:$0xff]
      %v774 = vld [vmem:[%s269 + $0xe08] sm:$0xff]
      %v775 = vld [vmem:[%s269 + $0xe10] sm:$0xff]
      %v776 = vld [vmem:[%s269 + $0xe18] sm:$0xff]
      %v777 = vld [vmem:[%s269 + $0xe20] sm:$0xff]
      %v778 = vld [vmem:[%s269 + $0xe28] sm:$0xff]
      %v779 = vld [vmem:[%s269 + $0xe30] sm:$0xff]
      %v780 = vld [vmem:[%s269 + $0xe38] sm:$0xff]
      %v781 = vld [vmem:[%s269 + $0xe40] sm:$0xff]
      %v782 = vld [vmem:[%s269 + $0xe48] sm:$0xff]
      %v783 = vld [vmem:[%s269 + $0xe50] sm:$0xff]
      %v784 = vld [vmem:[%s269 + $0xe58] sm:$0xff]
      %v785 = vld [vmem:[%s269 + $0xe60] sm:$0xff]
      %v786 = vld [vmem:[%s269 + $0xe68] sm:$0xff]
      %v787 = vld [vmem:[%s269 + $0xe70] sm:$0xff]
      %v788 = vld [vmem:[%s269 + $0xe78] sm:$0xff]
      %v789 = vld [vmem:[%s269 + $0xe80] sm:$0xff]
      %v790 = vld [vmem:[%s269 + $0xe88] sm:$0xff]
      %v791 = vld [vmem:[%s269 + $0xe90] sm:$0xff]
      %v792 = vld [vmem:[%s269 + $0xe98] sm:$0xff]
      %v793 = vld [vmem:[%s269 + $0xea0] sm:$0xff]
      %v794 = vld [vmem:[%s269 + $0xea8] sm:$0xff]
      %v795 = vld [vmem:[%s269 + $0xeb0] sm:$0xff]
      %v796 = vld [vmem:[%s269 + $0xeb8] sm:$0xff]
      %v797 = vld [vmem:[%s269 + $0xec0] sm:$0xff]
      %v798 = vld [vmem:[%s269 + $0xec8] sm:$0xff]
      %v799 = vld [vmem:[%s269 + $0xed0] sm:$0xff]
      %v800 = vld [vmem:[%s269 + $0xed8] sm:$0xff]
      %v801 = vld [vmem:[%s269 + $0xee0] sm:$0xff]
      %v802 = vld [vmem:[%s269 + $0xee8] sm:$0xff]
      %v803 = vld [vmem:[%s269 + $0xef0] sm:$0xff]
      %v804 = vld [vmem:[%s269 + $0xef8] sm:$0xff]
      %v805 = vld [vmem:[%s269 + $0xf00] sm:$0xff]
      %v806 = vld [vmem:[%s269 + $0xf08] sm:$0xff]
      %v807 = vld [vmem:[%s269 + $0xf10] sm:$0xff]
      %v808 = vld [vmem:[%s269 + $0xf18] sm:$0xff]
      %v809 = vld [vmem:[%s269 + $0xf20] sm:$0xff]
      %v810 = vld [vmem:[%s269 + $0xf28] sm:$0xff]
      %v811 = vld [vmem:[%s269 + $0xf30] sm:$0xff]
      %v812 = vld [vmem:[%s269 + $0xf38] sm:$0xff]
      %v813 = vld [vmem:[%s269 + $0xf40] sm:$0xff]
      %v814 = vld [vmem:[%s269 + $0xf48] sm:$0xff]
      %v815 = vld [vmem:[%s269 + $0xf50] sm:$0xff]
      %v816 = vld [vmem:[%s269 + $0xf58] sm:$0xff]
      %v817 = vld [vmem:[%s269 + $0xf60] sm:$0xff]
      %v818 = vld [vmem:[%s269 + $0xf68] sm:$0xff]
      %v819 = vld [vmem:[%s269 + $0xf70] sm:$0xff]
      %v820 = vld [vmem:[%s269 + $0xf78] sm:$0xff]
      %v821 = vld [vmem:[%s269 + $0xf80] sm:$0xff]
      %v822 = vld [vmem:[%s269 + $0xf88] sm:$0xff]
      %v823 = vld [vmem:[%s269 + $0xf90] sm:$0xff]
      %v824 = vld [vmem:[%s269 + $0xf98] sm:$0xff]
      %v825 = vld [vmem:[%s269 + $0xfa0] sm:$0xff]
      %v826 = vld [vmem:[%s269 + $0xfa8] sm:$0xff]
      %v827 = vld [vmem:[%s269 + $0xfb0] sm:$0xff]
      %v828 = vld [vmem:[%s269 + $0xfb8] sm:$0xff]
      %v829 = vld [vmem:[%s269 + $0xfc0] sm:$0xff]
      %v830 = vld [vmem:[%s269 + $0xfc8] sm:$0xff]
      %v831 = vld [vmem:[%s269 + $0xfd0] sm:$0xff]
      %v832 = vld [vmem:[%s269 + $0xfd8] sm:$0xff]
      %v833 = vld [vmem:[%s269 + $0xfe0] sm:$0xff]
      %v834 = vld [vmem:[%s269 + $0xfe8] sm:$0xff]
      %v835 = vld [vmem:[%s269 + $0xff0] sm:$0xff]
      %v836 = vld [vmem:[%s269 + $0xff8] sm:$0xff]
      %v837 = vld [vmem:[%s269 + $0x1000] sm:$0xff]
      %v838 = vld [vmem:[%s269 + $0x1008] sm:$0xff]
      %v839 = vld [vmem:[%s269 + $0x1010] sm:$0xff]
      %v840 = vld [vmem:[%s269 + $0x1018] sm:$0xff]
      %v841 = vld [vmem:[%s269 + $0x1020] sm:$0xff]
      %v842 = vld [vmem:[%s269 + $0x1028] sm:$0xff]
      %v843 = vld [vmem:[%s269 + $0x1030] sm:$0xff]
      %v844 = vld [vmem:[%s269 + $0x1038] sm:$0xff]
      %v845 = vld [vmem:[%s269 + $0x1040] sm:$0xff]
      %v846 = vld [vmem:[%s269 + $0x1048] sm:$0xff]
      %v847 = vld [vmem:[%s269 + $0x1050] sm:$0xff]
      %v848 = vld [vmem:[%s269 + $0x1058] sm:$0xff]
      %v849 = vld [vmem:[%s269 + $0x1060] sm:$0xff]
      %v850 = vld [vmem:[%s269 + $0x1068] sm:$0xff]
      %v851 = vld [vmem:[%s269 + $0x1070] sm:$0xff]
      %v852 = vld [vmem:[%s269 + $0x1078] sm:$0xff]
      %v853 = vld [vmem:[%s269 + $0x1080] sm:$0xff]
      %v854 = vld [vmem:[%s269 + $0x1088] sm:$0xff]
      %v855 = vld [vmem:[%s269 + $0x1090] sm:$0xff]
      %v856 = vld [vmem:[%s269 + $0x1098] sm:$0xff]
      %v857 = vld [vmem:[%s269 + $0x10a0] sm:$0xff]
      %v858 = vld [vmem:[%s269 + $0x10a8] sm:$0xff]
      %v859 = vld [vmem:[%s269 + $0x10b0] sm:$0xff]
      %v860 = vld [vmem:[%s269 + $0x10b8] sm:$0xff]
      %v861 = vld [vmem:[%s269 + $0x10c0] sm:$0xff]
      %v862 = vld [vmem:[%s269 + $0x10c8] sm:$0xff]
      %v863 = vld [vmem:[%s269 + $0x10d0] sm:$0xff]
      %v864 = vld [vmem:[%s269 + $0x10d8] sm:$0xff]
      %v865 = vld [vmem:[%s269 + $0x10e0] sm:$0xff]
      %v866 = vld [vmem:[%s269 + $0x10e8] sm:$0xff]
      %v867 = vld [vmem:[%s269 + $0x10f0] sm:$0xff]
      %v868 = vld [vmem:[%s269 + $0x10f8] sm:$0xff]
      %v869 = vld [vmem:[%s269 + $0x1100] sm:$0xff]
      %v870 = vld [vmem:[%s269 + $0x1108] sm:$0xff]
      %v871 = vld [vmem:[%s269 + $0x1110] sm:$0xff]
      %v872 = vld [vmem:[%s269 + $0x1118] sm:$0xff]
      %v873 = vld [vmem:[%s269 + $0x1120] sm:$0xff]
      %v874 = vld [vmem:[%s269 + $0x1128] sm:$0xff]
      %v875 = vld [vmem:[%s269 + $0x1130] sm:$0xff]
      %v876 = vld [vmem:[%s269 + $0x1138] sm:$0xff]
      %v877 = vld [vmem:[%s269 + $0x1140] sm:$0xff]
      %v878 = vld [vmem:[%s269 + $0x1148] sm:$0xff]
      %v879 = vld [vmem:[%s269 + $0x1150] sm:$0xff]
      %v880 = vld [vmem:[%s269 + $0x1158] sm:$0xff]
      %v881 = vld [vmem:[%s269 + $0x1160] sm:$0xff]
      %v882 = vld [vmem:[%s269 + $0x1168] sm:$0xff]
      %v883 = vld [vmem:[%s269 + $0x1170] sm:$0xff]
      %v884 = vld [vmem:[%s269 + $0x1178] sm:$0xff]
      %v885 = vld [vmem:[%s269 + $0x1180] sm:$0xff]
      %v886 = vld [vmem:[%s269 + $0x1188] sm:$0xff]
      %v887 = vld [vmem:[%s269 + $0x1190] sm:$0xff]
      %v888 = vld [vmem:[%s269 + $0x1198] sm:$0xff]
      %v889 = vld [vmem:[%s269 + $0x11a0] sm:$0xff]
      %v890 = vld [vmem:[%s269 + $0x11a8] sm:$0xff]
      %v891 = vld [vmem:[%s269 + $0x11b0] sm:$0xff]
      %v892 = vld [vmem:[%s269 + $0x11b8] sm:$0xff]
      %v893 = vld [vmem:[%s269 + $0x11c0] sm:$0xff]
      %v894 = vld [vmem:[%s269 + $0x11c8] sm:$0xff]
      %v895 = vld [vmem:[%s269 + $0x11d0] sm:$0xff]
      %v896 = vld [vmem:[%s269 + $0x11d8] sm:$0xff]
      %v897 = vld [vmem:[%s269 + $0x11e0] sm:$0xff]
      %v898 = vld [vmem:[%s269 + $0x11e8] sm:$0xff]
      %v899 = vld [vmem:[%s269 + $0x11f0] sm:$0xff]
      %v900 = vld [vmem:[%s269 + $0x11f8] sm:$0xff]
      %v901 = vld [vmem:[%s269 + $0x1200] sm:$0xff]
      %v902 = vld [vmem:[%s269 + $0x1208] sm:$0xff]
      %v903 = vld [vmem:[%s269 + $0x1210] sm:$0xff]
      %v904 = vld [vmem:[%s269 + $0x1218] sm:$0xff]
      %v905 = vld [vmem:[%s269 + $0x1220] sm:$0xff]
      %v906 = vld [vmem:[%s269 + $0x1228] sm:$0xff]
      %v907 = vld [vmem:[%s269 + $0x1230] sm:$0xff]
      %v908 = vld [vmem:[%s269 + $0x1238] sm:$0xff]
      %v909 = vld [vmem:[%s269 + $0x1240] sm:$0xff]
      %v910 = vld [vmem:[%s269 + $0x1248] sm:$0xff]
      %v911 = vld [vmem:[%s269 + $0x1250] sm:$0xff]
      %v912 = vld [vmem:[%s269 + $0x1258] sm:$0xff]
      %v913 = vld [vmem:[%s269 + $0x1260] sm:$0xff]
      %v914 = vld [vmem:[%s269 + $0x1268] sm:$0xff]
      %v915 = vld [vmem:[%s269 + $0x1270] sm:$0xff]
      %v916 = vld [vmem:[%s269 + $0x1278] sm:$0xff]
      %v917 = vld [vmem:[%s269 + $0x1280] sm:$0xff]
      %v918 = vld [vmem:[%s269 + $0x1288] sm:$0xff]
      %v919 = vld [vmem:[%s269 + $0x1290] sm:$0xff]
      %v920 = vld [vmem:[%s269 + $0x1298] sm:$0xff]
      %v921 = vld [vmem:[%s269 + $0x12a0] sm:$0xff]
      %v922 = vld [vmem:[%s269 + $0x12a8] sm:$0xff]
      %v923 = vld [vmem:[%s269 + $0x12b0] sm:$0xff]
      %v924 = vld [vmem:[%s269 + $0x12b8] sm:$0xff]
      %v925 = vld [vmem:[%s269 + $0x12c0] sm:$0xff]
      %v926 = vld [vmem:[%s269 + $0x12c8] sm:$0xff]
      %v927 = vld [vmem:[%s269 + $0x12d0] sm:$0xff]
      %v928 = vld [vmem:[%s269 + $0x12d8] sm:$0xff]
      %v929 = vld [vmem:[%s269 + $0x12e0] sm:$0xff]
      %v930 = vld [vmem:[%s269 + $0x12e8] sm:$0xff]
      %v931 = vld [vmem:[%s269 + $0x12f0] sm:$0xff]
      %v932 = vld [vmem:[%s269 + $0x12f8] sm:$0xff]
      %v933 = vld [vmem:[%s269 + $0x1300] sm:$0xff]
      %v934 = vld [vmem:[%s269 + $0x1308] sm:$0xff]
      %v935 = vld [vmem:[%s269 + $0x1310] sm:$0xff]
      %v936 = vld [vmem:[%s269 + $0x1318] sm:$0xff]
      %v937 = vld [vmem:[%s269 + $0x1320] sm:$0xff]
      %v938 = vld [vmem:[%s269 + $0x1328] sm:$0xff]
      %v939 = vld [vmem:[%s269 + $0x1330] sm:$0xff]
      %v940 = vld [vmem:[%s269 + $0x1338] sm:$0xff]
      %v941 = vld [vmem:[%s269 + $0x1340] sm:$0xff]
      %v942 = vld [vmem:[%s269 + $0x1348] sm:$0xff]
      %v943 = vld [vmem:[%s269 + $0x1350] sm:$0xff]
      %v944 = vld [vmem:[%s269 + $0x1358] sm:$0xff]
      %v945 = vld [vmem:[%s269 + $0x1360] sm:$0xff]
      %v946 = vld [vmem:[%s269 + $0x1368] sm:$0xff]
      %v947 = vld [vmem:[%s269 + $0x1370] sm:$0xff]
      %v948 = vld [vmem:[%s269 + $0x1378] sm:$0xff]
      %v949 = vld [vmem:[%s269 + $0x1380] sm:$0xff]
      %v950 = vld [vmem:[%s269 + $0x1388] sm:$0xff]
      %v951 = vld [vmem:[%s269 + $0x1390] sm:$0xff]
      %v952 = vld [vmem:[%s269 + $0x1398] sm:$0xff]
      %v953 = vld [vmem:[%s269 + $0x13a0] sm:$0xff]
      %v954 = vld [vmem:[%s269 + $0x13a8] sm:$0xff]
      %v955 = vld [vmem:[%s269 + $0x13b0] sm:$0xff]
      %v956 = vld [vmem:[%s269 + $0x13b8] sm:$0xff]
      %v957 = vld [vmem:[%s269 + $0x13c0] sm:$0xff]
      %v958 = vld [vmem:[%s269 + $0x13c8] sm:$0xff]
      %v959 = vld [vmem:[%s269 + $0x13d0] sm:$0xff]
      %v960 = vld [vmem:[%s269 + $0x13d8] sm:$0xff]
      %v961 = vld [vmem:[%s269 + $0x13e0] sm:$0xff]
      %v962 = vld [vmem:[%s269 + $0x13e8] sm:$0xff]
      %v963 = vld [vmem:[%s269 + $0x13f0] sm:$0xff]
      %v964 = vld [vmem:[%s269 + $0x13f8] sm:$0xff]
      %v965 = vld [vmem:[%s269 + $0x1400] sm:$0xff]
      %v966 = vld [vmem:[%s269 + $0x1408] sm:$0xff]
      %v967 = vld [vmem:[%s269 + $0x1410] sm:$0xff]
      %v968 = vld [vmem:[%s269 + $0x1418] sm:$0xff]
      %v969 = vld [vmem:[%s269 + $0x1420] sm:$0xff]
      %v970 = vld [vmem:[%s269 + $0x1428] sm:$0xff]
      %v971 = vld [vmem:[%s269 + $0x1430] sm:$0xff]
      %v972 = vld [vmem:[%s269 + $0x1438] sm:$0xff]
      %v973 = vld [vmem:[%s269 + $0x1440] sm:$0xff]
      %v974 = vld [vmem:[%s269 + $0x1448] sm:$0xff]
      %v975 = vld [vmem:[%s269 + $0x1450] sm:$0xff]
      %v976 = vld [vmem:[%s269 + $0x1458] sm:$0xff]
      %v977 = vld [vmem:[%s269 + $0x1460] sm:$0xff]
      %v978 = vld [vmem:[%s269 + $0x1468] sm:$0xff]
      %v979 = vld [vmem:[%s269 + $0x1470] sm:$0xff]
      %v980 = vld [vmem:[%s269 + $0x1478] sm:$0xff]
      %v981 = vld [vmem:[%s269 + $0x1480] sm:$0xff]
      %v982 = vld [vmem:[%s269 + $0x1488] sm:$0xff]
      %v983 = vld [vmem:[%s269 + $0x1490] sm:$0xff]
      %v984 = vld [vmem:[%s269 + $0x1498] sm:$0xff]
      %v985 = vld [vmem:[%s269 + $0x14a0] sm:$0xff]
      %v986 = vld [vmem:[%s269 + $0x14a8] sm:$0xff]
      %v987 = vld [vmem:[%s269 + $0x14b0] sm:$0xff]
      %v988 = vld [vmem:[%s269 + $0x14b8] sm:$0xff]
      %v989 = vld [vmem:[%s269 + $0x14c0] sm:$0xff]
      %v990 = vld [vmem:[%s269 + $0x14c8] sm:$0xff]
      %v991 = vld [vmem:[%s269 + $0x14d0] sm:$0xff]
      %v992 = vld [vmem:[%s269 + $0x14d8] sm:$0xff]
      %v993 = vld [vmem:[%s269 + $0x14e0] sm:$0xff]
      %v994 = vld [vmem:[%s269 + $0x14e8] sm:$0xff]
      %v995 = vld [vmem:[%s269 + $0x14f0] sm:$0xff]
      %v996 = vld [vmem:[%s269 + $0x14f8] sm:$0xff]
      %v997 = vld [vmem:[%s269 + $0x1500] sm:$0xff]
      %v998 = vld [vmem:[%s269 + $0x1508] sm:$0xff]
      %v999 = vld [vmem:[%s269 + $0x1510] sm:$0xff]
      %v1000 = vld [vmem:[%s269 + $0x1518] sm:$0xff]
      %v1001 = vld [vmem:[%s269 + $0x1520] sm:$0xff]
      %v1002 = vld [vmem:[%s269 + $0x1528] sm:$0xff]
      %v1003 = vld [vmem:[%s269 + $0x1530] sm:$0xff]
      %v1004 = vld [vmem:[%s269 + $0x1538] sm:$0xff]
      %v1005 = vld [vmem:[%s269 + $0x1540] sm:$0xff]
      %v1006 = vld [vmem:[%s269 + $0x1548] sm:$0xff]
      %v1007 = vld [vmem:[%s269 + $0x1550] sm:$0xff]
      %v1008 = vld [vmem:[%s269 + $0x1558] sm:$0xff]
      %v1009 = vld [vmem:[%s269 + $0x1560] sm:$0xff]
      %v1010 = vld [vmem:[%s269 + $0x1568] sm:$0xff]
      %v1011 = vld [vmem:[%s269 + $0x1570] sm:$0xff]
      %v1012 = vld [vmem:[%s269 + $0x1578] sm:$0xff]
      %v1013 = vld [vmem:[%s269 + $0x1580] sm:$0xff]
      %v1014 = vld [vmem:[%s269 + $0x1588] sm:$0xff]
      %v1015 = vld [vmem:[%s269 + $0x1590] sm:$0xff]
      %v1016 = vld [vmem:[%s269 + $0x1598] sm:$0xff]
      %v1017 = vld [vmem:[%s269 + $0x15a0] sm:$0xff]
      %v1018 = vld [vmem:[%s269 + $0x15a8] sm:$0xff]
      %v1019 = vld [vmem:[%s269 + $0x15b0] sm:$0xff]
      %v1020 = vld [vmem:[%s269 + $0x15b8] sm:$0xff]
      %v1021 = vld [vmem:[%s269 + $0x15c0] sm:$0xff]
      %v1022 = vld [vmem:[%s269 + $0x15c8] sm:$0xff]
      %v1023 = vld [vmem:[%s269 + $0x15d0] sm:$0xff]
      %v1024 = vld [vmem:[%s269 + $0x15d8] sm:$0xff]
      %v1025 = vld [vmem:[%s269 + $0x15e0] sm:$0xff]
      %v1026 = vld [vmem:[%s269 + $0x15e8] sm:$0xff]
      %v1027 = vld [vmem:[%s269 + $0x15f0] sm:$0xff]
      %v1028 = vld [vmem:[%s269 + $0x15f8] sm:$0xff]
      %v1029 = vld [vmem:[%s269 + $0x1600] sm:$0xff]
      %v1030 = vld [vmem:[%s269 + $0x1608] sm:$0xff]
      %v1031 = vld [vmem:[%s269 + $0x1610] sm:$0xff]
      %v1032 = vld [vmem:[%s269 + $0x1618] sm:$0xff]
      %v1033 = vld [vmem:[%s269 + $0x1620] sm:$0xff]
      %v1034 = vld [vmem:[%s269 + $0x1628] sm:$0xff]
      %v1035 = vld [vmem:[%s269 + $0x1630] sm:$0xff]
      %v1036 = vld [vmem:[%s269 + $0x1638] sm:$0xff]
      %v1037 = vld [vmem:[%s269 + $0x1640] sm:$0xff]
      %v1038 = vld [vmem:[%s269 + $0x1648] sm:$0xff]
      %v1039 = vld [vmem:[%s269 + $0x1650] sm:$0xff]
      %v1040 = vld [vmem:[%s269 + $0x1658] sm:$0xff]
      %v1041 = vld [vmem:[%s269 + $0x1660] sm:$0xff]
      %v1042 = vld [vmem:[%s269 + $0x1668] sm:$0xff]
      %v1043 = vld [vmem:[%s269 + $0x1670] sm:$0xff]
      %v1044 = vld [vmem:[%s269 + $0x1678] sm:$0xff]
      %v1045 = vld [vmem:[%s269 + $0x1680] sm:$0xff]
      %v1046 = vld [vmem:[%s269 + $0x1688] sm:$0xff]
      %v1047 = vld [vmem:[%s269 + $0x1690] sm:$0xff]
      %v1048 = vld [vmem:[%s269 + $0x1698] sm:$0xff]
      %v1049 = vld [vmem:[%s269 + $0x16a0] sm:$0xff]
      %v1050 = vld [vmem:[%s269 + $0x16a8] sm:$0xff]
      %v1051 = vld [vmem:[%s269 + $0x16b0] sm:$0xff]
      %v1052 = vld [vmem:[%s269 + $0x16b8] sm:$0xff]
      %v1053 = vld [vmem:[%s269 + $0x16c0] sm:$0xff]
      %v1054 = vld [vmem:[%s269 + $0x16c8] sm:$0xff]
      %v1055 = vld [vmem:[%s269 + $0x16d0] sm:$0xff]
      %v1056 = vld [vmem:[%s269 + $0x16d8] sm:$0xff]
      %v1057 = vld [vmem:[%s269 + $0x16e0] sm:$0xff]
      %v1058 = vld [vmem:[%s269 + $0x16e8] sm:$0xff]
      %v1059 = vld [vmem:[%s269 + $0x16f0] sm:$0xff]
      %v1060 = vld [vmem:[%s269 + $0x16f8] sm:$0xff]
      %v1061 = vld [vmem:[%s269 + $0x1700] sm:$0xff]
      %v1062 = vld [vmem:[%s269 + $0x1708] sm:$0xff]
      %v1063 = vld [vmem:[%s269 + $0x1710] sm:$0xff]
      %v1064 = vld [vmem:[%s269 + $0x1718] sm:$0xff]
      %v1065 = vld [vmem:[%s269 + $0x1720] sm:$0xff]
      %v1066 = vld [vmem:[%s269 + $0x1728] sm:$0xff]
      %v1067 = vld [vmem:[%s269 + $0x1730] sm:$0xff]
      %v1068 = vld [vmem:[%s269 + $0x1738] sm:$0xff]
      %v1069 = vld [vmem:[%s269 + $0x1740] sm:$0xff]
      %v1070 = vld [vmem:[%s269 + $0x1748] sm:$0xff]
      %v1071 = vld [vmem:[%s269 + $0x1750] sm:$0xff]
      %v1072 = vld [vmem:[%s269 + $0x1758] sm:$0xff]
      %v1073 = vld [vmem:[%s269 + $0x1760] sm:$0xff]
      %v1074 = vld [vmem:[%s269 + $0x1768] sm:$0xff]
      %v1075 = vld [vmem:[%s269 + $0x1770] sm:$0xff]
      %v1076 = vld [vmem:[%s269 + $0x1778] sm:$0xff]
      %v1077 = vld [vmem:[%s269 + $0x1780] sm:$0xff]
      %v1078 = vld [vmem:[%s269 + $0x1788] sm:$0xff]
      %v1079 = vld [vmem:[%s269 + $0x1790] sm:$0xff]
      %v1080 = vld [vmem:[%s269 + $0x1798] sm:$0xff]
      %v1081 = vld [vmem:[%s269 + $0x17a0] sm:$0xff]
      %v1082 = vld [vmem:[%s269 + $0x17a8] sm:$0xff]
      %v1083 = vld [vmem:[%s269 + $0x17b0] sm:$0xff]
      %v1084 = vld [vmem:[%s269 + $0x17b8] sm:$0xff]
      %v1085 = vld [vmem:[%s269 + $0x17c0] sm:$0xff]
      %v1086 = vld [vmem:[%s269 + $0x17c8] sm:$0xff]
      %v1087 = vld [vmem:[%s269 + $0x17d0] sm:$0xff]
      %v1088 = vld [vmem:[%s269 + $0x17d8] sm:$0xff]
      %v1089 = vld [vmem:[%s269 + $0x17e0] sm:$0xff]
      %v1090 = vld [vmem:[%s269 + $0x17e8] sm:$0xff]
      %v1091 = vld [vmem:[%s269 + $0x17f0] sm:$0xff]
      %v1092 = vld [vmem:[%s269 + $0x17f8] sm:$0xff]
      %v1093 = vld [vmem:[%s269 + $0x1800] sm:$0xff]
      %v1094 = vld [vmem:[%s269 + $0x1808] sm:$0xff]
      %v1095 = vld [vmem:[%s269 + $0x1810] sm:$0xff]
      %v1096 = vld [vmem:[%s269 + $0x1818] sm:$0xff]
      %v1097 = vld [vmem:[%s269 + $0x1820] sm:$0xff]
      %v1098 = vld [vmem:[%s269 + $0x1828] sm:$0xff]
      %v1099 = vld [vmem:[%s269 + $0x1830] sm:$0xff]
      %v1100 = vld [vmem:[%s269 + $0x1838] sm:$0xff]
      %v1101 = vld [vmem:[%s269 + $0x1840] sm:$0xff]
      %v1102 = vld [vmem:[%s269 + $0x1848] sm:$0xff]
      %v1103 = vld [vmem:[%s269 + $0x1850] sm:$0xff]
      %v1104 = vld [vmem:[%s269 + $0x1858] sm:$0xff]
      %v1105 = vld [vmem:[%s269 + $0x1860] sm:$0xff]
      %v1106 = vld [vmem:[%s269 + $0x1868] sm:$0xff]
      %v1107 = vld [vmem:[%s269 + $0x1870] sm:$0xff]
      %v1108 = vld [vmem:[%s269 + $0x1878] sm:$0xff]
      %v1109 = vld [vmem:[%s269 + $0x1880] sm:$0xff]
      %v1110 = vld [vmem:[%s269 + $0x1888] sm:$0xff]
      %v1111 = vld [vmem:[%s269 + $0x1890] sm:$0xff]
      %v1112 = vld [vmem:[%s269 + $0x1898] sm:$0xff]
      %v1113 = vld [vmem:[%s269 + $0x18a0] sm:$0xff]
      %v1114 = vld [vmem:[%s269 + $0x18a8] sm:$0xff]
      %v1115 = vld [vmem:[%s269 + $0x18b0] sm:$0xff]
      %v1116 = vld [vmem:[%s269 + $0x18b8] sm:$0xff]
      %v1117 = vld [vmem:[%s269 + $0x18c0] sm:$0xff]
      %v1118 = vld [vmem:[%s269 + $0x18c8] sm:$0xff]
      %v1119 = vld [vmem:[%s269 + $0x18d0] sm:$0xff]
      %v1120 = vld [vmem:[%s269 + $0x18d8] sm:$0xff]
      %v1121 = vld [vmem:[%s269 + $0x18e0] sm:$0xff]
      %v1122 = vld [vmem:[%s269 + $0x18e8] sm:$0xff]
      %v1123 = vld [vmem:[%s269 + $0x18f0] sm:$0xff]
      %v1124 = vld [vmem:[%s269 + $0x18f8] sm:$0xff]
      %v1125 = vld [vmem:[%s269 + $0x1900] sm:$0xff]
      %v1126 = vld [vmem:[%s269 + $0x1908] sm:$0xff]
      %v1127 = vld [vmem:[%s269 + $0x1910] sm:$0xff]
      %v1128 = vld [vmem:[%s269 + $0x1918] sm:$0xff]
      %v1129 = vld [vmem:[%s269 + $0x1920] sm:$0xff]
      %v1130 = vld [vmem:[%s269 + $0x1928] sm:$0xff]
      %v1131 = vld [vmem:[%s269 + $0x1930] sm:$0xff]
      %v1132 = vld [vmem:[%s269 + $0x1938] sm:$0xff]
      %v1133 = vld [vmem:[%s269 + $0x1940] sm:$0xff]
      %v1134 = vld [vmem:[%s269 + $0x1948] sm:$0xff]
      %v1135 = vld [vmem:[%s269 + $0x1950] sm:$0xff]
      %v1136 = vld [vmem:[%s269 + $0x1958] sm:$0xff]
      %v1137 = vld [vmem:[%s269 + $0x1960] sm:$0xff]
      %v1138 = vld [vmem:[%s269 + $0x1968] sm:$0xff]
      %v1139 = vld [vmem:[%s269 + $0x1970] sm:$0xff]
      %v1140 = vld [vmem:[%s269 + $0x1978] sm:$0xff]
      %v1141 = vld [vmem:[%s269 + $0x1980] sm:$0xff]
      %v1142 = vld [vmem:[%s269 + $0x1988] sm:$0xff]
      %v1143 = vld [vmem:[%s269 + $0x1990] sm:$0xff]
      %v1144 = vld [vmem:[%s269 + $0x1998] sm:$0xff]
      %v1145 = vld [vmem:[%s269 + $0x19a0] sm:$0xff]
      %v1146 = vld [vmem:[%s269 + $0x19a8] sm:$0xff]
      %v1147 = vld [vmem:[%s269 + $0x19b0] sm:$0xff]
      %v1148 = vld [vmem:[%s269 + $0x19b8] sm:$0xff]
      %v1149 = vld [vmem:[%s269 + $0x19c0] sm:$0xff]
      %v1150 = vld [vmem:[%s269 + $0x19c8] sm:$0xff]
      %v1151 = vld [vmem:[%s269 + $0x19d0] sm:$0xff]
      %v1152 = vld [vmem:[%s269 + $0x19d8] sm:$0xff]
      %v1153 = vld [vmem:[%s269 + $0x19e0] sm:$0xff]
      %v1154 = vld [vmem:[%s269 + $0x19e8] sm:$0xff]
      %v1155 = vld [vmem:[%s269 + $0x19f0] sm:$0xff]
      %v1156 = vld [vmem:[%s269 + $0x19f8] sm:$0xff]
      %v1157 = vld [vmem:[%s269 + $0x1a00] sm:$0xff]
      %v1158 = vld [vmem:[%s269 + $0x1a08] sm:$0xff]
      %v1159 = vld [vmem:[%s269 + $0x1a10] sm:$0xff]
      %v1160 = vld [vmem:[%s269 + $0x1a18] sm:$0xff]
      %v1161 = vld [vmem:[%s269 + $0x1a20] sm:$0xff]
      %v1162 = vld [vmem:[%s269 + $0x1a28] sm:$0xff]
      %v1163 = vld [vmem:[%s269 + $0x1a30] sm:$0xff]
      %v1164 = vld [vmem:[%s269 + $0x1a38] sm:$0xff]
      %v1165 = vld [vmem:[%s269 + $0x1a40] sm:$0xff]
      %v1166 = vld [vmem:[%s269 + $0x1a48] sm:$0xff]
      %v1167 = vld [vmem:[%s269 + $0x1a50] sm:$0xff]
      %v1168 = vld [vmem:[%s269 + $0x1a58] sm:$0xff]
      %v1169 = vld [vmem:[%s269 + $0x1a60] sm:$0xff]
      %v1170 = vld [vmem:[%s269 + $0x1a68] sm:$0xff]
      %v1171 = vld [vmem:[%s269 + $0x1a70] sm:$0xff]
      %v1172 = vld [vmem:[%s269 + $0x1a78] sm:$0xff]
      %v1173 = vld [vmem:[%s269 + $0x1a80] sm:$0xff]
      %v1174 = vld [vmem:[%s269 + $0x1a88] sm:$0xff]
      %v1175 = vld [vmem:[%s269 + $0x1a90] sm:$0xff]
      %v1176 = vld [vmem:[%s269 + $0x1a98] sm:$0xff]
      %v1177 = vld [vmem:[%s269 + $0x1aa0] sm:$0xff]
      %v1178 = vld [vmem:[%s269 + $0x1aa8] sm:$0xff]
      %v1179 = vld [vmem:[%s269 + $0x1ab0] sm:$0xff]
      %v1180 = vld [vmem:[%s269 + $0x1ab8] sm:$0xff]
      %v1181 = vld [vmem:[%s269 + $0x1ac0] sm:$0xff]
      %v1182 = vld [vmem:[%s269 + $0x1ac8] sm:$0xff]
      %v1183 = vld [vmem:[%s269 + $0x1ad0] sm:$0xff]
      %v1184 = vld [vmem:[%s269 + $0x1ad8] sm:$0xff]
      %v1185 = vld [vmem:[%s269 + $0x1ae0] sm:$0xff]
      %v1186 = vld [vmem:[%s269 + $0x1ae8] sm:$0xff]
      %v1187 = vld [vmem:[%s269 + $0x1af0] sm:$0xff]
      %v1188 = vld [vmem:[%s269 + $0x1af8] sm:$0xff]
      %v1189 = vld [vmem:[%s269 + $0x1b00] sm:$0xff]
      %v1190 = vld [vmem:[%s269 + $0x1b08] sm:$0xff]
      %v1191 = vld [vmem:[%s269 + $0x1b10] sm:$0xff]
      %v1192 = vld [vmem:[%s269 + $0x1b18] sm:$0xff]
      %v1193 = vld [vmem:[%s269 + $0x1b20] sm:$0xff]
      %v1194 = vld [vmem:[%s269 + $0x1b28] sm:$0xff]
      %v1195 = vld [vmem:[%s269 + $0x1b30] sm:$0xff]
      %v1196 = vld [vmem:[%s269 + $0x1b38] sm:$0xff]
      %v1197 = vld [vmem:[%s269 + $0x1b40] sm:$0xff]
      %v1198 = vld [vmem:[%s269 + $0x1b48] sm:$0xff]
      %v1199 = vld [vmem:[%s269 + $0x1b50] sm:$0xff]
      %v1200 = vld [vmem:[%s269 + $0x1b58] sm:$0xff]
      %v1201 = vld [vmem:[%s269 + $0x1b60] sm:$0xff]
      %v1202 = vld [vmem:[%s269 + $0x1b68] sm:$0xff]
      %v1203 = vld [vmem:[%s269 + $0x1b70] sm:$0xff]
      %v1204 = vld [vmem:[%s269 + $0x1b78] sm:$0xff]
      %v1205 = vld [vmem:[%s269 + $0x1b80] sm:$0xff]
      %v1206 = vld [vmem:[%s269 + $0x1b88] sm:$0xff]
      %v1207 = vld [vmem:[%s269 + $0x1b90] sm:$0xff]
      %v1208 = vld [vmem:[%s269 + $0x1b98] sm:$0xff]
      %v1209 = vld [vmem:[%s269 + $0x1ba0] sm:$0xff]
      %v1210 = vld [vmem:[%s269 + $0x1ba8] sm:$0xff]
      %v1211 = vld [vmem:[%s269 + $0x1bb0] sm:$0xff]
      %v1212 = vld [vmem:[%s269 + $0x1bb8] sm:$0xff]
      %v1213 = vld [vmem:[%s269 + $0x1bc0] sm:$0xff]
      %v1214 = vld [vmem:[%s269 + $0x1bc8] sm:$0xff]
      %v1215 = vld [vmem:[%s269 + $0x1bd0] sm:$0xff]
      %v1216 = vld [vmem:[%s269 + $0x1bd8] sm:$0xff]
      %v1217 = vld [vmem:[%s269 + $0x1be0] sm:$0xff]
      %v1218 = vld [vmem:[%s269 + $0x1be8] sm:$0xff]
      %v1219 = vld [vmem:[%s269 + $0x1bf0] sm:$0xff]
      %v1220 = vld [vmem:[%s269 + $0x1bf8] sm:$0xff]
      %v1221 = vld [vmem:[%s269 + $0x1c00] sm:$0xff]
      %v1222 = vld [vmem:[%s269 + $0x1c08] sm:$0xff]
      %v1223 = vld [vmem:[%s269 + $0x1c10] sm:$0xff]
      %v1224 = vld [vmem:[%s269 + $0x1c18] sm:$0xff]
      %v1225 = vld [vmem:[%s269 + $0x1c20] sm:$0xff]
      %v1226 = vld [vmem:[%s269 + $0x1c28] sm:$0xff]
      %v1227 = vld [vmem:[%s269 + $0x1c30] sm:$0xff]
      %v1228 = vld [vmem:[%s269 + $0x1c38] sm:$0xff]
      %v1229 = vld [vmem:[%s269 + $0x1c40] sm:$0xff]
      %v1230 = vld [vmem:[%s269 + $0x1c48] sm:$0xff]
      %v1231 = vld [vmem:[%s269 + $0x1c50] sm:$0xff]
      %v1232 = vld [vmem:[%s269 + $0x1c58] sm:$0xff]
      %v1233 = vld [vmem:[%s269 + $0x1c60] sm:$0xff]
      %v1234 = vld [vmem:[%s269 + $0x1c68] sm:$0xff]
      %v1235 = vld [vmem:[%s269 + $0x1c70] sm:$0xff]
      %v1236 = vld [vmem:[%s269 + $0x1c78] sm:$0xff]
      %v1237 = vld [vmem:[%s269 + $0x1c80] sm:$0xff]
      %v1238 = vld [vmem:[%s269 + $0x1c88] sm:$0xff]
      %v1239 = vld [vmem:[%s269 + $0x1c90] sm:$0xff]
      %v1240 = vld [vmem:[%s269 + $0x1c98] sm:$0xff]
      %v1241 = vld [vmem:[%s269 + $0x1ca0] sm:$0xff]
      %v1242 = vld [vmem:[%s269 + $0x1ca8] sm:$0xff]
      %v1243 = vld [vmem:[%s269 + $0x1cb0] sm:$0xff]
      %v1244 = vld [vmem:[%s269 + $0x1cb8] sm:$0xff]
      %v1245 = vld [vmem:[%s269 + $0x1cc0] sm:$0xff]
      %v1246 = vld [vmem:[%s269 + $0x1cc8] sm:$0xff]
      %v1247 = vld [vmem:[%s269 + $0x1cd0] sm:$0xff]
      %v1248 = vld [vmem:[%s269 + $0x1cd8] sm:$0xff]
      %v1249 = vld [vmem:[%s269 + $0x1ce0] sm:$0xff]
      %v1250 = vld [vmem:[%s269 + $0x1ce8] sm:$0xff]
      %v1251 = vld [vmem:[%s269 + $0x1cf0] sm:$0xff]
      %v1252 = vld [vmem:[%s269 + $0x1cf8] sm:$0xff]
      %v1253 = vld [vmem:[%s269 + $0x1d00] sm:$0xff]
      %v1254 = vld [vmem:[%s269 + $0x1d08] sm:$0xff]
      %v1255 = vld [vmem:[%s269 + $0x1d10] sm:$0xff]
      %v1256 = vld [vmem:[%s269 + $0x1d18] sm:$0xff]
      %v1257 = vld [vmem:[%s269 + $0x1d20] sm:$0xff]
      %v1258 = vld [vmem:[%s269 + $0x1d28] sm:$0xff]
      %v1259 = vld [vmem:[%s269 + $0x1d30] sm:$0xff]
      %v1260 = vld [vmem:[%s269 + $0x1d38] sm:$0xff]
      %v1261 = vld [vmem:[%s269 + $0x1d40] sm:$0xff]
      %v1262 = vld [vmem:[%s269 + $0x1d48] sm:$0xff]
      %v1263 = vld [vmem:[%s269 + $0x1d50] sm:$0xff]
      %v1264 = vld [vmem:[%s269 + $0x1d58] sm:$0xff]
      %v1265 = vld [vmem:[%s269 + $0x1d60] sm:$0xff]
      %v1266 = vld [vmem:[%s269 + $0x1d68] sm:$0xff]
      %v1267 = vld [vmem:[%s269 + $0x1d70] sm:$0xff]
      %v1268 = vld [vmem:[%s269 + $0x1d78] sm:$0xff]
      %v1269 = vld [vmem:[%s269 + $0x1d80] sm:$0xff]
      %v1270 = vld [vmem:[%s269 + $0x1d88] sm:$0xff]
      %v1271 = vld [vmem:[%s269 + $0x1d90] sm:$0xff]
      %v1272 = vld [vmem:[%s269 + $0x1d98] sm:$0xff]
      %v1273 = vld [vmem:[%s269 + $0x1da0] sm:$0xff]
      %v1274 = vld [vmem:[%s269 + $0x1da8] sm:$0xff]
      %v1275 = vld [vmem:[%s269 + $0x1db0] sm:$0xff]
      %v1276 = vld [vmem:[%s269 + $0x1db8] sm:$0xff]
      %v1277 = vld [vmem:[%s269 + $0x1dc0] sm:$0xff]
      %v1278 = vld [vmem:[%s269 + $0x1dc8] sm:$0xff]
      %v1279 = vld [vmem:[%s269 + $0x1dd0] sm:$0xff]
      %v1280 = vld [vmem:[%s269 + $0x1dd8] sm:$0xff]
      %v1281 = vld [vmem:[%s269 + $0x1de0] sm:$0xff]
      %v1282 = vld [vmem:[%s269 + $0x1de8] sm:$0xff]
      %v1283 = vld [vmem:[%s269 + $0x1df0] sm:$0xff]
      %v1284 = vld [vmem:[%s269 + $0x1df8] sm:$0xff]
      %v1285 = vld [vmem:[%s269 + $0x1e00] sm:$0xff]
      %v1286 = vld [vmem:[%s269 + $0x1e08] sm:$0xff]
      %v1287 = vld [vmem:[%s269 + $0x1e10] sm:$0xff]
      %v1288 = vld [vmem:[%s269 + $0x1e18] sm:$0xff]
      %v1289 = vld [vmem:[%s269 + $0x1e20] sm:$0xff]
      %v1290 = vld [vmem:[%s269 + $0x1e28] sm:$0xff]
      %v1291 = vld [vmem:[%s269 + $0x1e30] sm:$0xff]
      %v1292 = vld [vmem:[%s269 + $0x1e38] sm:$0xff]
      %v1293 = vld [vmem:[%s269 + $0x1e40] sm:$0xff]
      %v1294 = vld [vmem:[%s269 + $0x1e48] sm:$0xff]
      %v1295 = vld [vmem:[%s269 + $0x1e50] sm:$0xff]
      %v1296 = vld [vmem:[%s269 + $0x1e58] sm:$0xff]
      %v1297 = vld [vmem:[%s269 + $0x1e60] sm:$0xff]
      %v1298 = vld [vmem:[%s269 + $0x1e68] sm:$0xff]
      %v1299 = vld [vmem:[%s269 + $0x1e70] sm:$0xff]
      %v1300 = vld [vmem:[%s269 + $0x1e78] sm:$0xff]
      %v1301 = vld [vmem:[%s269 + $0x1e80] sm:$0xff]
      %v1302 = vld [vmem:[%s269 + $0x1e88] sm:$0xff]
      %v1303 = vld [vmem:[%s269 + $0x1e90] sm:$0xff]
      %v1304 = vld [vmem:[%s269 + $0x1e98] sm:$0xff]
      %v1305 = vld [vmem:[%s269 + $0x1ea0] sm:$0xff]
      %v1306 = vld [vmem:[%s269 + $0x1ea8] sm:$0xff]
      %v1307 = vld [vmem:[%s269 + $0x1eb0] sm:$0xff]
      %v1308 = vld [vmem:[%s269 + $0x1eb8] sm:$0xff]
      %v1309 = vld [vmem:[%s269 + $0x1ec0] sm:$0xff]
      %v1310 = vld [vmem:[%s269 + $0x1ec8] sm:$0xff]
      %v1311 = vld [vmem:[%s269 + $0x1ed0] sm:$0xff]
      %v1312 = vld [vmem:[%s269 + $0x1ed8] sm:$0xff]
      %v1313 = vld [vmem:[%s269 + $0x1ee0] sm:$0xff]
      %v1314 = vld [vmem:[%s269 + $0x1ee8] sm:$0xff]
      %v1315 = vld [vmem:[%s269 + $0x1ef0] sm:$0xff]
      %v1316 = vld [vmem:[%s269 + $0x1ef8] sm:$0xff]
      %v1317 = vld [vmem:[%s269 + $0x1f00] sm:$0xff]
      %v1318 = vld [vmem:[%s269 + $0x1f08] sm:$0xff]
      %v1319 = vld [vmem:[%s269 + $0x1f10] sm:$0xff]
      %v1320 = vld [vmem:[%s269 + $0x1f18] sm:$0xff]
      %v1321 = vld [vmem:[%s269 + $0x1f20] sm:$0xff]
      %v1322 = vld [vmem:[%s269 + $0x1f28] sm:$0xff]
      %v1323 = vld [vmem:[%s269 + $0x1f30] sm:$0xff]
      %v1324 = vld [vmem:[%s269 + $0x1f38] sm:$0xff]
      %v1325 = vld [vmem:[%s269 + $0x1f40] sm:$0xff]
      %v1326 = vld [vmem:[%s269 + $0x1f48] sm:$0xff]
      %v1327 = vld [vmem:[%s269 + $0x1f50] sm:$0xff]
      %v1328 = vld [vmem:[%s269 + $0x1f58] sm:$0xff]
      %v1329 = vld [vmem:[%s269 + $0x1f60] sm:$0xff]
      %v1330 = vld [vmem:[%s269 + $0x1f68] sm:$0xff]
      %v1331 = vld [vmem:[%s269 + $0x1f70] sm:$0xff]
      %v1332 = vld [vmem:[%s269 + $0x1f78] sm:$0xff]
      %v1333 = vld [vmem:[%s269 + $0x1f80] sm:$0xff]
      %v1334 = vld [vmem:[%s269 + $0x1f88] sm:$0xff]
      %v1335 = vld [vmem:[%s269 + $0x1f90] sm:$0xff]
      %v1336 = vld [vmem:[%s269 + $0x1f98] sm:$0xff]
      %v1337 = vld [vmem:[%s269 + $0x1fa0] sm:$0xff]
      %v1338 = vld [vmem:[%s269 + $0x1fa8] sm:$0xff]
      %v1339 = vld [vmem:[%s269 + $0x1fb0] sm:$0xff]
      %v1340 = vld [vmem:[%s269 + $0x1fb8] sm:$0xff]
      %v1341 = vld [vmem:[%s269 + $0x1fc0] sm:$0xff]
      %v1342 = vld [vmem:[%s269 + $0x1fc8] sm:$0xff]
      %v1343 = vld [vmem:[%s269 + $0x1fd0] sm:$0xff]
      %v1344 = vld [vmem:[%s269 + $0x1fd8] sm:$0xff]
      %v1345 = vld [vmem:[%s269 + $0x1fe0] sm:$0xff]
      %v1346 = vld [vmem:[%s269 + $0x1fe8] sm:$0xff]
      %v1347 = vld [vmem:[%s269 + $0x1ff0] sm:$0xff]
      %v1348 = vld [vmem:[%s269 + $0x1ff8] sm:$0xff]
      %v1349 = vld [vmem:[%s269 + $0x2000] sm:$0xff]
      %v1350 = vld [vmem:[%s269 + $0x2008] sm:$0xff]
      %v1351 = vld [vmem:[%s269 + $0x2010] sm:$0xff]
      %v1352 = vld [vmem:[%s269 + $0x2018] sm:$0xff]
      %v1353 = vld [vmem:[%s269 + $0x2020] sm:$0xff]
      %v1354 = vld [vmem:[%s269 + $0x2028] sm:$0xff]
      %v1355 = vld [vmem:[%s269 + $0x2030] sm:$0xff]
      %v1356 = vld [vmem:[%s269 + $0x2038] sm:$0xff]
      %v1357 = vld [vmem:[%s269 + $0x2040] sm:$0xff]
      %v1358 = vld [vmem:[%s269 + $0x2048] sm:$0xff]
      %v1359 = vld [vmem:[%s269 + $0x2050] sm:$0xff]
      %v1360 = vld [vmem:[%s269 + $0x2058] sm:$0xff]
      %v1361 = vld [vmem:[%s269 + $0x2060] sm:$0xff]
      %v1362 = vld [vmem:[%s269 + $0x2068] sm:$0xff]
      %v1363 = vld [vmem:[%s269 + $0x2070] sm:$0xff]
      %v1364 = vld [vmem:[%s269 + $0x2078] sm:$0xff]
      %v1365 = vld [vmem:[%s269 + $0x2080] sm:$0xff]
      %v1366 = vld [vmem:[%s269 + $0x2088] sm:$0xff]
      %v1367 = vld [vmem:[%s269 + $0x2090] sm:$0xff]
      %v1368 = vld [vmem:[%s269 + $0x2098] sm:$0xff]
      %v1369 = vld [vmem:[%s269 + $0x20a0] sm:$0xff]
      %v1370 = vld [vmem:[%s269 + $0x20a8] sm:$0xff]
      %v1371 = vld [vmem:[%s269 + $0x20b0] sm:$0xff]
      %v1372 = vld [vmem:[%s269 + $0x20b8] sm:$0xff]
      %v1373 = vld [vmem:[%s269 + $0x20c0] sm:$0xff]
      %v1374 = vld [vmem:[%s269 + $0x20c8] sm:$0xff]
      %v1375 = vld [vmem:[%s269 + $0x20d0] sm:$0xff]
      %v1376 = vld [vmem:[%s269 + $0x20d8] sm:$0xff]
      %v1377 = vld [vmem:[%s269 + $0x20e0] sm:$0xff]
      %v1378 = vld [vmem:[%s269 + $0x20e8] sm:$0xff]
      %v1379 = vld [vmem:[%s269 + $0x20f0] sm:$0xff]
      %v1380 = vld [vmem:[%s269 + $0x20f8] sm:$0xff]
      %v1381 = vld [vmem:[%s269 + $0x2100] sm:$0xff]
      %v1382 = vld [vmem:[%s269 + $0x2108] sm:$0xff]
      %v1383 = vld [vmem:[%s269 + $0x2110] sm:$0xff]
      %v1384 = vld [vmem:[%s269 + $0x2118] sm:$0xff]
      %v1385 = vld [vmem:[%s269 + $0x2120] sm:$0xff]
      %v1386 = vld [vmem:[%s269 + $0x2128] sm:$0xff]
      %v1387 = vld [vmem:[%s269 + $0x2130] sm:$0xff]
      %v1388 = vld [vmem:[%s269 + $0x2138] sm:$0xff]
      %v1389 = vld [vmem:[%s269 + $0x2140] sm:$0xff]
      %v1390 = vld [vmem:[%s269 + $0x2148] sm:$0xff]
      %v1391 = vld [vmem:[%s269 + $0x2150] sm:$0xff]
      %v1392 = vld [vmem:[%s269 + $0x2158] sm:$0xff]
      %v1393 = vld [vmem:[%s269 + $0x2160] sm:$0xff]
      %v1394 = vld [vmem:[%s269 + $0x2168] sm:$0xff]
      %v1395 = vld [vmem:[%s269 + $0x2170] sm:$0xff]
      %v1396 = vld [vmem:[%s269 + $0x2178] sm:$0xff]
      %v1397 = vld [vmem:[%s269 + $0x2180] sm:$0xff]
      %v1398 = vld [vmem:[%s269 + $0x2188] sm:$0xff]
      %v1399 = vld [vmem:[%s269 + $0x2190] sm:$0xff]
      %v1400 = vld [vmem:[%s269 + $0x2198] sm:$0xff]
      %v1401 = vld [vmem:[%s269 + $0x21a0] sm:$0xff]
      %v1402 = vld [vmem:[%s269 + $0x21a8] sm:$0xff]
      %v1403 = vld [vmem:[%s269 + $0x21b0] sm:$0xff]
      %v1404 = vld [vmem:[%s269 + $0x21b8] sm:$0xff]
      %v1405 = vld [vmem:[%s269 + $0x21c0] sm:$0xff]
      %v1406 = vld [vmem:[%s269 + $0x21c8] sm:$0xff]
      %v1407 = vld [vmem:[%s269 + $0x21d0] sm:$0xff]
      %v1408 = vld [vmem:[%s269 + $0x21d8] sm:$0xff]
      %v1409 = vld [vmem:[%s269 + $0x21e0] sm:$0xff]
      %v1410 = vld [vmem:[%s269 + $0x21e8] sm:$0xff]
      %v1411 = vld [vmem:[%s269 + $0x21f0] sm:$0xff]
      %v1412 = vld [vmem:[%s269 + $0x21f8] sm:$0xff]
      %v1413 = vld [vmem:[%s269 + $0x2200] sm:$0xff]
      %v1414 = vld [vmem:[%s269 + $0x2208] sm:$0xff]
      %v1415 = vld [vmem:[%s269 + $0x2210] sm:$0xff]
      %v1416 = vld [vmem:[%s269 + $0x2218] sm:$0xff]
      %v1417 = vld [vmem:[%s269 + $0x2220] sm:$0xff]
      %v1418 = vld [vmem:[%s269 + $0x2228] sm:$0xff]
      %v1419 = vld [vmem:[%s269 + $0x2230] sm:$0xff]
      %v1420 = vld [vmem:[%s269 + $0x2238] sm:$0xff]
      %v1421 = vld [vmem:[%s269 + $0x2240] sm:$0xff]
      %v1422 = vld [vmem:[%s269 + $0x2248] sm:$0xff]
      %v1423 = vld [vmem:[%s269 + $0x2250] sm:$0xff]
      %v1424 = vld [vmem:[%s269 + $0x2258] sm:$0xff]
      %v1425 = vld [vmem:[%s269 + $0x2260] sm:$0xff]
      %v1426 = vld [vmem:[%s269 + $0x2268] sm:$0xff]
      %v1427 = vld [vmem:[%s269 + $0x2270] sm:$0xff]
      %v1428 = vld [vmem:[%s269 + $0x2278] sm:$0xff]
      %v1429 = vld [vmem:[%s269 + $0x2280] sm:$0xff]
      %v1430 = vld [vmem:[%s269 + $0x2288] sm:$0xff]
      %v1431 = vld [vmem:[%s269 + $0x2290] sm:$0xff]
      %v1432 = vld [vmem:[%s269 + $0x2298] sm:$0xff]
      %v1433 = vld [vmem:[%s269 + $0x22a0] sm:$0xff]
      %v1434 = vld [vmem:[%s269 + $0x22a8] sm:$0xff]
      %v1435 = vld [vmem:[%s269 + $0x22b0] sm:$0xff]
      %v1436 = vld [vmem:[%s269 + $0x22b8] sm:$0xff]
      %v1437 = vld [vmem:[%s269 + $0x22c0] sm:$0xff]
      %v1438 = vld [vmem:[%s269 + $0x22c8] sm:$0xff]
      %v1439 = vld [vmem:[%s269 + $0x22d0] sm:$0xff]
      %v1440 = vld [vmem:[%s269 + $0x22d8] sm:$0xff]
      %v1441 = vld [vmem:[%s269 + $0x22e0] sm:$0xff]
      %v1442 = vld [vmem:[%s269 + $0x22e8] sm:$0xff]
      %v1443 = vld [vmem:[%s269 + $0x22f0] sm:$0xff]
      %v1444 = vld [vmem:[%s269 + $0x22f8] sm:$0xff]
      %v1445 = vld [vmem:[%s269 + $0x2300] sm:$0xff]
      %v1446 = vld [vmem:[%s269 + $0x2308] sm:$0xff]
      %v1447 = vld [vmem:[%s269 + $0x2310] sm:$0xff]
      %v1448 = vld [vmem:[%s269 + $0x2318] sm:$0xff]
      %v1449 = vld [vmem:[%s269 + $0x2320] sm:$0xff]
      %v1450 = vld [vmem:[%s269 + $0x2328] sm:$0xff]
      %v1451 = vld [vmem:[%s269 + $0x2330] sm:$0xff]
      %v1452 = vld [vmem:[%s269 + $0x2338] sm:$0xff]
      %v1453 = vld [vmem:[%s269 + $0x2340] sm:$0xff]
      %v1454 = vld [vmem:[%s269 + $0x2348] sm:$0xff]
      %v1455 = vld [vmem:[%s269 + $0x2350] sm:$0xff]
      %v1456 = vld [vmem:[%s269 + $0x2358] sm:$0xff]
      %v1457 = vld [vmem:[%s269 + $0x2360] sm:$0xff]
      %v1458 = vld [vmem:[%s269 + $0x2368] sm:$0xff]
      %v1459 = vld [vmem:[%s269 + $0x2370] sm:$0xff]
      %v1460 = vld [vmem:[%s269 + $0x2378] sm:$0xff]
      %v1461 = vld [vmem:[%s269 + $0x2380] sm:$0xff]
      %v1462 = vld [vmem:[%s269 + $0x2388] sm:$0xff]
      %v1463 = vld [vmem:[%s269 + $0x2390] sm:$0xff]
      %v1464 = vld [vmem:[%s269 + $0x2398] sm:$0xff]
      %v1465 = vld [vmem:[%s269 + $0x23a0] sm:$0xff]
      %v1466 = vld [vmem:[%s269 + $0x23a8] sm:$0xff]
      %v1467 = vld [vmem:[%s269 + $0x23b0] sm:$0xff]
      %v1468 = vld [vmem:[%s269 + $0x23b8] sm:$0xff]
      %v1469 = vld [vmem:[%s269 + $0x23c0] sm:$0xff]
      %v1470 = vld [vmem:[%s269 + $0x23c8] sm:$0xff]
      %v1471 = vld [vmem:[%s269 + $0x23d0] sm:$0xff]
      %v1472 = vld [vmem:[%s269 + $0x23d8] sm:$0xff]
      %v1473 = vld [vmem:[%s269 + $0x23e0] sm:$0xff]
      %v1474 = vld [vmem:[%s269 + $0x23e8] sm:$0xff]
      %v1475 = vld [vmem:[%s269 + $0x23f0] sm:$0xff]
      %v1476 = vld [vmem:[%s269 + $0x23f8] sm:$0xff]
      %v1477 = vld [vmem:[%s269 + $0x2400] sm:$0xff]
      %v1478 = vld [vmem:[%s269 + $0x2408] sm:$0xff]
      %v1479 = vld [vmem:[%s269 + $0x2410] sm:$0xff]
      %v1480 = vld [vmem:[%s269 + $0x2418] sm:$0xff]
      %v1481 = vld [vmem:[%s269 + $0x2420] sm:$0xff]
      %v1482 = vld [vmem:[%s269 + $0x2428] sm:$0xff]
      %v1483 = vld [vmem:[%s269 + $0x2430] sm:$0xff]
      %v1484 = vld [vmem:[%s269 + $0x2438] sm:$0xff]
      %v1485 = vld [vmem:[%s269 + $0x2440] sm:$0xff]
      %v1486 = vld [vmem:[%s269 + $0x2448] sm:$0xff]
      %v1487 = vld [vmem:[%s269 + $0x2450] sm:$0xff]
      %v1488 = vld [vmem:[%s269 + $0x2458] sm:$0xff]
      %v1489 = vld [vmem:[%s269 + $0x2460] sm:$0xff]
      %v1490 = vld [vmem:[%s269 + $0x2468] sm:$0xff]
      %v1491 = vld [vmem:[%s269 + $0x2470] sm:$0xff]
      %v1492 = vld [vmem:[%s269 + $0x2478] sm:$0xff]
      %v1493 = vld [vmem:[%s269 + $0x2480] sm:$0xff]
      %v1494 = vld [vmem:[%s269 + $0x2488] sm:$0xff]
      %v1495 = vld [vmem:[%s269 + $0x2490] sm:$0xff]
      %v1496 = vld [vmem:[%s269 + $0x2498] sm:$0xff]
      %v1497 = vld [vmem:[%s269 + $0x24a0] sm:$0xff]
      %v1498 = vld [vmem:[%s269 + $0x24a8] sm:$0xff]
      %v1499 = vld [vmem:[%s269 + $0x24b0] sm:$0xff]
      %v1500 = vld [vmem:[%s269 + $0x24b8] sm:$0xff]
      %v1501 = vld [vmem:[%s269 + $0x24c0] sm:$0xff]
      %v1502 = vld [vmem:[%s269 + $0x24c8] sm:$0xff]
      %v1503 = vld [vmem:[%s269 + $0x24d0] sm:$0xff]
      %v1504 = vld [vmem:[%s269 + $0x24d8] sm:$0xff]
      %v1505 = vld [vmem:[%s269 + $0x24e0] sm:$0xff]
      %v1506 = vld [vmem:[%s269 + $0x24e8] sm:$0xff]
      %v1507 = vld [vmem:[%s269 + $0x24f0] sm:$0xff]
      %v1508 = vld [vmem:[%s269 + $0x24f8] sm:$0xff]
      %v1509 = vld [vmem:[%s269 + $0x2500] sm:$0xff]
      %v1510 = vld [vmem:[%s269 + $0x2508] sm:$0xff]
      %v1511 = vld [vmem:[%s269 + $0x2510] sm:$0xff]
      %v1512 = vld [vmem:[%s269 + $0x2518] sm:$0xff]
      %v1513 = vld [vmem:[%s269 + $0x2520] sm:$0xff]
      %v1514 = vld [vmem:[%s269 + $0x2528] sm:$0xff]
      %v1515 = vld [vmem:[%s269 + $0x2530] sm:$0xff]
      %v1516 = vld [vmem:[%s269 + $0x2538] sm:$0xff]
      %v1517 = vld [vmem:[%s269 + $0x2540] sm:$0xff]
      %v1518 = vld [vmem:[%s269 + $0x2548] sm:$0xff]
      %v1519 = vld [vmem:[%s269 + $0x2550] sm:$0xff]
      %v1520 = vld [vmem:[%s269 + $0x2558] sm:$0xff]
      %v1521 = vld [vmem:[%s269 + $0x2560] sm:$0xff]
      %v1522 = vld [vmem:[%s269 + $0x2568] sm:$0xff]
      %v1523 = vld [vmem:[%s269 + $0x2570] sm:$0xff]
      %v1524 = vld [vmem:[%s269 + $0x2578] sm:$0xff]
      %v1525 = vld [vmem:[%s269 + $0x2580] sm:$0xff]
      %v1526 = vld [vmem:[%s269 + $0x2588] sm:$0xff]
      %v1527 = vld [vmem:[%s269 + $0x2590] sm:$0xff]
      %v1528 = vld [vmem:[%s269 + $0x2598] sm:$0xff]
      %v1529 = vld [vmem:[%s269 + $0x25a0] sm:$0xff]
      %v1530 = vld [vmem:[%s269 + $0x25a8] sm:$0xff]
      %v1531 = vld [vmem:[%s269 + $0x25b0] sm:$0xff]
      %v1532 = vld [vmem:[%s269 + $0x25b8] sm:$0xff]
      %v1533 = vld [vmem:[%s269 + $0x25c0] sm:$0xff]
      %v1534 = vld [vmem:[%s269 + $0x25c8] sm:$0xff]
      %v1535 = vld [vmem:[%s269 + $0x25d0] sm:$0xff]
      %v1536 = vld [vmem:[%s269 + $0x25d8] sm:$0xff]
      %v1537 = vld [vmem:[%s269 + $0x25e0] sm:$0xff]
      %v1538 = vld [vmem:[%s269 + $0x25e8] sm:$0xff]
      %v1539 = vld [vmem:[%s269 + $0x25f0] sm:$0xff]
      %v1540 = vld [vmem:[%s269 + $0x25f8] sm:$0xff]
      %v1541 = vld [vmem:[%s269 + $0x2600] sm:$0xff]
      %v1542 = vld [vmem:[%s269 + $0x2608] sm:$0xff]
      %v1543 = vld [vmem:[%s269 + $0x2610] sm:$0xff]
      %v1544 = vld [vmem:[%s269 + $0x2618] sm:$0xff]
      %v1545 = vld [vmem:[%s269 + $0x2620] sm:$0xff]
      %v1546 = vld [vmem:[%s269 + $0x2628] sm:$0xff]
      %v1547 = vld [vmem:[%s269 + $0x2630] sm:$0xff]
      %v1548 = vld [vmem:[%s269 + $0x2638] sm:$0xff]
      %v1549 = vld [vmem:[%s269 + $0x2640] sm:$0xff]
      %v1550 = vld [vmem:[%s269 + $0x2648] sm:$0xff]
      %v1551 = vld [vmem:[%s269 + $0x2650] sm:$0xff]
      %v1552 = vld [vmem:[%s269 + $0x2658] sm:$0xff]
      %v1553 = vld [vmem:[%s269 + $0x2660] sm:$0xff]
      %v1554 = vld [vmem:[%s269 + $0x2668] sm:$0xff]
      %v1555 = vld [vmem:[%s269 + $0x2670] sm:$0xff]
      %v1556 = vld [vmem:[%s269 + $0x2678] sm:$0xff]
      %v1557 = vld [vmem:[%s269 + $0x2680] sm:$0xff]
      %v1558 = vld [vmem:[%s269 + $0x2688] sm:$0xff]
      %v1559 = vld [vmem:[%s269 + $0x2690] sm:$0xff]
      %v1560 = vld [vmem:[%s269 + $0x2698] sm:$0xff]
      %v1561 = vld [vmem:[%s269 + $0x26a0] sm:$0xff]
      %v1562 = vld [vmem:[%s269 + $0x26a8] sm:$0xff]
      %v1563 = vld [vmem:[%s269 + $0x26b0] sm:$0xff]
      %v1564 = vld [vmem:[%s269 + $0x26b8] sm:$0xff]
      %v1565 = vld [vmem:[%s269 + $0x26c0] sm:$0xff]
      %v1566 = vld [vmem:[%s269 + $0x26c8] sm:$0xff]
      %v1567 = vld [vmem:[%s269 + $0x26d0] sm:$0xff]
      %v1568 = vld [vmem:[%s269 + $0x26d8] sm:$0xff]
      %v1569 = vld [vmem:[%s269 + $0x26e0] sm:$0xff]
      %v1570 = vld [vmem:[%s269 + $0x26e8] sm:$0xff]
      %v1571 = vld [vmem:[%s269 + $0x26f0] sm:$0xff]
      %v1572 = vld [vmem:[%s269 + $0x26f8] sm:$0xff]
      %v1573 = vld [vmem:[%s269 + $0x2700] sm:$0xff]
      %v1574 = vld [vmem:[%s269 + $0x2708] sm:$0xff]
      %v1575 = vld [vmem:[%s269 + $0x2710] sm:$0xff]
      %v1576 = vld [vmem:[%s269 + $0x2718] sm:$0xff]
      %v1577 = vld [vmem:[%s269 + $0x2720] sm:$0xff]
      %v1578 = vld [vmem:[%s269 + $0x2728] sm:$0xff]
      %v1579 = vld [vmem:[%s269 + $0x2730] sm:$0xff]
      %v1580 = vld [vmem:[%s269 + $0x2738] sm:$0xff]
      %v1581 = vld [vmem:[%s269 + $0x2740] sm:$0xff]
      %v1582 = vld [vmem:[%s269 + $0x2748] sm:$0xff]
      %v1583 = vld [vmem:[%s269 + $0x2750] sm:$0xff]
      %v1584 = vld [vmem:[%s269 + $0x2758] sm:$0xff]
      %v1585 = vld [vmem:[%s269 + $0x2760] sm:$0xff]
      %v1586 = vld [vmem:[%s269 + $0x2768] sm:$0xff]
      %v1587 = vld [vmem:[%s269 + $0x2770] sm:$0xff]
      %v1588 = vld [vmem:[%s269 + $0x2778] sm:$0xff]
      %v1589 = vld [vmem:[%s269 + $0x2780] sm:$0xff]
      %v1590 = vld [vmem:[%s269 + $0x2788] sm:$0xff]
      %v1591 = vld [vmem:[%s269 + $0x2790] sm:$0xff]
      %v1592 = vld [vmem:[%s269 + $0x2798] sm:$0xff]
      %v1593 = vld [vmem:[%s269 + $0x27a0] sm:$0xff]
      %v1594 = vld [vmem:[%s269 + $0x27a8] sm:$0xff]
      %v1595 = vld [vmem:[%s269 + $0x27b0] sm:$0xff]
      %v1596 = vld [vmem:[%s269 + $0x27b8] sm:$0xff]
      %v1597 = vld [vmem:[%s269 + $0x27c0] sm:$0xff]
      %v1598 = vld [vmem:[%s269 + $0x27c8] sm:$0xff]
      %v1599 = vld [vmem:[%s269 + $0x27d0] sm:$0xff]
      %v1600 = vld [vmem:[%s269 + $0x27d8] sm:$0xff]
      %v1601 = vld [vmem:[%s269 + $0x27e0] sm:$0xff]
      %v1602 = vld [vmem:[%s269 + $0x27e8] sm:$0xff]
      %v1603 = vld [vmem:[%s269 + $0x27f0] sm:$0xff]
      %v1604 = vld [vmem:[%s269 + $0x27f8] sm:$0xff]
      %v1605 = vld [vmem:[%s269 + $0x2800] sm:$0xff]
      %v1606 = vld [vmem:[%s269 + $0x2808] sm:$0xff]
      %v1607 = vld [vmem:[%s269 + $0x2810] sm:$0xff]
      %v1608 = vld [vmem:[%s269 + $0x2818] sm:$0xff]
      %v1609 = vld [vmem:[%s269 + $0x2820] sm:$0xff]
      %v1610 = vld [vmem:[%s269 + $0x2828] sm:$0xff]
      %v1611 = vld [vmem:[%s269 + $0x2830] sm:$0xff]
      %v1612 = vld [vmem:[%s269 + $0x2838] sm:$0xff]
      %v1613 = vld [vmem:[%s269 + $0x2840] sm:$0xff]
      %v1614 = vld [vmem:[%s269 + $0x2848] sm:$0xff]
      %v1615 = vld [vmem:[%s269 + $0x2850] sm:$0xff]
      %v1616 = vld [vmem:[%s269 + $0x2858] sm:$0xff]
      %v1617 = vld [vmem:[%s269 + $0x2860] sm:$0xff]
      %v1618 = vld [vmem:[%s269 + $0x2868] sm:$0xff]
      %v1619 = vld [vmem:[%s269 + $0x2870] sm:$0xff]
      %v1620 = vld [vmem:[%s269 + $0x2878] sm:$0xff]
      %v1621 = vld [vmem:[%s269 + $0x2880] sm:$0xff]
      %v1622 = vld [vmem:[%s269 + $0x2888] sm:$0xff]
      %v1623 = vld [vmem:[%s269 + $0x2890] sm:$0xff]
      %v1624 = vld [vmem:[%s269 + $0x2898] sm:$0xff]
      %v1625 = vld [vmem:[%s269 + $0x28a0] sm:$0xff]
      %v1626 = vld [vmem:[%s269 + $0x28a8] sm:$0xff]
      %v1627 = vld [vmem:[%s269 + $0x28b0] sm:$0xff]
      %v1628 = vld [vmem:[%s269 + $0x28b8] sm:$0xff]
      %v1629 = vld [vmem:[%s269 + $0x28c0] sm:$0xff]
      %v1630 = vld [vmem:[%s269 + $0x28c8] sm:$0xff]
      %v1631 = vld [vmem:[%s269 + $0x28d0] sm:$0xff]
      %v1632 = vld [vmem:[%s269 + $0x28d8] sm:$0xff]
      %v1633 = vld [vmem:[%s269 + $0x28e0] sm:$0xff]
      %v1634 = vld [vmem:[%s269 + $0x28e8] sm:$0xff]
      %v1635 = vld [vmem:[%s269 + $0x28f0] sm:$0xff]
      %v1636 = vld [vmem:[%s269 + $0x28f8] sm:$0xff]
      %v1637 = vld [vmem:[%s269 + $0x2900] sm:$0xff]
      %v1638 = vld [vmem:[%s269 + $0x2908] sm:$0xff]
      %v1639 = vld [vmem:[%s269 + $0x2910] sm:$0xff]
      %v1640 = vld [vmem:[%s269 + $0x2918] sm:$0xff]
      %v1641 = vld [vmem:[%s269 + $0x2920] sm:$0xff]
      %v1642 = vld [vmem:[%s269 + $0x2928] sm:$0xff]
      %v1643 = vld [vmem:[%s269 + $0x2930] sm:$0xff]
      %v1644 = vld [vmem:[%s269 + $0x2938] sm:$0xff]
      %v1645 = vld [vmem:[%s269 + $0x2940] sm:$0xff]
      %v1646 = vld [vmem:[%s269 + $0x2948] sm:$0xff]
      %v1647 = vld [vmem:[%s269 + $0x2950] sm:$0xff]
      %v1648 = vld [vmem:[%s269 + $0x2958] sm:$0xff]
      %v1649 = vld [vmem:[%s269 + $0x2960] sm:$0xff]
      %v1650 = vld [vmem:[%s269 + $0x2968] sm:$0xff]
      %v1651 = vld [vmem:[%s269 + $0x2970] sm:$0xff]
      %v1652 = vld [vmem:[%s269 + $0x2978] sm:$0xff]
      %v1653 = vld [vmem:[%s269 + $0x2980] sm:$0xff]
      %v1654 = vld [vmem:[%s269 + $0x2988] sm:$0xff]
      %v1655 = vld [vmem:[%s269 + $0x2990] sm:$0xff]
      %v1656 = vld [vmem:[%s269 + $0x2998] sm:$0xff]
      %v1657 = vld [vmem:[%s269 + $0x29a0] sm:$0xff]
      %v1658 = vld [vmem:[%s269 + $0x29a8] sm:$0xff]
      %v1659 = vld [vmem:[%s269 + $0x29b0] sm:$0xff]
      %v1660 = vld [vmem:[%s269 + $0x29b8] sm:$0xff]
      %v1661 = vld [vmem:[%s269 + $0x29c0] sm:$0xff]
      %v1662 = vld [vmem:[%s269 + $0x29c8] sm:$0xff]
      %v1663 = vld [vmem:[%s269 + $0x29d0] sm:$0xff]
      %v1664 = vld [vmem:[%s269 + $0x29d8] sm:$0xff]
      %v1665 = vld [vmem:[%s269 + $0x29e0] sm:$0xff]
      %v1666 = vld [vmem:[%s269 + $0x29e8] sm:$0xff]
      %v1667 = vld [vmem:[%s269 + $0x29f0] sm:$0xff]
      %v1668 = vld [vmem:[%s269 + $0x29f8] sm:$0xff]
      %v1669 = vld [vmem:[%s269 + $0x2a00] sm:$0xff]
      %v1670 = vld [vmem:[%s269 + $0x2a08] sm:$0xff]
      %v1671 = vld [vmem:[%s269 + $0x2a10] sm:$0xff]
      %v1672 = vld [vmem:[%s269 + $0x2a18] sm:$0xff]
      %v1673 = vld [vmem:[%s269 + $0x2a20] sm:$0xff]
      %v1674 = vld [vmem:[%s269 + $0x2a28] sm:$0xff]
      %v1675 = vld [vmem:[%s269 + $0x2a30] sm:$0xff]
      %v1676 = vld [vmem:[%s269 + $0x2a38] sm:$0xff]
      %v1677 = vld [vmem:[%s269 + $0x2a40] sm:$0xff]
      %v1678 = vld [vmem:[%s269 + $0x2a48] sm:$0xff]
      %v1679 = vld [vmem:[%s269 + $0x2a50] sm:$0xff]
      %v1680 = vld [vmem:[%s269 + $0x2a58] sm:$0xff]
      %v1681 = vld [vmem:[%s269 + $0x2a60] sm:$0xff]
      %v1682 = vld [vmem:[%s269 + $0x2a68] sm:$0xff]
      %v1683 = vld [vmem:[%s269 + $0x2a70] sm:$0xff]
      %v1684 = vld [vmem:[%s269 + $0x2a78] sm:$0xff]
      %v1685 = vld [vmem:[%s269 + $0x2a80] sm:$0xff]
      %v1686 = vld [vmem:[%s269 + $0x2a88] sm:$0xff]
      %v1687 = vld [vmem:[%s269 + $0x2a90] sm:$0xff]
      %v1688 = vld [vmem:[%s269 + $0x2a98] sm:$0xff]
      %v1689 = vld [vmem:[%s269 + $0x2aa0] sm:$0xff]
      %v1690 = vld [vmem:[%s269 + $0x2aa8] sm:$0xff]
      %v1691 = vld [vmem:[%s269 + $0x2ab0] sm:$0xff]
      %v1692 = vld [vmem:[%s269 + $0x2ab8] sm:$0xff]
      %v1693 = vld [vmem:[%s269 + $0x2ac0] sm:$0xff]
      %v1694 = vld [vmem:[%s269 + $0x2ac8] sm:$0xff]
      %v1695 = vld [vmem:[%s269 + $0x2ad0] sm:$0xff]
      %v1696 = vld [vmem:[%s269 + $0x2ad8] sm:$0xff]
      %v1697 = vld [vmem:[%s269 + $0x2ae0] sm:$0xff]
      %v1698 = vld [vmem:[%s269 + $0x2ae8] sm:$0xff]
      %v1699 = vld [vmem:[%s269 + $0x2af0] sm:$0xff]
      %v1700 = vld [vmem:[%s269 + $0x2af8] sm:$0xff]
      %v1701 = vld [vmem:[%s269 + $0x2b00] sm:$0xff]
      %v1702 = vld [vmem:[%s269 + $0x2b08] sm:$0xff]
      %v1703 = vld [vmem:[%s269 + $0x2b10] sm:$0xff]
      %v1704 = vld [vmem:[%s269 + $0x2b18] sm:$0xff]
      %v1705 = vld [vmem:[%s269 + $0x2b20] sm:$0xff]
      %v1706 = vld [vmem:[%s269 + $0x2b28] sm:$0xff]
      %v1707 = vld [vmem:[%s269 + $0x2b30] sm:$0xff]
      %v1708 = vld [vmem:[%s269 + $0x2b38] sm:$0xff]
      %v1709 = vld [vmem:[%s269 + $0x2b40] sm:$0xff]
      %v1710 = vld [vmem:[%s269 + $0x2b48] sm:$0xff]
      %v1711 = vld [vmem:[%s269 + $0x2b50] sm:$0xff]
      %v1712 = vld [vmem:[%s269 + $0x2b58] sm:$0xff]
      %v1713 = vld [vmem:[%s269 + $0x2b60] sm:$0xff]
      %v1714 = vld [vmem:[%s269 + $0x2b68] sm:$0xff]
      %v1715 = vld [vmem:[%s269 + $0x2b70] sm:$0xff]
      %v1716 = vld [vmem:[%s269 + $0x2b78] sm:$0xff]
      %v1717 = vld [vmem:[%s269 + $0x2b80] sm:$0xff]
      %v1718 = vld [vmem:[%s269 + $0x2b88] sm:$0xff]
      %v1719 = vld [vmem:[%s269 + $0x2b90] sm:$0xff]
      %v1720 = vld [vmem:[%s269 + $0x2b98] sm:$0xff]
      %v1721 = vld [vmem:[%s269 + $0x2ba0] sm:$0xff]
      %v1722 = vld [vmem:[%s269 + $0x2ba8] sm:$0xff]
      %v1723 = vld [vmem:[%s269 + $0x2bb0] sm:$0xff]
      %v1724 = vld [vmem:[%s269 + $0x2bb8] sm:$0xff]
      %v1725 = vld [vmem:[%s269 + $0x2bc0] sm:$0xff]
      %v1726 = vld [vmem:[%s269 + $0x2bc8] sm:$0xff]
      %v1727 = vld [vmem:[%s269 + $0x2bd0] sm:$0xff]
      %v1728 = vld [vmem:[%s269 + $0x2bd8] sm:$0xff]
      %v1729 = vld [vmem:[%s269 + $0x2be0] sm:$0xff]
      %v1730 = vld [vmem:[%s269 + $0x2be8] sm:$0xff]
      %v1731 = vld [vmem:[%s269 + $0x2bf0] sm:$0xff]
      %v1732 = vld [vmem:[%s269 + $0x2bf8] sm:$0xff]
      %v1733 = vld [vmem:[%s269 + $0x2c00] sm:$0xff]
      %v1734 = vld [vmem:[%s269 + $0x2c08] sm:$0xff]
      %v1735 = vld [vmem:[%s269 + $0x2c10] sm:$0xff]
      %v1736 = vld [vmem:[%s269 + $0x2c18] sm:$0xff]
      %v1737 = vld [vmem:[%s269 + $0x2c20] sm:$0xff]
      %v1738 = vld [vmem:[%s269 + $0x2c28] sm:$0xff]
      %v1739 = vld [vmem:[%s269 + $0x2c30] sm:$0xff]
      %v1740 = vld [vmem:[%s269 + $0x2c38] sm:$0xff]
      %v1741 = vld [vmem:[%s269 + $0x2c40] sm:$0xff]
      %v1742 = vld [vmem:[%s269 + $0x2c48] sm:$0xff]
      %v1743 = vld [vmem:[%s269 + $0x2c50] sm:$0xff]
      %v1744 = vld [vmem:[%s269 + $0x2c58] sm:$0xff]
      %v1745 = vld [vmem:[%s269 + $0x2c60] sm:$0xff]
      %v1746 = vld [vmem:[%s269 + $0x2c68] sm:$0xff]
      %v1747 = vld [vmem:[%s269 + $0x2c70] sm:$0xff]
      %v1748 = vld [vmem:[%s269 + $0x2c78] sm:$0xff]
      %v1749 = vld [vmem:[%s269 + $0x2c80] sm:$0xff]
      %v1750 = vld [vmem:[%s269 + $0x2c88] sm:$0xff]
      %v1751 = vld [vmem:[%s269 + $0x2c90] sm:$0xff]
      %v1752 = vld [vmem:[%s269 + $0x2c98] sm:$0xff]
      %v1753 = vld [vmem:[%s269 + $0x2ca0] sm:$0xff]
      %v1754 = vld [vmem:[%s269 + $0x2ca8] sm:$0xff]
      %v1755 = vld [vmem:[%s269 + $0x2cb0] sm:$0xff]
      %v1756 = vld [vmem:[%s269 + $0x2cb8] sm:$0xff]
      %v1757 = vld [vmem:[%s269 + $0x2cc0] sm:$0xff]
      %v1758 = vld [vmem:[%s269 + $0x2cc8] sm:$0xff]
      %v1759 = vld [vmem:[%s269 + $0x2cd0] sm:$0xff]
      %v1760 = vld [vmem:[%s269 + $0x2cd8] sm:$0xff]
      %v1761 = vld [vmem:[%s269 + $0x2ce0] sm:$0xff]
      %v1762 = vld [vmem:[%s269 + $0x2ce8] sm:$0xff]
      %v1763 = vld [vmem:[%s269 + $0x2cf0] sm:$0xff]
      %v1764 = vld [vmem:[%s269 + $0x2cf8] sm:$0xff]
      %v1765 = vld [vmem:[%s269 + $0x2d00] sm:$0xff]
      %v1766 = vld [vmem:[%s269 + $0x2d08] sm:$0xff]
      %v1767 = vld [vmem:[%s269 + $0x2d10] sm:$0xff]
      %v1768 = vld [vmem:[%s269 + $0x2d18] sm:$0xff]
      %v1769 = vld [vmem:[%s269 + $0x2d20] sm:$0xff]
      %v1770 = vld [vmem:[%s269 + $0x2d28] sm:$0xff]
      %v1771 = vld [vmem:[%s269 + $0x2d30] sm:$0xff]
      %v1772 = vld [vmem:[%s269 + $0x2d38] sm:$0xff]
      %v1773 = vld [vmem:[%s269 + $0x2d40] sm:$0xff]
      %v1774 = vld [vmem:[%s269 + $0x2d48] sm:$0xff]
      %v1775 = vld [vmem:[%s269 + $0x2d50] sm:$0xff]
      %v1776 = vld [vmem:[%s269 + $0x2d58] sm:$0xff]
      %v1777 = vld [vmem:[%s269 + $0x2d60] sm:$0xff]
      %v1778 = vld [vmem:[%s269 + $0x2d68] sm:$0xff]
      %v1779 = vld [vmem:[%s269 + $0x2d70] sm:$0xff]
      %v1780 = vld [vmem:[%s269 + $0x2d78] sm:$0xff]
      %v1781 = vld [vmem:[%s269 + $0x2d80] sm:$0xff]
      %v1782 = vld [vmem:[%s269 + $0x2d88] sm:$0xff]
      %v1783 = vld [vmem:[%s269 + $0x2d90] sm:$0xff]
      %v1784 = vld [vmem:[%s269 + $0x2d98] sm:$0xff]
      %v1785 = vld [vmem:[%s269 + $0x2da0] sm:$0xff]
      %v1786 = vld [vmem:[%s269 + $0x2da8] sm:$0xff]
      %v1787 = vld [vmem:[%s269 + $0x2db0] sm:$0xff]
      %v1788 = vld [vmem:[%s269 + $0x2db8] sm:$0xff]
      %v1789 = vld [vmem:[%s269 + $0x2dc0] sm:$0xff]
      %v1790 = vld [vmem:[%s269 + $0x2dc8] sm:$0xff]
      %v1791 = vld [vmem:[%s269 + $0x2dd0] sm:$0xff]
      %v1792 = vld [vmem:[%s269 + $0x2dd8] sm:$0xff]
      %v1793 = vld [vmem:[%s269 + $0x2de0] sm:$0xff]
      %v1794 = vld [vmem:[%s269 + $0x2de8] sm:$0xff]
      %v1795 = vld [vmem:[%s269 + $0x2df0] sm:$0xff]
      %v1796 = vld [vmem:[%s269 + $0x2df8] sm:$0xff]
      %v1797 = vld [vmem:[%s269 + $0x2e00] sm:$0xff]
      %v1798 = vld [vmem:[%s269 + $0x2e08] sm:$0xff]
      %v1799 = vld [vmem:[%s269 + $0x2e10] sm:$0xff]
      %v1800 = vld [vmem:[%s269 + $0x2e18] sm:$0xff]
      %v1801 = vld [vmem:[%s269 + $0x2e20] sm:$0xff]
      %v1802 = vld [vmem:[%s269 + $0x2e28] sm:$0xff]
      %v1803 = vld [vmem:[%s269 + $0x2e30] sm:$0xff]
      %v1804 = vld [vmem:[%s269 + $0x2e38] sm:$0xff]
      %v1805 = vld [vmem:[%s269 + $0x2e40] sm:$0xff]
      %v1806 = vld [vmem:[%s269 + $0x2e48] sm:$0xff]
      %v1807 = vld [vmem:[%s269 + $0x2e50] sm:$0xff]
      %v1808 = vld [vmem:[%s269 + $0x2e58] sm:$0xff]
      %v1809 = vld [vmem:[%s269 + $0x2e60] sm:$0xff]
      %v1810 = vld [vmem:[%s269 + $0x2e68] sm:$0xff]
      %v1811 = vld [vmem:[%s269 + $0x2e70] sm:$0xff]
      %v1812 = vld [vmem:[%s269 + $0x2e78] sm:$0xff]
      %v1813 = vld [vmem:[%s269 + $0x2e80] sm:$0xff]
      %v1814 = vld [vmem:[%s269 + $0x2e88] sm:$0xff]
      %v1815 = vld [vmem:[%s269 + $0x2e90] sm:$0xff]
      %v1816 = vld [vmem:[%s269 + $0x2e98] sm:$0xff]
      %v1817 = vld [vmem:[%s269 + $0x2ea0] sm:$0xff]
      %v1818 = vld [vmem:[%s269 + $0x2ea8] sm:$0xff]
      %v1819 = vld [vmem:[%s269 + $0x2eb0] sm:$0xff]
      %v1820 = vld [vmem:[%s269 + $0x2eb8] sm:$0xff]
      %v1821 = vld [vmem:[%s269 + $0x2ec0] sm:$0xff]
      %v1822 = vld [vmem:[%s269 + $0x2ec8] sm:$0xff]
      %v1823 = vld [vmem:[%s269 + $0x2ed0] sm:$0xff]
      %v1824 = vld [vmem:[%s269 + $0x2ed8] sm:$0xff]
      %v1825 = vld [vmem:[%s269 + $0x2ee0] sm:$0xff]
      %v1826 = vld [vmem:[%s269 + $0x2ee8] sm:$0xff]
      %v1827 = vld [vmem:[%s269 + $0x2ef0] sm:$0xff]
      %v1828 = vld [vmem:[%s269 + $0x2ef8] sm:$0xff]
      %v1829 = vld [vmem:[%s269 + $0x2f00] sm:$0xff]
      %v1830 = vld [vmem:[%s269 + $0x2f08] sm:$0xff]
      %v1831 = vld [vmem:[%s269 + $0x2f10] sm:$0xff]
      %v1832 = vld [vmem:[%s269 + $0x2f18] sm:$0xff]
      %v1833 = vld [vmem:[%s269 + $0x2f20] sm:$0xff]
      %v1834 = vld [vmem:[%s269 + $0x2f28] sm:$0xff]
      %v1835 = vld [vmem:[%s269 + $0x2f30] sm:$0xff]
      %v1836 = vld [vmem:[%s269 + $0x2f38] sm:$0xff]
      %v1837 = vld [vmem:[%s269 + $0x2f40] sm:$0xff]
      %v1838 = vld [vmem:[%s269 + $0x2f48] sm:$0xff]
      %v1839 = vld [vmem:[%s269 + $0x2f50] sm:$0xff]
      %v1840 = vld [vmem:[%s269 + $0x2f58] sm:$0xff]
      %v1841 = vld [vmem:[%s269 + $0x2f60] sm:$0xff]
      %v1842 = vld [vmem:[%s269 + $0x2f68] sm:$0xff]
      %v1843 = vld [vmem:[%s269 + $0x2f70] sm:$0xff]
      %v1844 = vld [vmem:[%s269 + $0x2f78] sm:$0xff]
      %v1845 = vld [vmem:[%s269 + $0x2f80] sm:$0xff]
      %v1846 = vld [vmem:[%s269 + $0x2f88] sm:$0xff]
      %v1847 = vld [vmem:[%s269 + $0x2f90] sm:$0xff]
      %v1848 = vld [vmem:[%s269 + $0x2f98] sm:$0xff]
      %v1849 = vld [vmem:[%s269 + $0x2fa0] sm:$0xff]
      %v1850 = vld [vmem:[%s269 + $0x2fa8] sm:$0xff]
      %v1851 = vld [vmem:[%s269 + $0x2fb0] sm:$0xff]
      %v1852 = vld [vmem:[%s269 + $0x2fb8] sm:$0xff]
      %v1853 = vld [vmem:[%s269 + $0x2fc0] sm:$0xff]
      %v1854 = vld [vmem:[%s269 + $0x2fc8] sm:$0xff]
      %v1855 = vld [vmem:[%s269 + $0x2fd0] sm:$0xff]
      %v1856 = vld [vmem:[%s269 + $0x2fd8] sm:$0xff]
      %v1857 = vld [vmem:[%s269 + $0x2fe0] sm:$0xff]
      %v1858 = vld [vmem:[%s269 + $0x2fe8] sm:$0xff]
      %v1859 = vld [vmem:[%s269 + $0x2ff0] sm:$0xff]
      %v1860 = vld [vmem:[%s269 + $0x2ff8] sm:$0xff]
      %v1861 = vld [vmem:[%s269 + $0x3000] sm:$0xff]
      %v1862 = vld [vmem:[%s269 + $0x3008] sm:$0xff]
      %v1863 = vld [vmem:[%s269 + $0x3010] sm:$0xff]
      %v1864 = vld [vmem:[%s269 + $0x3018] sm:$0xff]
      %v1865 = vld [vmem:[%s269 + $0x3020] sm:$0xff]
      %v1866 = vld [vmem:[%s269 + $0x3028] sm:$0xff]
      %v1867 = vld [vmem:[%s269 + $0x3030] sm:$0xff]
      %v1868 = vld [vmem:[%s269 + $0x3038] sm:$0xff]
      %v1869 = vld [vmem:[%s269 + $0x3040] sm:$0xff]
      %v1870 = vld [vmem:[%s269 + $0x3048] sm:$0xff]
      %v1871 = vld [vmem:[%s269 + $0x3050] sm:$0xff]
      %v1872 = vld [vmem:[%s269 + $0x3058] sm:$0xff]
      %v1873 = vld [vmem:[%s269 + $0x3060] sm:$0xff]
      %v1874 = vld [vmem:[%s269 + $0x3068] sm:$0xff]
      %v1875 = vld [vmem:[%s269 + $0x3070] sm:$0xff]
      %v1876 = vld [vmem:[%s269 + $0x3078] sm:$0xff]
      %v1877 = vld [vmem:[%s269 + $0x3080] sm:$0xff]
      %v1878 = vld [vmem:[%s269 + $0x3088] sm:$0xff]
      %v1879 = vld [vmem:[%s269 + $0x3090] sm:$0xff]
      %v1880 = vld [vmem:[%s269 + $0x3098] sm:$0xff]
      %v1881 = vld [vmem:[%s269 + $0x30a0] sm:$0xff]
      %v1882 = vld [vmem:[%s269 + $0x30a8] sm:$0xff]
      %v1883 = vld [vmem:[%s269 + $0x30b0] sm:$0xff]
      %v1884 = vld [vmem:[%s269 + $0x30b8] sm:$0xff]
      %v1885 = vld [vmem:[%s269 + $0x30c0] sm:$0xff]
      %v1886 = vld [vmem:[%s269 + $0x30c8] sm:$0xff]
      %v1887 = vld [vmem:[%s269 + $0x30d0] sm:$0xff]
      %v1888 = vld [vmem:[%s269 + $0x30d8] sm:$0xff]
      %v1889 = vld [vmem:[%s269 + $0x30e0] sm:$0xff]
      %v1890 = vld [vmem:[%s269 + $0x30e8] sm:$0xff]
      %v1891 = vld [vmem:[%s269 + $0x30f0] sm:$0xff]
      %v1892 = vld [vmem:[%s269 + $0x30f8] sm:$0xff]
      %v1900 = vcombine.high %v317, %v317
      %v1902 = vunpack.c.l.s4 1966171168
      %v1903 = vunpack.c.0.s8 %v1902
      %v1904 = vlaneseq
      %v1905 = vshrl.u32 %v1904, 7
      %v1906 = vsub.s32 %v1903, %v1905
      %v1907 = vrot.slane %v317, %v1906
      %v1909 = vunpack.c.l.s4 1966171168
      %v1910 = vunpack.c.0.s8 %v1909
      %v1911 = vlaneseq
      %v1912 = vshrl.u32 %v1911, 7
      %v1913 = vsub.s32 %v1910, %v1912
      %v1914 = vrot.slane %v1900, %v1913
      %v1915 = vcombine.high %v1907, %v1907
      %v1916 = vcombine.high %v1914, %v1914
      %v1918 = vunpack.c.l.s4 1966171168
      %v1919 = vunpack.c.0.s8 %v1918
      %v1920 = vlaneseq
      %v1921 = vshrl.u32 %v1920, 7
      %v1922 = vsub.s32 %v1919, %v1921
      %v1923 = vrot.slane %v1907, %v1922
      %v1925 = vunpack.c.l.s4 1966171168
      %v1926 = vunpack.c.0.s8 %v1925
      %v1927 = vlaneseq
      %v1928 = vshrl.u32 %v1927, 7
      %v1929 = vsub.s32 %v1926, %v1928
      %v1930 = vrot.slane %v1914, %v1929
      %v1932 = vunpack.c.l.s4 1966171168
      %v1933 = vunpack.c.0.s8 %v1932
      %v1934 = vlaneseq
      %v1935 = vshrl.u32 %v1934, 7
      %v1936 = vsub.s32 %v1933, %v1935
      %v1937 = vrot.slane %v1915, %v1936
      %v1939 = vunpack.c.l.s4 1966171168
      %v1940 = vunpack.c.0.s8 %v1939
      %v1941 = vlaneseq
      %v1942 = vshrl.u32 %v1941, 7
      %v1943 = vsub.s32 %v1940, %v1942
      %v1944 = vrot.slane %v1916, %v1943
      %v1945 = vcombine.high %v1923, %v1923
      %v1946 = vcombine.high %v1930, %v1930
      %v1947 = vcombine.high %v1937, %v1937
      %v1948 = vcombine.high %v1944, %v1944
      %v1949 = vcombine.high %v318, %v318
      %v1951 = vunpack.c.l.s4 1966171168
      %v1952 = vunpack.c.0.s8 %v1951
      %v1953 = vlaneseq
      %v1954 = vshrl.u32 %v1953, 7
      %v1955 = vsub.s32 %v1952, %v1954
      %v1956 = vrot.slane %v318, %v1955
      %v1958 = vunpack.c.l.s4 1966171168
      %v1959 = vunpack.c.0.s8 %v1958
      %v1960 = vlaneseq
      %v1961 = vshrl.u32 %v1960, 7
      %v1962 = vsub.s32 %v1959, %v1961
      %v1963 = vrot.slane %v1949, %v1962
      %v1964 = vcombine.high %v1956, %v1956
      %v1965 = vcombine.high %v1963, %v1963
      %v1967 = vunpack.c.l.s4 1966171168
      %v1968 = vunpack.c.0.s8 %v1967
      %v1969 = vlaneseq
      %v1970 = vshrl.u32 %v1969, 7
      %v1971 = vsub.s32 %v1968, %v1970
      %v1972 = vrot.slane %v1956, %v1971
      %v1974 = vunpack.c.l.s4 1966171168
      %v1975 = vunpack.c.0.s8 %v1974
      %v1976 = vlaneseq
      %v1977 = vshrl.u32 %v1976, 7
      %v1978 = vsub.s32 %v1975, %v1977
      %v1979 = vrot.slane %v1963, %v1978
      %v1981 = vunpack.c.l.s4 1966171168
      %v1982 = vunpack.c.0.s8 %v1981
      %v1983 = vlaneseq
      %v1984 = vshrl.u32 %v1983, 7
      %v1985 = vsub.s32 %v1982, %v1984
      %v1986 = vrot.slane %v1964, %v1985
      %v1988 = vunpack.c.l.s4 1966171168
      %v1989 = vunpack.c.0.s8 %v1988
      %v1990 = vlaneseq
      %v1991 = vshrl.u32 %v1990, 7
      %v1992 = vsub.s32 %v1989, %v1991
      %v1993 = vrot.slane %v1965, %v1992
      %v1994 = vcombine.high %v1972, %v1972
      %v1995 = vcombine.high %v1979, %v1979
      %v1996 = vcombine.high %v1986, %v1986
      %v1997 = vcombine.high %v1993, %v1993
      %v1998 = vcombine.high %v319, %v319
      %v2000 = vunpack.c.l.s4 1966171168
      %v2001 = vunpack.c.0.s8 %v2000
      %v2002 = vlaneseq
      %v2003 = vshrl.u32 %v2002, 7
      %v2004 = vsub.s32 %v2001, %v2003
      %v2005 = vrot.slane %v319, %v2004
      %v2007 = vunpack.c.l.s4 1966171168
      %v2008 = vunpack.c.0.s8 %v2007
      %v2009 = vlaneseq
      %v2010 = vshrl.u32 %v2009, 7
      %v2011 = vsub.s32 %v2008, %v2010
      %v2012 = vrot.slane %v1998, %v2011
      %v2013 = vcombine.high %v2005, %v2005
      %v2014 = vcombine.high %v2012, %v2012
      %v2016 = vunpack.c.l.s4 1966171168
      %v2017 = vunpack.c.0.s8 %v2016
      %v2018 = vlaneseq
      %v2019 = vshrl.u32 %v2018, 7
      %v2020 = vsub.s32 %v2017, %v2019
      %v2021 = vrot.slane %v2005, %v2020
      %v2023 = vunpack.c.l.s4 1966171168
      %v2024 = vunpack.c.0.s8 %v2023
      %v2025 = vlaneseq
      %v2026 = vshrl.u32 %v2025, 7
      %v2027 = vsub.s32 %v2024, %v2026
      %v2028 = vrot.slane %v2012, %v2027
      %v2030 = vunpack.c.l.s4 1966171168
      %v2031 = vunpack.c.0.s8 %v2030
      %v2032 = vlaneseq
      %v2033 = vshrl.u32 %v2032, 7
      %v2034 = vsub.s32 %v2031, %v2033
      %v2035 = vrot.slane %v2013, %v2034
      %v2037 = vunpack.c.l.s4 1966171168
      %v2038 = vunpack.c.0.s8 %v2037
      %v2039 = vlaneseq
      %v2040 = vshrl.u32 %v2039, 7
      %v2041 = vsub.s32 %v2038, %v2040
      %v2042 = vrot.slane %v2014, %v2041
      %v2043 = vcombine.high %v2021, %v2021
      %v2044 = vcombine.high %v2028, %v2028
      %v2045 = vcombine.high %v2035, %v2035
      %v2046 = vcombine.high %v2042, %v2042
      %v2047 = vcombine.high %v320, %v320
      %v2049 = vunpack.c.l.s4 1966171168
      %v2050 = vunpack.c.0.s8 %v2049
      %v2051 = vlaneseq
      %v2052 = vshrl.u32 %v2051, 7
      %v2053 = vsub.s32 %v2050, %v2052
      %v2054 = vrot.slane %v320, %v2053
      %v2056 = vunpack.c.l.s4 1966171168
      %v2057 = vunpack.c.0.s8 %v2056
      %v2058 = vlaneseq
      %v2059 = vshrl.u32 %v2058, 7
      %v2060 = vsub.s32 %v2057, %v2059
      %v2061 = vrot.slane %v2047, %v2060
      %v2062 = vcombine.high %v2054, %v2054
      %v2063 = vcombine.high %v2061, %v2061
      %v2065 = vunpack.c.l.s4 1966171168
      %v2066 = vunpack.c.0.s8 %v2065
      %v2067 = vlaneseq
      %v2068 = vshrl.u32 %v2067, 7
      %v2069 = vsub.s32 %v2066, %v2068
      %v2070 = vrot.slane %v2054, %v2069
      %v2072 = vunpack.c.l.s4 1966171168
      %v2073 = vunpack.c.0.s8 %v2072
      %v2074 = vlaneseq
      %v2075 = vshrl.u32 %v2074, 7
      %v2076 = vsub.s32 %v2073, %v2075
      %v2077 = vrot.slane %v2061, %v2076
      %v2079 = vunpack.c.l.s4 1966171168
      %v2080 = vunpack.c.0.s8 %v2079
      %v2081 = vlaneseq
      %v2082 = vshrl.u32 %v2081, 7
      %v2083 = vsub.s32 %v2080, %v2082
      %v2084 = vrot.slane %v2062, %v2083
      %v2086 = vunpack.c.l.s4 1966171168
      %v2087 = vunpack.c.0.s8 %v2086
      %v2088 = vlaneseq
      %v2089 = vshrl.u32 %v2088, 7
      %v2090 = vsub.s32 %v2087, %v2089
      %v2091 = vrot.slane %v2063, %v2090
      %v2092 = vcombine.high %v2070, %v2070
      %v2093 = vcombine.high %v2077, %v2077
      %v2094 = vcombine.high %v2084, %v2084
      %v2095 = vcombine.high %v2091, %v2091
      %v2096 = vcombine.high %v321, %v321
      %v2098 = vunpack.c.l.s4 1966171168
      %v2099 = vunpack.c.0.s8 %v2098
      %v2100 = vlaneseq
      %v2101 = vshrl.u32 %v2100, 7
      %v2102 = vsub.s32 %v2099, %v2101
      %v2103 = vrot.slane %v321, %v2102
      %v2105 = vunpack.c.l.s4 1966171168
      %v2106 = vunpack.c.0.s8 %v2105
      %v2107 = vlaneseq
      %v2108 = vshrl.u32 %v2107, 7
      %v2109 = vsub.s32 %v2106, %v2108
      %v2110 = vrot.slane %v2096, %v2109
      %v2111 = vcombine.high %v2103, %v2103
      %v2112 = vcombine.high %v2110, %v2110
      %v2114 = vunpack.c.l.s4 1966171168
      %v2115 = vunpack.c.0.s8 %v2114
      %v2116 = vlaneseq
      %v2117 = vshrl.u32 %v2116, 7
      %v2118 = vsub.s32 %v2115, %v2117
      %v2119 = vrot.slane %v2103, %v2118
      %v2121 = vunpack.c.l.s4 1966171168
      %v2122 = vunpack.c.0.s8 %v2121
      %v2123 = vlaneseq
      %v2124 = vshrl.u32 %v2123, 7
      %v2125 = vsub.s32 %v2122, %v2124
      %v2126 = vrot.slane %v2110, %v2125
      %v2128 = vunpack.c.l.s4 1966171168
      %v2129 = vunpack.c.0.s8 %v2128
      %v2130 = vlaneseq
      %v2131 = vshrl.u32 %v2130, 7
      %v2132 = vsub.s32 %v2129, %v2131
      %v2133 = vrot.slane %v2111, %v2132
      %v2135 = vunpack.c.l.s4 1966171168
      %v2136 = vunpack.c.0.s8 %v2135
      %v2137 = vlaneseq
      %v2138 = vshrl.u32 %v2137, 7
      %v2139 = vsub.s32 %v2136, %v2138
      %v2140 = vrot.slane %v2112, %v2139
      %v2141 = vcombine.high %v2119, %v2119
      %v2142 = vcombine.high %v2126, %v2126
      %v2143 = vcombine.high %v2133, %v2133
      %v2144 = vcombine.high %v2140, %v2140
      %v2145 = vcombine.high %v322, %v322
      %v2147 = vunpack.c.l.s4 1966171168
      %v2148 = vunpack.c.0.s8 %v2147
      %v2149 = vlaneseq
      %v2150 = vshrl.u32 %v2149, 7
      %v2151 = vsub.s32 %v2148, %v2150
      %v2152 = vrot.slane %v322, %v2151
      %v2154 = vunpack.c.l.s4 1966171168
      %v2155 = vunpack.c.0.s8 %v2154
      %v2156 = vlaneseq
      %v2157 = vshrl.u32 %v2156, 7
      %v2158 = vsub.s32 %v2155, %v2157
      %v2159 = vrot.slane %v2145, %v2158
      %v2160 = vcombine.high %v2152, %v2152
      %v2161 = vcombine.high %v2159, %v2159
      %v2163 = vunpack.c.l.s4 1966171168
      %v2164 = vunpack.c.0.s8 %v2163
      %v2165 = vlaneseq
      %v2166 = vshrl.u32 %v2165, 7
      %v2167 = vsub.s32 %v2164, %v2166
      %v2168 = vrot.slane %v2152, %v2167
      %v2170 = vunpack.c.l.s4 1966171168
      %v2171 = vunpack.c.0.s8 %v2170
      %v2172 = vlaneseq
      %v2173 = vshrl.u32 %v2172, 7
      %v2174 = vsub.s32 %v2171, %v2173
      %v2175 = vrot.slane %v2159, %v2174
      %v2177 = vunpack.c.l.s4 1966171168
      %v2178 = vunpack.c.0.s8 %v2177
      %v2179 = vlaneseq
      %v2180 = vshrl.u32 %v2179, 7
      %v2181 = vsub.s32 %v2178, %v2180
      %v2182 = vrot.slane %v2160, %v2181
      %v2184 = vunpack.c.l.s4 1966171168
      %v2185 = vunpack.c.0.s8 %v2184
      %v2186 = vlaneseq
      %v2187 = vshrl.u32 %v2186, 7
      %v2188 = vsub.s32 %v2185, %v2187
      %v2189 = vrot.slane %v2161, %v2188
      %v2190 = vcombine.high %v2168, %v2168
      %v2191 = vcombine.high %v2175, %v2175
      %v2192 = vcombine.high %v2182, %v2182
      %v2193 = vcombine.high %v2189, %v2189
      %v2195 = vunpack.c.l.s4 1966171168
      %v2196 = vunpack.c.0.s8 %v2195
      %v2197 = vlaneseq
      %v2198 = vshrl.u32 %v2197, 7
      %v2199 = vsub.s32 %v2196, %v2198
      %v2200 = vrot.slane %v323, %v2199
      %v2202 = vunpack.c.l.s4 1966171168
      %v2203 = vunpack.c.0.s8 %v2202
      %v2204 = vlaneseq
      %v2205 = vshrl.u32 %v2204, 7
      %v2206 = vsub.s32 %v2203, %v2205
      %v2207 = vrot.slane %v2200, %v2206
      %v3825 = vunpack.c.l.b16 %v325
      %v3826 = vunpack.c.h.b16 %v325
      %v3827 = vunpack.c.l.b16 %v326
      %v3828 = vunpack.c.h.b16 %v326
      %v3829 = vunpack.c.l.b16 %v327
      %v3830 = vunpack.c.h.b16 %v327
      %v3831 = vunpack.c.l.b16 %v328
      %v3832 = vunpack.c.h.b16 %v328
      %v3833 = vunpack.c.l.b16 %v329
      %v3834 = vunpack.c.h.b16 %v329
      %v3835 = vunpack.c.l.b16 %v330
      %v3836 = vunpack.c.h.b16 %v330
      %v3837 = vunpack.c.l.b16 %v331
      %v3838 = vunpack.c.h.b16 %v331
      %v3839 = vunpack.c.l.b16 %v332
      %v3840 = vunpack.c.h.b16 %v332
      %v3841 = vunpack.c.l.b16 %v333
      %v3842 = vunpack.c.h.b16 %v333
      %v3843 = vunpack.c.l.b16 %v334
      %v3844 = vunpack.c.h.b16 %v334
      %v3845 = vunpack.c.l.b16 %v335
      %v3846 = vunpack.c.h.b16 %v335
      %v3847 = vunpack.c.l.b16 %v336
      %v3848 = vunpack.c.h.b16 %v336
      %v3849 = vunpack.c.l.b16 %v337
      %v3850 = vunpack.c.h.b16 %v337
      %v3851 = vunpack.c.l.b16 %v338
      %v3852 = vunpack.c.h.b16 %v338
      %v3853 = vunpack.c.l.b16 %v339
      %v3854 = vunpack.c.h.b16 %v339
      %v3855 = vunpack.c.l.b16 %v340
      %v3856 = vunpack.c.h.b16 %v340
      %v3857 = vunpack.c.l.b16 %v341
      %v3858 = vunpack.c.h.b16 %v341
      %v3859 = vunpack.c.l.b16 %v342
      %v3860 = vunpack.c.h.b16 %v342
      %v3861 = vunpack.c.l.b16 %v343
      %v3862 = vunpack.c.h.b16 %v343
      %v3863 = vunpack.c.l.b16 %v344
      %v3864 = vunpack.c.h.b16 %v344
      %v3865 = vunpack.c.l.b16 %v345
      %v3866 = vunpack.c.h.b16 %v345
      %v3867 = vunpack.c.l.b16 %v346
      %v3868 = vunpack.c.h.b16 %v346
      %v3869 = vunpack.c.l.b16 %v347
      %v3870 = vunpack.c.h.b16 %v347
      %v3871 = vunpack.c.l.b16 %v348
      %v3872 = vunpack.c.h.b16 %v348
      %v3873 = vunpack.c.l.b16 %v349
      %v3874 = vunpack.c.h.b16 %v349
      %v3875 = vunpack.c.l.b16 %v350
      %v3876 = vunpack.c.h.b16 %v350
      %v3877 = vunpack.c.l.b16 %v351
      %v3878 = vunpack.c.h.b16 %v351
      %v3879 = vunpack.c.l.b16 %v352
      %v3880 = vunpack.c.h.b16 %v352
      %v3881 = vunpack.c.l.b16 %v353
      %v3882 = vunpack.c.h.b16 %v353
      %v3883 = vunpack.c.l.b16 %v354
      %v3884 = vunpack.c.h.b16 %v354
      %v3885 = vunpack.c.l.b16 %v355
      %v3886 = vunpack.c.h.b16 %v355
      %v3887 = vunpack.c.l.b16 %v356
      %v3888 = vunpack.c.h.b16 %v356
      %v3889 = vunpack.c.l.b16 %v357
      %v3890 = vunpack.c.h.b16 %v357
      %v3891 = vunpack.c.l.b16 %v358
      %v3892 = vunpack.c.h.b16 %v358
      %v3893 = vunpack.c.l.b16 %v359
      %v3894 = vunpack.c.h.b16 %v359
      %v3895 = vunpack.c.l.b16 %v360
      %v3896 = vunpack.c.h.b16 %v360
      %v3897 = vunpack.c.l.b16 %v361
      %v3898 = vunpack.c.h.b16 %v361
      %v3899 = vunpack.c.l.b16 %v362
      %v3900 = vunpack.c.h.b16 %v362
      %v3901 = vunpack.c.l.b16 %v363
      %v3902 = vunpack.c.h.b16 %v363
      %v3903 = vunpack.c.l.b16 %v364
      %v3904 = vunpack.c.h.b16 %v364
      %v3905 = vunpack.c.l.b16 %v365
      %v3906 = vunpack.c.h.b16 %v365
      %v3907 = vunpack.c.l.b16 %v366
      %v3908 = vunpack.c.h.b16 %v366
      %v3909 = vunpack.c.l.b16 %v367
      %v3910 = vunpack.c.h.b16 %v367
      %v3911 = vunpack.c.l.b16 %v368
      %v3912 = vunpack.c.h.b16 %v368
      %v3913 = vunpack.c.l.b16 %v369
      %v3914 = vunpack.c.h.b16 %v369
      %v3915 = vunpack.c.l.b16 %v370
      %v3916 = vunpack.c.h.b16 %v370
      %v3917 = vunpack.c.l.b16 %v371
      %v3918 = vunpack.c.h.b16 %v371
      %v3919 = vunpack.c.l.b16 %v372
      %v3920 = vunpack.c.h.b16 %v372
      %v3921 = vunpack.c.l.b16 %v373
      %v3922 = vunpack.c.h.b16 %v373
      %v3923 = vunpack.c.l.b16 %v374
      %v3924 = vunpack.c.h.b16 %v374
      %v3925 = vunpack.c.l.b16 %v375
      %v3926 = vunpack.c.h.b16 %v375
      %v3927 = vunpack.c.l.b16 %v376
      %v3928 = vunpack.c.h.b16 %v376
      %v3929 = vunpack.c.l.b16 %v377
      %v3930 = vunpack.c.h.b16 %v377
      %v3931 = vunpack.c.l.b16 %v378
      %v3932 = vunpack.c.h.b16 %v378
      %v3933 = vunpack.c.l.b16 %v379
      %v3934 = vunpack.c.h.b16 %v379
      %v3935 = vunpack.c.l.b16 %v380
      %v3936 = vunpack.c.h.b16 %v380
      %v3937 = vunpack.c.l.b16 %v381
      %v3938 = vunpack.c.h.b16 %v381
      %v3939 = vunpack.c.l.b16 %v382
      %v3940 = vunpack.c.h.b16 %v382
      %v3941 = vunpack.c.l.b16 %v383
      %v3942 = vunpack.c.h.b16 %v383
      %v3943 = vunpack.c.l.b16 %v384
      %v3944 = vunpack.c.h.b16 %v384
      %v3945 = vunpack.c.l.b16 %v385
      %v3946 = vunpack.c.h.b16 %v385
      %v3947 = vunpack.c.l.b16 %v386
      %v3948 = vunpack.c.h.b16 %v386
      %v3949 = vunpack.c.l.b16 %v387
      %v3950 = vunpack.c.h.b16 %v387
      %v3951 = vunpack.c.l.b16 %v388
      %v3952 = vunpack.c.h.b16 %v388
      %v3953 = vunpack.c.l.b16 %v389
      %v3954 = vunpack.c.h.b16 %v389
      %v3955 = vunpack.c.l.b16 %v390
      %v3956 = vunpack.c.h.b16 %v390
      %v3957 = vunpack.c.l.b16 %v391
      %v3958 = vunpack.c.h.b16 %v391
      %v3959 = vunpack.c.l.b16 %v392
      %v3960 = vunpack.c.h.b16 %v392
      %v3961 = vunpack.c.l.b16 %v393
      %v3962 = vunpack.c.h.b16 %v393
      %v3963 = vunpack.c.l.b16 %v394
      %v3964 = vunpack.c.h.b16 %v394
      %v3965 = vunpack.c.l.b16 %v395
      %v3966 = vunpack.c.h.b16 %v395
      %v3967 = vunpack.c.l.b16 %v396
      %v3968 = vunpack.c.h.b16 %v396
      %v3969 = vunpack.c.l.b16 %v397
      %v3970 = vunpack.c.h.b16 %v397
      %v3971 = vunpack.c.l.b16 %v398
      %v3972 = vunpack.c.h.b16 %v398
      %v3973 = vunpack.c.l.b16 %v399
      %v3974 = vunpack.c.h.b16 %v399
      %v3975 = vunpack.c.l.b16 %v400
      %v3976 = vunpack.c.h.b16 %v400
      %v3977 = vunpack.c.l.b16 %v401
      %v3978 = vunpack.c.h.b16 %v401
      %v3979 = vunpack.c.l.b16 %v402
      %v3980 = vunpack.c.h.b16 %v402
      %v3981 = vunpack.c.l.b16 %v403
      %v3982 = vunpack.c.h.b16 %v403
      %v3983 = vunpack.c.l.b16 %v404
      %v3984 = vunpack.c.h.b16 %v404
      %v3985 = vunpack.c.l.b16 %v405
      %v3986 = vunpack.c.h.b16 %v405
      %v3987 = vunpack.c.l.b16 %v406
      %v3988 = vunpack.c.h.b16 %v406
      %v3989 = vunpack.c.l.b16 %v407
      %v3990 = vunpack.c.h.b16 %v407
      %v3991 = vunpack.c.l.b16 %v408
      %v3992 = vunpack.c.h.b16 %v408
      %v3993 = vunpack.c.l.b16 %v409
      %v3994 = vunpack.c.h.b16 %v409
      %v3995 = vunpack.c.l.b16 %v410
      %v3996 = vunpack.c.h.b16 %v410
      %v3997 = vunpack.c.l.b16 %v411
      %v3998 = vunpack.c.h.b16 %v411
      %v3999 = vunpack.c.l.b16 %v412
      %v4000 = vunpack.c.h.b16 %v412
      %v4001 = vunpack.c.l.b16 %v413
      %v4002 = vunpack.c.h.b16 %v413
      %v4003 = vunpack.c.l.b16 %v414
      %v4004 = vunpack.c.h.b16 %v414
      %v4005 = vunpack.c.l.b16 %v415
      %v4006 = vunpack.c.h.b16 %v415
      %v4007 = vunpack.c.l.b16 %v416
      %v4008 = vunpack.c.h.b16 %v416
      %v4009 = vunpack.c.l.b16 %v417
      %v4010 = vunpack.c.h.b16 %v417
      %v4011 = vunpack.c.l.b16 %v418
      %v4012 = vunpack.c.h.b16 %v418
      %v4013 = vunpack.c.l.b16 %v419
      %v4014 = vunpack.c.h.b16 %v419
      %v4015 = vunpack.c.l.b16 %v420
      %v4016 = vunpack.c.h.b16 %v420
      %v4017 = vunpack.c.l.b16 %v421
      %v4018 = vunpack.c.h.b16 %v421
      %v4019 = vunpack.c.l.b16 %v422
      %v4020 = vunpack.c.h.b16 %v422
      %v4021 = vunpack.c.l.b16 %v423
      %v4022 = vunpack.c.h.b16 %v423
      %v4023 = vunpack.c.l.b16 %v424
      %v4024 = vunpack.c.h.b16 %v424
      %v4025 = vunpack.c.l.b16 %v425
      %v4026 = vunpack.c.h.b16 %v425
      %v4027 = vunpack.c.l.b16 %v426
      %v4028 = vunpack.c.h.b16 %v426
      %v4029 = vunpack.c.l.b16 %v427
      %v4030 = vunpack.c.h.b16 %v427
      %v4031 = vunpack.c.l.b16 %v428
      %v4032 = vunpack.c.h.b16 %v428
      %v4033 = vunpack.c.l.b16 %v429
      %v4034 = vunpack.c.h.b16 %v429
      %v4035 = vunpack.c.l.b16 %v430
      %v4036 = vunpack.c.h.b16 %v430
      %v4037 = vunpack.c.l.b16 %v431
      %v4038 = vunpack.c.h.b16 %v431
      %v4039 = vunpack.c.l.b16 %v432
      %v4040 = vunpack.c.h.b16 %v432
      %v4041 = vunpack.c.l.b16 %v433
      %v4042 = vunpack.c.h.b16 %v433
      %v4043 = vunpack.c.l.b16 %v434
      %v4044 = vunpack.c.h.b16 %v434
      %v4045 = vunpack.c.l.b16 %v435
      %v4046 = vunpack.c.h.b16 %v435
      %v4047 = vunpack.c.l.b16 %v436
      %v4048 = vunpack.c.h.b16 %v436
      %v4049 = vunpack.c.l.b16 %v437
      %v4050 = vunpack.c.h.b16 %v437
      %v4051 = vunpack.c.l.b16 %v438
      %v4052 = vunpack.c.h.b16 %v438
      %v4053 = vunpack.c.l.b16 %v439
      %v4054 = vunpack.c.h.b16 %v439
      %v4055 = vunpack.c.l.b16 %v440
      %v4056 = vunpack.c.h.b16 %v440
      %v4057 = vunpack.c.l.b16 %v441
      %v4058 = vunpack.c.h.b16 %v441
      %v4059 = vunpack.c.l.b16 %v442
      %v4060 = vunpack.c.h.b16 %v442
      %v4061 = vunpack.c.l.b16 %v443
      %v4062 = vunpack.c.h.b16 %v443
      %v4063 = vunpack.c.l.b16 %v444
      %v4064 = vunpack.c.h.b16 %v444
      %v4065 = vunpack.c.l.b16 %v445
      %v4066 = vunpack.c.h.b16 %v445
      %v4067 = vunpack.c.l.b16 %v446
      %v4068 = vunpack.c.h.b16 %v446
      %v4069 = vunpack.c.l.b16 %v447
      %v4070 = vunpack.c.h.b16 %v447
      %v4071 = vunpack.c.l.b16 %v448
      %v4072 = vunpack.c.h.b16 %v448
      %v4073 = vunpack.c.l.b16 %v449
      %v4074 = vunpack.c.h.b16 %v449
      %v4075 = vunpack.c.l.b16 %v450
      %v4076 = vunpack.c.h.b16 %v450
      %v4077 = vunpack.c.l.b16 %v451
      %v4078 = vunpack.c.h.b16 %v451
      %v4079 = vunpack.c.l.b16 %v452
      %v4080 = vunpack.c.h.b16 %v452
      %v4081 = vunpack.c.l.b16 %v453
      %v4082 = vunpack.c.h.b16 %v453
      %v4083 = vunpack.c.l.b16 %v454
      %v4084 = vunpack.c.h.b16 %v454
      %v4085 = vunpack.c.l.b16 %v455
      %v4086 = vunpack.c.h.b16 %v455
      %v4087 = vunpack.c.l.b16 %v456
      %v4088 = vunpack.c.h.b16 %v456
      %v4089 = vunpack.c.l.b16 %v457
      %v4090 = vunpack.c.h.b16 %v457
      %v4091 = vunpack.c.l.b16 %v458
      %v4092 = vunpack.c.h.b16 %v458
      %v4093 = vunpack.c.l.b16 %v459
      %v4094 = vunpack.c.h.b16 %v459
      %v4095 = vunpack.c.l.b16 %v460
      %v4096 = vunpack.c.h.b16 %v460
      %v4097 = vunpack.c.l.b16 %v461
      %v4098 = vunpack.c.h.b16 %v461
      %v4099 = vunpack.c.l.b16 %v462
      %v4100 = vunpack.c.h.b16 %v462
      %v4101 = vunpack.c.l.b16 %v463
      %v4102 = vunpack.c.h.b16 %v463
      %v4103 = vunpack.c.l.b16 %v464
      %v4104 = vunpack.c.h.b16 %v464
      %v4105 = vunpack.c.l.b16 %v465
      %v4106 = vunpack.c.h.b16 %v465
      %v4107 = vunpack.c.l.b16 %v466
      %v4108 = vunpack.c.h.b16 %v466
      %v4109 = vunpack.c.l.b16 %v467
      %v4110 = vunpack.c.h.b16 %v467
      %v4111 = vunpack.c.l.b16 %v468
      %v4112 = vunpack.c.h.b16 %v468
      %v4113 = vunpack.c.l.b16 %v469
      %v4114 = vunpack.c.h.b16 %v469
      %v4115 = vunpack.c.l.b16 %v470
      %v4116 = vunpack.c.h.b16 %v470
      %v4117 = vunpack.c.l.b16 %v471
      %v4118 = vunpack.c.h.b16 %v471
      %v4119 = vunpack.c.l.b16 %v472
      %v4120 = vunpack.c.h.b16 %v472
      %v4121 = vunpack.c.l.b16 %v473
      %v4122 = vunpack.c.h.b16 %v473
      %v4123 = vunpack.c.l.b16 %v474
      %v4124 = vunpack.c.h.b16 %v474
      %v4125 = vunpack.c.l.b16 %v475
      %v4126 = vunpack.c.h.b16 %v475
      %v4127 = vunpack.c.l.b16 %v476
      %v4128 = vunpack.c.h.b16 %v476
      %v4129 = vunpack.c.l.b16 %v477
      %v4130 = vunpack.c.h.b16 %v477
      %v4131 = vunpack.c.l.b16 %v478
      %v4132 = vunpack.c.h.b16 %v478
      %v4133 = vunpack.c.l.b16 %v479
      %v4134 = vunpack.c.h.b16 %v479
      %v4135 = vunpack.c.l.b16 %v480
      %v4136 = vunpack.c.h.b16 %v480
      %v4137 = vunpack.c.l.b16 %v481
      %v4138 = vunpack.c.h.b16 %v481
      %v4139 = vunpack.c.l.b16 %v482
      %v4140 = vunpack.c.h.b16 %v482
      %v4141 = vunpack.c.l.b16 %v483
      %v4142 = vunpack.c.h.b16 %v483
      %v4143 = vunpack.c.l.b16 %v484
      %v4144 = vunpack.c.h.b16 %v484
      %v4145 = vunpack.c.l.b16 %v485
      %v4146 = vunpack.c.h.b16 %v485
      %v4147 = vunpack.c.l.b16 %v486
      %v4148 = vunpack.c.h.b16 %v486
      %v4149 = vunpack.c.l.b16 %v487
      %v4150 = vunpack.c.h.b16 %v487
      %v4151 = vunpack.c.l.b16 %v488
      %v4152 = vunpack.c.h.b16 %v488
      %v4153 = vunpack.c.l.b16 %v489
      %v4154 = vunpack.c.h.b16 %v489
      %v4155 = vunpack.c.l.b16 %v490
      %v4156 = vunpack.c.h.b16 %v490
      %v4157 = vunpack.c.l.b16 %v491
      %v4158 = vunpack.c.h.b16 %v491
      %v4159 = vunpack.c.l.b16 %v492
      %v4160 = vunpack.c.h.b16 %v492
      %v4161 = vunpack.c.l.b16 %v493
      %v4162 = vunpack.c.h.b16 %v493
      %v4163 = vunpack.c.l.b16 %v494
      %v4164 = vunpack.c.h.b16 %v494
      %v4165 = vunpack.c.l.b16 %v495
      %v4166 = vunpack.c.h.b16 %v495
      %v4167 = vunpack.c.l.b16 %v496
      %v4168 = vunpack.c.h.b16 %v496
      %v4169 = vunpack.c.l.b16 %v497
      %v4170 = vunpack.c.h.b16 %v497
      %v4171 = vunpack.c.l.b16 %v498
      %v4172 = vunpack.c.h.b16 %v498
      %v4173 = vunpack.c.l.b16 %v499
      %v4174 = vunpack.c.h.b16 %v499
      %v4175 = vunpack.c.l.b16 %v500
      %v4176 = vunpack.c.h.b16 %v500
      %v4177 = vunpack.c.l.b16 %v501
      %v4178 = vunpack.c.h.b16 %v501
      %v4179 = vunpack.c.l.b16 %v502
      %v4180 = vunpack.c.h.b16 %v502
      %v4181 = vunpack.c.l.b16 %v503
      %v4182 = vunpack.c.h.b16 %v503
      %v4183 = vunpack.c.l.b16 %v504
      %v4184 = vunpack.c.h.b16 %v504
      %v4185 = vunpack.c.l.b16 %v505
      %v4186 = vunpack.c.h.b16 %v505
      %v4187 = vunpack.c.l.b16 %v506
      %v4188 = vunpack.c.h.b16 %v506
      %v4189 = vunpack.c.l.b16 %v507
      %v4190 = vunpack.c.h.b16 %v507
      %v4191 = vunpack.c.l.b16 %v508
      %v4192 = vunpack.c.h.b16 %v508
      %v4193 = vunpack.c.l.b16 %v509
      %v4194 = vunpack.c.h.b16 %v509
      %v4195 = vunpack.c.l.b16 %v510
      %v4196 = vunpack.c.h.b16 %v510
      %v4197 = vunpack.c.l.b16 %v511
      %v4198 = vunpack.c.h.b16 %v511
      %v4199 = vunpack.c.l.b16 %v512
      %v4200 = vunpack.c.h.b16 %v512
      %v4201 = vunpack.c.l.b16 %v513
      %v4202 = vunpack.c.h.b16 %v513
      %v4203 = vunpack.c.l.b16 %v514
      %v4204 = vunpack.c.h.b16 %v514
      %v4205 = vunpack.c.l.b16 %v515
      %v4206 = vunpack.c.h.b16 %v515
      %v4207 = vunpack.c.l.b16 %v516
      %v4208 = vunpack.c.h.b16 %v516
      %v4209 = vunpack.c.l.b16 %v517
      %v4210 = vunpack.c.h.b16 %v517
      %v4211 = vunpack.c.l.b16 %v518
      %v4212 = vunpack.c.h.b16 %v518
      %v4213 = vunpack.c.l.b16 %v519
      %v4214 = vunpack.c.h.b16 %v519
      %v4215 = vunpack.c.l.b16 %v520
      %v4216 = vunpack.c.h.b16 %v520
      %v4217 = vunpack.c.l.b16 %v521
      %v4218 = vunpack.c.h.b16 %v521
      %v4219 = vunpack.c.l.b16 %v522
      %v4220 = vunpack.c.h.b16 %v522
      %v4221 = vunpack.c.l.b16 %v523
      %v4222 = vunpack.c.h.b16 %v523
      %v4223 = vunpack.c.l.b16 %v524
      %v4224 = vunpack.c.h.b16 %v524
      %v4225 = vunpack.c.l.b16 %v525
      %v4226 = vunpack.c.h.b16 %v525
      %v4227 = vunpack.c.l.b16 %v526
      %v4228 = vunpack.c.h.b16 %v526
      %v4229 = vunpack.c.l.b16 %v527
      %v4230 = vunpack.c.h.b16 %v527
      %v4231 = vunpack.c.l.b16 %v528
      %v4232 = vunpack.c.h.b16 %v528
      %v4233 = vunpack.c.l.b16 %v529
      %v4234 = vunpack.c.h.b16 %v529
      %v4235 = vunpack.c.l.b16 %v530
      %v4236 = vunpack.c.h.b16 %v530
      %v4237 = vunpack.c.l.b16 %v531
      %v4238 = vunpack.c.h.b16 %v531
      %v4239 = vunpack.c.l.b16 %v532
      %v4240 = vunpack.c.h.b16 %v532
      %v4241 = vunpack.c.l.b16 %v533
      %v4242 = vunpack.c.h.b16 %v533
      %v4243 = vunpack.c.l.b16 %v534
      %v4244 = vunpack.c.h.b16 %v534
      %v4245 = vunpack.c.l.b16 %v535
      %v4246 = vunpack.c.h.b16 %v535
      %v4247 = vunpack.c.l.b16 %v536
      %v4248 = vunpack.c.h.b16 %v536
      %v4249 = vunpack.c.l.b16 %v537
      %v4250 = vunpack.c.h.b16 %v537
      %v4251 = vunpack.c.l.b16 %v538
      %v4252 = vunpack.c.h.b16 %v538
      %v4253 = vunpack.c.l.b16 %v539
      %v4254 = vunpack.c.h.b16 %v539
      %v4255 = vunpack.c.l.b16 %v540
      %v4256 = vunpack.c.h.b16 %v540
      %v4257 = vunpack.c.l.b16 %v541
      %v4258 = vunpack.c.h.b16 %v541
      %v4259 = vunpack.c.l.b16 %v542
      %v4260 = vunpack.c.h.b16 %v542
      %v4261 = vunpack.c.l.b16 %v543
      %v4262 = vunpack.c.h.b16 %v543
      %v4263 = vunpack.c.l.b16 %v544
      %v4264 = vunpack.c.h.b16 %v544
      %v4265 = vunpack.c.l.b16 %v545
      %v4266 = vunpack.c.h.b16 %v545
      %v4267 = vunpack.c.l.b16 %v546
      %v4268 = vunpack.c.h.b16 %v546
      %v4269 = vunpack.c.l.b16 %v547
      %v4270 = vunpack.c.h.b16 %v547
      %v4271 = vunpack.c.l.b16 %v548
      %v4272 = vunpack.c.h.b16 %v548
      %v4273 = vunpack.c.l.b16 %v549
      %v4274 = vunpack.c.h.b16 %v549
      %v4275 = vunpack.c.l.b16 %v550
      %v4276 = vunpack.c.h.b16 %v550
      %v4277 = vunpack.c.l.b16 %v551
      %v4278 = vunpack.c.h.b16 %v551
      %v4279 = vunpack.c.l.b16 %v552
      %v4280 = vunpack.c.h.b16 %v552
      %v4281 = vunpack.c.l.b16 %v553
      %v4282 = vunpack.c.h.b16 %v553
      %v4283 = vunpack.c.l.b16 %v554
      %v4284 = vunpack.c.h.b16 %v554
      %v4285 = vunpack.c.l.b16 %v555
      %v4286 = vunpack.c.h.b16 %v555
      %v4287 = vunpack.c.l.b16 %v556
      %v4288 = vunpack.c.h.b16 %v556
      %v4289 = vunpack.c.l.b16 %v557
      %v4290 = vunpack.c.h.b16 %v557
      %v4291 = vunpack.c.l.b16 %v558
      %v4292 = vunpack.c.h.b16 %v558
      %v4293 = vunpack.c.l.b16 %v559
      %v4294 = vunpack.c.h.b16 %v559
      %v4295 = vunpack.c.l.b16 %v560
      %v4296 = vunpack.c.h.b16 %v560
      %v4297 = vunpack.c.l.b16 %v561
      %v4298 = vunpack.c.h.b16 %v561
      %v4299 = vunpack.c.l.b16 %v562
      %v4300 = vunpack.c.h.b16 %v562
      %v4301 = vunpack.c.l.b16 %v563
      %v4302 = vunpack.c.h.b16 %v563
      %v4303 = vunpack.c.l.b16 %v564
      %v4304 = vunpack.c.h.b16 %v564
      %v4305 = vunpack.c.l.b16 %v565
      %v4306 = vunpack.c.h.b16 %v565
      %v4307 = vunpack.c.l.b16 %v566
      %v4308 = vunpack.c.h.b16 %v566
      %v4309 = vunpack.c.l.b16 %v567
      %v4310 = vunpack.c.h.b16 %v567
      %v4311 = vunpack.c.l.b16 %v568
      %v4312 = vunpack.c.h.b16 %v568
      %v4313 = vunpack.c.l.b16 %v569
      %v4314 = vunpack.c.h.b16 %v569
      %v4315 = vunpack.c.l.b16 %v570
      %v4316 = vunpack.c.h.b16 %v570
      %v4317 = vunpack.c.l.b16 %v571
      %v4318 = vunpack.c.h.b16 %v571
      %v4319 = vunpack.c.l.b16 %v572
      %v4320 = vunpack.c.h.b16 %v572
      %v4321 = vunpack.c.l.b16 %v573
      %v4322 = vunpack.c.h.b16 %v573
      %v4323 = vunpack.c.l.b16 %v574
      %v4324 = vunpack.c.h.b16 %v574
      %v4325 = vunpack.c.l.b16 %v575
      %v4326 = vunpack.c.h.b16 %v575
      %v4327 = vunpack.c.l.b16 %v576
      %v4328 = vunpack.c.h.b16 %v576
      %v4329 = vunpack.c.l.b16 %v577
      %v4330 = vunpack.c.h.b16 %v577
      %v4331 = vunpack.c.l.b16 %v578
      %v4332 = vunpack.c.h.b16 %v578
      %v4333 = vunpack.c.l.b16 %v579
      %v4334 = vunpack.c.h.b16 %v579
      %v4335 = vunpack.c.l.b16 %v580
      %v4336 = vunpack.c.h.b16 %v580
      %v4337 = vunpack.c.l.b16 %v581
      %v4338 = vunpack.c.h.b16 %v581
      %v4339 = vunpack.c.l.b16 %v582
      %v4340 = vunpack.c.h.b16 %v582
      %v4341 = vunpack.c.l.b16 %v583
      %v4342 = vunpack.c.h.b16 %v583
      %v4343 = vunpack.c.l.b16 %v584
      %v4344 = vunpack.c.h.b16 %v584
      %v4345 = vunpack.c.l.b16 %v585
      %v4346 = vunpack.c.h.b16 %v585
      %v4347 = vunpack.c.l.b16 %v586
      %v4348 = vunpack.c.h.b16 %v586
      %v4349 = vunpack.c.l.b16 %v587
      %v4350 = vunpack.c.h.b16 %v587
      %v4351 = vunpack.c.l.b16 %v588
      %v4352 = vunpack.c.h.b16 %v588
      %v4353 = vunpack.c.l.b16 %v589
      %v4354 = vunpack.c.h.b16 %v589
      %v4355 = vunpack.c.l.b16 %v590
      %v4356 = vunpack.c.h.b16 %v590
      %v4357 = vunpack.c.l.b16 %v591
      %v4358 = vunpack.c.h.b16 %v591
      %v4359 = vunpack.c.l.b16 %v592
      %v4360 = vunpack.c.h.b16 %v592
      %v4361 = vunpack.c.l.b16 %v593
      %v4362 = vunpack.c.h.b16 %v593
      %v4363 = vunpack.c.l.b16 %v594
      %v4364 = vunpack.c.h.b16 %v594
      %v4365 = vunpack.c.l.b16 %v595
      %v4366 = vunpack.c.h.b16 %v595
      %v4367 = vunpack.c.l.b16 %v596
      %v4368 = vunpack.c.h.b16 %v596
      %v4369 = vunpack.c.l.b16 %v597
      %v4370 = vunpack.c.h.b16 %v597
      %v4371 = vunpack.c.l.b16 %v598
      %v4372 = vunpack.c.h.b16 %v598
      %v4373 = vunpack.c.l.b16 %v599
      %v4374 = vunpack.c.h.b16 %v599
      %v4375 = vunpack.c.l.b16 %v600
      %v4376 = vunpack.c.h.b16 %v600
      %v4377 = vunpack.c.l.b16 %v601
      %v4378 = vunpack.c.h.b16 %v601
      %v4379 = vunpack.c.l.b16 %v602
      %v4380 = vunpack.c.h.b16 %v602
      %v4381 = vunpack.c.l.b16 %v603
      %v4382 = vunpack.c.h.b16 %v603
      %v4383 = vunpack.c.l.b16 %v604
      %v4384 = vunpack.c.h.b16 %v604
      %v4385 = vunpack.c.l.b16 %v605
      %v4386 = vunpack.c.h.b16 %v605
      %v4387 = vunpack.c.l.b16 %v606
      %v4388 = vunpack.c.h.b16 %v606
      %v4389 = vunpack.c.l.b16 %v607
      %v4390 = vunpack.c.h.b16 %v607
      %v4391 = vunpack.c.l.b16 %v608
      %v4392 = vunpack.c.h.b16 %v608
      %v4393 = vunpack.c.l.b16 %v609
      %v4394 = vunpack.c.h.b16 %v609
      %v4395 = vunpack.c.l.b16 %v610
      %v4396 = vunpack.c.h.b16 %v610
      %v4397 = vunpack.c.l.b16 %v611
      %v4398 = vunpack.c.h.b16 %v611
      %v4399 = vunpack.c.l.b16 %v612
      %v4400 = vunpack.c.h.b16 %v612
      %v4401 = vunpack.c.l.b16 %v613
      %v4402 = vunpack.c.h.b16 %v613
      %v4403 = vunpack.c.l.b16 %v614
      %v4404 = vunpack.c.h.b16 %v614
      %v4405 = vunpack.c.l.b16 %v615
      %v4406 = vunpack.c.h.b16 %v615
      %v4407 = vunpack.c.l.b16 %v616
      %v4408 = vunpack.c.h.b16 %v616
      %v4409 = vunpack.c.l.b16 %v617
      %v4410 = vunpack.c.h.b16 %v617
      %v4411 = vunpack.c.l.b16 %v618
      %v4412 = vunpack.c.h.b16 %v618
      %v4413 = vunpack.c.l.b16 %v619
      %v4414 = vunpack.c.h.b16 %v619
      %v4415 = vunpack.c.l.b16 %v620
      %v4416 = vunpack.c.h.b16 %v620
      %v4417 = vunpack.c.l.b16 %v621
      %v4418 = vunpack.c.h.b16 %v621
      %v4419 = vunpack.c.l.b16 %v622
      %v4420 = vunpack.c.h.b16 %v622
      %v4421 = vunpack.c.l.b16 %v623
      %v4422 = vunpack.c.h.b16 %v623
      %v4423 = vunpack.c.l.b16 %v624
      %v4424 = vunpack.c.h.b16 %v624
      %v4425 = vunpack.c.l.b16 %v625
      %v4426 = vunpack.c.h.b16 %v625
      %v4427 = vunpack.c.l.b16 %v626
      %v4428 = vunpack.c.h.b16 %v626
      %v4429 = vunpack.c.l.b16 %v627
      %v4430 = vunpack.c.h.b16 %v627
      %v4431 = vunpack.c.l.b16 %v628
      %v4432 = vunpack.c.h.b16 %v628
      %v4433 = vunpack.c.l.b16 %v629
      %v4434 = vunpack.c.h.b16 %v629
      %v4435 = vunpack.c.l.b16 %v630
      %v4436 = vunpack.c.h.b16 %v630
      %v4437 = vunpack.c.l.b16 %v631
      %v4438 = vunpack.c.h.b16 %v631
      %v4439 = vunpack.c.l.b16 %v632
      %v4440 = vunpack.c.h.b16 %v632
      %v4441 = vunpack.c.l.b16 %v633
      %v4442 = vunpack.c.h.b16 %v633
      %v4443 = vunpack.c.l.b16 %v634
      %v4444 = vunpack.c.h.b16 %v634
      %v4445 = vunpack.c.l.b16 %v635
      %v4446 = vunpack.c.h.b16 %v635
      %v4447 = vunpack.c.l.b16 %v636
      %v4448 = vunpack.c.h.b16 %v636
      %v4449 = vunpack.c.l.b16 %v637
      %v4450 = vunpack.c.h.b16 %v637
      %v4451 = vunpack.c.l.b16 %v638
      %v4452 = vunpack.c.h.b16 %v638
      %v4453 = vunpack.c.l.b16 %v639
      %v4454 = vunpack.c.h.b16 %v639
      %v4455 = vunpack.c.l.b16 %v640
      %v4456 = vunpack.c.h.b16 %v640
      %v4457 = vunpack.c.l.b16 %v641
      %v4458 = vunpack.c.h.b16 %v641
      %v4459 = vunpack.c.l.b16 %v642
      %v4460 = vunpack.c.h.b16 %v642
      %v4461 = vunpack.c.l.b16 %v643
      %v4462 = vunpack.c.h.b16 %v643
      %v4463 = vunpack.c.l.b16 %v644
      %v4464 = vunpack.c.h.b16 %v644
      %v4465 = vunpack.c.l.b16 %v645
      %v4466 = vunpack.c.h.b16 %v645
      %v4467 = vunpack.c.l.b16 %v646
      %v4468 = vunpack.c.h.b16 %v646
      %v4469 = vunpack.c.l.b16 %v647
      %v4470 = vunpack.c.h.b16 %v647
      %v4471 = vunpack.c.l.b16 %v648
      %v4472 = vunpack.c.h.b16 %v648
      %v4473 = vunpack.c.l.b16 %v649
      %v4474 = vunpack.c.h.b16 %v649
      %v4475 = vunpack.c.l.b16 %v650
      %v4476 = vunpack.c.h.b16 %v650
      %v4477 = vunpack.c.l.b16 %v651
      %v4478 = vunpack.c.h.b16 %v651
      %v4479 = vunpack.c.l.b16 %v652
      %v4480 = vunpack.c.h.b16 %v652
      %v4481 = vunpack.c.l.b16 %v653
      %v4482 = vunpack.c.h.b16 %v653
      %v4483 = vunpack.c.l.b16 %v654
      %v4484 = vunpack.c.h.b16 %v654
      %v4485 = vunpack.c.l.b16 %v655
      %v4486 = vunpack.c.h.b16 %v655
      %v4487 = vunpack.c.l.b16 %v656
      %v4488 = vunpack.c.h.b16 %v656
      %v4489 = vunpack.c.l.b16 %v657
      %v4490 = vunpack.c.h.b16 %v657
      %v4491 = vunpack.c.l.b16 %v658
      %v4492 = vunpack.c.h.b16 %v658
      %v4493 = vunpack.c.l.b16 %v659
      %v4494 = vunpack.c.h.b16 %v659
      %v4495 = vunpack.c.l.b16 %v660
      %v4496 = vunpack.c.h.b16 %v660
      %v4497 = vunpack.c.l.b16 %v661
      %v4498 = vunpack.c.h.b16 %v661
      %v4499 = vunpack.c.l.b16 %v662
      %v4500 = vunpack.c.h.b16 %v662
      %v4501 = vunpack.c.l.b16 %v663
      %v4502 = vunpack.c.h.b16 %v663
      %v4503 = vunpack.c.l.b16 %v664
      %v4504 = vunpack.c.h.b16 %v664
      %v4505 = vunpack.c.l.b16 %v665
      %v4506 = vunpack.c.h.b16 %v665
      %v4507 = vunpack.c.l.b16 %v666
      %v4508 = vunpack.c.h.b16 %v666
      %v4509 = vunpack.c.l.b16 %v667
      %v4510 = vunpack.c.h.b16 %v667
      %v4511 = vunpack.c.l.b16 %v668
      %v4512 = vunpack.c.h.b16 %v668
      %v4513 = vunpack.c.l.b16 %v669
      %v4514 = vunpack.c.h.b16 %v669
      %v4515 = vunpack.c.l.b16 %v670
      %v4516 = vunpack.c.h.b16 %v670
      %v4517 = vunpack.c.l.b16 %v671
      %v4518 = vunpack.c.h.b16 %v671
      %v4519 = vunpack.c.l.b16 %v672
      %v4520 = vunpack.c.h.b16 %v672
      %v4521 = vunpack.c.l.b16 %v673
      %v4522 = vunpack.c.h.b16 %v673
      %v4523 = vunpack.c.l.b16 %v674
      %v4524 = vunpack.c.h.b16 %v674
      %v4525 = vunpack.c.l.b16 %v675
      %v4526 = vunpack.c.h.b16 %v675
      %v4527 = vunpack.c.l.b16 %v676
      %v4528 = vunpack.c.h.b16 %v676
      %v4529 = vunpack.c.l.b16 %v677
      %v4530 = vunpack.c.h.b16 %v677
      %v4531 = vunpack.c.l.b16 %v678
      %v4532 = vunpack.c.h.b16 %v678
      %v4533 = vunpack.c.l.b16 %v679
      %v4534 = vunpack.c.h.b16 %v679
      %v4535 = vunpack.c.l.b16 %v680
      %v4536 = vunpack.c.h.b16 %v680
      %v4537 = vunpack.c.l.b16 %v681
      %v4538 = vunpack.c.h.b16 %v681
      %v4539 = vunpack.c.l.b16 %v682
      %v4540 = vunpack.c.h.b16 %v682
      %v4541 = vunpack.c.l.b16 %v683
      %v4542 = vunpack.c.h.b16 %v683
      %v4543 = vunpack.c.l.b16 %v684
      %v4544 = vunpack.c.h.b16 %v684
      %v4545 = vunpack.c.l.b16 %v685
      %v4546 = vunpack.c.h.b16 %v685
      %v4547 = vunpack.c.l.b16 %v686
      %v4548 = vunpack.c.h.b16 %v686
      %v4549 = vunpack.c.l.b16 %v687
      %v4550 = vunpack.c.h.b16 %v687
      %v4551 = vunpack.c.l.b16 %v688
      %v4552 = vunpack.c.h.b16 %v688
      %v4553 = vunpack.c.l.b16 %v689
      %v4554 = vunpack.c.h.b16 %v689
      %v4555 = vunpack.c.l.b16 %v690
      %v4556 = vunpack.c.h.b16 %v690
      %v4557 = vunpack.c.l.b16 %v691
      %v4558 = vunpack.c.h.b16 %v691
      %v4559 = vunpack.c.l.b16 %v692
      %v4560 = vunpack.c.h.b16 %v692
      %v4561 = vunpack.c.l.b16 %v693
      %v4562 = vunpack.c.h.b16 %v693
      %v4563 = vunpack.c.l.b16 %v694
      %v4564 = vunpack.c.h.b16 %v694
      %v4565 = vunpack.c.l.b16 %v695
      %v4566 = vunpack.c.h.b16 %v695
      %v4567 = vunpack.c.l.b16 %v696
      %v4568 = vunpack.c.h.b16 %v696
      %v4569 = vunpack.c.l.b16 %v697
      %v4570 = vunpack.c.h.b16 %v697
      %v4571 = vunpack.c.l.b16 %v698
      %v4572 = vunpack.c.h.b16 %v698
      %v4573 = vunpack.c.l.b16 %v699
      %v4574 = vunpack.c.h.b16 %v699
      %v4575 = vunpack.c.l.b16 %v700
      %v4576 = vunpack.c.h.b16 %v700
      %v4577 = vunpack.c.l.b16 %v701
      %v4578 = vunpack.c.h.b16 %v701
      %v4579 = vunpack.c.l.b16 %v702
      %v4580 = vunpack.c.h.b16 %v702
      %v4581 = vunpack.c.l.b16 %v703
      %v4582 = vunpack.c.h.b16 %v703
      %v4583 = vunpack.c.l.b16 %v704
      %v4584 = vunpack.c.h.b16 %v704
      %v4585 = vunpack.c.l.b16 %v705
      %v4586 = vunpack.c.h.b16 %v705
      %v4587 = vunpack.c.l.b16 %v706
      %v4588 = vunpack.c.h.b16 %v706
      %v4589 = vunpack.c.l.b16 %v707
      %v4590 = vunpack.c.h.b16 %v707
      %v4591 = vunpack.c.l.b16 %v708
      %v4592 = vunpack.c.h.b16 %v708
      %v4593 = vunpack.c.l.b16 %v709
      %v4594 = vunpack.c.h.b16 %v709
      %v4595 = vunpack.c.l.b16 %v710
      %v4596 = vunpack.c.h.b16 %v710
      %v4597 = vunpack.c.l.b16 %v711
      %v4598 = vunpack.c.h.b16 %v711
      %v4599 = vunpack.c.l.b16 %v712
      %v4600 = vunpack.c.h.b16 %v712
      %v4601 = vunpack.c.l.b16 %v713
      %v4602 = vunpack.c.h.b16 %v713
      %v4603 = vunpack.c.l.b16 %v714
      %v4604 = vunpack.c.h.b16 %v714
      %v4605 = vunpack.c.l.b16 %v715
      %v4606 = vunpack.c.h.b16 %v715
      %v4607 = vunpack.c.l.b16 %v716
      %v4608 = vunpack.c.h.b16 %v716
      %v4609 = vunpack.c.l.b16 %v717
      %v4610 = vunpack.c.h.b16 %v717
      %v4611 = vunpack.c.l.b16 %v718
      %v4612 = vunpack.c.h.b16 %v718
      %v4613 = vunpack.c.l.b16 %v719
      %v4614 = vunpack.c.h.b16 %v719
      %v4615 = vunpack.c.l.b16 %v720
      %v4616 = vunpack.c.h.b16 %v720
      %v4617 = vunpack.c.l.b16 %v721
      %v4618 = vunpack.c.h.b16 %v721
      %v4619 = vunpack.c.l.b16 %v722
      %v4620 = vunpack.c.h.b16 %v722
      %v4621 = vunpack.c.l.b16 %v723
      %v4622 = vunpack.c.h.b16 %v723
      %v4623 = vunpack.c.l.b16 %v724
      %v4624 = vunpack.c.h.b16 %v724
      %v4625 = vunpack.c.l.b16 %v725
      %v4626 = vunpack.c.h.b16 %v725
      %v4627 = vunpack.c.l.b16 %v726
      %v4628 = vunpack.c.h.b16 %v726
      %v4629 = vunpack.c.l.b16 %v727
      %v4630 = vunpack.c.h.b16 %v727
      %v4631 = vunpack.c.l.b16 %v728
      %v4632 = vunpack.c.h.b16 %v728
      %v4633 = vunpack.c.l.b16 %v729
      %v4634 = vunpack.c.h.b16 %v729
      %v4635 = vunpack.c.l.b16 %v730
      %v4636 = vunpack.c.h.b16 %v730
      %v4637 = vunpack.c.l.b16 %v731
      %v4638 = vunpack.c.h.b16 %v731
      %v4639 = vunpack.c.l.b16 %v732
      %v4640 = vunpack.c.h.b16 %v732
      %v4641 = vunpack.c.l.b16 %v733
      %v4642 = vunpack.c.h.b16 %v733
      %v4643 = vunpack.c.l.b16 %v734
      %v4644 = vunpack.c.h.b16 %v734
      %v4645 = vunpack.c.l.b16 %v735
      %v4646 = vunpack.c.h.b16 %v735
      %v4647 = vunpack.c.l.b16 %v736
      %v4648 = vunpack.c.h.b16 %v736
      %v4649 = vunpack.c.l.b16 %v737
      %v4650 = vunpack.c.h.b16 %v737
      %v4651 = vunpack.c.l.b16 %v738
      %v4652 = vunpack.c.h.b16 %v738
      %v4653 = vunpack.c.l.b16 %v739
      %v4654 = vunpack.c.h.b16 %v739
      %v4655 = vunpack.c.l.b16 %v740
      %v4656 = vunpack.c.h.b16 %v740
      %v4657 = vunpack.c.l.b16 %v741
      %v4658 = vunpack.c.h.b16 %v741
      %v4659 = vunpack.c.l.b16 %v742
      %v4660 = vunpack.c.h.b16 %v742
      %v4661 = vunpack.c.l.b16 %v743
      %v4662 = vunpack.c.h.b16 %v743
      %v4663 = vunpack.c.l.b16 %v744
      %v4664 = vunpack.c.h.b16 %v744
      %v4665 = vunpack.c.l.b16 %v745
      %v4666 = vunpack.c.h.b16 %v745
      %v4667 = vunpack.c.l.b16 %v746
      %v4668 = vunpack.c.h.b16 %v746
      %v4669 = vunpack.c.l.b16 %v747
      %v4670 = vunpack.c.h.b16 %v747
      %v4671 = vunpack.c.l.b16 %v748
      %v4672 = vunpack.c.h.b16 %v748
      %v4673 = vunpack.c.l.b16 %v749
      %v4674 = vunpack.c.h.b16 %v749
      %v4675 = vunpack.c.l.b16 %v750
      %v4676 = vunpack.c.h.b16 %v750
      %v4677 = vunpack.c.l.b16 %v751
      %v4678 = vunpack.c.h.b16 %v751
      %v4679 = vunpack.c.l.b16 %v752
      %v4680 = vunpack.c.h.b16 %v752
      %v4681 = vunpack.c.l.b16 %v753
      %v4682 = vunpack.c.h.b16 %v753
      %v4683 = vunpack.c.l.b16 %v754
      %v4684 = vunpack.c.h.b16 %v754
      %v4685 = vunpack.c.l.b16 %v755
      %v4686 = vunpack.c.h.b16 %v755
      %v4687 = vunpack.c.l.b16 %v756
      %v4688 = vunpack.c.h.b16 %v756
      %v4689 = vunpack.c.l.b16 %v757
      %v4690 = vunpack.c.h.b16 %v757
      %v4691 = vunpack.c.l.b16 %v758
      %v4692 = vunpack.c.h.b16 %v758
      %v4693 = vunpack.c.l.b16 %v759
      %v4694 = vunpack.c.h.b16 %v759
      %v4695 = vunpack.c.l.b16 %v760
      %v4696 = vunpack.c.h.b16 %v760
      %v4697 = vunpack.c.l.b16 %v761
      %v4698 = vunpack.c.h.b16 %v761
      %v4699 = vunpack.c.l.b16 %v762
      %v4700 = vunpack.c.h.b16 %v762
      %v4701 = vunpack.c.l.b16 %v763
      %v4702 = vunpack.c.h.b16 %v763
      %v4703 = vunpack.c.l.b16 %v764
      %v4704 = vunpack.c.h.b16 %v764
      %v4705 = vunpack.c.l.b16 %v765
      %v4706 = vunpack.c.h.b16 %v765
      %v4707 = vunpack.c.l.b16 %v766
      %v4708 = vunpack.c.h.b16 %v766
      %v4709 = vunpack.c.l.b16 %v767
      %v4710 = vunpack.c.h.b16 %v767
      %v4711 = vunpack.c.l.b16 %v768
      %v4712 = vunpack.c.h.b16 %v768
      %v4713 = vunpack.c.l.b16 %v769
      %v4714 = vunpack.c.h.b16 %v769
      %v4715 = vunpack.c.l.b16 %v770
      %v4716 = vunpack.c.h.b16 %v770
      %v4717 = vunpack.c.l.b16 %v771
      %v4718 = vunpack.c.h.b16 %v771
      %v4719 = vunpack.c.l.b16 %v772
      %v4720 = vunpack.c.h.b16 %v772
      %v4721 = vunpack.c.l.b16 %v773
      %v4722 = vunpack.c.h.b16 %v773
      %v4723 = vunpack.c.l.b16 %v774
      %v4724 = vunpack.c.h.b16 %v774
      %v4725 = vunpack.c.l.b16 %v775
      %v4726 = vunpack.c.h.b16 %v775
      %v4727 = vunpack.c.l.b16 %v776
      %v4728 = vunpack.c.h.b16 %v776
      %v4729 = vunpack.c.l.b16 %v777
      %v4730 = vunpack.c.h.b16 %v777
      %v4731 = vunpack.c.l.b16 %v778
      %v4732 = vunpack.c.h.b16 %v778
      %v4733 = vunpack.c.l.b16 %v779
      %v4734 = vunpack.c.h.b16 %v779
      %v4735 = vunpack.c.l.b16 %v780
      %v4736 = vunpack.c.h.b16 %v780
      %v4737 = vunpack.c.l.b16 %v781
      %v4738 = vunpack.c.h.b16 %v781
      %v4739 = vunpack.c.l.b16 %v782
      %v4740 = vunpack.c.h.b16 %v782
      %v4741 = vunpack.c.l.b16 %v783
      %v4742 = vunpack.c.h.b16 %v783
      %v4743 = vunpack.c.l.b16 %v784
      %v4744 = vunpack.c.h.b16 %v784
      %v4745 = vunpack.c.l.b16 %v785
      %v4746 = vunpack.c.h.b16 %v785
      %v4747 = vunpack.c.l.b16 %v786
      %v4748 = vunpack.c.h.b16 %v786
      %v4749 = vunpack.c.l.b16 %v787
      %v4750 = vunpack.c.h.b16 %v787
      %v4751 = vunpack.c.l.b16 %v788
      %v4752 = vunpack.c.h.b16 %v788
      %v4753 = vunpack.c.l.b16 %v789
      %v4754 = vunpack.c.h.b16 %v789
      %v4755 = vunpack.c.l.b16 %v790
      %v4756 = vunpack.c.h.b16 %v790
      %v4757 = vunpack.c.l.b16 %v791
      %v4758 = vunpack.c.h.b16 %v791
      %v4759 = vunpack.c.l.b16 %v792
      %v4760 = vunpack.c.h.b16 %v792
      %v4761 = vunpack.c.l.b16 %v793
      %v4762 = vunpack.c.h.b16 %v793
      %v4763 = vunpack.c.l.b16 %v794
      %v4764 = vunpack.c.h.b16 %v794
      %v4765 = vunpack.c.l.b16 %v795
      %v4766 = vunpack.c.h.b16 %v795
      %v4767 = vunpack.c.l.b16 %v796
      %v4768 = vunpack.c.h.b16 %v796
      %v4769 = vunpack.c.l.b16 %v797
      %v4770 = vunpack.c.h.b16 %v797
      %v4771 = vunpack.c.l.b16 %v798
      %v4772 = vunpack.c.h.b16 %v798
      %v4773 = vunpack.c.l.b16 %v799
      %v4774 = vunpack.c.h.b16 %v799
      %v4775 = vunpack.c.l.b16 %v800
      %v4776 = vunpack.c.h.b16 %v800
      %v4777 = vunpack.c.l.b16 %v801
      %v4778 = vunpack.c.h.b16 %v801
      %v4779 = vunpack.c.l.b16 %v802
      %v4780 = vunpack.c.h.b16 %v802
      %v4781 = vunpack.c.l.b16 %v803
      %v4782 = vunpack.c.h.b16 %v803
      %v4783 = vunpack.c.l.b16 %v804
      %v4784 = vunpack.c.h.b16 %v804
      %v4785 = vunpack.c.l.b16 %v805
      %v4786 = vunpack.c.h.b16 %v805
      %v4787 = vunpack.c.l.b16 %v806
      %v4788 = vunpack.c.h.b16 %v806
      %v4789 = vunpack.c.l.b16 %v807
      %v4790 = vunpack.c.h.b16 %v807
      %v4791 = vunpack.c.l.b16 %v808
      %v4792 = vunpack.c.h.b16 %v808
      %v4793 = vunpack.c.l.b16 %v809
      %v4794 = vunpack.c.h.b16 %v809
      %v4795 = vunpack.c.l.b16 %v810
      %v4796 = vunpack.c.h.b16 %v810
      %v4797 = vunpack.c.l.b16 %v811
      %v4798 = vunpack.c.h.b16 %v811
      %v4799 = vunpack.c.l.b16 %v812
      %v4800 = vunpack.c.h.b16 %v812
      %v4801 = vunpack.c.l.b16 %v813
      %v4802 = vunpack.c.h.b16 %v813
      %v4803 = vunpack.c.l.b16 %v814
      %v4804 = vunpack.c.h.b16 %v814
      %v4805 = vunpack.c.l.b16 %v815
      %v4806 = vunpack.c.h.b16 %v815
      %v4807 = vunpack.c.l.b16 %v816
      %v4808 = vunpack.c.h.b16 %v816
      %v4809 = vunpack.c.l.b16 %v817
      %v4810 = vunpack.c.h.b16 %v817
      %v4811 = vunpack.c.l.b16 %v818
      %v4812 = vunpack.c.h.b16 %v818
      %v4813 = vunpack.c.l.b16 %v819
      %v4814 = vunpack.c.h.b16 %v819
      %v4815 = vunpack.c.l.b16 %v820
      %v4816 = vunpack.c.h.b16 %v820
      %v4817 = vunpack.c.l.b16 %v821
      %v4818 = vunpack.c.h.b16 %v821
      %v4819 = vunpack.c.l.b16 %v822
      %v4820 = vunpack.c.h.b16 %v822
      %v4821 = vunpack.c.l.b16 %v823
      %v4822 = vunpack.c.h.b16 %v823
      %v4823 = vunpack.c.l.b16 %v824
      %v4824 = vunpack.c.h.b16 %v824
      %v4825 = vunpack.c.l.b16 %v825
      %v4826 = vunpack.c.h.b16 %v825
      %v4827 = vunpack.c.l.b16 %v826
      %v4828 = vunpack.c.h.b16 %v826
      %v4829 = vunpack.c.l.b16 %v827
      %v4830 = vunpack.c.h.b16 %v827
      %v4831 = vunpack.c.l.b16 %v828
      %v4832 = vunpack.c.h.b16 %v828
      %v4833 = vunpack.c.l.b16 %v829
      %v4834 = vunpack.c.h.b16 %v829
      %v4835 = vunpack.c.l.b16 %v830
      %v4836 = vunpack.c.h.b16 %v830
      %v4837 = vunpack.c.l.b16 %v831
      %v4838 = vunpack.c.h.b16 %v831
      %v4839 = vunpack.c.l.b16 %v832
      %v4840 = vunpack.c.h.b16 %v832
      %v4841 = vunpack.c.l.b16 %v833
      %v4842 = vunpack.c.h.b16 %v833
      %v4843 = vunpack.c.l.b16 %v834
      %v4844 = vunpack.c.h.b16 %v834
      %v4845 = vunpack.c.l.b16 %v835
      %v4846 = vunpack.c.h.b16 %v835
      %v4847 = vunpack.c.l.b16 %v836
      %v4848 = vunpack.c.h.b16 %v836
      %v4849 = vunpack.c.l.b16 %v837
      %v4850 = vunpack.c.h.b16 %v837
      %v4851 = vunpack.c.l.b16 %v838
      %v4852 = vunpack.c.h.b16 %v838
      %v4853 = vunpack.c.l.b16 %v839
      %v4854 = vunpack.c.h.b16 %v839
      %v4855 = vunpack.c.l.b16 %v840
      %v4856 = vunpack.c.h.b16 %v840
      %v4857 = vunpack.c.l.b16 %v841
      %v4858 = vunpack.c.h.b16 %v841
      %v4859 = vunpack.c.l.b16 %v842
      %v4860 = vunpack.c.h.b16 %v842
      %v4861 = vunpack.c.l.b16 %v843
      %v4862 = vunpack.c.h.b16 %v843
      %v4863 = vunpack.c.l.b16 %v844
      %v4864 = vunpack.c.h.b16 %v844
      %v4865 = vunpack.c.l.b16 %v845
      %v4866 = vunpack.c.h.b16 %v845
      %v4867 = vunpack.c.l.b16 %v846
      %v4868 = vunpack.c.h.b16 %v846
      %v4869 = vunpack.c.l.b16 %v847
      %v4870 = vunpack.c.h.b16 %v847
      %v4871 = vunpack.c.l.b16 %v848
      %v4872 = vunpack.c.h.b16 %v848
      %v4873 = vunpack.c.l.b16 %v849
      %v4874 = vunpack.c.h.b16 %v849
      %v4875 = vunpack.c.l.b16 %v850
      %v4876 = vunpack.c.h.b16 %v850
      %v4877 = vunpack.c.l.b16 %v851
      %v4878 = vunpack.c.h.b16 %v851
      %v4879 = vunpack.c.l.b16 %v852
      %v4880 = vunpack.c.h.b16 %v852
      %v4881 = vunpack.c.l.b16 %v853
      %v4882 = vunpack.c.h.b16 %v853
      %v4883 = vunpack.c.l.b16 %v854
      %v4884 = vunpack.c.h.b16 %v854
      %v4885 = vunpack.c.l.b16 %v855
      %v4886 = vunpack.c.h.b16 %v855
      %v4887 = vunpack.c.l.b16 %v856
      %v4888 = vunpack.c.h.b16 %v856
      %v4889 = vunpack.c.l.b16 %v857
      %v4890 = vunpack.c.h.b16 %v857
      %v4891 = vunpack.c.l.b16 %v858
      %v4892 = vunpack.c.h.b16 %v858
      %v4893 = vunpack.c.l.b16 %v859
      %v4894 = vunpack.c.h.b16 %v859
      %v4895 = vunpack.c.l.b16 %v860
      %v4896 = vunpack.c.h.b16 %v860
      %v4897 = vunpack.c.l.b16 %v861
      %v4898 = vunpack.c.h.b16 %v861
      %v4899 = vunpack.c.l.b16 %v862
      %v4900 = vunpack.c.h.b16 %v862
      %v4901 = vunpack.c.l.b16 %v863
      %v4902 = vunpack.c.h.b16 %v863
      %v4903 = vunpack.c.l.b16 %v864
      %v4904 = vunpack.c.h.b16 %v864
      %v4905 = vunpack.c.l.b16 %v865
      %v4906 = vunpack.c.h.b16 %v865
      %v4907 = vunpack.c.l.b16 %v866
      %v4908 = vunpack.c.h.b16 %v866
      %v4909 = vunpack.c.l.b16 %v867
      %v4910 = vunpack.c.h.b16 %v867
      %v4911 = vunpack.c.l.b16 %v868
      %v4912 = vunpack.c.h.b16 %v868
      %v4913 = vunpack.c.l.b16 %v869
      %v4914 = vunpack.c.h.b16 %v869
      %v4915 = vunpack.c.l.b16 %v870
      %v4916 = vunpack.c.h.b16 %v870
      %v4917 = vunpack.c.l.b16 %v871
      %v4918 = vunpack.c.h.b16 %v871
      %v4919 = vunpack.c.l.b16 %v872
      %v4920 = vunpack.c.h.b16 %v872
      %v4921 = vunpack.c.l.b16 %v873
      %v4922 = vunpack.c.h.b16 %v873
      %v4923 = vunpack.c.l.b16 %v874
      %v4924 = vunpack.c.h.b16 %v874
      %v4925 = vunpack.c.l.b16 %v875
      %v4926 = vunpack.c.h.b16 %v875
      %v4927 = vunpack.c.l.b16 %v876
      %v4928 = vunpack.c.h.b16 %v876
      %v4929 = vunpack.c.l.b16 %v877
      %v4930 = vunpack.c.h.b16 %v877
      %v4931 = vunpack.c.l.b16 %v878
      %v4932 = vunpack.c.h.b16 %v878
      %v4933 = vunpack.c.l.b16 %v879
      %v4934 = vunpack.c.h.b16 %v879
      %v4935 = vunpack.c.l.b16 %v880
      %v4936 = vunpack.c.h.b16 %v880
      %v4937 = vunpack.c.l.b16 %v881
      %v4938 = vunpack.c.h.b16 %v881
      %v4939 = vunpack.c.l.b16 %v882
      %v4940 = vunpack.c.h.b16 %v882
      %v4941 = vunpack.c.l.b16 %v883
      %v4942 = vunpack.c.h.b16 %v883
      %v4943 = vunpack.c.l.b16 %v884
      %v4944 = vunpack.c.h.b16 %v884
      %v4945 = vunpack.c.l.b16 %v885
      %v4946 = vunpack.c.h.b16 %v885
      %v4947 = vunpack.c.l.b16 %v886
      %v4948 = vunpack.c.h.b16 %v886
      %v4949 = vunpack.c.l.b16 %v887
      %v4950 = vunpack.c.h.b16 %v887
      %v4951 = vunpack.c.l.b16 %v888
      %v4952 = vunpack.c.h.b16 %v888
      %v4953 = vunpack.c.l.b16 %v889
      %v4954 = vunpack.c.h.b16 %v889
      %v4955 = vunpack.c.l.b16 %v890
      %v4956 = vunpack.c.h.b16 %v890
      %v4957 = vunpack.c.l.b16 %v891
      %v4958 = vunpack.c.h.b16 %v891
      %v4959 = vunpack.c.l.b16 %v892
      %v4960 = vunpack.c.h.b16 %v892
      %v4961 = vunpack.c.l.b16 %v893
      %v4962 = vunpack.c.h.b16 %v893
      %v4963 = vunpack.c.l.b16 %v894
      %v4964 = vunpack.c.h.b16 %v894
      %v4965 = vunpack.c.l.b16 %v895
      %v4966 = vunpack.c.h.b16 %v895
      %v4967 = vunpack.c.l.b16 %v896
      %v4968 = vunpack.c.h.b16 %v896
      %v4969 = vunpack.c.l.b16 %v897
      %v4970 = vunpack.c.h.b16 %v897
      %v4971 = vunpack.c.l.b16 %v898
      %v4972 = vunpack.c.h.b16 %v898
      %v4973 = vunpack.c.l.b16 %v899
      %v4974 = vunpack.c.h.b16 %v899
      %v4975 = vunpack.c.l.b16 %v900
      %v4976 = vunpack.c.h.b16 %v900
      %v4977 = vunpack.c.l.b16 %v901
      %v4978 = vunpack.c.h.b16 %v901
      %v4979 = vunpack.c.l.b16 %v902
      %v4980 = vunpack.c.h.b16 %v902
      %v4981 = vunpack.c.l.b16 %v903
      %v4982 = vunpack.c.h.b16 %v903
      %v4983 = vunpack.c.l.b16 %v904
      %v4984 = vunpack.c.h.b16 %v904
      %v4985 = vunpack.c.l.b16 %v905
      %v4986 = vunpack.c.h.b16 %v905
      %v4987 = vunpack.c.l.b16 %v906
      %v4988 = vunpack.c.h.b16 %v906
      %v4989 = vunpack.c.l.b16 %v907
      %v4990 = vunpack.c.h.b16 %v907
      %v4991 = vunpack.c.l.b16 %v908
      %v4992 = vunpack.c.h.b16 %v908
      %v4993 = vunpack.c.l.b16 %v909
      %v4994 = vunpack.c.h.b16 %v909
      %v4995 = vunpack.c.l.b16 %v910
      %v4996 = vunpack.c.h.b16 %v910
      %v4997 = vunpack.c.l.b16 %v911
      %v4998 = vunpack.c.h.b16 %v911
      %v4999 = vunpack.c.l.b16 %v912
      %v5000 = vunpack.c.h.b16 %v912
      %v5001 = vunpack.c.l.b16 %v913
      %v5002 = vunpack.c.h.b16 %v913
      %v5003 = vunpack.c.l.b16 %v914
      %v5004 = vunpack.c.h.b16 %v914
      %v5005 = vunpack.c.l.b16 %v915
      %v5006 = vunpack.c.h.b16 %v915
      %v5007 = vunpack.c.l.b16 %v916
      %v5008 = vunpack.c.h.b16 %v916
      %v5009 = vunpack.c.l.b16 %v917
      %v5010 = vunpack.c.h.b16 %v917
      %v5011 = vunpack.c.l.b16 %v918
      %v5012 = vunpack.c.h.b16 %v918
      %v5013 = vunpack.c.l.b16 %v919
      %v5014 = vunpack.c.h.b16 %v919
      %v5015 = vunpack.c.l.b16 %v920
      %v5016 = vunpack.c.h.b16 %v920
      %v5017 = vunpack.c.l.b16 %v921
      %v5018 = vunpack.c.h.b16 %v921
      %v5019 = vunpack.c.l.b16 %v922
      %v5020 = vunpack.c.h.b16 %v922
      %v5021 = vunpack.c.l.b16 %v923
      %v5022 = vunpack.c.h.b16 %v923
      %v5023 = vunpack.c.l.b16 %v924
      %v5024 = vunpack.c.h.b16 %v924
      %v5025 = vunpack.c.l.b16 %v925
      %v5026 = vunpack.c.h.b16 %v925
      %v5027 = vunpack.c.l.b16 %v926
      %v5028 = vunpack.c.h.b16 %v926
      %v5029 = vunpack.c.l.b16 %v927
      %v5030 = vunpack.c.h.b16 %v927
      %v5031 = vunpack.c.l.b16 %v928
      %v5032 = vunpack.c.h.b16 %v928
      %v5033 = vunpack.c.l.b16 %v929
      %v5034 = vunpack.c.h.b16 %v929
      %v5035 = vunpack.c.l.b16 %v930
      %v5036 = vunpack.c.h.b16 %v930
      %v5037 = vunpack.c.l.b16 %v931
      %v5038 = vunpack.c.h.b16 %v931
      %v5039 = vunpack.c.l.b16 %v932
      %v5040 = vunpack.c.h.b16 %v932
      %v5041 = vunpack.c.l.b16 %v933
      %v5042 = vunpack.c.h.b16 %v933
      %v5043 = vunpack.c.l.b16 %v934
      %v5044 = vunpack.c.h.b16 %v934
      %v5045 = vunpack.c.l.b16 %v935
      %v5046 = vunpack.c.h.b16 %v935
      %v5047 = vunpack.c.l.b16 %v936
      %v5048 = vunpack.c.h.b16 %v936
      %v5049 = vunpack.c.l.b16 %v937
      %v5050 = vunpack.c.h.b16 %v937
      %v5051 = vunpack.c.l.b16 %v938
      %v5052 = vunpack.c.h.b16 %v938
      %v5053 = vunpack.c.l.b16 %v939
      %v5054 = vunpack.c.h.b16 %v939
      %v5055 = vunpack.c.l.b16 %v940
      %v5056 = vunpack.c.h.b16 %v940
      %v5057 = vunpack.c.l.b16 %v941
      %v5058 = vunpack.c.h.b16 %v941
      %v5059 = vunpack.c.l.b16 %v942
      %v5060 = vunpack.c.h.b16 %v942
      %v5061 = vunpack.c.l.b16 %v943
      %v5062 = vunpack.c.h.b16 %v943
      %v5063 = vunpack.c.l.b16 %v944
      %v5064 = vunpack.c.h.b16 %v944
      %v5065 = vunpack.c.l.b16 %v945
      %v5066 = vunpack.c.h.b16 %v945
      %v5067 = vunpack.c.l.b16 %v946
      %v5068 = vunpack.c.h.b16 %v946
      %v5069 = vunpack.c.l.b16 %v947
      %v5070 = vunpack.c.h.b16 %v947
      %v5071 = vunpack.c.l.b16 %v948
      %v5072 = vunpack.c.h.b16 %v948
      %v5073 = vunpack.c.l.b16 %v949
      %v5074 = vunpack.c.h.b16 %v949
      %v5075 = vunpack.c.l.b16 %v950
      %v5076 = vunpack.c.h.b16 %v950
      %v5077 = vunpack.c.l.b16 %v951
      %v5078 = vunpack.c.h.b16 %v951
      %v5079 = vunpack.c.l.b16 %v952
      %v5080 = vunpack.c.h.b16 %v952
      %v5081 = vunpack.c.l.b16 %v953
      %v5082 = vunpack.c.h.b16 %v953
      %v5083 = vunpack.c.l.b16 %v954
      %v5084 = vunpack.c.h.b16 %v954
      %v5085 = vunpack.c.l.b16 %v955
      %v5086 = vunpack.c.h.b16 %v955
      %v5087 = vunpack.c.l.b16 %v956
      %v5088 = vunpack.c.h.b16 %v956
      %v5089 = vunpack.c.l.b16 %v957
      %v5090 = vunpack.c.h.b16 %v957
      %v5091 = vunpack.c.l.b16 %v958
      %v5092 = vunpack.c.h.b16 %v958
      %v5093 = vunpack.c.l.b16 %v959
      %v5094 = vunpack.c.h.b16 %v959
      %v5095 = vunpack.c.l.b16 %v960
      %v5096 = vunpack.c.h.b16 %v960
      %v5097 = vunpack.c.l.b16 %v961
      %v5098 = vunpack.c.h.b16 %v961
      %v5099 = vunpack.c.l.b16 %v962
      %v5100 = vunpack.c.h.b16 %v962
      %v5101 = vunpack.c.l.b16 %v963
      %v5102 = vunpack.c.h.b16 %v963
      %v5103 = vunpack.c.l.b16 %v964
      %v5104 = vunpack.c.h.b16 %v964
      %v5105 = vunpack.c.l.b16 %v965
      %v5106 = vunpack.c.h.b16 %v965
      %v5107 = vunpack.c.l.b16 %v966
      %v5108 = vunpack.c.h.b16 %v966
      %v5109 = vunpack.c.l.b16 %v967
      %v5110 = vunpack.c.h.b16 %v967
      %v5111 = vunpack.c.l.b16 %v968
      %v5112 = vunpack.c.h.b16 %v968
      %v5113 = vunpack.c.l.b16 %v969
      %v5114 = vunpack.c.h.b16 %v969
      %v5115 = vunpack.c.l.b16 %v970
      %v5116 = vunpack.c.h.b16 %v970
      %v5117 = vunpack.c.l.b16 %v971
      %v5118 = vunpack.c.h.b16 %v971
      %v5119 = vunpack.c.l.b16 %v972
      %v5120 = vunpack.c.h.b16 %v972
      %v5121 = vunpack.c.l.b16 %v973
      %v5122 = vunpack.c.h.b16 %v973
      %v5123 = vunpack.c.l.b16 %v974
      %v5124 = vunpack.c.h.b16 %v974
      %v5125 = vunpack.c.l.b16 %v975
      %v5126 = vunpack.c.h.b16 %v975
      %v5127 = vunpack.c.l.b16 %v976
      %v5128 = vunpack.c.h.b16 %v976
      %v5129 = vunpack.c.l.b16 %v977
      %v5130 = vunpack.c.h.b16 %v977
      %v5131 = vunpack.c.l.b16 %v978
      %v5132 = vunpack.c.h.b16 %v978
      %v5133 = vunpack.c.l.b16 %v979
      %v5134 = vunpack.c.h.b16 %v979
      %v5135 = vunpack.c.l.b16 %v980
      %v5136 = vunpack.c.h.b16 %v980
      %v5137 = vunpack.c.l.b16 %v981
      %v5138 = vunpack.c.h.b16 %v981
      %v5139 = vunpack.c.l.b16 %v982
      %v5140 = vunpack.c.h.b16 %v982
      %v5141 = vunpack.c.l.b16 %v983
      %v5142 = vunpack.c.h.b16 %v983
      %v5143 = vunpack.c.l.b16 %v984
      %v5144 = vunpack.c.h.b16 %v984
      %v5145 = vunpack.c.l.b16 %v985
      %v5146 = vunpack.c.h.b16 %v985
      %v5147 = vunpack.c.l.b16 %v986
      %v5148 = vunpack.c.h.b16 %v986
      %v5149 = vunpack.c.l.b16 %v987
      %v5150 = vunpack.c.h.b16 %v987
      %v5151 = vunpack.c.l.b16 %v988
      %v5152 = vunpack.c.h.b16 %v988
      %v5153 = vunpack.c.l.b16 %v989
      %v5154 = vunpack.c.h.b16 %v989
      %v5155 = vunpack.c.l.b16 %v990
      %v5156 = vunpack.c.h.b16 %v990
      %v5157 = vunpack.c.l.b16 %v991
      %v5158 = vunpack.c.h.b16 %v991
      %v5159 = vunpack.c.l.b16 %v992
      %v5160 = vunpack.c.h.b16 %v992
      %v5161 = vunpack.c.l.b16 %v993
      %v5162 = vunpack.c.h.b16 %v993
      %v5163 = vunpack.c.l.b16 %v994
      %v5164 = vunpack.c.h.b16 %v994
      %v5165 = vunpack.c.l.b16 %v995
      %v5166 = vunpack.c.h.b16 %v995
      %v5167 = vunpack.c.l.b16 %v996
      %v5168 = vunpack.c.h.b16 %v996
      %v5169 = vunpack.c.l.b16 %v997
      %v5170 = vunpack.c.h.b16 %v997
      %v5171 = vunpack.c.l.b16 %v998
      %v5172 = vunpack.c.h.b16 %v998
      %v5173 = vunpack.c.l.b16 %v999
      %v5174 = vunpack.c.h.b16 %v999
      %v5175 = vunpack.c.l.b16 %v1000
      %v5176 = vunpack.c.h.b16 %v1000
      %v5177 = vunpack.c.l.b16 %v1001
      %v5178 = vunpack.c.h.b16 %v1001
      %v5179 = vunpack.c.l.b16 %v1002
      %v5180 = vunpack.c.h.b16 %v1002
      %v5181 = vunpack.c.l.b16 %v1003
      %v5182 = vunpack.c.h.b16 %v1003
      %v5183 = vunpack.c.l.b16 %v1004
      %v5184 = vunpack.c.h.b16 %v1004
      %v5185 = vunpack.c.l.b16 %v1005
      %v5186 = vunpack.c.h.b16 %v1005
      %v5187 = vunpack.c.l.b16 %v1006
      %v5188 = vunpack.c.h.b16 %v1006
      %v5189 = vunpack.c.l.b16 %v1007
      %v5190 = vunpack.c.h.b16 %v1007
      %v5191 = vunpack.c.l.b16 %v1008
      %v5192 = vunpack.c.h.b16 %v1008
      %v5193 = vunpack.c.l.b16 %v1009
      %v5194 = vunpack.c.h.b16 %v1009
      %v5195 = vunpack.c.l.b16 %v1010
      %v5196 = vunpack.c.h.b16 %v1010
      %v5197 = vunpack.c.l.b16 %v1011
      %v5198 = vunpack.c.h.b16 %v1011
      %v5199 = vunpack.c.l.b16 %v1012
      %v5200 = vunpack.c.h.b16 %v1012
      %v5201 = vunpack.c.l.b16 %v1013
      %v5202 = vunpack.c.h.b16 %v1013
      %v5203 = vunpack.c.l.b16 %v1014
      %v5204 = vunpack.c.h.b16 %v1014
      %v5205 = vunpack.c.l.b16 %v1015
      %v5206 = vunpack.c.h.b16 %v1015
      %v5207 = vunpack.c.l.b16 %v1016
      %v5208 = vunpack.c.h.b16 %v1016
      %v5209 = vunpack.c.l.b16 %v1017
      %v5210 = vunpack.c.h.b16 %v1017
      %v5211 = vunpack.c.l.b16 %v1018
      %v5212 = vunpack.c.h.b16 %v1018
      %v5213 = vunpack.c.l.b16 %v1019
      %v5214 = vunpack.c.h.b16 %v1019
      %v5215 = vunpack.c.l.b16 %v1020
      %v5216 = vunpack.c.h.b16 %v1020
      %v5217 = vunpack.c.l.b16 %v1021
      %v5218 = vunpack.c.h.b16 %v1021
      %v5219 = vunpack.c.l.b16 %v1022
      %v5220 = vunpack.c.h.b16 %v1022
      %v5221 = vunpack.c.l.b16 %v1023
      %v5222 = vunpack.c.h.b16 %v1023
      %v5223 = vunpack.c.l.b16 %v1024
      %v5224 = vunpack.c.h.b16 %v1024
      %v5225 = vunpack.c.l.b16 %v1025
      %v5226 = vunpack.c.h.b16 %v1025
      %v5227 = vunpack.c.l.b16 %v1026
      %v5228 = vunpack.c.h.b16 %v1026
      %v5229 = vunpack.c.l.b16 %v1027
      %v5230 = vunpack.c.h.b16 %v1027
      %v5231 = vunpack.c.l.b16 %v1028
      %v5232 = vunpack.c.h.b16 %v1028
      %v5233 = vunpack.c.l.b16 %v1029
      %v5234 = vunpack.c.h.b16 %v1029
      %v5235 = vunpack.c.l.b16 %v1030
      %v5236 = vunpack.c.h.b16 %v1030
      %v5237 = vunpack.c.l.b16 %v1031
      %v5238 = vunpack.c.h.b16 %v1031
      %v5239 = vunpack.c.l.b16 %v1032
      %v5240 = vunpack.c.h.b16 %v1032
      %v5241 = vunpack.c.l.b16 %v1033
      %v5242 = vunpack.c.h.b16 %v1033
      %v5243 = vunpack.c.l.b16 %v1034
      %v5244 = vunpack.c.h.b16 %v1034
      %v5245 = vunpack.c.l.b16 %v1035
      %v5246 = vunpack.c.h.b16 %v1035
      %v5247 = vunpack.c.l.b16 %v1036
      %v5248 = vunpack.c.h.b16 %v1036
      %v5249 = vunpack.c.l.b16 %v1037
      %v5250 = vunpack.c.h.b16 %v1037
      %v5251 = vunpack.c.l.b16 %v1038
      %v5252 = vunpack.c.h.b16 %v1038
      %v5253 = vunpack.c.l.b16 %v1039
      %v5254 = vunpack.c.h.b16 %v1039
      %v5255 = vunpack.c.l.b16 %v1040
      %v5256 = vunpack.c.h.b16 %v1040
      %v5257 = vunpack.c.l.b16 %v1041
      %v5258 = vunpack.c.h.b16 %v1041
      %v5259 = vunpack.c.l.b16 %v1042
      %v5260 = vunpack.c.h.b16 %v1042
      %v5261 = vunpack.c.l.b16 %v1043
      %v5262 = vunpack.c.h.b16 %v1043
      %v5263 = vunpack.c.l.b16 %v1044
      %v5264 = vunpack.c.h.b16 %v1044
      %v5265 = vunpack.c.l.b16 %v1045
      %v5266 = vunpack.c.h.b16 %v1045
      %v5267 = vunpack.c.l.b16 %v1046
      %v5268 = vunpack.c.h.b16 %v1046
      %v5269 = vunpack.c.l.b16 %v1047
      %v5270 = vunpack.c.h.b16 %v1047
      %v5271 = vunpack.c.l.b16 %v1048
      %v5272 = vunpack.c.h.b16 %v1048
      %v5273 = vunpack.c.l.b16 %v1049
      %v5274 = vunpack.c.h.b16 %v1049
      %v5275 = vunpack.c.l.b16 %v1050
      %v5276 = vunpack.c.h.b16 %v1050
      %v5277 = vunpack.c.l.b16 %v1051
      %v5278 = vunpack.c.h.b16 %v1051
      %v5279 = vunpack.c.l.b16 %v1052
      %v5280 = vunpack.c.h.b16 %v1052
      %v5281 = vunpack.c.l.b16 %v1053
      %v5282 = vunpack.c.h.b16 %v1053
      %v5283 = vunpack.c.l.b16 %v1054
      %v5284 = vunpack.c.h.b16 %v1054
      %v5285 = vunpack.c.l.b16 %v1055
      %v5286 = vunpack.c.h.b16 %v1055
      %v5287 = vunpack.c.l.b16 %v1056
      %v5288 = vunpack.c.h.b16 %v1056
      %v5289 = vunpack.c.l.b16 %v1057
      %v5290 = vunpack.c.h.b16 %v1057
      %v5291 = vunpack.c.l.b16 %v1058
      %v5292 = vunpack.c.h.b16 %v1058
      %v5293 = vunpack.c.l.b16 %v1059
      %v5294 = vunpack.c.h.b16 %v1059
      %v5295 = vunpack.c.l.b16 %v1060
      %v5296 = vunpack.c.h.b16 %v1060
      %v5297 = vunpack.c.l.b16 %v1061
      %v5298 = vunpack.c.h.b16 %v1061
      %v5299 = vunpack.c.l.b16 %v1062
      %v5300 = vunpack.c.h.b16 %v1062
      %v5301 = vunpack.c.l.b16 %v1063
      %v5302 = vunpack.c.h.b16 %v1063
      %v5303 = vunpack.c.l.b16 %v1064
      %v5304 = vunpack.c.h.b16 %v1064
      %v5305 = vunpack.c.l.b16 %v1065
      %v5306 = vunpack.c.h.b16 %v1065
      %v5307 = vunpack.c.l.b16 %v1066
      %v5308 = vunpack.c.h.b16 %v1066
      %v5309 = vunpack.c.l.b16 %v1067
      %v5310 = vunpack.c.h.b16 %v1067
      %v5311 = vunpack.c.l.b16 %v1068
      %v5312 = vunpack.c.h.b16 %v1068
      %v5313 = vunpack.c.l.b16 %v1069
      %v5314 = vunpack.c.h.b16 %v1069
      %v5315 = vunpack.c.l.b16 %v1070
      %v5316 = vunpack.c.h.b16 %v1070
      %v5317 = vunpack.c.l.b16 %v1071
      %v5318 = vunpack.c.h.b16 %v1071
      %v5319 = vunpack.c.l.b16 %v1072
      %v5320 = vunpack.c.h.b16 %v1072
      %v5321 = vunpack.c.l.b16 %v1073
      %v5322 = vunpack.c.h.b16 %v1073
      %v5323 = vunpack.c.l.b16 %v1074
      %v5324 = vunpack.c.h.b16 %v1074
      %v5325 = vunpack.c.l.b16 %v1075
      %v5326 = vunpack.c.h.b16 %v1075
      %v5327 = vunpack.c.l.b16 %v1076
      %v5328 = vunpack.c.h.b16 %v1076
      %v5329 = vunpack.c.l.b16 %v1077
      %v5330 = vunpack.c.h.b16 %v1077
      %v5331 = vunpack.c.l.b16 %v1078
      %v5332 = vunpack.c.h.b16 %v1078
      %v5333 = vunpack.c.l.b16 %v1079
      %v5334 = vunpack.c.h.b16 %v1079
      %v5335 = vunpack.c.l.b16 %v1080
      %v5336 = vunpack.c.h.b16 %v1080
      %v5337 = vunpack.c.l.b16 %v1081
      %v5338 = vunpack.c.h.b16 %v1081
      %v5339 = vunpack.c.l.b16 %v1082
      %v5340 = vunpack.c.h.b16 %v1082
      %v5341 = vunpack.c.l.b16 %v1083
      %v5342 = vunpack.c.h.b16 %v1083
      %v5343 = vunpack.c.l.b16 %v1084
      %v5344 = vunpack.c.h.b16 %v1084
      %v5345 = vunpack.c.l.b16 %v1085
      %v5346 = vunpack.c.h.b16 %v1085
      %v5347 = vunpack.c.l.b16 %v1086
      %v5348 = vunpack.c.h.b16 %v1086
      %v5349 = vunpack.c.l.b16 %v1087
      %v5350 = vunpack.c.h.b16 %v1087
      %v5351 = vunpack.c.l.b16 %v1088
      %v5352 = vunpack.c.h.b16 %v1088
      %v5353 = vunpack.c.l.b16 %v1089
      %v5354 = vunpack.c.h.b16 %v1089
      %v5355 = vunpack.c.l.b16 %v1090
      %v5356 = vunpack.c.h.b16 %v1090
      %v5357 = vunpack.c.l.b16 %v1091
      %v5358 = vunpack.c.h.b16 %v1091
      %v5359 = vunpack.c.l.b16 %v1092
      %v5360 = vunpack.c.h.b16 %v1092
      %v5361 = vunpack.c.l.b16 %v1093
      %v5362 = vunpack.c.h.b16 %v1093
      %v5363 = vunpack.c.l.b16 %v1094
      %v5364 = vunpack.c.h.b16 %v1094
      %v5365 = vunpack.c.l.b16 %v1095
      %v5366 = vunpack.c.h.b16 %v1095
      %v5367 = vunpack.c.l.b16 %v1096
      %v5368 = vunpack.c.h.b16 %v1096
      %v5369 = vunpack.c.l.b16 %v1097
      %v5370 = vunpack.c.h.b16 %v1097
      %v5371 = vunpack.c.l.b16 %v1098
      %v5372 = vunpack.c.h.b16 %v1098
      %v5373 = vunpack.c.l.b16 %v1099
      %v5374 = vunpack.c.h.b16 %v1099
      %v5375 = vunpack.c.l.b16 %v1100
      %v5376 = vunpack.c.h.b16 %v1100
      %v5377 = vunpack.c.l.b16 %v1101
      %v5378 = vunpack.c.h.b16 %v1101
      %v5379 = vunpack.c.l.b16 %v1102
      %v5380 = vunpack.c.h.b16 %v1102
      %v5381 = vunpack.c.l.b16 %v1103
      %v5382 = vunpack.c.h.b16 %v1103
      %v5383 = vunpack.c.l.b16 %v1104
      %v5384 = vunpack.c.h.b16 %v1104
      %v5385 = vunpack.c.l.b16 %v1105
      %v5386 = vunpack.c.h.b16 %v1105
      %v5387 = vunpack.c.l.b16 %v1106
      %v5388 = vunpack.c.h.b16 %v1106
      %v5389 = vunpack.c.l.b16 %v1107
      %v5390 = vunpack.c.h.b16 %v1107
      %v5391 = vunpack.c.l.b16 %v1108
      %v5392 = vunpack.c.h.b16 %v1108
      %v5393 = vunpack.c.l.b16 %v1109
      %v5394 = vunpack.c.h.b16 %v1109
      %v5395 = vunpack.c.l.b16 %v1110
      %v5396 = vunpack.c.h.b16 %v1110
      %v5397 = vunpack.c.l.b16 %v1111
      %v5398 = vunpack.c.h.b16 %v1111
      %v5399 = vunpack.c.l.b16 %v1112
      %v5400 = vunpack.c.h.b16 %v1112
      %v5401 = vunpack.c.l.b16 %v1113
      %v5402 = vunpack.c.h.b16 %v1113
      %v5403 = vunpack.c.l.b16 %v1114
      %v5404 = vunpack.c.h.b16 %v1114
      %v5405 = vunpack.c.l.b16 %v1115
      %v5406 = vunpack.c.h.b16 %v1115
      %v5407 = vunpack.c.l.b16 %v1116
      %v5408 = vunpack.c.h.b16 %v1116
      %v5409 = vunpack.c.l.b16 %v1117
      %v5410 = vunpack.c.h.b16 %v1117
      %v5411 = vunpack.c.l.b16 %v1118
      %v5412 = vunpack.c.h.b16 %v1118
      %v5413 = vunpack.c.l.b16 %v1119
      %v5414 = vunpack.c.h.b16 %v1119
      %v5415 = vunpack.c.l.b16 %v1120
      %v5416 = vunpack.c.h.b16 %v1120
      %v5417 = vunpack.c.l.b16 %v1121
      %v5418 = vunpack.c.h.b16 %v1121
      %v5419 = vunpack.c.l.b16 %v1122
      %v5420 = vunpack.c.h.b16 %v1122
      %v5421 = vunpack.c.l.b16 %v1123
      %v5422 = vunpack.c.h.b16 %v1123
      %v5423 = vunpack.c.l.b16 %v1124
      %v5424 = vunpack.c.h.b16 %v1124
      %v5425 = vunpack.c.l.b16 %v1125
      %v5426 = vunpack.c.h.b16 %v1125
      %v5427 = vunpack.c.l.b16 %v1126
      %v5428 = vunpack.c.h.b16 %v1126
      %v5429 = vunpack.c.l.b16 %v1127
      %v5430 = vunpack.c.h.b16 %v1127
      %v5431 = vunpack.c.l.b16 %v1128
      %v5432 = vunpack.c.h.b16 %v1128
      %v5433 = vunpack.c.l.b16 %v1129
      %v5434 = vunpack.c.h.b16 %v1129
      %v5435 = vunpack.c.l.b16 %v1130
      %v5436 = vunpack.c.h.b16 %v1130
      %v5437 = vunpack.c.l.b16 %v1131
      %v5438 = vunpack.c.h.b16 %v1131
      %v5439 = vunpack.c.l.b16 %v1132
      %v5440 = vunpack.c.h.b16 %v1132
      %v5441 = vunpack.c.l.b16 %v1133
      %v5442 = vunpack.c.h.b16 %v1133
      %v5443 = vunpack.c.l.b16 %v1134
      %v5444 = vunpack.c.h.b16 %v1134
      %v5445 = vunpack.c.l.b16 %v1135
      %v5446 = vunpack.c.h.b16 %v1135
      %v5447 = vunpack.c.l.b16 %v1136
      %v5448 = vunpack.c.h.b16 %v1136
      %v5449 = vunpack.c.l.b16 %v1137
      %v5450 = vunpack.c.h.b16 %v1137
      %v5451 = vunpack.c.l.b16 %v1138
      %v5452 = vunpack.c.h.b16 %v1138
      %v5453 = vunpack.c.l.b16 %v1139
      %v5454 = vunpack.c.h.b16 %v1139
      %v5455 = vunpack.c.l.b16 %v1140
      %v5456 = vunpack.c.h.b16 %v1140
      %v5457 = vunpack.c.l.b16 %v1141
      %v5458 = vunpack.c.h.b16 %v1141
      %v5459 = vunpack.c.l.b16 %v1142
      %v5460 = vunpack.c.h.b16 %v1142
      %v5461 = vunpack.c.l.b16 %v1143
      %v5462 = vunpack.c.h.b16 %v1143
      %v5463 = vunpack.c.l.b16 %v1144
      %v5464 = vunpack.c.h.b16 %v1144
      %v5465 = vunpack.c.l.b16 %v1145
      %v5466 = vunpack.c.h.b16 %v1145
      %v5467 = vunpack.c.l.b16 %v1146
      %v5468 = vunpack.c.h.b16 %v1146
      %v5469 = vunpack.c.l.b16 %v1147
      %v5470 = vunpack.c.h.b16 %v1147
      %v5471 = vunpack.c.l.b16 %v1148
      %v5472 = vunpack.c.h.b16 %v1148
      %v5473 = vunpack.c.l.b16 %v1149
      %v5474 = vunpack.c.h.b16 %v1149
      %v5475 = vunpack.c.l.b16 %v1150
      %v5476 = vunpack.c.h.b16 %v1150
      %v5477 = vunpack.c.l.b16 %v1151
      %v5478 = vunpack.c.h.b16 %v1151
      %v5479 = vunpack.c.l.b16 %v1152
      %v5480 = vunpack.c.h.b16 %v1152
      %v5481 = vunpack.c.l.b16 %v1153
      %v5482 = vunpack.c.h.b16 %v1153
      %v5483 = vunpack.c.l.b16 %v1154
      %v5484 = vunpack.c.h.b16 %v1154
      %v5485 = vunpack.c.l.b16 %v1155
      %v5486 = vunpack.c.h.b16 %v1155
      %v5487 = vunpack.c.l.b16 %v1156
      %v5488 = vunpack.c.h.b16 %v1156
      %v5489 = vunpack.c.l.b16 %v1157
      %v5490 = vunpack.c.h.b16 %v1157
      %v5491 = vunpack.c.l.b16 %v1158
      %v5492 = vunpack.c.h.b16 %v1158
      %v5493 = vunpack.c.l.b16 %v1159
      %v5494 = vunpack.c.h.b16 %v1159
      %v5495 = vunpack.c.l.b16 %v1160
      %v5496 = vunpack.c.h.b16 %v1160
      %v5497 = vunpack.c.l.b16 %v1161
      %v5498 = vunpack.c.h.b16 %v1161
      %v5499 = vunpack.c.l.b16 %v1162
      %v5500 = vunpack.c.h.b16 %v1162
      %v5501 = vunpack.c.l.b16 %v1163
      %v5502 = vunpack.c.h.b16 %v1163
      %v5503 = vunpack.c.l.b16 %v1164
      %v5504 = vunpack.c.h.b16 %v1164
      %v5505 = vunpack.c.l.b16 %v1165
      %v5506 = vunpack.c.h.b16 %v1165
      %v5507 = vunpack.c.l.b16 %v1166
      %v5508 = vunpack.c.h.b16 %v1166
      %v5509 = vunpack.c.l.b16 %v1167
      %v5510 = vunpack.c.h.b16 %v1167
      %v5511 = vunpack.c.l.b16 %v1168
      %v5512 = vunpack.c.h.b16 %v1168
      %v5513 = vunpack.c.l.b16 %v1169
      %v5514 = vunpack.c.h.b16 %v1169
      %v5515 = vunpack.c.l.b16 %v1170
      %v5516 = vunpack.c.h.b16 %v1170
      %v5517 = vunpack.c.l.b16 %v1171
      %v5518 = vunpack.c.h.b16 %v1171
      %v5519 = vunpack.c.l.b16 %v1172
      %v5520 = vunpack.c.h.b16 %v1172
      %v5521 = vunpack.c.l.b16 %v1173
      %v5522 = vunpack.c.h.b16 %v1173
      %v5523 = vunpack.c.l.b16 %v1174
      %v5524 = vunpack.c.h.b16 %v1174
      %v5525 = vunpack.c.l.b16 %v1175
      %v5526 = vunpack.c.h.b16 %v1175
      %v5527 = vunpack.c.l.b16 %v1176
      %v5528 = vunpack.c.h.b16 %v1176
      %v5529 = vunpack.c.l.b16 %v1177
      %v5530 = vunpack.c.h.b16 %v1177
      %v5531 = vunpack.c.l.b16 %v1178
      %v5532 = vunpack.c.h.b16 %v1178
      %v5533 = vunpack.c.l.b16 %v1179
      %v5534 = vunpack.c.h.b16 %v1179
      %v5535 = vunpack.c.l.b16 %v1180
      %v5536 = vunpack.c.h.b16 %v1180
      %v5537 = vunpack.c.l.b16 %v1181
      %v5538 = vunpack.c.h.b16 %v1181
      %v5539 = vunpack.c.l.b16 %v1182
      %v5540 = vunpack.c.h.b16 %v1182
      %v5541 = vunpack.c.l.b16 %v1183
      %v5542 = vunpack.c.h.b16 %v1183
      %v5543 = vunpack.c.l.b16 %v1184
      %v5544 = vunpack.c.h.b16 %v1184
      %v5545 = vunpack.c.l.b16 %v1185
      %v5546 = vunpack.c.h.b16 %v1185
      %v5547 = vunpack.c.l.b16 %v1186
      %v5548 = vunpack.c.h.b16 %v1186
      %v5549 = vunpack.c.l.b16 %v1187
      %v5550 = vunpack.c.h.b16 %v1187
      %v5551 = vunpack.c.l.b16 %v1188
      %v5552 = vunpack.c.h.b16 %v1188
      %v5553 = vunpack.c.l.b16 %v1189
      %v5554 = vunpack.c.h.b16 %v1189
      %v5555 = vunpack.c.l.b16 %v1190
      %v5556 = vunpack.c.h.b16 %v1190
      %v5557 = vunpack.c.l.b16 %v1191
      %v5558 = vunpack.c.h.b16 %v1191
      %v5559 = vunpack.c.l.b16 %v1192
      %v5560 = vunpack.c.h.b16 %v1192
      %v5561 = vunpack.c.l.b16 %v1193
      %v5562 = vunpack.c.h.b16 %v1193
      %v5563 = vunpack.c.l.b16 %v1194
      %v5564 = vunpack.c.h.b16 %v1194
      %v5565 = vunpack.c.l.b16 %v1195
      %v5566 = vunpack.c.h.b16 %v1195
      %v5567 = vunpack.c.l.b16 %v1196
      %v5568 = vunpack.c.h.b16 %v1196
      %v5569 = vunpack.c.l.b16 %v1197
      %v5570 = vunpack.c.h.b16 %v1197
      %v5571 = vunpack.c.l.b16 %v1198
      %v5572 = vunpack.c.h.b16 %v1198
      %v5573 = vunpack.c.l.b16 %v1199
      %v5574 = vunpack.c.h.b16 %v1199
      %v5575 = vunpack.c.l.b16 %v1200
      %v5576 = vunpack.c.h.b16 %v1200
      %v5577 = vunpack.c.l.b16 %v1201
      %v5578 = vunpack.c.h.b16 %v1201
      %v5579 = vunpack.c.l.b16 %v1202
      %v5580 = vunpack.c.h.b16 %v1202
      %v5581 = vunpack.c.l.b16 %v1203
      %v5582 = vunpack.c.h.b16 %v1203
      %v5583 = vunpack.c.l.b16 %v1204
      %v5584 = vunpack.c.h.b16 %v1204
      %v5585 = vunpack.c.l.b16 %v1205
      %v5586 = vunpack.c.h.b16 %v1205
      %v5587 = vunpack.c.l.b16 %v1206
      %v5588 = vunpack.c.h.b16 %v1206
      %v5589 = vunpack.c.l.b16 %v1207
      %v5590 = vunpack.c.h.b16 %v1207
      %v5591 = vunpack.c.l.b16 %v1208
      %v5592 = vunpack.c.h.b16 %v1208
      %v5593 = vunpack.c.l.b16 %v1209
      %v5594 = vunpack.c.h.b16 %v1209
      %v5595 = vunpack.c.l.b16 %v1210
      %v5596 = vunpack.c.h.b16 %v1210
      %v5597 = vunpack.c.l.b16 %v1211
      %v5598 = vunpack.c.h.b16 %v1211
      %v5599 = vunpack.c.l.b16 %v1212
      %v5600 = vunpack.c.h.b16 %v1212
      %v5601 = vunpack.c.l.b16 %v1213
      %v5602 = vunpack.c.h.b16 %v1213
      %v5603 = vunpack.c.l.b16 %v1214
      %v5604 = vunpack.c.h.b16 %v1214
      %v5605 = vunpack.c.l.b16 %v1215
      %v5606 = vunpack.c.h.b16 %v1215
      %v5607 = vunpack.c.l.b16 %v1216
      %v5608 = vunpack.c.h.b16 %v1216
      %v5609 = vunpack.c.l.b16 %v1217
      %v5610 = vunpack.c.h.b16 %v1217
      %v5611 = vunpack.c.l.b16 %v1218
      %v5612 = vunpack.c.h.b16 %v1218
      %v5613 = vunpack.c.l.b16 %v1219
      %v5614 = vunpack.c.h.b16 %v1219
      %v5615 = vunpack.c.l.b16 %v1220
      %v5616 = vunpack.c.h.b16 %v1220
      %v5617 = vunpack.c.l.b16 %v1221
      %v5618 = vunpack.c.h.b16 %v1221
      %v5619 = vunpack.c.l.b16 %v1222
      %v5620 = vunpack.c.h.b16 %v1222
      %v5621 = vunpack.c.l.b16 %v1223
      %v5622 = vunpack.c.h.b16 %v1223
      %v5623 = vunpack.c.l.b16 %v1224
      %v5624 = vunpack.c.h.b16 %v1224
      %v5625 = vunpack.c.l.b16 %v1225
      %v5626 = vunpack.c.h.b16 %v1225
      %v5627 = vunpack.c.l.b16 %v1226
      %v5628 = vunpack.c.h.b16 %v1226
      %v5629 = vunpack.c.l.b16 %v1227
      %v5630 = vunpack.c.h.b16 %v1227
      %v5631 = vunpack.c.l.b16 %v1228
      %v5632 = vunpack.c.h.b16 %v1228
      %v5633 = vunpack.c.l.b16 %v1229
      %v5634 = vunpack.c.h.b16 %v1229
      %v5635 = vunpack.c.l.b16 %v1230
      %v5636 = vunpack.c.h.b16 %v1230
      %v5637 = vunpack.c.l.b16 %v1231
      %v5638 = vunpack.c.h.b16 %v1231
      %v5639 = vunpack.c.l.b16 %v1232
      %v5640 = vunpack.c.h.b16 %v1232
      %v5641 = vunpack.c.l.b16 %v1233
      %v5642 = vunpack.c.h.b16 %v1233
      %v5643 = vunpack.c.l.b16 %v1234
      %v5644 = vunpack.c.h.b16 %v1234
      %v5645 = vunpack.c.l.b16 %v1235
      %v5646 = vunpack.c.h.b16 %v1235
      %v5647 = vunpack.c.l.b16 %v1236
      %v5648 = vunpack.c.h.b16 %v1236
      %v5649 = vunpack.c.l.b16 %v1237
      %v5650 = vunpack.c.h.b16 %v1237
      %v5651 = vunpack.c.l.b16 %v1238
      %v5652 = vunpack.c.h.b16 %v1238
      %v5653 = vunpack.c.l.b16 %v1239
      %v5654 = vunpack.c.h.b16 %v1239
      %v5655 = vunpack.c.l.b16 %v1240
      %v5656 = vunpack.c.h.b16 %v1240
      %v5657 = vunpack.c.l.b16 %v1241
      %v5658 = vunpack.c.h.b16 %v1241
      %v5659 = vunpack.c.l.b16 %v1242
      %v5660 = vunpack.c.h.b16 %v1242
      %v5661 = vunpack.c.l.b16 %v1243
      %v5662 = vunpack.c.h.b16 %v1243
      %v5663 = vunpack.c.l.b16 %v1244
      %v5664 = vunpack.c.h.b16 %v1244
      %v5665 = vunpack.c.l.b16 %v1245
      %v5666 = vunpack.c.h.b16 %v1245
      %v5667 = vunpack.c.l.b16 %v1246
      %v5668 = vunpack.c.h.b16 %v1246
      %v5669 = vunpack.c.l.b16 %v1247
      %v5670 = vunpack.c.h.b16 %v1247
      %v5671 = vunpack.c.l.b16 %v1248
      %v5672 = vunpack.c.h.b16 %v1248
      %v5673 = vunpack.c.l.b16 %v1249
      %v5674 = vunpack.c.h.b16 %v1249
      %v5675 = vunpack.c.l.b16 %v1250
      %v5676 = vunpack.c.h.b16 %v1250
      %v5677 = vunpack.c.l.b16 %v1251
      %v5678 = vunpack.c.h.b16 %v1251
      %v5679 = vunpack.c.l.b16 %v1252
      %v5680 = vunpack.c.h.b16 %v1252
      %v5681 = vunpack.c.l.b16 %v1253
      %v5682 = vunpack.c.h.b16 %v1253
      %v5683 = vunpack.c.l.b16 %v1254
      %v5684 = vunpack.c.h.b16 %v1254
      %v5685 = vunpack.c.l.b16 %v1255
      %v5686 = vunpack.c.h.b16 %v1255
      %v5687 = vunpack.c.l.b16 %v1256
      %v5688 = vunpack.c.h.b16 %v1256
      %v5689 = vunpack.c.l.b16 %v1257
      %v5690 = vunpack.c.h.b16 %v1257
      %v5691 = vunpack.c.l.b16 %v1258
      %v5692 = vunpack.c.h.b16 %v1258
      %v5693 = vunpack.c.l.b16 %v1259
      %v5694 = vunpack.c.h.b16 %v1259
      %v5695 = vunpack.c.l.b16 %v1260
      %v5696 = vunpack.c.h.b16 %v1260
      %v5697 = vunpack.c.l.b16 %v1261
      %v5698 = vunpack.c.h.b16 %v1261
      %v5699 = vunpack.c.l.b16 %v1262
      %v5700 = vunpack.c.h.b16 %v1262
      %v5701 = vunpack.c.l.b16 %v1263
      %v5702 = vunpack.c.h.b16 %v1263
      %v5703 = vunpack.c.l.b16 %v1264
      %v5704 = vunpack.c.h.b16 %v1264
      %v5705 = vunpack.c.l.b16 %v1265
      %v5706 = vunpack.c.h.b16 %v1265
      %v5707 = vunpack.c.l.b16 %v1266
      %v5708 = vunpack.c.h.b16 %v1266
      %v5709 = vunpack.c.l.b16 %v1267
      %v5710 = vunpack.c.h.b16 %v1267
      %v5711 = vunpack.c.l.b16 %v1268
      %v5712 = vunpack.c.h.b16 %v1268
      %v5713 = vunpack.c.l.b16 %v1269
      %v5714 = vunpack.c.h.b16 %v1269
      %v5715 = vunpack.c.l.b16 %v1270
      %v5716 = vunpack.c.h.b16 %v1270
      %v5717 = vunpack.c.l.b16 %v1271
      %v5718 = vunpack.c.h.b16 %v1271
      %v5719 = vunpack.c.l.b16 %v1272
      %v5720 = vunpack.c.h.b16 %v1272
      %v5721 = vunpack.c.l.b16 %v1273
      %v5722 = vunpack.c.h.b16 %v1273
      %v5723 = vunpack.c.l.b16 %v1274
      %v5724 = vunpack.c.h.b16 %v1274
      %v5725 = vunpack.c.l.b16 %v1275
      %v5726 = vunpack.c.h.b16 %v1275
      %v5727 = vunpack.c.l.b16 %v1276
      %v5728 = vunpack.c.h.b16 %v1276
      %v5729 = vunpack.c.l.b16 %v1277
      %v5730 = vunpack.c.h.b16 %v1277
      %v5731 = vunpack.c.l.b16 %v1278
      %v5732 = vunpack.c.h.b16 %v1278
      %v5733 = vunpack.c.l.b16 %v1279
      %v5734 = vunpack.c.h.b16 %v1279
      %v5735 = vunpack.c.l.b16 %v1280
      %v5736 = vunpack.c.h.b16 %v1280
      %v5737 = vunpack.c.l.b16 %v1281
      %v5738 = vunpack.c.h.b16 %v1281
      %v5739 = vunpack.c.l.b16 %v1282
      %v5740 = vunpack.c.h.b16 %v1282
      %v5741 = vunpack.c.l.b16 %v1283
      %v5742 = vunpack.c.h.b16 %v1283
      %v5743 = vunpack.c.l.b16 %v1284
      %v5744 = vunpack.c.h.b16 %v1284
      %v5745 = vunpack.c.l.b16 %v1285
      %v5746 = vunpack.c.h.b16 %v1285
      %v5747 = vunpack.c.l.b16 %v1286
      %v5748 = vunpack.c.h.b16 %v1286
      %v5749 = vunpack.c.l.b16 %v1287
      %v5750 = vunpack.c.h.b16 %v1287
      %v5751 = vunpack.c.l.b16 %v1288
      %v5752 = vunpack.c.h.b16 %v1288
      %v5753 = vunpack.c.l.b16 %v1289
      %v5754 = vunpack.c.h.b16 %v1289
      %v5755 = vunpack.c.l.b16 %v1290
      %v5756 = vunpack.c.h.b16 %v1290
      %v5757 = vunpack.c.l.b16 %v1291
      %v5758 = vunpack.c.h.b16 %v1291
      %v5759 = vunpack.c.l.b16 %v1292
      %v5760 = vunpack.c.h.b16 %v1292
      %v5761 = vunpack.c.l.b16 %v1293
      %v5762 = vunpack.c.h.b16 %v1293
      %v5763 = vunpack.c.l.b16 %v1294
      %v5764 = vunpack.c.h.b16 %v1294
      %v5765 = vunpack.c.l.b16 %v1295
      %v5766 = vunpack.c.h.b16 %v1295
      %v5767 = vunpack.c.l.b16 %v1296
      %v5768 = vunpack.c.h.b16 %v1296
      %v5769 = vunpack.c.l.b16 %v1297
      %v5770 = vunpack.c.h.b16 %v1297
      %v5771 = vunpack.c.l.b16 %v1298
      %v5772 = vunpack.c.h.b16 %v1298
      %v5773 = vunpack.c.l.b16 %v1299
      %v5774 = vunpack.c.h.b16 %v1299
      %v5775 = vunpack.c.l.b16 %v1300
      %v5776 = vunpack.c.h.b16 %v1300
      %v5777 = vunpack.c.l.b16 %v1301
      %v5778 = vunpack.c.h.b16 %v1301
      %v5779 = vunpack.c.l.b16 %v1302
      %v5780 = vunpack.c.h.b16 %v1302
      %v5781 = vunpack.c.l.b16 %v1303
      %v5782 = vunpack.c.h.b16 %v1303
      %v5783 = vunpack.c.l.b16 %v1304
      %v5784 = vunpack.c.h.b16 %v1304
      %v5785 = vunpack.c.l.b16 %v1305
      %v5786 = vunpack.c.h.b16 %v1305
      %v5787 = vunpack.c.l.b16 %v1306
      %v5788 = vunpack.c.h.b16 %v1306
      %v5789 = vunpack.c.l.b16 %v1307
      %v5790 = vunpack.c.h.b16 %v1307
      %v5791 = vunpack.c.l.b16 %v1308
      %v5792 = vunpack.c.h.b16 %v1308
      %v5793 = vunpack.c.l.b16 %v1309
      %v5794 = vunpack.c.h.b16 %v1309
      %v5795 = vunpack.c.l.b16 %v1310
      %v5796 = vunpack.c.h.b16 %v1310
      %v5797 = vunpack.c.l.b16 %v1311
      %v5798 = vunpack.c.h.b16 %v1311
      %v5799 = vunpack.c.l.b16 %v1312
      %v5800 = vunpack.c.h.b16 %v1312
      %v5801 = vunpack.c.l.b16 %v1313
      %v5802 = vunpack.c.h.b16 %v1313
      %v5803 = vunpack.c.l.b16 %v1314
      %v5804 = vunpack.c.h.b16 %v1314
      %v5805 = vunpack.c.l.b16 %v1315
      %v5806 = vunpack.c.h.b16 %v1315
      %v5807 = vunpack.c.l.b16 %v1316
      %v5808 = vunpack.c.h.b16 %v1316
      %v5809 = vunpack.c.l.b16 %v1317
      %v5810 = vunpack.c.h.b16 %v1317
      %v5811 = vunpack.c.l.b16 %v1318
      %v5812 = vunpack.c.h.b16 %v1318
      %v5813 = vunpack.c.l.b16 %v1319
      %v5814 = vunpack.c.h.b16 %v1319
      %v5815 = vunpack.c.l.b16 %v1320
      %v5816 = vunpack.c.h.b16 %v1320
      %v5817 = vunpack.c.l.b16 %v1321
      %v5818 = vunpack.c.h.b16 %v1321
      %v5819 = vunpack.c.l.b16 %v1322
      %v5820 = vunpack.c.h.b16 %v1322
      %v5821 = vunpack.c.l.b16 %v1323
      %v5822 = vunpack.c.h.b16 %v1323
      %v5823 = vunpack.c.l.b16 %v1324
      %v5824 = vunpack.c.h.b16 %v1324
      %v5825 = vunpack.c.l.b16 %v1325
      %v5826 = vunpack.c.h.b16 %v1325
      %v5827 = vunpack.c.l.b16 %v1326
      %v5828 = vunpack.c.h.b16 %v1326
      %v5829 = vunpack.c.l.b16 %v1327
      %v5830 = vunpack.c.h.b16 %v1327
      %v5831 = vunpack.c.l.b16 %v1328
      %v5832 = vunpack.c.h.b16 %v1328
      %v5833 = vunpack.c.l.b16 %v1329
      %v5834 = vunpack.c.h.b16 %v1329
      %v5835 = vunpack.c.l.b16 %v1330
      %v5836 = vunpack.c.h.b16 %v1330
      %v5837 = vunpack.c.l.b16 %v1331
      %v5838 = vunpack.c.h.b16 %v1331
      %v5839 = vunpack.c.l.b16 %v1332
      %v5840 = vunpack.c.h.b16 %v1332
      %v5841 = vunpack.c.l.b16 %v1333
      %v5842 = vunpack.c.h.b16 %v1333
      %v5843 = vunpack.c.l.b16 %v1334
      %v5844 = vunpack.c.h.b16 %v1334
      %v5845 = vunpack.c.l.b16 %v1335
      %v5846 = vunpack.c.h.b16 %v1335
      %v5847 = vunpack.c.l.b16 %v1336
      %v5848 = vunpack.c.h.b16 %v1336
      %v5849 = vunpack.c.l.b16 %v1337
      %v5850 = vunpack.c.h.b16 %v1337
      %v5851 = vunpack.c.l.b16 %v1338
      %v5852 = vunpack.c.h.b16 %v1338
      %v5853 = vunpack.c.l.b16 %v1339
      %v5854 = vunpack.c.h.b16 %v1339
      %v5855 = vunpack.c.l.b16 %v1340
      %v5856 = vunpack.c.h.b16 %v1340
      %v5857 = vunpack.c.l.b16 %v1341
      %v5858 = vunpack.c.h.b16 %v1341
      %v5859 = vunpack.c.l.b16 %v1342
      %v5860 = vunpack.c.h.b16 %v1342
      %v5861 = vunpack.c.l.b16 %v1343
      %v5862 = vunpack.c.h.b16 %v1343
      %v5863 = vunpack.c.l.b16 %v1344
      %v5864 = vunpack.c.h.b16 %v1344
      %v5865 = vunpack.c.l.b16 %v1345
      %v5866 = vunpack.c.h.b16 %v1345
      %v5867 = vunpack.c.l.b16 %v1346
      %v5868 = vunpack.c.h.b16 %v1346
      %v5869 = vunpack.c.l.b16 %v1347
      %v5870 = vunpack.c.h.b16 %v1347
      %v5871 = vunpack.c.l.b16 %v1348
      %v5872 = vunpack.c.h.b16 %v1348
      %v5873 = vunpack.c.l.b16 %v1349
      %v5874 = vunpack.c.h.b16 %v1349
      %v5875 = vunpack.c.l.b16 %v1350
      %v5876 = vunpack.c.h.b16 %v1350
      %v5877 = vunpack.c.l.b16 %v1351
      %v5878 = vunpack.c.h.b16 %v1351
      %v5879 = vunpack.c.l.b16 %v1352
      %v5880 = vunpack.c.h.b16 %v1352
      %v5881 = vunpack.c.l.b16 %v1353
      %v5882 = vunpack.c.h.b16 %v1353
      %v5883 = vunpack.c.l.b16 %v1354
      %v5884 = vunpack.c.h.b16 %v1354
      %v5885 = vunpack.c.l.b16 %v1355
      %v5886 = vunpack.c.h.b16 %v1355
      %v5887 = vunpack.c.l.b16 %v1356
      %v5888 = vunpack.c.h.b16 %v1356
      %v5889 = vunpack.c.l.b16 %v1357
      %v5890 = vunpack.c.h.b16 %v1357
      %v5891 = vunpack.c.l.b16 %v1358
      %v5892 = vunpack.c.h.b16 %v1358
      %v5893 = vunpack.c.l.b16 %v1359
      %v5894 = vunpack.c.h.b16 %v1359
      %v5895 = vunpack.c.l.b16 %v1360
      %v5896 = vunpack.c.h.b16 %v1360
      %v5897 = vunpack.c.l.b16 %v1361
      %v5898 = vunpack.c.h.b16 %v1361
      %v5899 = vunpack.c.l.b16 %v1362
      %v5900 = vunpack.c.h.b16 %v1362
      %v5901 = vunpack.c.l.b16 %v1363
      %v5902 = vunpack.c.h.b16 %v1363
      %v5903 = vunpack.c.l.b16 %v1364
      %v5904 = vunpack.c.h.b16 %v1364
      %v5905 = vunpack.c.l.b16 %v1365
      %v5906 = vunpack.c.h.b16 %v1365
      %v5907 = vunpack.c.l.b16 %v1366
      %v5908 = vunpack.c.h.b16 %v1366
      %v5909 = vunpack.c.l.b16 %v1367
      %v5910 = vunpack.c.h.b16 %v1367
      %v5911 = vunpack.c.l.b16 %v1368
      %v5912 = vunpack.c.h.b16 %v1368
      %v5913 = vunpack.c.l.b16 %v1369
      %v5914 = vunpack.c.h.b16 %v1369
      %v5915 = vunpack.c.l.b16 %v1370
      %v5916 = vunpack.c.h.b16 %v1370
      %v5917 = vunpack.c.l.b16 %v1371
      %v5918 = vunpack.c.h.b16 %v1371
      %v5919 = vunpack.c.l.b16 %v1372
      %v5920 = vunpack.c.h.b16 %v1372
      %v5921 = vunpack.c.l.b16 %v1373
      %v5922 = vunpack.c.h.b16 %v1373
      %v5923 = vunpack.c.l.b16 %v1374
      %v5924 = vunpack.c.h.b16 %v1374
      %v5925 = vunpack.c.l.b16 %v1375
      %v5926 = vunpack.c.h.b16 %v1375
      %v5927 = vunpack.c.l.b16 %v1376
      %v5928 = vunpack.c.h.b16 %v1376
      %v5929 = vunpack.c.l.b16 %v1377
      %v5930 = vunpack.c.h.b16 %v1377
      %v5931 = vunpack.c.l.b16 %v1378
      %v5932 = vunpack.c.h.b16 %v1378
      %v5933 = vunpack.c.l.b16 %v1379
      %v5934 = vunpack.c.h.b16 %v1379
      %v5935 = vunpack.c.l.b16 %v1380
      %v5936 = vunpack.c.h.b16 %v1380
      %v5937 = vunpack.c.l.b16 %v1381
      %v5938 = vunpack.c.h.b16 %v1381
      %v5939 = vunpack.c.l.b16 %v1382
      %v5940 = vunpack.c.h.b16 %v1382
      %v5941 = vunpack.c.l.b16 %v1383
      %v5942 = vunpack.c.h.b16 %v1383
      %v5943 = vunpack.c.l.b16 %v1384
      %v5944 = vunpack.c.h.b16 %v1384
      %v5945 = vunpack.c.l.b16 %v1385
      %v5946 = vunpack.c.h.b16 %v1385
      %v5947 = vunpack.c.l.b16 %v1386
      %v5948 = vunpack.c.h.b16 %v1386
      %v5949 = vunpack.c.l.b16 %v1387
      %v5950 = vunpack.c.h.b16 %v1387
      %v5951 = vunpack.c.l.b16 %v1388
      %v5952 = vunpack.c.h.b16 %v1388
      %v5953 = vunpack.c.l.b16 %v1389
      %v5954 = vunpack.c.h.b16 %v1389
      %v5955 = vunpack.c.l.b16 %v1390
      %v5956 = vunpack.c.h.b16 %v1390
      %v5957 = vunpack.c.l.b16 %v1391
      %v5958 = vunpack.c.h.b16 %v1391
      %v5959 = vunpack.c.l.b16 %v1392
      %v5960 = vunpack.c.h.b16 %v1392
      %v5961 = vunpack.c.l.b16 %v1393
      %v5962 = vunpack.c.h.b16 %v1393
      %v5963 = vunpack.c.l.b16 %v1394
      %v5964 = vunpack.c.h.b16 %v1394
      %v5965 = vunpack.c.l.b16 %v1395
      %v5966 = vunpack.c.h.b16 %v1395
      %v5967 = vunpack.c.l.b16 %v1396
      %v5968 = vunpack.c.h.b16 %v1396
      %v5969 = vunpack.c.l.b16 %v1397
      %v5970 = vunpack.c.h.b16 %v1397
      %v5971 = vunpack.c.l.b16 %v1398
      %v5972 = vunpack.c.h.b16 %v1398
      %v5973 = vunpack.c.l.b16 %v1399
      %v5974 = vunpack.c.h.b16 %v1399
      %v5975 = vunpack.c.l.b16 %v1400
      %v5976 = vunpack.c.h.b16 %v1400
      %v5977 = vunpack.c.l.b16 %v1401
      %v5978 = vunpack.c.h.b16 %v1401
      %v5979 = vunpack.c.l.b16 %v1402
      %v5980 = vunpack.c.h.b16 %v1402
      %v5981 = vunpack.c.l.b16 %v1403
      %v5982 = vunpack.c.h.b16 %v1403
      %v5983 = vunpack.c.l.b16 %v1404
      %v5984 = vunpack.c.h.b16 %v1404
      %v5985 = vunpack.c.l.b16 %v1405
      %v5986 = vunpack.c.h.b16 %v1405
      %v5987 = vunpack.c.l.b16 %v1406
      %v5988 = vunpack.c.h.b16 %v1406
      %v5989 = vunpack.c.l.b16 %v1407
      %v5990 = vunpack.c.h.b16 %v1407
      %v5991 = vunpack.c.l.b16 %v1408
      %v5992 = vunpack.c.h.b16 %v1408
      %v5993 = vunpack.c.l.b16 %v1409
      %v5994 = vunpack.c.h.b16 %v1409
      %v5995 = vunpack.c.l.b16 %v1410
      %v5996 = vunpack.c.h.b16 %v1410
      %v5997 = vunpack.c.l.b16 %v1411
      %v5998 = vunpack.c.h.b16 %v1411
      %v5999 = vunpack.c.l.b16 %v1412
      %v6000 = vunpack.c.h.b16 %v1412
      %v6001 = vunpack.c.l.b16 %v1413
      %v6002 = vunpack.c.h.b16 %v1413
      %v6003 = vunpack.c.l.b16 %v1414
      %v6004 = vunpack.c.h.b16 %v1414
      %v6005 = vunpack.c.l.b16 %v1415
      %v6006 = vunpack.c.h.b16 %v1415
      %v6007 = vunpack.c.l.b16 %v1416
      %v6008 = vunpack.c.h.b16 %v1416
      %v6009 = vunpack.c.l.b16 %v1417
      %v6010 = vunpack.c.h.b16 %v1417
      %v6011 = vunpack.c.l.b16 %v1418
      %v6012 = vunpack.c.h.b16 %v1418
      %v6013 = vunpack.c.l.b16 %v1419
      %v6014 = vunpack.c.h.b16 %v1419
      %v6015 = vunpack.c.l.b16 %v1420
      %v6016 = vunpack.c.h.b16 %v1420
      %v6017 = vunpack.c.l.b16 %v1421
      %v6018 = vunpack.c.h.b16 %v1421
      %v6019 = vunpack.c.l.b16 %v1422
      %v6020 = vunpack.c.h.b16 %v1422
      %v6021 = vunpack.c.l.b16 %v1423
      %v6022 = vunpack.c.h.b16 %v1423
      %v6023 = vunpack.c.l.b16 %v1424
      %v6024 = vunpack.c.h.b16 %v1424
      %v6025 = vunpack.c.l.b16 %v1425
      %v6026 = vunpack.c.h.b16 %v1425
      %v6027 = vunpack.c.l.b16 %v1426
      %v6028 = vunpack.c.h.b16 %v1426
      %v6029 = vunpack.c.l.b16 %v1427
      %v6030 = vunpack.c.h.b16 %v1427
      %v6031 = vunpack.c.l.b16 %v1428
      %v6032 = vunpack.c.h.b16 %v1428
      %v6033 = vunpack.c.l.b16 %v1429
      %v6034 = vunpack.c.h.b16 %v1429
      %v6035 = vunpack.c.l.b16 %v1430
      %v6036 = vunpack.c.h.b16 %v1430
      %v6037 = vunpack.c.l.b16 %v1431
      %v6038 = vunpack.c.h.b16 %v1431
      %v6039 = vunpack.c.l.b16 %v1432
      %v6040 = vunpack.c.h.b16 %v1432
      %v6041 = vunpack.c.l.b16 %v1433
      %v6042 = vunpack.c.h.b16 %v1433
      %v6043 = vunpack.c.l.b16 %v1434
      %v6044 = vunpack.c.h.b16 %v1434
      %v6045 = vunpack.c.l.b16 %v1435
      %v6046 = vunpack.c.h.b16 %v1435
      %v6047 = vunpack.c.l.b16 %v1436
      %v6048 = vunpack.c.h.b16 %v1436
      %v6049 = vunpack.c.l.b16 %v1437
      %v6050 = vunpack.c.h.b16 %v1437
      %v6051 = vunpack.c.l.b16 %v1438
      %v6052 = vunpack.c.h.b16 %v1438
      %v6053 = vunpack.c.l.b16 %v1439
      %v6054 = vunpack.c.h.b16 %v1439
      %v6055 = vunpack.c.l.b16 %v1440
      %v6056 = vunpack.c.h.b16 %v1440
      %v6057 = vunpack.c.l.b16 %v1441
      %v6058 = vunpack.c.h.b16 %v1441
      %v6059 = vunpack.c.l.b16 %v1442
      %v6060 = vunpack.c.h.b16 %v1442
      %v6061 = vunpack.c.l.b16 %v1443
      %v6062 = vunpack.c.h.b16 %v1443
      %v6063 = vunpack.c.l.b16 %v1444
      %v6064 = vunpack.c.h.b16 %v1444
      %v6065 = vunpack.c.l.b16 %v1445
      %v6066 = vunpack.c.h.b16 %v1445
      %v6067 = vunpack.c.l.b16 %v1446
      %v6068 = vunpack.c.h.b16 %v1446
      %v6069 = vunpack.c.l.b16 %v1447
      %v6070 = vunpack.c.h.b16 %v1447
      %v6071 = vunpack.c.l.b16 %v1448
      %v6072 = vunpack.c.h.b16 %v1448
      %v6073 = vunpack.c.l.b16 %v1449
      %v6074 = vunpack.c.h.b16 %v1449
      %v6075 = vunpack.c.l.b16 %v1450
      %v6076 = vunpack.c.h.b16 %v1450
      %v6077 = vunpack.c.l.b16 %v1451
      %v6078 = vunpack.c.h.b16 %v1451
      %v6079 = vunpack.c.l.b16 %v1452
      %v6080 = vunpack.c.h.b16 %v1452
      %v6081 = vunpack.c.l.b16 %v1453
      %v6082 = vunpack.c.h.b16 %v1453
      %v6083 = vunpack.c.l.b16 %v1454
      %v6084 = vunpack.c.h.b16 %v1454
      %v6085 = vunpack.c.l.b16 %v1455
      %v6086 = vunpack.c.h.b16 %v1455
      %v6087 = vunpack.c.l.b16 %v1456
      %v6088 = vunpack.c.h.b16 %v1456
      %v6089 = vunpack.c.l.b16 %v1457
      %v6090 = vunpack.c.h.b16 %v1457
      %v6091 = vunpack.c.l.b16 %v1458
      %v6092 = vunpack.c.h.b16 %v1458
      %v6093 = vunpack.c.l.b16 %v1459
      %v6094 = vunpack.c.h.b16 %v1459
      %v6095 = vunpack.c.l.b16 %v1460
      %v6096 = vunpack.c.h.b16 %v1460
      %v6097 = vunpack.c.l.b16 %v1461
      %v6098 = vunpack.c.h.b16 %v1461
      %v6099 = vunpack.c.l.b16 %v1462
      %v6100 = vunpack.c.h.b16 %v1462
      %v6101 = vunpack.c.l.b16 %v1463
      %v6102 = vunpack.c.h.b16 %v1463
      %v6103 = vunpack.c.l.b16 %v1464
      %v6104 = vunpack.c.h.b16 %v1464
      %v6105 = vunpack.c.l.b16 %v1465
      %v6106 = vunpack.c.h.b16 %v1465
      %v6107 = vunpack.c.l.b16 %v1466
      %v6108 = vunpack.c.h.b16 %v1466
      %v6109 = vunpack.c.l.b16 %v1467
      %v6110 = vunpack.c.h.b16 %v1467
      %v6111 = vunpack.c.l.b16 %v1468
      %v6112 = vunpack.c.h.b16 %v1468
      %v6113 = vunpack.c.l.b16 %v1469
      %v6114 = vunpack.c.h.b16 %v1469
      %v6115 = vunpack.c.l.b16 %v1470
      %v6116 = vunpack.c.h.b16 %v1470
      %v6117 = vunpack.c.l.b16 %v1471
      %v6118 = vunpack.c.h.b16 %v1471
      %v6119 = vunpack.c.l.b16 %v1472
      %v6120 = vunpack.c.h.b16 %v1472
      %v6121 = vunpack.c.l.b16 %v1473
      %v6122 = vunpack.c.h.b16 %v1473
      %v6123 = vunpack.c.l.b16 %v1474
      %v6124 = vunpack.c.h.b16 %v1474
      %v6125 = vunpack.c.l.b16 %v1475
      %v6126 = vunpack.c.h.b16 %v1475
      %v6127 = vunpack.c.l.b16 %v1476
      %v6128 = vunpack.c.h.b16 %v1476
      %v6129 = vunpack.c.l.b16 %v1477
      %v6130 = vunpack.c.h.b16 %v1477
      %v6131 = vunpack.c.l.b16 %v1478
      %v6132 = vunpack.c.h.b16 %v1478
      %v6133 = vunpack.c.l.b16 %v1479
      %v6134 = vunpack.c.h.b16 %v1479
      %v6135 = vunpack.c.l.b16 %v1480
      %v6136 = vunpack.c.h.b16 %v1480
      %v6137 = vunpack.c.l.b16 %v1481
      %v6138 = vunpack.c.h.b16 %v1481
      %v6139 = vunpack.c.l.b16 %v1482
      %v6140 = vunpack.c.h.b16 %v1482
      %v6141 = vunpack.c.l.b16 %v1483
      %v6142 = vunpack.c.h.b16 %v1483
      %v6143 = vunpack.c.l.b16 %v1484
      %v6144 = vunpack.c.h.b16 %v1484
      %v6145 = vunpack.c.l.b16 %v1485
      %v6146 = vunpack.c.h.b16 %v1485
      %v6147 = vunpack.c.l.b16 %v1486
      %v6148 = vunpack.c.h.b16 %v1486
      %v6149 = vunpack.c.l.b16 %v1487
      %v6150 = vunpack.c.h.b16 %v1487
      %v6151 = vunpack.c.l.b16 %v1488
      %v6152 = vunpack.c.h.b16 %v1488
      %v6153 = vunpack.c.l.b16 %v1489
      %v6154 = vunpack.c.h.b16 %v1489
      %v6155 = vunpack.c.l.b16 %v1490
      %v6156 = vunpack.c.h.b16 %v1490
      %v6157 = vunpack.c.l.b16 %v1491
      %v6158 = vunpack.c.h.b16 %v1491
      %v6159 = vunpack.c.l.b16 %v1492
      %v6160 = vunpack.c.h.b16 %v1492
      %v6161 = vunpack.c.l.b16 %v1493
      %v6162 = vunpack.c.h.b16 %v1493
      %v6163 = vunpack.c.l.b16 %v1494
      %v6164 = vunpack.c.h.b16 %v1494
      %v6165 = vunpack.c.l.b16 %v1495
      %v6166 = vunpack.c.h.b16 %v1495
      %v6167 = vunpack.c.l.b16 %v1496
      %v6168 = vunpack.c.h.b16 %v1496
      %v6169 = vunpack.c.l.b16 %v1497
      %v6170 = vunpack.c.h.b16 %v1497
      %v6171 = vunpack.c.l.b16 %v1498
      %v6172 = vunpack.c.h.b16 %v1498
      %v6173 = vunpack.c.l.b16 %v1499
      %v6174 = vunpack.c.h.b16 %v1499
      %v6175 = vunpack.c.l.b16 %v1500
      %v6176 = vunpack.c.h.b16 %v1500
      %v6177 = vunpack.c.l.b16 %v1501
      %v6178 = vunpack.c.h.b16 %v1501
      %v6179 = vunpack.c.l.b16 %v1502
      %v6180 = vunpack.c.h.b16 %v1502
      %v6181 = vunpack.c.l.b16 %v1503
      %v6182 = vunpack.c.h.b16 %v1503
      %v6183 = vunpack.c.l.b16 %v1504
      %v6184 = vunpack.c.h.b16 %v1504
      %v6185 = vunpack.c.l.b16 %v1505
      %v6186 = vunpack.c.h.b16 %v1505
      %v6187 = vunpack.c.l.b16 %v1506
      %v6188 = vunpack.c.h.b16 %v1506
      %v6189 = vunpack.c.l.b16 %v1507
      %v6190 = vunpack.c.h.b16 %v1507
      %v6191 = vunpack.c.l.b16 %v1508
      %v6192 = vunpack.c.h.b16 %v1508
      %v6193 = vunpack.c.l.b16 %v1509
      %v6194 = vunpack.c.h.b16 %v1509
      %v6195 = vunpack.c.l.b16 %v1510
      %v6196 = vunpack.c.h.b16 %v1510
      %v6197 = vunpack.c.l.b16 %v1511
      %v6198 = vunpack.c.h.b16 %v1511
      %v6199 = vunpack.c.l.b16 %v1512
      %v6200 = vunpack.c.h.b16 %v1512
      %v6201 = vunpack.c.l.b16 %v1513
      %v6202 = vunpack.c.h.b16 %v1513
      %v6203 = vunpack.c.l.b16 %v1514
      %v6204 = vunpack.c.h.b16 %v1514
      %v6205 = vunpack.c.l.b16 %v1515
      %v6206 = vunpack.c.h.b16 %v1515
      %v6207 = vunpack.c.l.b16 %v1516
      %v6208 = vunpack.c.h.b16 %v1516
      %v6209 = vunpack.c.l.b16 %v1517
      %v6210 = vunpack.c.h.b16 %v1517
      %v6211 = vunpack.c.l.b16 %v1518
      %v6212 = vunpack.c.h.b16 %v1518
      %v6213 = vunpack.c.l.b16 %v1519
      %v6214 = vunpack.c.h.b16 %v1519
      %v6215 = vunpack.c.l.b16 %v1520
      %v6216 = vunpack.c.h.b16 %v1520
      %v6217 = vunpack.c.l.b16 %v1521
      %v6218 = vunpack.c.h.b16 %v1521
      %v6219 = vunpack.c.l.b16 %v1522
      %v6220 = vunpack.c.h.b16 %v1522
      %v6221 = vunpack.c.l.b16 %v1523
      %v6222 = vunpack.c.h.b16 %v1523
      %v6223 = vunpack.c.l.b16 %v1524
      %v6224 = vunpack.c.h.b16 %v1524
      %v6225 = vunpack.c.l.b16 %v1525
      %v6226 = vunpack.c.h.b16 %v1525
      %v6227 = vunpack.c.l.b16 %v1526
      %v6228 = vunpack.c.h.b16 %v1526
      %v6229 = vunpack.c.l.b16 %v1527
      %v6230 = vunpack.c.h.b16 %v1527
      %v6231 = vunpack.c.l.b16 %v1528
      %v6232 = vunpack.c.h.b16 %v1528
      %v6233 = vunpack.c.l.b16 %v1529
      %v6234 = vunpack.c.h.b16 %v1529
      %v6235 = vunpack.c.l.b16 %v1530
      %v6236 = vunpack.c.h.b16 %v1530
      %v6237 = vunpack.c.l.b16 %v1531
      %v6238 = vunpack.c.h.b16 %v1531
      %v6239 = vunpack.c.l.b16 %v1532
      %v6240 = vunpack.c.h.b16 %v1532
      %v6241 = vunpack.c.l.b16 %v1533
      %v6242 = vunpack.c.h.b16 %v1533
      %v6243 = vunpack.c.l.b16 %v1534
      %v6244 = vunpack.c.h.b16 %v1534
      %v6245 = vunpack.c.l.b16 %v1535
      %v6246 = vunpack.c.h.b16 %v1535
      %v6247 = vunpack.c.l.b16 %v1536
      %v6248 = vunpack.c.h.b16 %v1536
      %v6249 = vunpack.c.l.b16 %v1537
      %v6250 = vunpack.c.h.b16 %v1537
      %v6251 = vunpack.c.l.b16 %v1538
      %v6252 = vunpack.c.h.b16 %v1538
      %v6253 = vunpack.c.l.b16 %v1539
      %v6254 = vunpack.c.h.b16 %v1539
      %v6255 = vunpack.c.l.b16 %v1540
      %v6256 = vunpack.c.h.b16 %v1540
      %v6257 = vunpack.c.l.b16 %v1541
      %v6258 = vunpack.c.h.b16 %v1541
      %v6259 = vunpack.c.l.b16 %v1542
      %v6260 = vunpack.c.h.b16 %v1542
      %v6261 = vunpack.c.l.b16 %v1543
      %v6262 = vunpack.c.h.b16 %v1543
      %v6263 = vunpack.c.l.b16 %v1544
      %v6264 = vunpack.c.h.b16 %v1544
      %v6265 = vunpack.c.l.b16 %v1545
      %v6266 = vunpack.c.h.b16 %v1545
      %v6267 = vunpack.c.l.b16 %v1546
      %v6268 = vunpack.c.h.b16 %v1546
      %v6269 = vunpack.c.l.b16 %v1547
      %v6270 = vunpack.c.h.b16 %v1547
      %v6271 = vunpack.c.l.b16 %v1548
      %v6272 = vunpack.c.h.b16 %v1548
      %v6273 = vunpack.c.l.b16 %v1549
      %v6274 = vunpack.c.h.b16 %v1549
      %v6275 = vunpack.c.l.b16 %v1550
      %v6276 = vunpack.c.h.b16 %v1550
      %v6277 = vunpack.c.l.b16 %v1551
      %v6278 = vunpack.c.h.b16 %v1551
      %v6279 = vunpack.c.l.b16 %v1552
      %v6280 = vunpack.c.h.b16 %v1552
      %v6281 = vunpack.c.l.b16 %v1553
      %v6282 = vunpack.c.h.b16 %v1553
      %v6283 = vunpack.c.l.b16 %v1554
      %v6284 = vunpack.c.h.b16 %v1554
      %v6285 = vunpack.c.l.b16 %v1555
      %v6286 = vunpack.c.h.b16 %v1555
      %v6287 = vunpack.c.l.b16 %v1556
      %v6288 = vunpack.c.h.b16 %v1556
      %v6289 = vunpack.c.l.b16 %v1557
      %v6290 = vunpack.c.h.b16 %v1557
      %v6291 = vunpack.c.l.b16 %v1558
      %v6292 = vunpack.c.h.b16 %v1558
      %v6293 = vunpack.c.l.b16 %v1559
      %v6294 = vunpack.c.h.b16 %v1559
      %v6295 = vunpack.c.l.b16 %v1560
      %v6296 = vunpack.c.h.b16 %v1560
      %v6297 = vunpack.c.l.b16 %v1561
      %v6298 = vunpack.c.h.b16 %v1561
      %v6299 = vunpack.c.l.b16 %v1562
      %v6300 = vunpack.c.h.b16 %v1562
      %v6301 = vunpack.c.l.b16 %v1563
      %v6302 = vunpack.c.h.b16 %v1563
      %v6303 = vunpack.c.l.b16 %v1564
      %v6304 = vunpack.c.h.b16 %v1564
      %v6305 = vunpack.c.l.b16 %v1565
      %v6306 = vunpack.c.h.b16 %v1565
      %v6307 = vunpack.c.l.b16 %v1566
      %v6308 = vunpack.c.h.b16 %v1566
      %v6309 = vunpack.c.l.b16 %v1567
      %v6310 = vunpack.c.h.b16 %v1567
      %v6311 = vunpack.c.l.b16 %v1568
      %v6312 = vunpack.c.h.b16 %v1568
      %v6313 = vunpack.c.l.b16 %v1569
      %v6314 = vunpack.c.h.b16 %v1569
      %v6315 = vunpack.c.l.b16 %v1570
      %v6316 = vunpack.c.h.b16 %v1570
      %v6317 = vunpack.c.l.b16 %v1571
      %v6318 = vunpack.c.h.b16 %v1571
      %v6319 = vunpack.c.l.b16 %v1572
      %v6320 = vunpack.c.h.b16 %v1572
      %v6321 = vunpack.c.l.b16 %v1573
      %v6322 = vunpack.c.h.b16 %v1573
      %v6323 = vunpack.c.l.b16 %v1574
      %v6324 = vunpack.c.h.b16 %v1574
      %v6325 = vunpack.c.l.b16 %v1575
      %v6326 = vunpack.c.h.b16 %v1575
      %v6327 = vunpack.c.l.b16 %v1576
      %v6328 = vunpack.c.h.b16 %v1576
      %v6329 = vunpack.c.l.b16 %v1577
      %v6330 = vunpack.c.h.b16 %v1577
      %v6331 = vunpack.c.l.b16 %v1578
      %v6332 = vunpack.c.h.b16 %v1578
      %v6333 = vunpack.c.l.b16 %v1579
      %v6334 = vunpack.c.h.b16 %v1579
      %v6335 = vunpack.c.l.b16 %v1580
      %v6336 = vunpack.c.h.b16 %v1580
      %v6337 = vunpack.c.l.b16 %v1581
      %v6338 = vunpack.c.h.b16 %v1581
      %v6339 = vunpack.c.l.b16 %v1582
      %v6340 = vunpack.c.h.b16 %v1582
      %v6341 = vunpack.c.l.b16 %v1583
      %v6342 = vunpack.c.h.b16 %v1583
      %v6343 = vunpack.c.l.b16 %v1584
      %v6344 = vunpack.c.h.b16 %v1584
      %v6345 = vunpack.c.l.b16 %v1585
      %v6346 = vunpack.c.h.b16 %v1585
      %v6347 = vunpack.c.l.b16 %v1586
      %v6348 = vunpack.c.h.b16 %v1586
      %v6349 = vunpack.c.l.b16 %v1587
      %v6350 = vunpack.c.h.b16 %v1587
      %v6351 = vunpack.c.l.b16 %v1588
      %v6352 = vunpack.c.h.b16 %v1588
      %v6353 = vunpack.c.l.b16 %v1589
      %v6354 = vunpack.c.h.b16 %v1589
      %v6355 = vunpack.c.l.b16 %v1590
      %v6356 = vunpack.c.h.b16 %v1590
      %v6357 = vunpack.c.l.b16 %v1591
      %v6358 = vunpack.c.h.b16 %v1591
      %v6359 = vunpack.c.l.b16 %v1592
      %v6360 = vunpack.c.h.b16 %v1592
      %v6361 = vunpack.c.l.b16 %v1593
      %v6362 = vunpack.c.h.b16 %v1593
      %v6363 = vunpack.c.l.b16 %v1594
      %v6364 = vunpack.c.h.b16 %v1594
      %v6365 = vunpack.c.l.b16 %v1595
      %v6366 = vunpack.c.h.b16 %v1595
      %v6367 = vunpack.c.l.b16 %v1596
      %v6368 = vunpack.c.h.b16 %v1596
      %v6369 = vunpack.c.l.b16 %v1597
      %v6370 = vunpack.c.h.b16 %v1597
      %v6371 = vunpack.c.l.b16 %v1598
      %v6372 = vunpack.c.h.b16 %v1598
      %v6373 = vunpack.c.l.b16 %v1599
      %v6374 = vunpack.c.h.b16 %v1599
      %v6375 = vunpack.c.l.b16 %v1600
      %v6376 = vunpack.c.h.b16 %v1600
      %v6377 = vunpack.c.l.b16 %v1601
      %v6378 = vunpack.c.h.b16 %v1601
      %v6379 = vunpack.c.l.b16 %v1602
      %v6380 = vunpack.c.h.b16 %v1602
      %v6381 = vunpack.c.l.b16 %v1603
      %v6382 = vunpack.c.h.b16 %v1603
      %v6383 = vunpack.c.l.b16 %v1604
      %v6384 = vunpack.c.h.b16 %v1604
      %v6385 = vunpack.c.l.b16 %v1605
      %v6386 = vunpack.c.h.b16 %v1605
      %v6387 = vunpack.c.l.b16 %v1606
      %v6388 = vunpack.c.h.b16 %v1606
      %v6389 = vunpack.c.l.b16 %v1607
      %v6390 = vunpack.c.h.b16 %v1607
      %v6391 = vunpack.c.l.b16 %v1608
      %v6392 = vunpack.c.h.b16 %v1608
      %v6393 = vunpack.c.l.b16 %v1609
      %v6394 = vunpack.c.h.b16 %v1609
      %v6395 = vunpack.c.l.b16 %v1610
      %v6396 = vunpack.c.h.b16 %v1610
      %v6397 = vunpack.c.l.b16 %v1611
      %v6398 = vunpack.c.h.b16 %v1611
      %v6399 = vunpack.c.l.b16 %v1612
      %v6400 = vunpack.c.h.b16 %v1612
      %v6401 = vunpack.c.l.b16 %v1613
      %v6402 = vunpack.c.h.b16 %v1613
      %v6403 = vunpack.c.l.b16 %v1614
      %v6404 = vunpack.c.h.b16 %v1614
      %v6405 = vunpack.c.l.b16 %v1615
      %v6406 = vunpack.c.h.b16 %v1615
      %v6407 = vunpack.c.l.b16 %v1616
      %v6408 = vunpack.c.h.b16 %v1616
      %v6409 = vunpack.c.l.b16 %v1617
      %v6410 = vunpack.c.h.b16 %v1617
      %v6411 = vunpack.c.l.b16 %v1618
      %v6412 = vunpack.c.h.b16 %v1618
      %v6413 = vunpack.c.l.b16 %v1619
      %v6414 = vunpack.c.h.b16 %v1619
      %v6415 = vunpack.c.l.b16 %v1620
      %v6416 = vunpack.c.h.b16 %v1620
      %v6417 = vunpack.c.l.b16 %v1621
      %v6418 = vunpack.c.h.b16 %v1621
      %v6419 = vunpack.c.l.b16 %v1622
      %v6420 = vunpack.c.h.b16 %v1622
      %v6421 = vunpack.c.l.b16 %v1623
      %v6422 = vunpack.c.h.b16 %v1623
      %v6423 = vunpack.c.l.b16 %v1624
      %v6424 = vunpack.c.h.b16 %v1624
      %v6425 = vunpack.c.l.b16 %v1625
      %v6426 = vunpack.c.h.b16 %v1625
      %v6427 = vunpack.c.l.b16 %v1626
      %v6428 = vunpack.c.h.b16 %v1626
      %v6429 = vunpack.c.l.b16 %v1627
      %v6430 = vunpack.c.h.b16 %v1627
      %v6431 = vunpack.c.l.b16 %v1628
      %v6432 = vunpack.c.h.b16 %v1628
      %v6433 = vunpack.c.l.b16 %v1629
      %v6434 = vunpack.c.h.b16 %v1629
      %v6435 = vunpack.c.l.b16 %v1630
      %v6436 = vunpack.c.h.b16 %v1630
      %v6437 = vunpack.c.l.b16 %v1631
      %v6438 = vunpack.c.h.b16 %v1631
      %v6439 = vunpack.c.l.b16 %v1632
      %v6440 = vunpack.c.h.b16 %v1632
      %v6441 = vunpack.c.l.b16 %v1633
      %v6442 = vunpack.c.h.b16 %v1633
      %v6443 = vunpack.c.l.b16 %v1634
      %v6444 = vunpack.c.h.b16 %v1634
      %v6445 = vunpack.c.l.b16 %v1635
      %v6446 = vunpack.c.h.b16 %v1635
      %v6447 = vunpack.c.l.b16 %v1636
      %v6448 = vunpack.c.h.b16 %v1636
      %v6449 = vunpack.c.l.b16 %v1637
      %v6450 = vunpack.c.h.b16 %v1637
      %v6451 = vunpack.c.l.b16 %v1638
      %v6452 = vunpack.c.h.b16 %v1638
      %v6453 = vunpack.c.l.b16 %v1639
      %v6454 = vunpack.c.h.b16 %v1639
      %v6455 = vunpack.c.l.b16 %v1640
      %v6456 = vunpack.c.h.b16 %v1640
      %v6457 = vunpack.c.l.b16 %v1641
      %v6458 = vunpack.c.h.b16 %v1641
      %v6459 = vunpack.c.l.b16 %v1642
      %v6460 = vunpack.c.h.b16 %v1642
      %v6461 = vunpack.c.l.b16 %v1643
      %v6462 = vunpack.c.h.b16 %v1643
      %v6463 = vunpack.c.l.b16 %v1644
      %v6464 = vunpack.c.h.b16 %v1644
      %v6465 = vunpack.c.l.b16 %v1645
      %v6466 = vunpack.c.h.b16 %v1645
      %v6467 = vunpack.c.l.b16 %v1646
      %v6468 = vunpack.c.h.b16 %v1646
      %v6469 = vunpack.c.l.b16 %v1647
      %v6470 = vunpack.c.h.b16 %v1647
      %v6471 = vunpack.c.l.b16 %v1648
      %v6472 = vunpack.c.h.b16 %v1648
      %v6473 = vunpack.c.l.b16 %v1649
      %v6474 = vunpack.c.h.b16 %v1649
      %v6475 = vunpack.c.l.b16 %v1650
      %v6476 = vunpack.c.h.b16 %v1650
      %v6477 = vunpack.c.l.b16 %v1651
      %v6478 = vunpack.c.h.b16 %v1651
      %v6479 = vunpack.c.l.b16 %v1652
      %v6480 = vunpack.c.h.b16 %v1652
      %v6481 = vunpack.c.l.b16 %v1653
      %v6482 = vunpack.c.h.b16 %v1653
      %v6483 = vunpack.c.l.b16 %v1654
      %v6484 = vunpack.c.h.b16 %v1654
      %v6485 = vunpack.c.l.b16 %v1655
      %v6486 = vunpack.c.h.b16 %v1655
      %v6487 = vunpack.c.l.b16 %v1656
      %v6488 = vunpack.c.h.b16 %v1656
      %v6489 = vunpack.c.l.b16 %v1657
      %v6490 = vunpack.c.h.b16 %v1657
      %v6491 = vunpack.c.l.b16 %v1658
      %v6492 = vunpack.c.h.b16 %v1658
      %v6493 = vunpack.c.l.b16 %v1659
      %v6494 = vunpack.c.h.b16 %v1659
      %v6495 = vunpack.c.l.b16 %v1660
      %v6496 = vunpack.c.h.b16 %v1660
      %v6497 = vunpack.c.l.b16 %v1661
      %v6498 = vunpack.c.h.b16 %v1661
      %v6499 = vunpack.c.l.b16 %v1662
      %v6500 = vunpack.c.h.b16 %v1662
      %v6501 = vunpack.c.l.b16 %v1663
      %v6502 = vunpack.c.h.b16 %v1663
      %v6503 = vunpack.c.l.b16 %v1664
      %v6504 = vunpack.c.h.b16 %v1664
      %v6505 = vunpack.c.l.b16 %v1665
      %v6506 = vunpack.c.h.b16 %v1665
      %v6507 = vunpack.c.l.b16 %v1666
      %v6508 = vunpack.c.h.b16 %v1666
      %v6509 = vunpack.c.l.b16 %v1667
      %v6510 = vunpack.c.h.b16 %v1667
      %v6511 = vunpack.c.l.b16 %v1668
      %v6512 = vunpack.c.h.b16 %v1668
      %v6513 = vunpack.c.l.b16 %v1669
      %v6514 = vunpack.c.h.b16 %v1669
      %v6515 = vunpack.c.l.b16 %v1670
      %v6516 = vunpack.c.h.b16 %v1670
      %v6517 = vunpack.c.l.b16 %v1671
      %v6518 = vunpack.c.h.b16 %v1671
      %v6519 = vunpack.c.l.b16 %v1672
      %v6520 = vunpack.c.h.b16 %v1672
      %v6521 = vunpack.c.l.b16 %v1673
      %v6522 = vunpack.c.h.b16 %v1673
      %v6523 = vunpack.c.l.b16 %v1674
      %v6524 = vunpack.c.h.b16 %v1674
      %v6525 = vunpack.c.l.b16 %v1675
      %v6526 = vunpack.c.h.b16 %v1675
      %v6527 = vunpack.c.l.b16 %v1676
      %v6528 = vunpack.c.h.b16 %v1676
      %v6529 = vunpack.c.l.b16 %v1677
      %v6530 = vunpack.c.h.b16 %v1677
      %v6531 = vunpack.c.l.b16 %v1678
      %v6532 = vunpack.c.h.b16 %v1678
      %v6533 = vunpack.c.l.b16 %v1679
      %v6534 = vunpack.c.h.b16 %v1679
      %v6535 = vunpack.c.l.b16 %v1680
      %v6536 = vunpack.c.h.b16 %v1680
      %v6537 = vunpack.c.l.b16 %v1681
      %v6538 = vunpack.c.h.b16 %v1681
      %v6539 = vunpack.c.l.b16 %v1682
      %v6540 = vunpack.c.h.b16 %v1682
      %v6541 = vunpack.c.l.b16 %v1683
      %v6542 = vunpack.c.h.b16 %v1683
      %v6543 = vunpack.c.l.b16 %v1684
      %v6544 = vunpack.c.h.b16 %v1684
      %v6545 = vunpack.c.l.b16 %v1685
      %v6546 = vunpack.c.h.b16 %v1685
      %v6547 = vunpack.c.l.b16 %v1686
      %v6548 = vunpack.c.h.b16 %v1686
      %v6549 = vunpack.c.l.b16 %v1687
      %v6550 = vunpack.c.h.b16 %v1687
      %v6551 = vunpack.c.l.b16 %v1688
      %v6552 = vunpack.c.h.b16 %v1688
      %v6553 = vunpack.c.l.b16 %v1689
      %v6554 = vunpack.c.h.b16 %v1689
      %v6555 = vunpack.c.l.b16 %v1690
      %v6556 = vunpack.c.h.b16 %v1690
      %v6557 = vunpack.c.l.b16 %v1691
      %v6558 = vunpack.c.h.b16 %v1691
      %v6559 = vunpack.c.l.b16 %v1692
      %v6560 = vunpack.c.h.b16 %v1692
      %v6561 = vunpack.c.l.b16 %v1693
      %v6562 = vunpack.c.h.b16 %v1693
      %v6563 = vunpack.c.l.b16 %v1694
      %v6564 = vunpack.c.h.b16 %v1694
      %v6565 = vunpack.c.l.b16 %v1695
      %v6566 = vunpack.c.h.b16 %v1695
      %v6567 = vunpack.c.l.b16 %v1696
      %v6568 = vunpack.c.h.b16 %v1696
      %v6569 = vunpack.c.l.b16 %v1697
      %v6570 = vunpack.c.h.b16 %v1697
      %v6571 = vunpack.c.l.b16 %v1698
      %v6572 = vunpack.c.h.b16 %v1698
      %v6573 = vunpack.c.l.b16 %v1699
      %v6574 = vunpack.c.h.b16 %v1699
      %v6575 = vunpack.c.l.b16 %v1700
      %v6576 = vunpack.c.h.b16 %v1700
      %v6577 = vunpack.c.l.b16 %v1701
      %v6578 = vunpack.c.h.b16 %v1701
      %v6579 = vunpack.c.l.b16 %v1702
      %v6580 = vunpack.c.h.b16 %v1702
      %v6581 = vunpack.c.l.b16 %v1703
      %v6582 = vunpack.c.h.b16 %v1703
      %v6583 = vunpack.c.l.b16 %v1704
      %v6584 = vunpack.c.h.b16 %v1704
      %v6585 = vunpack.c.l.b16 %v1705
      %v6586 = vunpack.c.h.b16 %v1705
      %v6587 = vunpack.c.l.b16 %v1706
      %v6588 = vunpack.c.h.b16 %v1706
      %v6589 = vunpack.c.l.b16 %v1707
      %v6590 = vunpack.c.h.b16 %v1707
      %v6591 = vunpack.c.l.b16 %v1708
      %v6592 = vunpack.c.h.b16 %v1708
      %v6593 = vunpack.c.l.b16 %v1709
      %v6594 = vunpack.c.h.b16 %v1709
      %v6595 = vunpack.c.l.b16 %v1710
      %v6596 = vunpack.c.h.b16 %v1710
      %v6597 = vunpack.c.l.b16 %v1711
      %v6598 = vunpack.c.h.b16 %v1711
      %v6599 = vunpack.c.l.b16 %v1712
      %v6600 = vunpack.c.h.b16 %v1712
      %v6601 = vunpack.c.l.b16 %v1713
      %v6602 = vunpack.c.h.b16 %v1713
      %v6603 = vunpack.c.l.b16 %v1714
      %v6604 = vunpack.c.h.b16 %v1714
      %v6605 = vunpack.c.l.b16 %v1715
      %v6606 = vunpack.c.h.b16 %v1715
      %v6607 = vunpack.c.l.b16 %v1716
      %v6608 = vunpack.c.h.b16 %v1716
      %v6609 = vunpack.c.l.b16 %v1717
      %v6610 = vunpack.c.h.b16 %v1717
      %v6611 = vunpack.c.l.b16 %v1718
      %v6612 = vunpack.c.h.b16 %v1718
      %v6613 = vunpack.c.l.b16 %v1719
      %v6614 = vunpack.c.h.b16 %v1719
      %v6615 = vunpack.c.l.b16 %v1720
      %v6616 = vunpack.c.h.b16 %v1720
      %v6617 = vunpack.c.l.b16 %v1721
      %v6618 = vunpack.c.h.b16 %v1721
      %v6619 = vunpack.c.l.b16 %v1722
      %v6620 = vunpack.c.h.b16 %v1722
      %v6621 = vunpack.c.l.b16 %v1723
      %v6622 = vunpack.c.h.b16 %v1723
      %v6623 = vunpack.c.l.b16 %v1724
      %v6624 = vunpack.c.h.b16 %v1724
      %v6625 = vunpack.c.l.b16 %v1725
      %v6626 = vunpack.c.h.b16 %v1725
      %v6627 = vunpack.c.l.b16 %v1726
      %v6628 = vunpack.c.h.b16 %v1726
      %v6629 = vunpack.c.l.b16 %v1727
      %v6630 = vunpack.c.h.b16 %v1727
      %v6631 = vunpack.c.l.b16 %v1728
      %v6632 = vunpack.c.h.b16 %v1728
      %v6633 = vunpack.c.l.b16 %v1729
      %v6634 = vunpack.c.h.b16 %v1729
      %v6635 = vunpack.c.l.b16 %v1730
      %v6636 = vunpack.c.h.b16 %v1730
      %v6637 = vunpack.c.l.b16 %v1731
      %v6638 = vunpack.c.h.b16 %v1731
      %v6639 = vunpack.c.l.b16 %v1732
      %v6640 = vunpack.c.h.b16 %v1732
      %v6641 = vunpack.c.l.b16 %v1733
      %v6642 = vunpack.c.h.b16 %v1733
      %v6643 = vunpack.c.l.b16 %v1734
      %v6644 = vunpack.c.h.b16 %v1734
      %v6645 = vunpack.c.l.b16 %v1735
      %v6646 = vunpack.c.h.b16 %v1735
      %v6647 = vunpack.c.l.b16 %v1736
      %v6648 = vunpack.c.h.b16 %v1736
      %v6649 = vunpack.c.l.b16 %v1737
      %v6650 = vunpack.c.h.b16 %v1737
      %v6651 = vunpack.c.l.b16 %v1738
      %v6652 = vunpack.c.h.b16 %v1738
      %v6653 = vunpack.c.l.b16 %v1739
      %v6654 = vunpack.c.h.b16 %v1739
      %v6655 = vunpack.c.l.b16 %v1740
      %v6656 = vunpack.c.h.b16 %v1740
      %v6657 = vunpack.c.l.b16 %v1741
      %v6658 = vunpack.c.h.b16 %v1741
      %v6659 = vunpack.c.l.b16 %v1742
      %v6660 = vunpack.c.h.b16 %v1742
      %v6661 = vunpack.c.l.b16 %v1743
      %v6662 = vunpack.c.h.b16 %v1743
      %v6663 = vunpack.c.l.b16 %v1744
      %v6664 = vunpack.c.h.b16 %v1744
      %v6665 = vunpack.c.l.b16 %v1745
      %v6666 = vunpack.c.h.b16 %v1745
      %v6667 = vunpack.c.l.b16 %v1746
      %v6668 = vunpack.c.h.b16 %v1746
      %v6669 = vunpack.c.l.b16 %v1747
      %v6670 = vunpack.c.h.b16 %v1747
      %v6671 = vunpack.c.l.b16 %v1748
      %v6672 = vunpack.c.h.b16 %v1748
      %v6673 = vunpack.c.l.b16 %v1749
      %v6674 = vunpack.c.h.b16 %v1749
      %v6675 = vunpack.c.l.b16 %v1750
      %v6676 = vunpack.c.h.b16 %v1750
      %v6677 = vunpack.c.l.b16 %v1751
      %v6678 = vunpack.c.h.b16 %v1751
      %v6679 = vunpack.c.l.b16 %v1752
      %v6680 = vunpack.c.h.b16 %v1752
      %v6681 = vunpack.c.l.b16 %v1753
      %v6682 = vunpack.c.h.b16 %v1753
      %v6683 = vunpack.c.l.b16 %v1754
      %v6684 = vunpack.c.h.b16 %v1754
      %v6685 = vunpack.c.l.b16 %v1755
      %v6686 = vunpack.c.h.b16 %v1755
      %v6687 = vunpack.c.l.b16 %v1756
      %v6688 = vunpack.c.h.b16 %v1756
      %v6689 = vunpack.c.l.b16 %v1757
      %v6690 = vunpack.c.h.b16 %v1757
      %v6691 = vunpack.c.l.b16 %v1758
      %v6692 = vunpack.c.h.b16 %v1758
      %v6693 = vunpack.c.l.b16 %v1759
      %v6694 = vunpack.c.h.b16 %v1759
      %v6695 = vunpack.c.l.b16 %v1760
      %v6696 = vunpack.c.h.b16 %v1760
      %v6697 = vunpack.c.l.b16 %v1761
      %v6698 = vunpack.c.h.b16 %v1761
      %v6699 = vunpack.c.l.b16 %v1762
      %v6700 = vunpack.c.h.b16 %v1762
      %v6701 = vunpack.c.l.b16 %v1763
      %v6702 = vunpack.c.h.b16 %v1763
      %v6703 = vunpack.c.l.b16 %v1764
      %v6704 = vunpack.c.h.b16 %v1764
      %v6705 = vunpack.c.l.b16 %v1765
      %v6706 = vunpack.c.h.b16 %v1765
      %v6707 = vunpack.c.l.b16 %v1766
      %v6708 = vunpack.c.h.b16 %v1766
      %v6709 = vunpack.c.l.b16 %v1767
      %v6710 = vunpack.c.h.b16 %v1767
      %v6711 = vunpack.c.l.b16 %v1768
      %v6712 = vunpack.c.h.b16 %v1768
      %v6713 = vunpack.c.l.b16 %v1769
      %v6714 = vunpack.c.h.b16 %v1769
      %v6715 = vunpack.c.l.b16 %v1770
      %v6716 = vunpack.c.h.b16 %v1770
      %v6717 = vunpack.c.l.b16 %v1771
      %v6718 = vunpack.c.h.b16 %v1771
      %v6719 = vunpack.c.l.b16 %v1772
      %v6720 = vunpack.c.h.b16 %v1772
      %v6721 = vunpack.c.l.b16 %v1773
      %v6722 = vunpack.c.h.b16 %v1773
      %v6723 = vunpack.c.l.b16 %v1774
      %v6724 = vunpack.c.h.b16 %v1774
      %v6725 = vunpack.c.l.b16 %v1775
      %v6726 = vunpack.c.h.b16 %v1775
      %v6727 = vunpack.c.l.b16 %v1776
      %v6728 = vunpack.c.h.b16 %v1776
      %v6729 = vunpack.c.l.b16 %v1777
      %v6730 = vunpack.c.h.b16 %v1777
      %v6731 = vunpack.c.l.b16 %v1778
      %v6732 = vunpack.c.h.b16 %v1778
      %v6733 = vunpack.c.l.b16 %v1779
      %v6734 = vunpack.c.h.b16 %v1779
      %v6735 = vunpack.c.l.b16 %v1780
      %v6736 = vunpack.c.h.b16 %v1780
      %v6737 = vunpack.c.l.b16 %v1781
      %v6738 = vunpack.c.h.b16 %v1781
      %v6739 = vunpack.c.l.b16 %v1782
      %v6740 = vunpack.c.h.b16 %v1782
      %v6741 = vunpack.c.l.b16 %v1783
      %v6742 = vunpack.c.h.b16 %v1783
      %v6743 = vunpack.c.l.b16 %v1784
      %v6744 = vunpack.c.h.b16 %v1784
      %v6745 = vunpack.c.l.b16 %v1785
      %v6746 = vunpack.c.h.b16 %v1785
      %v6747 = vunpack.c.l.b16 %v1786
      %v6748 = vunpack.c.h.b16 %v1786
      %v6749 = vunpack.c.l.b16 %v1787
      %v6750 = vunpack.c.h.b16 %v1787
      %v6751 = vunpack.c.l.b16 %v1788
      %v6752 = vunpack.c.h.b16 %v1788
      %v6753 = vunpack.c.l.b16 %v1789
      %v6754 = vunpack.c.h.b16 %v1789
      %v6755 = vunpack.c.l.b16 %v1790
      %v6756 = vunpack.c.h.b16 %v1790
      %v6757 = vunpack.c.l.b16 %v1791
      %v6758 = vunpack.c.h.b16 %v1791
      %v6759 = vunpack.c.l.b16 %v1792
      %v6760 = vunpack.c.h.b16 %v1792
      %v6761 = vunpack.c.l.b16 %v1793
      %v6762 = vunpack.c.h.b16 %v1793
      %v6763 = vunpack.c.l.b16 %v1794
      %v6764 = vunpack.c.h.b16 %v1794
      %v6765 = vunpack.c.l.b16 %v1795
      %v6766 = vunpack.c.h.b16 %v1795
      %v6767 = vunpack.c.l.b16 %v1796
      %v6768 = vunpack.c.h.b16 %v1796
      %v6769 = vunpack.c.l.b16 %v1797
      %v6770 = vunpack.c.h.b16 %v1797
      %v6771 = vunpack.c.l.b16 %v1798
      %v6772 = vunpack.c.h.b16 %v1798
      %v6773 = vunpack.c.l.b16 %v1799
      %v6774 = vunpack.c.h.b16 %v1799
      %v6775 = vunpack.c.l.b16 %v1800
      %v6776 = vunpack.c.h.b16 %v1800
      %v6777 = vunpack.c.l.b16 %v1801
      %v6778 = vunpack.c.h.b16 %v1801
      %v6779 = vunpack.c.l.b16 %v1802
      %v6780 = vunpack.c.h.b16 %v1802
      %v6781 = vunpack.c.l.b16 %v1803
      %v6782 = vunpack.c.h.b16 %v1803
      %v6783 = vunpack.c.l.b16 %v1804
      %v6784 = vunpack.c.h.b16 %v1804
      %v6785 = vunpack.c.l.b16 %v1805
      %v6786 = vunpack.c.h.b16 %v1805
      %v6787 = vunpack.c.l.b16 %v1806
      %v6788 = vunpack.c.h.b16 %v1806
      %v6789 = vunpack.c.l.b16 %v1807
      %v6790 = vunpack.c.h.b16 %v1807
      %v6791 = vunpack.c.l.b16 %v1808
      %v6792 = vunpack.c.h.b16 %v1808
      %v6793 = vunpack.c.l.b16 %v1809
      %v6794 = vunpack.c.h.b16 %v1809
      %v6795 = vunpack.c.l.b16 %v1810
      %v6796 = vunpack.c.h.b16 %v1810
      %v6797 = vunpack.c.l.b16 %v1811
      %v6798 = vunpack.c.h.b16 %v1811
      %v6799 = vunpack.c.l.b16 %v1812
      %v6800 = vunpack.c.h.b16 %v1812
      %v6801 = vunpack.c.l.b16 %v1813
      %v6802 = vunpack.c.h.b16 %v1813
      %v6803 = vunpack.c.l.b16 %v1814
      %v6804 = vunpack.c.h.b16 %v1814
      %v6805 = vunpack.c.l.b16 %v1815
      %v6806 = vunpack.c.h.b16 %v1815
      %v6807 = vunpack.c.l.b16 %v1816
      %v6808 = vunpack.c.h.b16 %v1816
      %v6809 = vunpack.c.l.b16 %v1817
      %v6810 = vunpack.c.h.b16 %v1817
      %v6811 = vunpack.c.l.b16 %v1818
      %v6812 = vunpack.c.h.b16 %v1818
      %v6813 = vunpack.c.l.b16 %v1819
      %v6814 = vunpack.c.h.b16 %v1819
      %v6815 = vunpack.c.l.b16 %v1820
      %v6816 = vunpack.c.h.b16 %v1820
      %v6817 = vunpack.c.l.b16 %v1821
      %v6818 = vunpack.c.h.b16 %v1821
      %v6819 = vunpack.c.l.b16 %v1822
      %v6820 = vunpack.c.h.b16 %v1822
      %v6821 = vunpack.c.l.b16 %v1823
      %v6822 = vunpack.c.h.b16 %v1823
      %v6823 = vunpack.c.l.b16 %v1824
      %v6824 = vunpack.c.h.b16 %v1824
      %v6825 = vunpack.c.l.b16 %v1825
      %v6826 = vunpack.c.h.b16 %v1825
      %v6827 = vunpack.c.l.b16 %v1826
      %v6828 = vunpack.c.h.b16 %v1826
      %v6829 = vunpack.c.l.b16 %v1827
      %v6830 = vunpack.c.h.b16 %v1827
      %v6831 = vunpack.c.l.b16 %v1828
      %v6832 = vunpack.c.h.b16 %v1828
      %v6833 = vunpack.c.l.b16 %v1829
      %v6834 = vunpack.c.h.b16 %v1829
      %v6835 = vunpack.c.l.b16 %v1830
      %v6836 = vunpack.c.h.b16 %v1830
      %v6837 = vunpack.c.l.b16 %v1831
      %v6838 = vunpack.c.h.b16 %v1831
      %v6839 = vunpack.c.l.b16 %v1832
      %v6840 = vunpack.c.h.b16 %v1832
      %v6841 = vunpack.c.l.b16 %v1833
      %v6842 = vunpack.c.h.b16 %v1833
      %v6843 = vunpack.c.l.b16 %v1834
      %v6844 = vunpack.c.h.b16 %v1834
      %v6845 = vunpack.c.l.b16 %v1835
      %v6846 = vunpack.c.h.b16 %v1835
      %v6847 = vunpack.c.l.b16 %v1836
      %v6848 = vunpack.c.h.b16 %v1836
      %v6849 = vunpack.c.l.b16 %v1837
      %v6850 = vunpack.c.h.b16 %v1837
      %v6851 = vunpack.c.l.b16 %v1838
      %v6852 = vunpack.c.h.b16 %v1838
      %v6853 = vunpack.c.l.b16 %v1839
      %v6854 = vunpack.c.h.b16 %v1839
      %v6855 = vunpack.c.l.b16 %v1840
      %v6856 = vunpack.c.h.b16 %v1840
      %v6857 = vunpack.c.l.b16 %v1841
      %v6858 = vunpack.c.h.b16 %v1841
      %v6859 = vunpack.c.l.b16 %v1842
      %v6860 = vunpack.c.h.b16 %v1842
      %v6861 = vunpack.c.l.b16 %v1843
      %v6862 = vunpack.c.h.b16 %v1843
      %v6863 = vunpack.c.l.b16 %v1844
      %v6864 = vunpack.c.h.b16 %v1844
      %v6865 = vunpack.c.l.b16 %v1845
      %v6866 = vunpack.c.h.b16 %v1845
      %v6867 = vunpack.c.l.b16 %v1846
      %v6868 = vunpack.c.h.b16 %v1846
      %v6869 = vunpack.c.l.b16 %v1847
      %v6870 = vunpack.c.h.b16 %v1847
      %v6871 = vunpack.c.l.b16 %v1848
      %v6872 = vunpack.c.h.b16 %v1848
      %v6873 = vunpack.c.l.b16 %v1849
      %v6874 = vunpack.c.h.b16 %v1849
      %v6875 = vunpack.c.l.b16 %v1850
      %v6876 = vunpack.c.h.b16 %v1850
      %v6877 = vunpack.c.l.b16 %v1851
      %v6878 = vunpack.c.h.b16 %v1851
      %v6879 = vunpack.c.l.b16 %v1852
      %v6880 = vunpack.c.h.b16 %v1852
      %v6881 = vunpack.c.l.b16 %v1853
      %v6882 = vunpack.c.h.b16 %v1853
      %v6883 = vunpack.c.l.b16 %v1854
      %v6884 = vunpack.c.h.b16 %v1854
      %v6885 = vunpack.c.l.b16 %v1855
      %v6886 = vunpack.c.h.b16 %v1855
      %v6887 = vunpack.c.l.b16 %v1856
      %v6888 = vunpack.c.h.b16 %v1856
      %v6889 = vunpack.c.l.b16 %v1857
      %v6890 = vunpack.c.h.b16 %v1857
      %v6891 = vunpack.c.l.b16 %v1858
      %v6892 = vunpack.c.h.b16 %v1858
      %v6893 = vunpack.c.l.b16 %v1859
      %v6894 = vunpack.c.h.b16 %v1859
      %v6895 = vunpack.c.l.b16 %v1860
      %v6896 = vunpack.c.h.b16 %v1860
      %v6897 = vunpack.c.l.b16 %v1861
      %v6898 = vunpack.c.h.b16 %v1861
      %v6899 = vunpack.c.l.b16 %v1862
      %v6900 = vunpack.c.h.b16 %v1862
      %v6901 = vunpack.c.l.b16 %v1863
      %v6902 = vunpack.c.h.b16 %v1863
      %v6903 = vunpack.c.l.b16 %v1864
      %v6904 = vunpack.c.h.b16 %v1864
      %v6905 = vunpack.c.l.b16 %v1865
      %v6906 = vunpack.c.h.b16 %v1865
      %v6907 = vunpack.c.l.b16 %v1866
      %v6908 = vunpack.c.h.b16 %v1866
      %v6909 = vunpack.c.l.b16 %v1867
      %v6910 = vunpack.c.h.b16 %v1867
      %v6911 = vunpack.c.l.b16 %v1868
      %v6912 = vunpack.c.h.b16 %v1868
      %v6913 = vunpack.c.l.b16 %v1869
      %v6914 = vunpack.c.h.b16 %v1869
      %v6915 = vunpack.c.l.b16 %v1870
      %v6916 = vunpack.c.h.b16 %v1870
      %v6917 = vunpack.c.l.b16 %v1871
      %v6918 = vunpack.c.h.b16 %v1871
      %v6919 = vunpack.c.l.b16 %v1872
      %v6920 = vunpack.c.h.b16 %v1872
      %v6921 = vunpack.c.l.b16 %v1873
      %v6922 = vunpack.c.h.b16 %v1873
      %v6923 = vunpack.c.l.b16 %v1874
      %v6924 = vunpack.c.h.b16 %v1874
      %v6925 = vunpack.c.l.b16 %v1875
      %v6926 = vunpack.c.h.b16 %v1875
      %v6927 = vunpack.c.l.b16 %v1876
      %v6928 = vunpack.c.h.b16 %v1876
      %v6929 = vunpack.c.l.b16 %v1877
      %v6930 = vunpack.c.h.b16 %v1877
      %v6931 = vunpack.c.l.b16 %v1878
      %v6932 = vunpack.c.h.b16 %v1878
      %v6933 = vunpack.c.l.b16 %v1879
      %v6934 = vunpack.c.h.b16 %v1879
      %v6935 = vunpack.c.l.b16 %v1880
      %v6936 = vunpack.c.h.b16 %v1880
      %v6937 = vunpack.c.l.b16 %v1881
      %v6938 = vunpack.c.h.b16 %v1881
      %v6939 = vunpack.c.l.b16 %v1882
      %v6940 = vunpack.c.h.b16 %v1882
      %v6941 = vunpack.c.l.b16 %v1883
      %v6942 = vunpack.c.h.b16 %v1883
      %v6943 = vunpack.c.l.b16 %v1884
      %v6944 = vunpack.c.h.b16 %v1884
      %v6945 = vunpack.c.l.b16 %v1885
      %v6946 = vunpack.c.h.b16 %v1885
      %v6947 = vunpack.c.l.b16 %v1886
      %v6948 = vunpack.c.h.b16 %v1886
      %v6949 = vunpack.c.l.b16 %v1887
      %v6950 = vunpack.c.h.b16 %v1887
      %v6951 = vunpack.c.l.b16 %v1888
      %v6952 = vunpack.c.h.b16 %v1888
      %v6953 = vunpack.c.l.b16 %v1889
      %v6954 = vunpack.c.h.b16 %v1889
      %v6955 = vunpack.c.l.b16 %v1890
      %v6956 = vunpack.c.h.b16 %v1890
      %v6957 = vunpack.c.l.b16 %v1891
      %v6958 = vunpack.c.h.b16 %v1891
      %v6959 = vunpack.c.l.b16 %v1892
      %v6960 = vunpack.c.h.b16 %v1892
      %v6961 = vpack.c.b16 %v3829, %v3825
      %v6962 = vpack.c.b16 %v3830, %v3826
      %v6963 = vpack.c.b16 %v3831, %v3827
      %v6964 = vpack.c.b16 %v3832, %v3828
      %v6965 = vpack.c.b16 %v3837, %v3833
      %v6966 = vpack.c.b16 %v3838, %v3834
      %v6967 = vpack.c.b16 %v3839, %v3835
      %v6968 = vpack.c.b16 %v3840, %v3836
      %v6969 = vpack.c.b16 %v3845, %v3841
      %v6970 = vpack.c.b16 %v3846, %v3842
      %v6971 = vpack.c.b16 %v3847, %v3843
      %v6972 = vpack.c.b16 %v3848, %v3844
      %v6973 = vpack.c.b16 %v3853, %v3849
      %v6974 = vpack.c.b16 %v3854, %v3850
      %v6975 = vpack.c.b16 %v3855, %v3851
      %v6976 = vpack.c.b16 %v3856, %v3852
      %v6977 = vpack.c.b16 %v3861, %v3857
      %v6978 = vpack.c.b16 %v3862, %v3858
      %v6979 = vpack.c.b16 %v3863, %v3859
      %v6980 = vpack.c.b16 %v3864, %v3860
      %v6981 = vpack.c.b16 %v3869, %v3865
      %v6982 = vpack.c.b16 %v3870, %v3866
      %v6983 = vpack.c.b16 %v3871, %v3867
      %v6984 = vpack.c.b16 %v3872, %v3868
      %v6985 = vpack.c.b16 %v3877, %v3873
      %v6986 = vpack.c.b16 %v3878, %v3874
      %v6987 = vpack.c.b16 %v3879, %v3875
      %v6988 = vpack.c.b16 %v3880, %v3876
      %v6989 = vpack.c.b16 %v3885, %v3881
      %v6990 = vpack.c.b16 %v3886, %v3882
      %v6991 = vpack.c.b16 %v3887, %v3883
      %v6992 = vpack.c.b16 %v3888, %v3884
      %v6993 = vpack.c.b16 %v3893, %v3889
      %v6994 = vpack.c.b16 %v3894, %v3890
      %v6995 = vpack.c.b16 %v3895, %v3891
      %v6996 = vpack.c.b16 %v3896, %v3892
      %v6997 = vpack.c.b16 %v3901, %v3897
      %v6998 = vpack.c.b16 %v3902, %v3898
      %v6999 = vpack.c.b16 %v3903, %v3899
      %v7000 = vpack.c.b16 %v3904, %v3900
      %v7001 = vpack.c.b16 %v3909, %v3905
      %v7002 = vpack.c.b16 %v3910, %v3906
      %v7003 = vpack.c.b16 %v3911, %v3907
      %v7004 = vpack.c.b16 %v3912, %v3908
      %v7005 = vpack.c.b16 %v3917, %v3913
      %v7006 = vpack.c.b16 %v3918, %v3914
      %v7007 = vpack.c.b16 %v3919, %v3915
      %v7008 = vpack.c.b16 %v3920, %v3916
      %v7009 = vpack.c.b16 %v3925, %v3921
      %v7010 = vpack.c.b16 %v3926, %v3922
      %v7011 = vpack.c.b16 %v3927, %v3923
      %v7012 = vpack.c.b16 %v3928, %v3924
      %v7013 = vpack.c.b16 %v3933, %v3929
      %v7014 = vpack.c.b16 %v3934, %v3930
      %v7015 = vpack.c.b16 %v3935, %v3931
      %v7016 = vpack.c.b16 %v3936, %v3932
      %v7017 = vpack.c.b16 %v3941, %v3937
      %v7018 = vpack.c.b16 %v3942, %v3938
      %v7019 = vpack.c.b16 %v3943, %v3939
      %v7020 = vpack.c.b16 %v3944, %v3940
      %v7021 = vpack.c.b16 %v3949, %v3945
      %v7022 = vpack.c.b16 %v3950, %v3946
      %v7023 = vpack.c.b16 %v3951, %v3947
      %v7024 = vpack.c.b16 %v3952, %v3948
      %v7025 = vpack.c.b16 %v3957, %v3953
      %v7026 = vpack.c.b16 %v3958, %v3954
      %v7027 = vpack.c.b16 %v3959, %v3955
      %v7028 = vpack.c.b16 %v3960, %v3956
      %v7029 = vpack.c.b16 %v3965, %v3961
      %v7030 = vpack.c.b16 %v3966, %v3962
      %v7031 = vpack.c.b16 %v3967, %v3963
      %v7032 = vpack.c.b16 %v3968, %v3964
      %v7033 = vpack.c.b16 %v3973, %v3969
      %v7034 = vpack.c.b16 %v3974, %v3970
      %v7035 = vpack.c.b16 %v3975, %v3971
      %v7036 = vpack.c.b16 %v3976, %v3972
      %v7037 = vpack.c.b16 %v3981, %v3977
      %v7038 = vpack.c.b16 %v3982, %v3978
      %v7039 = vpack.c.b16 %v3983, %v3979
      %v7040 = vpack.c.b16 %v3984, %v3980
      %v7041 = vpack.c.b16 %v3989, %v3985
      %v7042 = vpack.c.b16 %v3990, %v3986
      %v7043 = vpack.c.b16 %v3991, %v3987
      %v7044 = vpack.c.b16 %v3992, %v3988
      %v7045 = vpack.c.b16 %v3997, %v3993
      %v7046 = vpack.c.b16 %v3998, %v3994
      %v7047 = vpack.c.b16 %v3999, %v3995
      %v7048 = vpack.c.b16 %v4000, %v3996
      %v7049 = vpack.c.b16 %v4005, %v4001
      %v7050 = vpack.c.b16 %v4006, %v4002
      %v7051 = vpack.c.b16 %v4007, %v4003
      %v7052 = vpack.c.b16 %v4008, %v4004
      %v7053 = vpack.c.b16 %v4013, %v4009
      %v7054 = vpack.c.b16 %v4014, %v4010
      %v7055 = vpack.c.b16 %v4015, %v4011
      %v7056 = vpack.c.b16 %v4016, %v4012
      %v7057 = vpack.c.b16 %v4021, %v4017
      %v7058 = vpack.c.b16 %v4022, %v4018
      %v7059 = vpack.c.b16 %v4023, %v4019
      %v7060 = vpack.c.b16 %v4024, %v4020
      %v7061 = vpack.c.b16 %v4029, %v4025
      %v7062 = vpack.c.b16 %v4030, %v4026
      %v7063 = vpack.c.b16 %v4031, %v4027
      %v7064 = vpack.c.b16 %v4032, %v4028
      %v7065 = vpack.c.b16 %v4037, %v4033
      %v7066 = vpack.c.b16 %v4038, %v4034
      %v7067 = vpack.c.b16 %v4039, %v4035
      %v7068 = vpack.c.b16 %v4040, %v4036
      %v7069 = vpack.c.b16 %v4045, %v4041
      %v7070 = vpack.c.b16 %v4046, %v4042
      %v7071 = vpack.c.b16 %v4047, %v4043
      %v7072 = vpack.c.b16 %v4048, %v4044
      %v7073 = vpack.c.b16 %v4053, %v4049
      %v7074 = vpack.c.b16 %v4054, %v4050
      %v7075 = vpack.c.b16 %v4055, %v4051
      %v7076 = vpack.c.b16 %v4056, %v4052
      %v7077 = vpack.c.b16 %v4061, %v4057
      %v7078 = vpack.c.b16 %v4062, %v4058
      %v7079 = vpack.c.b16 %v4063, %v4059
      %v7080 = vpack.c.b16 %v4064, %v4060
      %v7081 = vpack.c.b16 %v4069, %v4065
      %v7082 = vpack.c.b16 %v4070, %v4066
      %v7083 = vpack.c.b16 %v4071, %v4067
      %v7084 = vpack.c.b16 %v4072, %v4068
      %v7085 = vpack.c.b16 %v4077, %v4073
      %v7086 = vpack.c.b16 %v4078, %v4074
      %v7087 = vpack.c.b16 %v4079, %v4075
      %v7088 = vpack.c.b16 %v4080, %v4076
      %v7089 = vpack.c.b16 %v4085, %v4081
      %v7090 = vpack.c.b16 %v4086, %v4082
      %v7091 = vpack.c.b16 %v4087, %v4083
      %v7092 = vpack.c.b16 %v4088, %v4084
      %v7093 = vpack.c.b16 %v4093, %v4089
      %v7094 = vpack.c.b16 %v4094, %v4090
      %v7095 = vpack.c.b16 %v4095, %v4091
      %v7096 = vpack.c.b16 %v4096, %v4092
      %v7097 = vpack.c.b16 %v4101, %v4097
      %v7098 = vpack.c.b16 %v4102, %v4098
      %v7099 = vpack.c.b16 %v4103, %v4099
      %v7100 = vpack.c.b16 %v4104, %v4100
      %v7101 = vpack.c.b16 %v4109, %v4105
      %v7102 = vpack.c.b16 %v4110, %v4106
      %v7103 = vpack.c.b16 %v4111, %v4107
      %v7104 = vpack.c.b16 %v4112, %v4108
      %v7105 = vpack.c.b16 %v4117, %v4113
      %v7106 = vpack.c.b16 %v4118, %v4114
      %v7107 = vpack.c.b16 %v4119, %v4115
      %v7108 = vpack.c.b16 %v4120, %v4116
      %v7109 = vpack.c.b16 %v4125, %v4121
      %v7110 = vpack.c.b16 %v4126, %v4122
      %v7111 = vpack.c.b16 %v4127, %v4123
      %v7112 = vpack.c.b16 %v4128, %v4124
      %v7113 = vpack.c.b16 %v4133, %v4129
      %v7114 = vpack.c.b16 %v4134, %v4130
      %v7115 = vpack.c.b16 %v4135, %v4131
      %v7116 = vpack.c.b16 %v4136, %v4132
      %v7117 = vpack.c.b16 %v4141, %v4137
      %v7118 = vpack.c.b16 %v4142, %v4138
      %v7119 = vpack.c.b16 %v4143, %v4139
      %v7120 = vpack.c.b16 %v4144, %v4140
      %v7121 = vpack.c.b16 %v4149, %v4145
      %v7122 = vpack.c.b16 %v4150, %v4146
      %v7123 = vpack.c.b16 %v4151, %v4147
      %v7124 = vpack.c.b16 %v4152, %v4148
      %v7125 = vpack.c.b16 %v4157, %v4153
      %v7126 = vpack.c.b16 %v4158, %v4154
      %v7127 = vpack.c.b16 %v4159, %v4155
      %v7128 = vpack.c.b16 %v4160, %v4156
      %v7129 = vpack.c.b16 %v4165, %v4161
      %v7130 = vpack.c.b16 %v4166, %v4162
      %v7131 = vpack.c.b16 %v4167, %v4163
      %v7132 = vpack.c.b16 %v4168, %v4164
      %v7133 = vpack.c.b16 %v4173, %v4169
      %v7134 = vpack.c.b16 %v4174, %v4170
      %v7135 = vpack.c.b16 %v4175, %v4171
      %v7136 = vpack.c.b16 %v4176, %v4172
      %v7137 = vpack.c.b16 %v4181, %v4177
      %v7138 = vpack.c.b16 %v4182, %v4178
      %v7139 = vpack.c.b16 %v4183, %v4179
      %v7140 = vpack.c.b16 %v4184, %v4180
      %v7141 = vpack.c.b16 %v4189, %v4185
      %v7142 = vpack.c.b16 %v4190, %v4186
      %v7143 = vpack.c.b16 %v4191, %v4187
      %v7144 = vpack.c.b16 %v4192, %v4188
      %v7145 = vpack.c.b16 %v4197, %v4193
      %v7146 = vpack.c.b16 %v4198, %v4194
      %v7147 = vpack.c.b16 %v4199, %v4195
      %v7148 = vpack.c.b16 %v4200, %v4196
      %v7149 = vpack.c.b16 %v4205, %v4201
      %v7150 = vpack.c.b16 %v4206, %v4202
      %v7151 = vpack.c.b16 %v4207, %v4203
      %v7152 = vpack.c.b16 %v4208, %v4204
      %v7153 = vpack.c.b16 %v4213, %v4209
      %v7154 = vpack.c.b16 %v4214, %v4210
      %v7155 = vpack.c.b16 %v4215, %v4211
      %v7156 = vpack.c.b16 %v4216, %v4212
      %v7157 = vpack.c.b16 %v4221, %v4217
      %v7158 = vpack.c.b16 %v4222, %v4218
      %v7159 = vpack.c.b16 %v4223, %v4219
      %v7160 = vpack.c.b16 %v4224, %v4220
      %v7161 = vpack.c.b16 %v4229, %v4225
      %v7162 = vpack.c.b16 %v4230, %v4226
      %v7163 = vpack.c.b16 %v4231, %v4227
      %v7164 = vpack.c.b16 %v4232, %v4228
      %v7165 = vpack.c.b16 %v4237, %v4233
      %v7166 = vpack.c.b16 %v4238, %v4234
      %v7167 = vpack.c.b16 %v4239, %v4235
      %v7168 = vpack.c.b16 %v4240, %v4236
      %v7169 = vpack.c.b16 %v4245, %v4241
      %v7170 = vpack.c.b16 %v4246, %v4242
      %v7171 = vpack.c.b16 %v4247, %v4243
      %v7172 = vpack.c.b16 %v4248, %v4244
      %v7173 = vpack.c.b16 %v4253, %v4249
      %v7174 = vpack.c.b16 %v4254, %v4250
      %v7175 = vpack.c.b16 %v4255, %v4251
      %v7176 = vpack.c.b16 %v4256, %v4252
      %v7177 = vpack.c.b16 %v4261, %v4257
      %v7178 = vpack.c.b16 %v4262, %v4258
      %v7179 = vpack.c.b16 %v4263, %v4259
      %v7180 = vpack.c.b16 %v4264, %v4260
      %v7181 = vpack.c.b16 %v4269, %v4265
      %v7182 = vpack.c.b16 %v4270, %v4266
      %v7183 = vpack.c.b16 %v4271, %v4267
      %v7184 = vpack.c.b16 %v4272, %v4268
      %v7185 = vpack.c.b16 %v4277, %v4273
      %v7186 = vpack.c.b16 %v4278, %v4274
      %v7187 = vpack.c.b16 %v4279, %v4275
      %v7188 = vpack.c.b16 %v4280, %v4276
      %v7189 = vpack.c.b16 %v4285, %v4281
      %v7190 = vpack.c.b16 %v4286, %v4282
      %v7191 = vpack.c.b16 %v4287, %v4283
      %v7192 = vpack.c.b16 %v4288, %v4284
      %v7193 = vpack.c.b16 %v4293, %v4289
      %v7194 = vpack.c.b16 %v4294, %v4290
      %v7195 = vpack.c.b16 %v4295, %v4291
      %v7196 = vpack.c.b16 %v4296, %v4292
      %v7197 = vpack.c.b16 %v4301, %v4297
      %v7198 = vpack.c.b16 %v4302, %v4298
      %v7199 = vpack.c.b16 %v4303, %v4299
      %v7200 = vpack.c.b16 %v4304, %v4300
      %v7201 = vpack.c.b16 %v4309, %v4305
      %v7202 = vpack.c.b16 %v4310, %v4306
      %v7203 = vpack.c.b16 %v4311, %v4307
      %v7204 = vpack.c.b16 %v4312, %v4308
      %v7205 = vpack.c.b16 %v4317, %v4313
      %v7206 = vpack.c.b16 %v4318, %v4314
      %v7207 = vpack.c.b16 %v4319, %v4315
      %v7208 = vpack.c.b16 %v4320, %v4316
      %v7209 = vpack.c.b16 %v4325, %v4321
      %v7210 = vpack.c.b16 %v4326, %v4322
      %v7211 = vpack.c.b16 %v4327, %v4323
      %v7212 = vpack.c.b16 %v4328, %v4324
      %v7213 = vpack.c.b16 %v4333, %v4329
      %v7214 = vpack.c.b16 %v4334, %v4330
      %v7215 = vpack.c.b16 %v4335, %v4331
      %v7216 = vpack.c.b16 %v4336, %v4332
      %v7217 = vpack.c.b16 %v4341, %v4337
      %v7218 = vpack.c.b16 %v4342, %v4338
      %v7219 = vpack.c.b16 %v4343, %v4339
      %v7220 = vpack.c.b16 %v4344, %v4340
      %v7221 = vpack.c.b16 %v4349, %v4345
      %v7222 = vpack.c.b16 %v4350, %v4346
      %v7223 = vpack.c.b16 %v4351, %v4347
      %v7224 = vpack.c.b16 %v4352, %v4348
      %v7225 = vpack.c.b16 %v4357, %v4353
      %v7226 = vpack.c.b16 %v4358, %v4354
      %v7227 = vpack.c.b16 %v4359, %v4355
      %v7228 = vpack.c.b16 %v4360, %v4356
      %v7229 = vpack.c.b16 %v4365, %v4361
      %v7230 = vpack.c.b16 %v4366, %v4362
      %v7231 = vpack.c.b16 %v4367, %v4363
      %v7232 = vpack.c.b16 %v4368, %v4364
      %v7233 = vpack.c.b16 %v4373, %v4369
      %v7234 = vpack.c.b16 %v4374, %v4370
      %v7235 = vpack.c.b16 %v4375, %v4371
      %v7236 = vpack.c.b16 %v4376, %v4372
      %v7237 = vpack.c.b16 %v4381, %v4377
      %v7238 = vpack.c.b16 %v4382, %v4378
      %v7239 = vpack.c.b16 %v4383, %v4379
      %v7240 = vpack.c.b16 %v4384, %v4380
      %v7241 = vpack.c.b16 %v4389, %v4385
      %v7242 = vpack.c.b16 %v4390, %v4386
      %v7243 = vpack.c.b16 %v4391, %v4387
      %v7244 = vpack.c.b16 %v4392, %v4388
      %v7245 = vpack.c.b16 %v4397, %v4393
      %v7246 = vpack.c.b16 %v4398, %v4394
      %v7247 = vpack.c.b16 %v4399, %v4395
      %v7248 = vpack.c.b16 %v4400, %v4396
      %v7249 = vpack.c.b16 %v4405, %v4401
      %v7250 = vpack.c.b16 %v4406, %v4402
      %v7251 = vpack.c.b16 %v4407, %v4403
      %v7252 = vpack.c.b16 %v4408, %v4404
      %v7253 = vpack.c.b16 %v4413, %v4409
      %v7254 = vpack.c.b16 %v4414, %v4410
      %v7255 = vpack.c.b16 %v4415, %v4411
      %v7256 = vpack.c.b16 %v4416, %v4412
      %v7257 = vpack.c.b16 %v4421, %v4417
      %v7258 = vpack.c.b16 %v4422, %v4418
      %v7259 = vpack.c.b16 %v4423, %v4419
      %v7260 = vpack.c.b16 %v4424, %v4420
      %v7261 = vpack.c.b16 %v4429, %v4425
      %v7262 = vpack.c.b16 %v4430, %v4426
      %v7263 = vpack.c.b16 %v4431, %v4427
      %v7264 = vpack.c.b16 %v4432, %v4428
      %v7265 = vpack.c.b16 %v4437, %v4433
      %v7266 = vpack.c.b16 %v4438, %v4434
      %v7267 = vpack.c.b16 %v4439, %v4435
      %v7268 = vpack.c.b16 %v4440, %v4436
      %v7269 = vpack.c.b16 %v4445, %v4441
      %v7270 = vpack.c.b16 %v4446, %v4442
      %v7271 = vpack.c.b16 %v4447, %v4443
      %v7272 = vpack.c.b16 %v4448, %v4444
      %v7273 = vpack.c.b16 %v4453, %v4449
      %v7274 = vpack.c.b16 %v4454, %v4450
      %v7275 = vpack.c.b16 %v4455, %v4451
      %v7276 = vpack.c.b16 %v4456, %v4452
      %v7277 = vpack.c.b16 %v4461, %v4457
      %v7278 = vpack.c.b16 %v4462, %v4458
      %v7279 = vpack.c.b16 %v4463, %v4459
      %v7280 = vpack.c.b16 %v4464, %v4460
      %v7281 = vpack.c.b16 %v4469, %v4465
      %v7282 = vpack.c.b16 %v4470, %v4466
      %v7283 = vpack.c.b16 %v4471, %v4467
      %v7284 = vpack.c.b16 %v4472, %v4468
      %v7285 = vpack.c.b16 %v4477, %v4473
      %v7286 = vpack.c.b16 %v4478, %v4474
      %v7287 = vpack.c.b16 %v4479, %v4475
      %v7288 = vpack.c.b16 %v4480, %v4476
      %v7289 = vpack.c.b16 %v4485, %v4481
      %v7290 = vpack.c.b16 %v4486, %v4482
      %v7291 = vpack.c.b16 %v4487, %v4483
      %v7292 = vpack.c.b16 %v4488, %v4484
      %v7293 = vpack.c.b16 %v4493, %v4489
      %v7294 = vpack.c.b16 %v4494, %v4490
      %v7295 = vpack.c.b16 %v4495, %v4491
      %v7296 = vpack.c.b16 %v4496, %v4492
      %v7297 = vpack.c.b16 %v4501, %v4497
      %v7298 = vpack.c.b16 %v4502, %v4498
      %v7299 = vpack.c.b16 %v4503, %v4499
      %v7300 = vpack.c.b16 %v4504, %v4500
      %v7301 = vpack.c.b16 %v4509, %v4505
      %v7302 = vpack.c.b16 %v4510, %v4506
      %v7303 = vpack.c.b16 %v4511, %v4507
      %v7304 = vpack.c.b16 %v4512, %v4508
      %v7305 = vpack.c.b16 %v4517, %v4513
      %v7306 = vpack.c.b16 %v4518, %v4514
      %v7307 = vpack.c.b16 %v4519, %v4515
      %v7308 = vpack.c.b16 %v4520, %v4516
      %v7309 = vpack.c.b16 %v4525, %v4521
      %v7310 = vpack.c.b16 %v4526, %v4522
      %v7311 = vpack.c.b16 %v4527, %v4523
      %v7312 = vpack.c.b16 %v4528, %v4524
      %v7313 = vpack.c.b16 %v4533, %v4529
      %v7314 = vpack.c.b16 %v4534, %v4530
      %v7315 = vpack.c.b16 %v4535, %v4531
      %v7316 = vpack.c.b16 %v4536, %v4532
      %v7317 = vpack.c.b16 %v4541, %v4537
      %v7318 = vpack.c.b16 %v4542, %v4538
      %v7319 = vpack.c.b16 %v4543, %v4539
      %v7320 = vpack.c.b16 %v4544, %v4540
      %v7321 = vpack.c.b16 %v4549, %v4545
      %v7322 = vpack.c.b16 %v4550, %v4546
      %v7323 = vpack.c.b16 %v4551, %v4547
      %v7324 = vpack.c.b16 %v4552, %v4548
      %v7325 = vpack.c.b16 %v4557, %v4553
      %v7326 = vpack.c.b16 %v4558, %v4554
      %v7327 = vpack.c.b16 %v4559, %v4555
      %v7328 = vpack.c.b16 %v4560, %v4556
      %v7329 = vpack.c.b16 %v4565, %v4561
      %v7330 = vpack.c.b16 %v4566, %v4562
      %v7331 = vpack.c.b16 %v4567, %v4563
      %v7332 = vpack.c.b16 %v4568, %v4564
      %v7333 = vpack.c.b16 %v4573, %v4569
      %v7334 = vpack.c.b16 %v4574, %v4570
      %v7335 = vpack.c.b16 %v4575, %v4571
      %v7336 = vpack.c.b16 %v4576, %v4572
      %v7337 = vpack.c.b16 %v4581, %v4577
      %v7338 = vpack.c.b16 %v4582, %v4578
      %v7339 = vpack.c.b16 %v4583, %v4579
      %v7340 = vpack.c.b16 %v4584, %v4580
      %v7341 = vpack.c.b16 %v4589, %v4585
      %v7342 = vpack.c.b16 %v4590, %v4586
      %v7343 = vpack.c.b16 %v4591, %v4587
      %v7344 = vpack.c.b16 %v4592, %v4588
      %v7345 = vpack.c.b16 %v4597, %v4593
      %v7346 = vpack.c.b16 %v4598, %v4594
      %v7347 = vpack.c.b16 %v4599, %v4595
      %v7348 = vpack.c.b16 %v4600, %v4596
      %v7349 = vpack.c.b16 %v4605, %v4601
      %v7350 = vpack.c.b16 %v4606, %v4602
      %v7351 = vpack.c.b16 %v4607, %v4603
      %v7352 = vpack.c.b16 %v4608, %v4604
      %v7353 = vpack.c.b16 %v4613, %v4609
      %v7354 = vpack.c.b16 %v4614, %v4610
      %v7355 = vpack.c.b16 %v4615, %v4611
      %v7356 = vpack.c.b16 %v4616, %v4612
      %v7357 = vpack.c.b16 %v4621, %v4617
      %v7358 = vpack.c.b16 %v4622, %v4618
      %v7359 = vpack.c.b16 %v4623, %v4619
      %v7360 = vpack.c.b16 %v4624, %v4620
      %v7361 = vpack.c.b16 %v4629, %v4625
      %v7362 = vpack.c.b16 %v4630, %v4626
      %v7363 = vpack.c.b16 %v4631, %v4627
      %v7364 = vpack.c.b16 %v4632, %v4628
      %v7365 = vpack.c.b16 %v4637, %v4633
      %v7366 = vpack.c.b16 %v4638, %v4634
      %v7367 = vpack.c.b16 %v4639, %v4635
      %v7368 = vpack.c.b16 %v4640, %v4636
      %v7369 = vpack.c.b16 %v4645, %v4641
      %v7370 = vpack.c.b16 %v4646, %v4642
      %v7371 = vpack.c.b16 %v4647, %v4643
      %v7372 = vpack.c.b16 %v4648, %v4644
      %v7373 = vpack.c.b16 %v4653, %v4649
      %v7374 = vpack.c.b16 %v4654, %v4650
      %v7375 = vpack.c.b16 %v4655, %v4651
      %v7376 = vpack.c.b16 %v4656, %v4652
      %v7377 = vpack.c.b16 %v4661, %v4657
      %v7378 = vpack.c.b16 %v4662, %v4658
      %v7379 = vpack.c.b16 %v4663, %v4659
      %v7380 = vpack.c.b16 %v4664, %v4660
      %v7381 = vpack.c.b16 %v4669, %v4665
      %v7382 = vpack.c.b16 %v4670, %v4666
      %v7383 = vpack.c.b16 %v4671, %v4667
      %v7384 = vpack.c.b16 %v4672, %v4668
      %v7385 = vpack.c.b16 %v4677, %v4673
      %v7386 = vpack.c.b16 %v4678, %v4674
      %v7387 = vpack.c.b16 %v4679, %v4675
      %v7388 = vpack.c.b16 %v4680, %v4676
      %v7389 = vpack.c.b16 %v4685, %v4681
      %v7390 = vpack.c.b16 %v4686, %v4682
      %v7391 = vpack.c.b16 %v4687, %v4683
      %v7392 = vpack.c.b16 %v4688, %v4684
      %v7393 = vpack.c.b16 %v4693, %v4689
      %v7394 = vpack.c.b16 %v4694, %v4690
      %v7395 = vpack.c.b16 %v4695, %v4691
      %v7396 = vpack.c.b16 %v4696, %v4692
      %v7397 = vpack.c.b16 %v4701, %v4697
      %v7398 = vpack.c.b16 %v4702, %v4698
      %v7399 = vpack.c.b16 %v4703, %v4699
      %v7400 = vpack.c.b16 %v4704, %v4700
      %v7401 = vpack.c.b16 %v4709, %v4705
      %v7402 = vpack.c.b16 %v4710, %v4706
      %v7403 = vpack.c.b16 %v4711, %v4707
      %v7404 = vpack.c.b16 %v4712, %v4708
      %v7405 = vpack.c.b16 %v4717, %v4713
      %v7406 = vpack.c.b16 %v4718, %v4714
      %v7407 = vpack.c.b16 %v4719, %v4715
      %v7408 = vpack.c.b16 %v4720, %v4716
      %v7409 = vpack.c.b16 %v4725, %v4721
      %v7410 = vpack.c.b16 %v4726, %v4722
      %v7411 = vpack.c.b16 %v4727, %v4723
      %v7412 = vpack.c.b16 %v4728, %v4724
      %v7413 = vpack.c.b16 %v4733, %v4729
      %v7414 = vpack.c.b16 %v4734, %v4730
      %v7415 = vpack.c.b16 %v4735, %v4731
      %v7416 = vpack.c.b16 %v4736, %v4732
      %v7417 = vpack.c.b16 %v4741, %v4737
      %v7418 = vpack.c.b16 %v4742, %v4738
      %v7419 = vpack.c.b16 %v4743, %v4739
      %v7420 = vpack.c.b16 %v4744, %v4740
      %v7421 = vpack.c.b16 %v4749, %v4745
      %v7422 = vpack.c.b16 %v4750, %v4746
      %v7423 = vpack.c.b16 %v4751, %v4747
      %v7424 = vpack.c.b16 %v4752, %v4748
      %v7425 = vpack.c.b16 %v4757, %v4753
      %v7426 = vpack.c.b16 %v4758, %v4754
      %v7427 = vpack.c.b16 %v4759, %v4755
      %v7428 = vpack.c.b16 %v4760, %v4756
      %v7429 = vpack.c.b16 %v4765, %v4761
      %v7430 = vpack.c.b16 %v4766, %v4762
      %v7431 = vpack.c.b16 %v4767, %v4763
      %v7432 = vpack.c.b16 %v4768, %v4764
      %v7433 = vpack.c.b16 %v4773, %v4769
      %v7434 = vpack.c.b16 %v4774, %v4770
      %v7435 = vpack.c.b16 %v4775, %v4771
      %v7436 = vpack.c.b16 %v4776, %v4772
      %v7437 = vpack.c.b16 %v4781, %v4777
      %v7438 = vpack.c.b16 %v4782, %v4778
      %v7439 = vpack.c.b16 %v4783, %v4779
      %v7440 = vpack.c.b16 %v4784, %v4780
      %v7441 = vpack.c.b16 %v4789, %v4785
      %v7442 = vpack.c.b16 %v4790, %v4786
      %v7443 = vpack.c.b16 %v4791, %v4787
      %v7444 = vpack.c.b16 %v4792, %v4788
      %v7445 = vpack.c.b16 %v4797, %v4793
      %v7446 = vpack.c.b16 %v4798, %v4794
      %v7447 = vpack.c.b16 %v4799, %v4795
      %v7448 = vpack.c.b16 %v4800, %v4796
      %v7449 = vpack.c.b16 %v4805, %v4801
      %v7450 = vpack.c.b16 %v4806, %v4802
      %v7451 = vpack.c.b16 %v4807, %v4803
      %v7452 = vpack.c.b16 %v4808, %v4804
      %v7453 = vpack.c.b16 %v4813, %v4809
      %v7454 = vpack.c.b16 %v4814, %v4810
      %v7455 = vpack.c.b16 %v4815, %v4811
      %v7456 = vpack.c.b16 %v4816, %v4812
      %v7457 = vpack.c.b16 %v4821, %v4817
      %v7458 = vpack.c.b16 %v4822, %v4818
      %v7459 = vpack.c.b16 %v4823, %v4819
      %v7460 = vpack.c.b16 %v4824, %v4820
      %v7461 = vpack.c.b16 %v4829, %v4825
      %v7462 = vpack.c.b16 %v4830, %v4826
      %v7463 = vpack.c.b16 %v4831, %v4827
      %v7464 = vpack.c.b16 %v4832, %v4828
      %v7465 = vpack.c.b16 %v4837, %v4833
      %v7466 = vpack.c.b16 %v4838, %v4834
      %v7467 = vpack.c.b16 %v4839, %v4835
      %v7468 = vpack.c.b16 %v4840, %v4836
      %v7469 = vpack.c.b16 %v4845, %v4841
      %v7470 = vpack.c.b16 %v4846, %v4842
      %v7471 = vpack.c.b16 %v4847, %v4843
      %v7472 = vpack.c.b16 %v4848, %v4844
      %v7473 = vpack.c.b16 %v4853, %v4849
      %v7474 = vpack.c.b16 %v4854, %v4850
      %v7475 = vpack.c.b16 %v4855, %v4851
      %v7476 = vpack.c.b16 %v4856, %v4852
      %v7477 = vpack.c.b16 %v4861, %v4857
      %v7478 = vpack.c.b16 %v4862, %v4858
      %v7479 = vpack.c.b16 %v4863, %v4859
      %v7480 = vpack.c.b16 %v4864, %v4860
      %v7481 = vpack.c.b16 %v4869, %v4865
      %v7482 = vpack.c.b16 %v4870, %v4866
      %v7483 = vpack.c.b16 %v4871, %v4867
      %v7484 = vpack.c.b16 %v4872, %v4868
      %v7485 = vpack.c.b16 %v4877, %v4873
      %v7486 = vpack.c.b16 %v4878, %v4874
      %v7487 = vpack.c.b16 %v4879, %v4875
      %v7488 = vpack.c.b16 %v4880, %v4876
      %v7489 = vpack.c.b16 %v4885, %v4881
      %v7490 = vpack.c.b16 %v4886, %v4882
      %v7491 = vpack.c.b16 %v4887, %v4883
      %v7492 = vpack.c.b16 %v4888, %v4884
      %v7493 = vpack.c.b16 %v4893, %v4889
      %v7494 = vpack.c.b16 %v4894, %v4890
      %v7495 = vpack.c.b16 %v4895, %v4891
      %v7496 = vpack.c.b16 %v4896, %v4892
      %v7497 = vpack.c.b16 %v4901, %v4897
      %v7498 = vpack.c.b16 %v4902, %v4898
      %v7499 = vpack.c.b16 %v4903, %v4899
      %v7500 = vpack.c.b16 %v4904, %v4900
      %v7501 = vpack.c.b16 %v4909, %v4905
      %v7502 = vpack.c.b16 %v4910, %v4906
      %v7503 = vpack.c.b16 %v4911, %v4907
      %v7504 = vpack.c.b16 %v4912, %v4908
      %v7505 = vpack.c.b16 %v4917, %v4913
      %v7506 = vpack.c.b16 %v4918, %v4914
      %v7507 = vpack.c.b16 %v4919, %v4915
      %v7508 = vpack.c.b16 %v4920, %v4916
      %v7509 = vpack.c.b16 %v4925, %v4921
      %v7510 = vpack.c.b16 %v4926, %v4922
      %v7511 = vpack.c.b16 %v4927, %v4923
      %v7512 = vpack.c.b16 %v4928, %v4924
      %v7513 = vpack.c.b16 %v4933, %v4929
      %v7514 = vpack.c.b16 %v4934, %v4930
      %v7515 = vpack.c.b16 %v4935, %v4931
      %v7516 = vpack.c.b16 %v4936, %v4932
      %v7517 = vpack.c.b16 %v4941, %v4937
      %v7518 = vpack.c.b16 %v4942, %v4938
      %v7519 = vpack.c.b16 %v4943, %v4939
      %v7520 = vpack.c.b16 %v4944, %v4940
      %v7521 = vpack.c.b16 %v4949, %v4945
      %v7522 = vpack.c.b16 %v4950, %v4946
      %v7523 = vpack.c.b16 %v4951, %v4947
      %v7524 = vpack.c.b16 %v4952, %v4948
      %v7525 = vpack.c.b16 %v4957, %v4953
      %v7526 = vpack.c.b16 %v4958, %v4954
      %v7527 = vpack.c.b16 %v4959, %v4955
      %v7528 = vpack.c.b16 %v4960, %v4956
      %v7529 = vpack.c.b16 %v4965, %v4961
      %v7530 = vpack.c.b16 %v4966, %v4962
      %v7531 = vpack.c.b16 %v4967, %v4963
      %v7532 = vpack.c.b16 %v4968, %v4964
      %v7533 = vpack.c.b16 %v4973, %v4969
      %v7534 = vpack.c.b16 %v4974, %v4970
      %v7535 = vpack.c.b16 %v4975, %v4971
      %v7536 = vpack.c.b16 %v4976, %v4972
      %v7537 = vpack.c.b16 %v4981, %v4977
      %v7538 = vpack.c.b16 %v4982, %v4978
      %v7539 = vpack.c.b16 %v4983, %v4979
      %v7540 = vpack.c.b16 %v4984, %v4980
      %v7541 = vpack.c.b16 %v4989, %v4985
      %v7542 = vpack.c.b16 %v4990, %v4986
      %v7543 = vpack.c.b16 %v4991, %v4987
      %v7544 = vpack.c.b16 %v4992, %v4988
      %v7545 = vpack.c.b16 %v4997, %v4993
      %v7546 = vpack.c.b16 %v4998, %v4994
      %v7547 = vpack.c.b16 %v4999, %v4995
      %v7548 = vpack.c.b16 %v5000, %v4996
      %v7549 = vpack.c.b16 %v5005, %v5001
      %v7550 = vpack.c.b16 %v5006, %v5002
      %v7551 = vpack.c.b16 %v5007, %v5003
      %v7552 = vpack.c.b16 %v5008, %v5004
      %v7553 = vpack.c.b16 %v5013, %v5009
      %v7554 = vpack.c.b16 %v5014, %v5010
      %v7555 = vpack.c.b16 %v5015, %v5011
      %v7556 = vpack.c.b16 %v5016, %v5012
      %v7557 = vpack.c.b16 %v5021, %v5017
      %v7558 = vpack.c.b16 %v5022, %v5018
      %v7559 = vpack.c.b16 %v5023, %v5019
      %v7560 = vpack.c.b16 %v5024, %v5020
      %v7561 = vpack.c.b16 %v5029, %v5025
      %v7562 = vpack.c.b16 %v5030, %v5026
      %v7563 = vpack.c.b16 %v5031, %v5027
      %v7564 = vpack.c.b16 %v5032, %v5028
      %v7565 = vpack.c.b16 %v5037, %v5033
      %v7566 = vpack.c.b16 %v5038, %v5034
      %v7567 = vpack.c.b16 %v5039, %v5035
      %v7568 = vpack.c.b16 %v5040, %v5036
      %v7569 = vpack.c.b16 %v5045, %v5041
      %v7570 = vpack.c.b16 %v5046, %v5042
      %v7571 = vpack.c.b16 %v5047, %v5043
      %v7572 = vpack.c.b16 %v5048, %v5044
      %v7573 = vpack.c.b16 %v5053, %v5049
      %v7574 = vpack.c.b16 %v5054, %v5050
      %v7575 = vpack.c.b16 %v5055, %v5051
      %v7576 = vpack.c.b16 %v5056, %v5052
      %v7577 = vpack.c.b16 %v5061, %v5057
      %v7578 = vpack.c.b16 %v5062, %v5058
      %v7579 = vpack.c.b16 %v5063, %v5059
      %v7580 = vpack.c.b16 %v5064, %v5060
      %v7581 = vpack.c.b16 %v5069, %v5065
      %v7582 = vpack.c.b16 %v5070, %v5066
      %v7583 = vpack.c.b16 %v5071, %v5067
      %v7584 = vpack.c.b16 %v5072, %v5068
      %v7585 = vpack.c.b16 %v5077, %v5073
      %v7586 = vpack.c.b16 %v5078, %v5074
      %v7587 = vpack.c.b16 %v5079, %v5075
      %v7588 = vpack.c.b16 %v5080, %v5076
      %v7589 = vpack.c.b16 %v5085, %v5081
      %v7590 = vpack.c.b16 %v5086, %v5082
      %v7591 = vpack.c.b16 %v5087, %v5083
      %v7592 = vpack.c.b16 %v5088, %v5084
      %v7593 = vpack.c.b16 %v5093, %v5089
      %v7594 = vpack.c.b16 %v5094, %v5090
      %v7595 = vpack.c.b16 %v5095, %v5091
      %v7596 = vpack.c.b16 %v5096, %v5092
      %v7597 = vpack.c.b16 %v5101, %v5097
      %v7598 = vpack.c.b16 %v5102, %v5098
      %v7599 = vpack.c.b16 %v5103, %v5099
      %v7600 = vpack.c.b16 %v5104, %v5100
      %v7601 = vpack.c.b16 %v5109, %v5105
      %v7602 = vpack.c.b16 %v5110, %v5106
      %v7603 = vpack.c.b16 %v5111, %v5107
      %v7604 = vpack.c.b16 %v5112, %v5108
      %v7605 = vpack.c.b16 %v5117, %v5113
      %v7606 = vpack.c.b16 %v5118, %v5114
      %v7607 = vpack.c.b16 %v5119, %v5115
      %v7608 = vpack.c.b16 %v5120, %v5116
      %v7609 = vpack.c.b16 %v5125, %v5121
      %v7610 = vpack.c.b16 %v5126, %v5122
      %v7611 = vpack.c.b16 %v5127, %v5123
      %v7612 = vpack.c.b16 %v5128, %v5124
      %v7613 = vpack.c.b16 %v5133, %v5129
      %v7614 = vpack.c.b16 %v5134, %v5130
      %v7615 = vpack.c.b16 %v5135, %v5131
      %v7616 = vpack.c.b16 %v5136, %v5132
      %v7617 = vpack.c.b16 %v5141, %v5137
      %v7618 = vpack.c.b16 %v5142, %v5138
      %v7619 = vpack.c.b16 %v5143, %v5139
      %v7620 = vpack.c.b16 %v5144, %v5140
      %v7621 = vpack.c.b16 %v5149, %v5145
      %v7622 = vpack.c.b16 %v5150, %v5146
      %v7623 = vpack.c.b16 %v5151, %v5147
      %v7624 = vpack.c.b16 %v5152, %v5148
      %v7625 = vpack.c.b16 %v5157, %v5153
      %v7626 = vpack.c.b16 %v5158, %v5154
      %v7627 = vpack.c.b16 %v5159, %v5155
      %v7628 = vpack.c.b16 %v5160, %v5156
      %v7629 = vpack.c.b16 %v5165, %v5161
      %v7630 = vpack.c.b16 %v5166, %v5162
      %v7631 = vpack.c.b16 %v5167, %v5163
      %v7632 = vpack.c.b16 %v5168, %v5164
      %v7633 = vpack.c.b16 %v5173, %v5169
      %v7634 = vpack.c.b16 %v5174, %v5170
      %v7635 = vpack.c.b16 %v5175, %v5171
      %v7636 = vpack.c.b16 %v5176, %v5172
      %v7637 = vpack.c.b16 %v5181, %v5177
      %v7638 = vpack.c.b16 %v5182, %v5178
      %v7639 = vpack.c.b16 %v5183, %v5179
      %v7640 = vpack.c.b16 %v5184, %v5180
      %v7641 = vpack.c.b16 %v5189, %v5185
      %v7642 = vpack.c.b16 %v5190, %v5186
      %v7643 = vpack.c.b16 %v5191, %v5187
      %v7644 = vpack.c.b16 %v5192, %v5188
      %v7645 = vpack.c.b16 %v5197, %v5193
      %v7646 = vpack.c.b16 %v5198, %v5194
      %v7647 = vpack.c.b16 %v5199, %v5195
      %v7648 = vpack.c.b16 %v5200, %v5196
      %v7649 = vpack.c.b16 %v5205, %v5201
      %v7650 = vpack.c.b16 %v5206, %v5202
      %v7651 = vpack.c.b16 %v5207, %v5203
      %v7652 = vpack.c.b16 %v5208, %v5204
      %v7653 = vpack.c.b16 %v5213, %v5209
      %v7654 = vpack.c.b16 %v5214, %v5210
      %v7655 = vpack.c.b16 %v5215, %v5211
      %v7656 = vpack.c.b16 %v5216, %v5212
      %v7657 = vpack.c.b16 %v5221, %v5217
      %v7658 = vpack.c.b16 %v5222, %v5218
      %v7659 = vpack.c.b16 %v5223, %v5219
      %v7660 = vpack.c.b16 %v5224, %v5220
      %v7661 = vpack.c.b16 %v5229, %v5225
      %v7662 = vpack.c.b16 %v5230, %v5226
      %v7663 = vpack.c.b16 %v5231, %v5227
      %v7664 = vpack.c.b16 %v5232, %v5228
      %v7665 = vpack.c.b16 %v5237, %v5233
      %v7666 = vpack.c.b16 %v5238, %v5234
      %v7667 = vpack.c.b16 %v5239, %v5235
      %v7668 = vpack.c.b16 %v5240, %v5236
      %v7669 = vpack.c.b16 %v5245, %v5241
      %v7670 = vpack.c.b16 %v5246, %v5242
      %v7671 = vpack.c.b16 %v5247, %v5243
      %v7672 = vpack.c.b16 %v5248, %v5244
      %v7673 = vpack.c.b16 %v5253, %v5249
      %v7674 = vpack.c.b16 %v5254, %v5250
      %v7675 = vpack.c.b16 %v5255, %v5251
      %v7676 = vpack.c.b16 %v5256, %v5252
      %v7677 = vpack.c.b16 %v5261, %v5257
      %v7678 = vpack.c.b16 %v5262, %v5258
      %v7679 = vpack.c.b16 %v5263, %v5259
      %v7680 = vpack.c.b16 %v5264, %v5260
      %v7681 = vpack.c.b16 %v5269, %v5265
      %v7682 = vpack.c.b16 %v5270, %v5266
      %v7683 = vpack.c.b16 %v5271, %v5267
      %v7684 = vpack.c.b16 %v5272, %v5268
      %v7685 = vpack.c.b16 %v5277, %v5273
      %v7686 = vpack.c.b16 %v5278, %v5274
      %v7687 = vpack.c.b16 %v5279, %v5275
      %v7688 = vpack.c.b16 %v5280, %v5276
      %v7689 = vpack.c.b16 %v5285, %v5281
      %v7690 = vpack.c.b16 %v5286, %v5282
      %v7691 = vpack.c.b16 %v5287, %v5283
      %v7692 = vpack.c.b16 %v5288, %v5284
      %v7693 = vpack.c.b16 %v5293, %v5289
      %v7694 = vpack.c.b16 %v5294, %v5290
      %v7695 = vpack.c.b16 %v5295, %v5291
      %v7696 = vpack.c.b16 %v5296, %v5292
      %v7697 = vpack.c.b16 %v5301, %v5297
      %v7698 = vpack.c.b16 %v5302, %v5298
      %v7699 = vpack.c.b16 %v5303, %v5299
      %v7700 = vpack.c.b16 %v5304, %v5300
      %v7701 = vpack.c.b16 %v5309, %v5305
      %v7702 = vpack.c.b16 %v5310, %v5306
      %v7703 = vpack.c.b16 %v5311, %v5307
      %v7704 = vpack.c.b16 %v5312, %v5308
      %v7705 = vpack.c.b16 %v5317, %v5313
      %v7706 = vpack.c.b16 %v5318, %v5314
      %v7707 = vpack.c.b16 %v5319, %v5315
      %v7708 = vpack.c.b16 %v5320, %v5316
      %v7709 = vpack.c.b16 %v5325, %v5321
      %v7710 = vpack.c.b16 %v5326, %v5322
      %v7711 = vpack.c.b16 %v5327, %v5323
      %v7712 = vpack.c.b16 %v5328, %v5324
      %v7713 = vpack.c.b16 %v5333, %v5329
      %v7714 = vpack.c.b16 %v5334, %v5330
      %v7715 = vpack.c.b16 %v5335, %v5331
      %v7716 = vpack.c.b16 %v5336, %v5332
      %v7717 = vpack.c.b16 %v5341, %v5337
      %v7718 = vpack.c.b16 %v5342, %v5338
      %v7719 = vpack.c.b16 %v5343, %v5339
      %v7720 = vpack.c.b16 %v5344, %v5340
      %v7721 = vpack.c.b16 %v5349, %v5345
      %v7722 = vpack.c.b16 %v5350, %v5346
      %v7723 = vpack.c.b16 %v5351, %v5347
      %v7724 = vpack.c.b16 %v5352, %v5348
      %v7725 = vpack.c.b16 %v5357, %v5353
      %v7726 = vpack.c.b16 %v5358, %v5354
      %v7727 = vpack.c.b16 %v5359, %v5355
      %v7728 = vpack.c.b16 %v5360, %v5356
      %v7729 = vpack.c.b16 %v5365, %v5361
      %v7730 = vpack.c.b16 %v5366, %v5362
      %v7731 = vpack.c.b16 %v5367, %v5363
      %v7732 = vpack.c.b16 %v5368, %v5364
      %v7733 = vpack.c.b16 %v5373, %v5369
      %v7734 = vpack.c.b16 %v5374, %v5370
      %v7735 = vpack.c.b16 %v5375, %v5371
      %v7736 = vpack.c.b16 %v5376, %v5372
      %v7737 = vpack.c.b16 %v5381, %v5377
      %v7738 = vpack.c.b16 %v5382, %v5378
      %v7739 = vpack.c.b16 %v5383, %v5379
      %v7740 = vpack.c.b16 %v5384, %v5380
      %v7741 = vpack.c.b16 %v5389, %v5385
      %v7742 = vpack.c.b16 %v5390, %v5386
      %v7743 = vpack.c.b16 %v5391, %v5387
      %v7744 = vpack.c.b16 %v5392, %v5388
      %v7745 = vpack.c.b16 %v5397, %v5393
      %v7746 = vpack.c.b16 %v5398, %v5394
      %v7747 = vpack.c.b16 %v5399, %v5395
      %v7748 = vpack.c.b16 %v5400, %v5396
      %v7749 = vpack.c.b16 %v5405, %v5401
      %v7750 = vpack.c.b16 %v5406, %v5402
      %v7751 = vpack.c.b16 %v5407, %v5403
      %v7752 = vpack.c.b16 %v5408, %v5404
      %v7753 = vpack.c.b16 %v5413, %v5409
      %v7754 = vpack.c.b16 %v5414, %v5410
      %v7755 = vpack.c.b16 %v5415, %v5411
      %v7756 = vpack.c.b16 %v5416, %v5412
      %v7757 = vpack.c.b16 %v5421, %v5417
      %v7758 = vpack.c.b16 %v5422, %v5418
      %v7759 = vpack.c.b16 %v5423, %v5419
      %v7760 = vpack.c.b16 %v5424, %v5420
      %v7761 = vpack.c.b16 %v5429, %v5425
      %v7762 = vpack.c.b16 %v5430, %v5426
      %v7763 = vpack.c.b16 %v5431, %v5427
      %v7764 = vpack.c.b16 %v5432, %v5428
      %v7765 = vpack.c.b16 %v5437, %v5433
      %v7766 = vpack.c.b16 %v5438, %v5434
      %v7767 = vpack.c.b16 %v5439, %v5435
      %v7768 = vpack.c.b16 %v5440, %v5436
      %v7769 = vpack.c.b16 %v5445, %v5441
      %v7770 = vpack.c.b16 %v5446, %v5442
      %v7771 = vpack.c.b16 %v5447, %v5443
      %v7772 = vpack.c.b16 %v5448, %v5444
      %v7773 = vpack.c.b16 %v5453, %v5449
      %v7774 = vpack.c.b16 %v5454, %v5450
      %v7775 = vpack.c.b16 %v5455, %v5451
      %v7776 = vpack.c.b16 %v5456, %v5452
      %v7777 = vpack.c.b16 %v5461, %v5457
      %v7778 = vpack.c.b16 %v5462, %v5458
      %v7779 = vpack.c.b16 %v5463, %v5459
      %v7780 = vpack.c.b16 %v5464, %v5460
      %v7781 = vpack.c.b16 %v5469, %v5465
      %v7782 = vpack.c.b16 %v5470, %v5466
      %v7783 = vpack.c.b16 %v5471, %v5467
      %v7784 = vpack.c.b16 %v5472, %v5468
      %v7785 = vpack.c.b16 %v5477, %v5473
      %v7786 = vpack.c.b16 %v5478, %v5474
      %v7787 = vpack.c.b16 %v5479, %v5475
      %v7788 = vpack.c.b16 %v5480, %v5476
      %v7789 = vpack.c.b16 %v5485, %v5481
      %v7790 = vpack.c.b16 %v5486, %v5482
      %v7791 = vpack.c.b16 %v5487, %v5483
      %v7792 = vpack.c.b16 %v5488, %v5484
      %v7793 = vpack.c.b16 %v5493, %v5489
      %v7794 = vpack.c.b16 %v5494, %v5490
      %v7795 = vpack.c.b16 %v5495, %v5491
      %v7796 = vpack.c.b16 %v5496, %v5492
      %v7797 = vpack.c.b16 %v5501, %v5497
      %v7798 = vpack.c.b16 %v5502, %v5498
      %v7799 = vpack.c.b16 %v5503, %v5499
      %v7800 = vpack.c.b16 %v5504, %v5500
      %v7801 = vpack.c.b16 %v5509, %v5505
      %v7802 = vpack.c.b16 %v5510, %v5506
      %v7803 = vpack.c.b16 %v5511, %v5507
      %v7804 = vpack.c.b16 %v5512, %v5508
      %v7805 = vpack.c.b16 %v5517, %v5513
      %v7806 = vpack.c.b16 %v5518, %v5514
      %v7807 = vpack.c.b16 %v5519, %v5515
      %v7808 = vpack.c.b16 %v5520, %v5516
      %v7809 = vpack.c.b16 %v5525, %v5521
      %v7810 = vpack.c.b16 %v5526, %v5522
      %v7811 = vpack.c.b16 %v5527, %v5523
      %v7812 = vpack.c.b16 %v5528, %v5524
      %v7813 = vpack.c.b16 %v5533, %v5529
      %v7814 = vpack.c.b16 %v5534, %v5530
      %v7815 = vpack.c.b16 %v5535, %v5531
      %v7816 = vpack.c.b16 %v5536, %v5532
      %v7817 = vpack.c.b16 %v5541, %v5537
      %v7818 = vpack.c.b16 %v5542, %v5538
      %v7819 = vpack.c.b16 %v5543, %v5539
      %v7820 = vpack.c.b16 %v5544, %v5540
      %v7821 = vpack.c.b16 %v5549, %v5545
      %v7822 = vpack.c.b16 %v5550, %v5546
      %v7823 = vpack.c.b16 %v5551, %v5547
      %v7824 = vpack.c.b16 %v5552, %v5548
      %v7825 = vpack.c.b16 %v5557, %v5553
      %v7826 = vpack.c.b16 %v5558, %v5554
      %v7827 = vpack.c.b16 %v5559, %v5555
      %v7828 = vpack.c.b16 %v5560, %v5556
      %v7829 = vpack.c.b16 %v5565, %v5561
      %v7830 = vpack.c.b16 %v5566, %v5562
      %v7831 = vpack.c.b16 %v5567, %v5563
      %v7832 = vpack.c.b16 %v5568, %v5564
      %v7833 = vpack.c.b16 %v5573, %v5569
      %v7834 = vpack.c.b16 %v5574, %v5570
      %v7835 = vpack.c.b16 %v5575, %v5571
      %v7836 = vpack.c.b16 %v5576, %v5572
      %v7837 = vpack.c.b16 %v5581, %v5577
      %v7838 = vpack.c.b16 %v5582, %v5578
      %v7839 = vpack.c.b16 %v5583, %v5579
      %v7840 = vpack.c.b16 %v5584, %v5580
      %v7841 = vpack.c.b16 %v5589, %v5585
      %v7842 = vpack.c.b16 %v5590, %v5586
      %v7843 = vpack.c.b16 %v5591, %v5587
      %v7844 = vpack.c.b16 %v5592, %v5588
      %v7845 = vpack.c.b16 %v5597, %v5593
      %v7846 = vpack.c.b16 %v5598, %v5594
      %v7847 = vpack.c.b16 %v5599, %v5595
      %v7848 = vpack.c.b16 %v5600, %v5596
      %v7849 = vpack.c.b16 %v5605, %v5601
      %v7850 = vpack.c.b16 %v5606, %v5602
      %v7851 = vpack.c.b16 %v5607, %v5603
      %v7852 = vpack.c.b16 %v5608, %v5604
      %v7853 = vpack.c.b16 %v5613, %v5609
      %v7854 = vpack.c.b16 %v5614, %v5610
      %v7855 = vpack.c.b16 %v5615, %v5611
      %v7856 = vpack.c.b16 %v5616, %v5612
      %v7857 = vpack.c.b16 %v5621, %v5617
      %v7858 = vpack.c.b16 %v5622, %v5618
      %v7859 = vpack.c.b16 %v5623, %v5619
      %v7860 = vpack.c.b16 %v5624, %v5620
      %v7861 = vpack.c.b16 %v5629, %v5625
      %v7862 = vpack.c.b16 %v5630, %v5626
      %v7863 = vpack.c.b16 %v5631, %v5627
      %v7864 = vpack.c.b16 %v5632, %v5628
      %v7865 = vpack.c.b16 %v5637, %v5633
      %v7866 = vpack.c.b16 %v5638, %v5634
      %v7867 = vpack.c.b16 %v5639, %v5635
      %v7868 = vpack.c.b16 %v5640, %v5636
      %v7869 = vpack.c.b16 %v5645, %v5641
      %v7870 = vpack.c.b16 %v5646, %v5642
      %v7871 = vpack.c.b16 %v5647, %v5643
      %v7872 = vpack.c.b16 %v5648, %v5644
      %v7873 = vpack.c.b16 %v5653, %v5649
      %v7874 = vpack.c.b16 %v5654, %v5650
      %v7875 = vpack.c.b16 %v5655, %v5651
      %v7876 = vpack.c.b16 %v5656, %v5652
      %v7877 = vpack.c.b16 %v5661, %v5657
      %v7878 = vpack.c.b16 %v5662, %v5658
      %v7879 = vpack.c.b16 %v5663, %v5659
      %v7880 = vpack.c.b16 %v5664, %v5660
      %v7881 = vpack.c.b16 %v5669, %v5665
      %v7882 = vpack.c.b16 %v5670, %v5666
      %v7883 = vpack.c.b16 %v5671, %v5667
      %v7884 = vpack.c.b16 %v5672, %v5668
      %v7885 = vpack.c.b16 %v5677, %v5673
      %v7886 = vpack.c.b16 %v5678, %v5674
      %v7887 = vpack.c.b16 %v5679, %v5675
      %v7888 = vpack.c.b16 %v5680, %v5676
      %v7889 = vpack.c.b16 %v5685, %v5681
      %v7890 = vpack.c.b16 %v5686, %v5682
      %v7891 = vpack.c.b16 %v5687, %v5683
      %v7892 = vpack.c.b16 %v5688, %v5684
      %v7893 = vpack.c.b16 %v5693, %v5689
      %v7894 = vpack.c.b16 %v5694, %v5690
      %v7895 = vpack.c.b16 %v5695, %v5691
      %v7896 = vpack.c.b16 %v5696, %v5692
      %v7897 = vpack.c.b16 %v5701, %v5697
      %v7898 = vpack.c.b16 %v5702, %v5698
      %v7899 = vpack.c.b16 %v5703, %v5699
      %v7900 = vpack.c.b16 %v5704, %v5700
      %v7901 = vpack.c.b16 %v5709, %v5705
      %v7902 = vpack.c.b16 %v5710, %v5706
      %v7903 = vpack.c.b16 %v5711, %v5707
      %v7904 = vpack.c.b16 %v5712, %v5708
      %v7905 = vpack.c.b16 %v5717, %v5713
      %v7906 = vpack.c.b16 %v5718, %v5714
      %v7907 = vpack.c.b16 %v5719, %v5715
      %v7908 = vpack.c.b16 %v5720, %v5716
      %v7909 = vpack.c.b16 %v5725, %v5721
      %v7910 = vpack.c.b16 %v5726, %v5722
      %v7911 = vpack.c.b16 %v5727, %v5723
      %v7912 = vpack.c.b16 %v5728, %v5724
      %v7913 = vpack.c.b16 %v5733, %v5729
      %v7914 = vpack.c.b16 %v5734, %v5730
      %v7915 = vpack.c.b16 %v5735, %v5731
      %v7916 = vpack.c.b16 %v5736, %v5732
      %v7917 = vpack.c.b16 %v5741, %v5737
      %v7918 = vpack.c.b16 %v5742, %v5738
      %v7919 = vpack.c.b16 %v5743, %v5739
      %v7920 = vpack.c.b16 %v5744, %v5740
      %v7921 = vpack.c.b16 %v5749, %v5745
      %v7922 = vpack.c.b16 %v5750, %v5746
      %v7923 = vpack.c.b16 %v5751, %v5747
      %v7924 = vpack.c.b16 %v5752, %v5748
      %v7925 = vpack.c.b16 %v5757, %v5753
      %v7926 = vpack.c.b16 %v5758, %v5754
      %v7927 = vpack.c.b16 %v5759, %v5755
      %v7928 = vpack.c.b16 %v5760, %v5756
      %v7929 = vpack.c.b16 %v5765, %v5761
      %v7930 = vpack.c.b16 %v5766, %v5762
      %v7931 = vpack.c.b16 %v5767, %v5763
      %v7932 = vpack.c.b16 %v5768, %v5764
      %v7933 = vpack.c.b16 %v5773, %v5769
      %v7934 = vpack.c.b16 %v5774, %v5770
      %v7935 = vpack.c.b16 %v5775, %v5771
      %v7936 = vpack.c.b16 %v5776, %v5772
      %v7937 = vpack.c.b16 %v5781, %v5777
      %v7938 = vpack.c.b16 %v5782, %v5778
      %v7939 = vpack.c.b16 %v5783, %v5779
      %v7940 = vpack.c.b16 %v5784, %v5780
      %v7941 = vpack.c.b16 %v5789, %v5785
      %v7942 = vpack.c.b16 %v5790, %v5786
      %v7943 = vpack.c.b16 %v5791, %v5787
      %v7944 = vpack.c.b16 %v5792, %v5788
      %v7945 = vpack.c.b16 %v5797, %v5793
      %v7946 = vpack.c.b16 %v5798, %v5794
      %v7947 = vpack.c.b16 %v5799, %v5795
      %v7948 = vpack.c.b16 %v5800, %v5796
      %v7949 = vpack.c.b16 %v5805, %v5801
      %v7950 = vpack.c.b16 %v5806, %v5802
      %v7951 = vpack.c.b16 %v5807, %v5803
      %v7952 = vpack.c.b16 %v5808, %v5804
      %v7953 = vpack.c.b16 %v5813, %v5809
      %v7954 = vpack.c.b16 %v5814, %v5810
      %v7955 = vpack.c.b16 %v5815, %v5811
      %v7956 = vpack.c.b16 %v5816, %v5812
      %v7957 = vpack.c.b16 %v5821, %v5817
      %v7958 = vpack.c.b16 %v5822, %v5818
      %v7959 = vpack.c.b16 %v5823, %v5819
      %v7960 = vpack.c.b16 %v5824, %v5820
      %v7961 = vpack.c.b16 %v5829, %v5825
      %v7962 = vpack.c.b16 %v5830, %v5826
      %v7963 = vpack.c.b16 %v5831, %v5827
      %v7964 = vpack.c.b16 %v5832, %v5828
      %v7965 = vpack.c.b16 %v5837, %v5833
      %v7966 = vpack.c.b16 %v5838, %v5834
      %v7967 = vpack.c.b16 %v5839, %v5835
      %v7968 = vpack.c.b16 %v5840, %v5836
      %v7969 = vpack.c.b16 %v5845, %v5841
      %v7970 = vpack.c.b16 %v5846, %v5842
      %v7971 = vpack.c.b16 %v5847, %v5843
      %v7972 = vpack.c.b16 %v5848, %v5844
      %v7973 = vpack.c.b16 %v5853, %v5849
      %v7974 = vpack.c.b16 %v5854, %v5850
      %v7975 = vpack.c.b16 %v5855, %v5851
      %v7976 = vpack.c.b16 %v5856, %v5852
      %v7977 = vpack.c.b16 %v5861, %v5857
      %v7978 = vpack.c.b16 %v5862, %v5858
      %v7979 = vpack.c.b16 %v5863, %v5859
      %v7980 = vpack.c.b16 %v5864, %v5860
      %v7981 = vpack.c.b16 %v5869, %v5865
      %v7982 = vpack.c.b16 %v5870, %v5866
      %v7983 = vpack.c.b16 %v5871, %v5867
      %v7984 = vpack.c.b16 %v5872, %v5868
      %v7985 = vpack.c.b16 %v5877, %v5873
      %v7986 = vpack.c.b16 %v5878, %v5874
      %v7987 = vpack.c.b16 %v5879, %v5875
      %v7988 = vpack.c.b16 %v5880, %v5876
      %v7989 = vpack.c.b16 %v5885, %v5881
      %v7990 = vpack.c.b16 %v5886, %v5882
      %v7991 = vpack.c.b16 %v5887, %v5883
      %v7992 = vpack.c.b16 %v5888, %v5884
      %v7993 = vpack.c.b16 %v5893, %v5889
      %v7994 = vpack.c.b16 %v5894, %v5890
      %v7995 = vpack.c.b16 %v5895, %v5891
      %v7996 = vpack.c.b16 %v5896, %v5892
      %v7997 = vpack.c.b16 %v5901, %v5897
      %v7998 = vpack.c.b16 %v5902, %v5898
      %v7999 = vpack.c.b16 %v5903, %v5899
      %v8000 = vpack.c.b16 %v5904, %v5900
      %v8001 = vpack.c.b16 %v5909, %v5905
      %v8002 = vpack.c.b16 %v5910, %v5906
      %v8003 = vpack.c.b16 %v5911, %v5907
      %v8004 = vpack.c.b16 %v5912, %v5908
      %v8005 = vpack.c.b16 %v5917, %v5913
      %v8006 = vpack.c.b16 %v5918, %v5914
      %v8007 = vpack.c.b16 %v5919, %v5915
      %v8008 = vpack.c.b16 %v5920, %v5916
      %v8009 = vpack.c.b16 %v5925, %v5921
      %v8010 = vpack.c.b16 %v5926, %v5922
      %v8011 = vpack.c.b16 %v5927, %v5923
      %v8012 = vpack.c.b16 %v5928, %v5924
      %v8013 = vpack.c.b16 %v5933, %v5929
      %v8014 = vpack.c.b16 %v5934, %v5930
      %v8015 = vpack.c.b16 %v5935, %v5931
      %v8016 = vpack.c.b16 %v5936, %v5932
      %v8017 = vpack.c.b16 %v5941, %v5937
      %v8018 = vpack.c.b16 %v5942, %v5938
      %v8019 = vpack.c.b16 %v5943, %v5939
      %v8020 = vpack.c.b16 %v5944, %v5940
      %v8021 = vpack.c.b16 %v5949, %v5945
      %v8022 = vpack.c.b16 %v5950, %v5946
      %v8023 = vpack.c.b16 %v5951, %v5947
      %v8024 = vpack.c.b16 %v5952, %v5948
      %v8025 = vpack.c.b16 %v5957, %v5953
      %v8026 = vpack.c.b16 %v5958, %v5954
      %v8027 = vpack.c.b16 %v5959, %v5955
      %v8028 = vpack.c.b16 %v5960, %v5956
      %v8029 = vpack.c.b16 %v5965, %v5961
      %v8030 = vpack.c.b16 %v5966, %v5962
      %v8031 = vpack.c.b16 %v5967, %v5963
      %v8032 = vpack.c.b16 %v5968, %v5964
      %v8033 = vpack.c.b16 %v5973, %v5969
      %v8034 = vpack.c.b16 %v5974, %v5970
      %v8035 = vpack.c.b16 %v5975, %v5971
      %v8036 = vpack.c.b16 %v5976, %v5972
      %v8037 = vpack.c.b16 %v5981, %v5977
      %v8038 = vpack.c.b16 %v5982, %v5978
      %v8039 = vpack.c.b16 %v5983, %v5979
      %v8040 = vpack.c.b16 %v5984, %v5980
      %v8041 = vpack.c.b16 %v5989, %v5985
      %v8042 = vpack.c.b16 %v5990, %v5986
      %v8043 = vpack.c.b16 %v5991, %v5987
      %v8044 = vpack.c.b16 %v5992, %v5988
      %v8045 = vpack.c.b16 %v5997, %v5993
      %v8046 = vpack.c.b16 %v5998, %v5994
      %v8047 = vpack.c.b16 %v5999, %v5995
      %v8048 = vpack.c.b16 %v6000, %v5996
      %v8049 = vpack.c.b16 %v6005, %v6001
      %v8050 = vpack.c.b16 %v6006, %v6002
      %v8051 = vpack.c.b16 %v6007, %v6003
      %v8052 = vpack.c.b16 %v6008, %v6004
      %v8053 = vpack.c.b16 %v6013, %v6009
      %v8054 = vpack.c.b16 %v6014, %v6010
      %v8055 = vpack.c.b16 %v6015, %v6011
      %v8056 = vpack.c.b16 %v6016, %v6012
      %v8057 = vpack.c.b16 %v6021, %v6017
      %v8058 = vpack.c.b16 %v6022, %v6018
      %v8059 = vpack.c.b16 %v6023, %v6019
      %v8060 = vpack.c.b16 %v6024, %v6020
      %v8061 = vpack.c.b16 %v6029, %v6025
      %v8062 = vpack.c.b16 %v6030, %v6026
      %v8063 = vpack.c.b16 %v6031, %v6027
      %v8064 = vpack.c.b16 %v6032, %v6028
      %v8065 = vpack.c.b16 %v6037, %v6033
      %v8066 = vpack.c.b16 %v6038, %v6034
      %v8067 = vpack.c.b16 %v6039, %v6035
      %v8068 = vpack.c.b16 %v6040, %v6036
      %v8069 = vpack.c.b16 %v6045, %v6041
      %v8070 = vpack.c.b16 %v6046, %v6042
      %v8071 = vpack.c.b16 %v6047, %v6043
      %v8072 = vpack.c.b16 %v6048, %v6044
      %v8073 = vpack.c.b16 %v6053, %v6049
      %v8074 = vpack.c.b16 %v6054, %v6050
      %v8075 = vpack.c.b16 %v6055, %v6051
      %v8076 = vpack.c.b16 %v6056, %v6052
      %v8077 = vpack.c.b16 %v6061, %v6057
      %v8078 = vpack.c.b16 %v6062, %v6058
      %v8079 = vpack.c.b16 %v6063, %v6059
      %v8080 = vpack.c.b16 %v6064, %v6060
      %v8081 = vpack.c.b16 %v6069, %v6065
      %v8082 = vpack.c.b16 %v6070, %v6066
      %v8083 = vpack.c.b16 %v6071, %v6067
      %v8084 = vpack.c.b16 %v6072, %v6068
      %v8085 = vpack.c.b16 %v6077, %v6073
      %v8086 = vpack.c.b16 %v6078, %v6074
      %v8087 = vpack.c.b16 %v6079, %v6075
      %v8088 = vpack.c.b16 %v6080, %v6076
      %v8089 = vpack.c.b16 %v6085, %v6081
      %v8090 = vpack.c.b16 %v6086, %v6082
      %v8091 = vpack.c.b16 %v6087, %v6083
      %v8092 = vpack.c.b16 %v6088, %v6084
      %v8093 = vpack.c.b16 %v6093, %v6089
      %v8094 = vpack.c.b16 %v6094, %v6090
      %v8095 = vpack.c.b16 %v6095, %v6091
      %v8096 = vpack.c.b16 %v6096, %v6092
      %v8097 = vpack.c.b16 %v6101, %v6097
      %v8098 = vpack.c.b16 %v6102, %v6098
      %v8099 = vpack.c.b16 %v6103, %v6099
      %v8100 = vpack.c.b16 %v6104, %v6100
      %v8101 = vpack.c.b16 %v6109, %v6105
      %v8102 = vpack.c.b16 %v6110, %v6106
      %v8103 = vpack.c.b16 %v6111, %v6107
      %v8104 = vpack.c.b16 %v6112, %v6108
      %v8105 = vpack.c.b16 %v6117, %v6113
      %v8106 = vpack.c.b16 %v6118, %v6114
      %v8107 = vpack.c.b16 %v6119, %v6115
      %v8108 = vpack.c.b16 %v6120, %v6116
      %v8109 = vpack.c.b16 %v6125, %v6121
      %v8110 = vpack.c.b16 %v6126, %v6122
      %v8111 = vpack.c.b16 %v6127, %v6123
      %v8112 = vpack.c.b16 %v6128, %v6124
      %v8113 = vpack.c.b16 %v6133, %v6129
      %v8114 = vpack.c.b16 %v6134, %v6130
      %v8115 = vpack.c.b16 %v6135, %v6131
      %v8116 = vpack.c.b16 %v6136, %v6132
      %v8117 = vpack.c.b16 %v6141, %v6137
      %v8118 = vpack.c.b16 %v6142, %v6138
      %v8119 = vpack.c.b16 %v6143, %v6139
      %v8120 = vpack.c.b16 %v6144, %v6140
      %v8121 = vpack.c.b16 %v6149, %v6145
      %v8122 = vpack.c.b16 %v6150, %v6146
      %v8123 = vpack.c.b16 %v6151, %v6147
      %v8124 = vpack.c.b16 %v6152, %v6148
      %v8125 = vpack.c.b16 %v6157, %v6153
      %v8126 = vpack.c.b16 %v6158, %v6154
      %v8127 = vpack.c.b16 %v6159, %v6155
      %v8128 = vpack.c.b16 %v6160, %v6156
      %v8129 = vpack.c.b16 %v6165, %v6161
      %v8130 = vpack.c.b16 %v6166, %v6162
      %v8131 = vpack.c.b16 %v6167, %v6163
      %v8132 = vpack.c.b16 %v6168, %v6164
      %v8133 = vpack.c.b16 %v6173, %v6169
      %v8134 = vpack.c.b16 %v6174, %v6170
      %v8135 = vpack.c.b16 %v6175, %v6171
      %v8136 = vpack.c.b16 %v6176, %v6172
      %v8137 = vpack.c.b16 %v6181, %v6177
      %v8138 = vpack.c.b16 %v6182, %v6178
      %v8139 = vpack.c.b16 %v6183, %v6179
      %v8140 = vpack.c.b16 %v6184, %v6180
      %v8141 = vpack.c.b16 %v6189, %v6185
      %v8142 = vpack.c.b16 %v6190, %v6186
      %v8143 = vpack.c.b16 %v6191, %v6187
      %v8144 = vpack.c.b16 %v6192, %v6188
      %v8145 = vpack.c.b16 %v6197, %v6193
      %v8146 = vpack.c.b16 %v6198, %v6194
      %v8147 = vpack.c.b16 %v6199, %v6195
      %v8148 = vpack.c.b16 %v6200, %v6196
      %v8149 = vpack.c.b16 %v6205, %v6201
      %v8150 = vpack.c.b16 %v6206, %v6202
      %v8151 = vpack.c.b16 %v6207, %v6203
      %v8152 = vpack.c.b16 %v6208, %v6204
      %v8153 = vpack.c.b16 %v6213, %v6209
      %v8154 = vpack.c.b16 %v6214, %v6210
      %v8155 = vpack.c.b16 %v6215, %v6211
      %v8156 = vpack.c.b16 %v6216, %v6212
      %v8157 = vpack.c.b16 %v6221, %v6217
      %v8158 = vpack.c.b16 %v6222, %v6218
      %v8159 = vpack.c.b16 %v6223, %v6219
      %v8160 = vpack.c.b16 %v6224, %v6220
      %v8161 = vpack.c.b16 %v6229, %v6225
      %v8162 = vpack.c.b16 %v6230, %v6226
      %v8163 = vpack.c.b16 %v6231, %v6227
      %v8164 = vpack.c.b16 %v6232, %v6228
      %v8165 = vpack.c.b16 %v6237, %v6233
      %v8166 = vpack.c.b16 %v6238, %v6234
      %v8167 = vpack.c.b16 %v6239, %v6235
      %v8168 = vpack.c.b16 %v6240, %v6236
      %v8169 = vpack.c.b16 %v6245, %v6241
      %v8170 = vpack.c.b16 %v6246, %v6242
      %v8171 = vpack.c.b16 %v6247, %v6243
      %v8172 = vpack.c.b16 %v6248, %v6244
      %v8173 = vpack.c.b16 %v6253, %v6249
      %v8174 = vpack.c.b16 %v6254, %v6250
      %v8175 = vpack.c.b16 %v6255, %v6251
      %v8176 = vpack.c.b16 %v6256, %v6252
      %v8177 = vpack.c.b16 %v6261, %v6257
      %v8178 = vpack.c.b16 %v6262, %v6258
      %v8179 = vpack.c.b16 %v6263, %v6259
      %v8180 = vpack.c.b16 %v6264, %v6260
      %v8181 = vpack.c.b16 %v6269, %v6265
      %v8182 = vpack.c.b16 %v6270, %v6266
      %v8183 = vpack.c.b16 %v6271, %v6267
      %v8184 = vpack.c.b16 %v6272, %v6268
      %v8185 = vpack.c.b16 %v6277, %v6273
      %v8186 = vpack.c.b16 %v6278, %v6274
      %v8187 = vpack.c.b16 %v6279, %v6275
      %v8188 = vpack.c.b16 %v6280, %v6276
      %v8189 = vpack.c.b16 %v6285, %v6281
      %v8190 = vpack.c.b16 %v6286, %v6282
      %v8191 = vpack.c.b16 %v6287, %v6283
      %v8192 = vpack.c.b16 %v6288, %v6284
      %v8193 = vpack.c.b16 %v6293, %v6289
      %v8194 = vpack.c.b16 %v6294, %v6290
      %v8195 = vpack.c.b16 %v6295, %v6291
      %v8196 = vpack.c.b16 %v6296, %v6292
      %v8197 = vpack.c.b16 %v6301, %v6297
      %v8198 = vpack.c.b16 %v6302, %v6298
      %v8199 = vpack.c.b16 %v6303, %v6299
      %v8200 = vpack.c.b16 %v6304, %v6300
      %v8201 = vpack.c.b16 %v6309, %v6305
      %v8202 = vpack.c.b16 %v6310, %v6306
      %v8203 = vpack.c.b16 %v6311, %v6307
      %v8204 = vpack.c.b16 %v6312, %v6308
      %v8205 = vpack.c.b16 %v6317, %v6313
      %v8206 = vpack.c.b16 %v6318, %v6314
      %v8207 = vpack.c.b16 %v6319, %v6315
      %v8208 = vpack.c.b16 %v6320, %v6316
      %v8209 = vpack.c.b16 %v6325, %v6321
      %v8210 = vpack.c.b16 %v6326, %v6322
      %v8211 = vpack.c.b16 %v6327, %v6323
      %v8212 = vpack.c.b16 %v6328, %v6324
      %v8213 = vpack.c.b16 %v6333, %v6329
      %v8214 = vpack.c.b16 %v6334, %v6330
      %v8215 = vpack.c.b16 %v6335, %v6331
      %v8216 = vpack.c.b16 %v6336, %v6332
      %v8217 = vpack.c.b16 %v6341, %v6337
      %v8218 = vpack.c.b16 %v6342, %v6338
      %v8219 = vpack.c.b16 %v6343, %v6339
      %v8220 = vpack.c.b16 %v6344, %v6340
      %v8221 = vpack.c.b16 %v6349, %v6345
      %v8222 = vpack.c.b16 %v6350, %v6346
      %v8223 = vpack.c.b16 %v6351, %v6347
      %v8224 = vpack.c.b16 %v6352, %v6348
      %v8225 = vpack.c.b16 %v6357, %v6353
      %v8226 = vpack.c.b16 %v6358, %v6354
      %v8227 = vpack.c.b16 %v6359, %v6355
      %v8228 = vpack.c.b16 %v6360, %v6356
      %v8229 = vpack.c.b16 %v6365, %v6361
      %v8230 = vpack.c.b16 %v6366, %v6362
      %v8231 = vpack.c.b16 %v6367, %v6363
      %v8232 = vpack.c.b16 %v6368, %v6364
      %v8233 = vpack.c.b16 %v6373, %v6369
      %v8234 = vpack.c.b16 %v6374, %v6370
      %v8235 = vpack.c.b16 %v6375, %v6371
      %v8236 = vpack.c.b16 %v6376, %v6372
      %v8237 = vpack.c.b16 %v6381, %v6377
      %v8238 = vpack.c.b16 %v6382, %v6378
      %v8239 = vpack.c.b16 %v6383, %v6379
      %v8240 = vpack.c.b16 %v6384, %v6380
      %v8241 = vpack.c.b16 %v6389, %v6385
      %v8242 = vpack.c.b16 %v6390, %v6386
      %v8243 = vpack.c.b16 %v6391, %v6387
      %v8244 = vpack.c.b16 %v6392, %v6388
      %v8245 = vpack.c.b16 %v6397, %v6393
      %v8246 = vpack.c.b16 %v6398, %v6394
      %v8247 = vpack.c.b16 %v6399, %v6395
      %v8248 = vpack.c.b16 %v6400, %v6396
      %v8249 = vpack.c.b16 %v6405, %v6401
      %v8250 = vpack.c.b16 %v6406, %v6402
      %v8251 = vpack.c.b16 %v6407, %v6403
      %v8252 = vpack.c.b16 %v6408, %v6404
      %v8253 = vpack.c.b16 %v6413, %v6409
      %v8254 = vpack.c.b16 %v6414, %v6410
      %v8255 = vpack.c.b16 %v6415, %v6411
      %v8256 = vpack.c.b16 %v6416, %v6412
      %v8257 = vpack.c.b16 %v6421, %v6417
      %v8258 = vpack.c.b16 %v6422, %v6418
      %v8259 = vpack.c.b16 %v6423, %v6419
      %v8260 = vpack.c.b16 %v6424, %v6420
      %v8261 = vpack.c.b16 %v6429, %v6425
      %v8262 = vpack.c.b16 %v6430, %v6426
      %v8263 = vpack.c.b16 %v6431, %v6427
      %v8264 = vpack.c.b16 %v6432, %v6428
      %v8265 = vpack.c.b16 %v6437, %v6433
      %v8266 = vpack.c.b16 %v6438, %v6434
      %v8267 = vpack.c.b16 %v6439, %v6435
      %v8268 = vpack.c.b16 %v6440, %v6436
      %v8269 = vpack.c.b16 %v6445, %v6441
      %v8270 = vpack.c.b16 %v6446, %v6442
      %v8271 = vpack.c.b16 %v6447, %v6443
      %v8272 = vpack.c.b16 %v6448, %v6444
      %v8273 = vpack.c.b16 %v6453, %v6449
      %v8274 = vpack.c.b16 %v6454, %v6450
      %v8275 = vpack.c.b16 %v6455, %v6451
      %v8276 = vpack.c.b16 %v6456, %v6452
      %v8277 = vpack.c.b16 %v6461, %v6457
      %v8278 = vpack.c.b16 %v6462, %v6458
      %v8279 = vpack.c.b16 %v6463, %v6459
      %v8280 = vpack.c.b16 %v6464, %v6460
      %v8281 = vpack.c.b16 %v6469, %v6465
      %v8282 = vpack.c.b16 %v6470, %v6466
      %v8283 = vpack.c.b16 %v6471, %v6467
      %v8284 = vpack.c.b16 %v6472, %v6468
      %v8285 = vpack.c.b16 %v6477, %v6473
      %v8286 = vpack.c.b16 %v6478, %v6474
      %v8287 = vpack.c.b16 %v6479, %v6475
      %v8288 = vpack.c.b16 %v6480, %v6476
      %v8289 = vpack.c.b16 %v6485, %v6481
      %v8290 = vpack.c.b16 %v6486, %v6482
      %v8291 = vpack.c.b16 %v6487, %v6483
      %v8292 = vpack.c.b16 %v6488, %v6484
      %v8293 = vpack.c.b16 %v6493, %v6489
      %v8294 = vpack.c.b16 %v6494, %v6490
      %v8295 = vpack.c.b16 %v6495, %v6491
      %v8296 = vpack.c.b16 %v6496, %v6492
      %v8297 = vpack.c.b16 %v6501, %v6497
      %v8298 = vpack.c.b16 %v6502, %v6498
      %v8299 = vpack.c.b16 %v6503, %v6499
      %v8300 = vpack.c.b16 %v6504, %v6500
      %v8301 = vpack.c.b16 %v6509, %v6505
      %v8302 = vpack.c.b16 %v6510, %v6506
      %v8303 = vpack.c.b16 %v6511, %v6507
      %v8304 = vpack.c.b16 %v6512, %v6508
      %v8305 = vpack.c.b16 %v6517, %v6513
      %v8306 = vpack.c.b16 %v6518, %v6514
      %v8307 = vpack.c.b16 %v6519, %v6515
      %v8308 = vpack.c.b16 %v6520, %v6516
      %v8309 = vpack.c.b16 %v6525, %v6521
      %v8310 = vpack.c.b16 %v6526, %v6522
      %v8311 = vpack.c.b16 %v6527, %v6523
      %v8312 = vpack.c.b16 %v6528, %v6524
      %v8313 = vpack.c.b16 %v6533, %v6529
      %v8314 = vpack.c.b16 %v6534, %v6530
      %v8315 = vpack.c.b16 %v6535, %v6531
      %v8316 = vpack.c.b16 %v6536, %v6532
      %v8317 = vpack.c.b16 %v6541, %v6537
      %v8318 = vpack.c.b16 %v6542, %v6538
      %v8319 = vpack.c.b16 %v6543, %v6539
      %v8320 = vpack.c.b16 %v6544, %v6540
      %v8321 = vpack.c.b16 %v6549, %v6545
      %v8322 = vpack.c.b16 %v6550, %v6546
      %v8323 = vpack.c.b16 %v6551, %v6547
      %v8324 = vpack.c.b16 %v6552, %v6548
      %v8325 = vpack.c.b16 %v6557, %v6553
      %v8326 = vpack.c.b16 %v6558, %v6554
      %v8327 = vpack.c.b16 %v6559, %v6555
      %v8328 = vpack.c.b16 %v6560, %v6556
      %v8329 = vpack.c.b16 %v6565, %v6561
      %v8330 = vpack.c.b16 %v6566, %v6562
      %v8331 = vpack.c.b16 %v6567, %v6563
      %v8332 = vpack.c.b16 %v6568, %v6564
      %v8333 = vpack.c.b16 %v6573, %v6569
      %v8334 = vpack.c.b16 %v6574, %v6570
      %v8335 = vpack.c.b16 %v6575, %v6571
      %v8336 = vpack.c.b16 %v6576, %v6572
      %v8337 = vpack.c.b16 %v6581, %v6577
      %v8338 = vpack.c.b16 %v6582, %v6578
      %v8339 = vpack.c.b16 %v6583, %v6579
      %v8340 = vpack.c.b16 %v6584, %v6580
      %v8341 = vpack.c.b16 %v6589, %v6585
      %v8342 = vpack.c.b16 %v6590, %v6586
      %v8343 = vpack.c.b16 %v6591, %v6587
      %v8344 = vpack.c.b16 %v6592, %v6588
      %v8345 = vpack.c.b16 %v6597, %v6593
      %v8346 = vpack.c.b16 %v6598, %v6594
      %v8347 = vpack.c.b16 %v6599, %v6595
      %v8348 = vpack.c.b16 %v6600, %v6596
      %v8349 = vpack.c.b16 %v6605, %v6601
      %v8350 = vpack.c.b16 %v6606, %v6602
      %v8351 = vpack.c.b16 %v6607, %v6603
      %v8352 = vpack.c.b16 %v6608, %v6604
      %v8353 = vpack.c.b16 %v6613, %v6609
      %v8354 = vpack.c.b16 %v6614, %v6610
      %v8355 = vpack.c.b16 %v6615, %v6611
      %v8356 = vpack.c.b16 %v6616, %v6612
      %v8357 = vpack.c.b16 %v6621, %v6617
      %v8358 = vpack.c.b16 %v6622, %v6618
      %v8359 = vpack.c.b16 %v6623, %v6619
      %v8360 = vpack.c.b16 %v6624, %v6620
      %v8361 = vpack.c.b16 %v6629, %v6625
      %v8362 = vpack.c.b16 %v6630, %v6626
      %v8363 = vpack.c.b16 %v6631, %v6627
      %v8364 = vpack.c.b16 %v6632, %v6628
      %v8365 = vpack.c.b16 %v6637, %v6633
      %v8366 = vpack.c.b16 %v6638, %v6634
      %v8367 = vpack.c.b16 %v6639, %v6635
      %v8368 = vpack.c.b16 %v6640, %v6636
      %v8369 = vpack.c.b16 %v6645, %v6641
      %v8370 = vpack.c.b16 %v6646, %v6642
      %v8371 = vpack.c.b16 %v6647, %v6643
      %v8372 = vpack.c.b16 %v6648, %v6644
      %v8373 = vpack.c.b16 %v6653, %v6649
      %v8374 = vpack.c.b16 %v6654, %v6650
      %v8375 = vpack.c.b16 %v6655, %v6651
      %v8376 = vpack.c.b16 %v6656, %v6652
      %v8377 = vpack.c.b16 %v6661, %v6657
      %v8378 = vpack.c.b16 %v6662, %v6658
      %v8379 = vpack.c.b16 %v6663, %v6659
      %v8380 = vpack.c.b16 %v6664, %v6660
      %v8381 = vpack.c.b16 %v6669, %v6665
      %v8382 = vpack.c.b16 %v6670, %v6666
      %v8383 = vpack.c.b16 %v6671, %v6667
      %v8384 = vpack.c.b16 %v6672, %v6668
      %v8385 = vpack.c.b16 %v6677, %v6673
      %v8386 = vpack.c.b16 %v6678, %v6674
      %v8387 = vpack.c.b16 %v6679, %v6675
      %v8388 = vpack.c.b16 %v6680, %v6676
      %v8389 = vpack.c.b16 %v6685, %v6681
      %v8390 = vpack.c.b16 %v6686, %v6682
      %v8391 = vpack.c.b16 %v6687, %v6683
      %v8392 = vpack.c.b16 %v6688, %v6684
      %v8393 = vpack.c.b16 %v6693, %v6689
      %v8394 = vpack.c.b16 %v6694, %v6690
      %v8395 = vpack.c.b16 %v6695, %v6691
      %v8396 = vpack.c.b16 %v6696, %v6692
      %v8397 = vpack.c.b16 %v6701, %v6697
      %v8398 = vpack.c.b16 %v6702, %v6698
      %v8399 = vpack.c.b16 %v6703, %v6699
      %v8400 = vpack.c.b16 %v6704, %v6700
      %v8401 = vpack.c.b16 %v6709, %v6705
      %v8402 = vpack.c.b16 %v6710, %v6706
      %v8403 = vpack.c.b16 %v6711, %v6707
      %v8404 = vpack.c.b16 %v6712, %v6708
      %v8405 = vpack.c.b16 %v6717, %v6713
      %v8406 = vpack.c.b16 %v6718, %v6714
      %v8407 = vpack.c.b16 %v6719, %v6715
      %v8408 = vpack.c.b16 %v6720, %v6716
      %v8409 = vpack.c.b16 %v6725, %v6721
      %v8410 = vpack.c.b16 %v6726, %v6722
      %v8411 = vpack.c.b16 %v6727, %v6723
      %v8412 = vpack.c.b16 %v6728, %v6724
      %v8413 = vpack.c.b16 %v6733, %v6729
      %v8414 = vpack.c.b16 %v6734, %v6730
      %v8415 = vpack.c.b16 %v6735, %v6731
      %v8416 = vpack.c.b16 %v6736, %v6732
      %v8417 = vpack.c.b16 %v6741, %v6737
      %v8418 = vpack.c.b16 %v6742, %v6738
      %v8419 = vpack.c.b16 %v6743, %v6739
      %v8420 = vpack.c.b16 %v6744, %v6740
      %v8421 = vpack.c.b16 %v6749, %v6745
      %v8422 = vpack.c.b16 %v6750, %v6746
      %v8423 = vpack.c.b16 %v6751, %v6747
      %v8424 = vpack.c.b16 %v6752, %v6748
      %v8425 = vpack.c.b16 %v6757, %v6753
      %v8426 = vpack.c.b16 %v6758, %v6754
      %v8427 = vpack.c.b16 %v6759, %v6755
      %v8428 = vpack.c.b16 %v6760, %v6756
      %v8429 = vpack.c.b16 %v6765, %v6761
      %v8430 = vpack.c.b16 %v6766, %v6762
      %v8431 = vpack.c.b16 %v6767, %v6763
      %v8432 = vpack.c.b16 %v6768, %v6764
      %v8433 = vpack.c.b16 %v6773, %v6769
      %v8434 = vpack.c.b16 %v6774, %v6770
      %v8435 = vpack.c.b16 %v6775, %v6771
      %v8436 = vpack.c.b16 %v6776, %v6772
      %v8437 = vpack.c.b16 %v6781, %v6777
      %v8438 = vpack.c.b16 %v6782, %v6778
      %v8439 = vpack.c.b16 %v6783, %v6779
      %v8440 = vpack.c.b16 %v6784, %v6780
      %v8441 = vpack.c.b16 %v6789, %v6785
      %v8442 = vpack.c.b16 %v6790, %v6786
      %v8443 = vpack.c.b16 %v6791, %v6787
      %v8444 = vpack.c.b16 %v6792, %v6788
      %v8445 = vpack.c.b16 %v6797, %v6793
      %v8446 = vpack.c.b16 %v6798, %v6794
      %v8447 = vpack.c.b16 %v6799, %v6795
      %v8448 = vpack.c.b16 %v6800, %v6796
      %v8449 = vpack.c.b16 %v6805, %v6801
      %v8450 = vpack.c.b16 %v6806, %v6802
      %v8451 = vpack.c.b16 %v6807, %v6803
      %v8452 = vpack.c.b16 %v6808, %v6804
      %v8453 = vpack.c.b16 %v6813, %v6809
      %v8454 = vpack.c.b16 %v6814, %v6810
      %v8455 = vpack.c.b16 %v6815, %v6811
      %v8456 = vpack.c.b16 %v6816, %v6812
      %v8457 = vpack.c.b16 %v6821, %v6817
      %v8458 = vpack.c.b16 %v6822, %v6818
      %v8459 = vpack.c.b16 %v6823, %v6819
      %v8460 = vpack.c.b16 %v6824, %v6820
      %v8461 = vpack.c.b16 %v6829, %v6825
      %v8462 = vpack.c.b16 %v6830, %v6826
      %v8463 = vpack.c.b16 %v6831, %v6827
      %v8464 = vpack.c.b16 %v6832, %v6828
      %v8465 = vpack.c.b16 %v6837, %v6833
      %v8466 = vpack.c.b16 %v6838, %v6834
      %v8467 = vpack.c.b16 %v6839, %v6835
      %v8468 = vpack.c.b16 %v6840, %v6836
      %v8469 = vpack.c.b16 %v6845, %v6841
      %v8470 = vpack.c.b16 %v6846, %v6842
      %v8471 = vpack.c.b16 %v6847, %v6843
      %v8472 = vpack.c.b16 %v6848, %v6844
      %v8473 = vpack.c.b16 %v6853, %v6849
      %v8474 = vpack.c.b16 %v6854, %v6850
      %v8475 = vpack.c.b16 %v6855, %v6851
      %v8476 = vpack.c.b16 %v6856, %v6852
      %v8477 = vpack.c.b16 %v6861, %v6857
      %v8478 = vpack.c.b16 %v6862, %v6858
      %v8479 = vpack.c.b16 %v6863, %v6859
      %v8480 = vpack.c.b16 %v6864, %v6860
      %v8481 = vpack.c.b16 %v6869, %v6865
      %v8482 = vpack.c.b16 %v6870, %v6866
      %v8483 = vpack.c.b16 %v6871, %v6867
      %v8484 = vpack.c.b16 %v6872, %v6868
      %v8485 = vpack.c.b16 %v6877, %v6873
      %v8486 = vpack.c.b16 %v6878, %v6874
      %v8487 = vpack.c.b16 %v6879, %v6875
      %v8488 = vpack.c.b16 %v6880, %v6876
      %v8489 = vpack.c.b16 %v6885, %v6881
      %v8490 = vpack.c.b16 %v6886, %v6882
      %v8491 = vpack.c.b16 %v6887, %v6883
      %v8492 = vpack.c.b16 %v6888, %v6884
      %v8493 = vpack.c.b16 %v6893, %v6889
      %v8494 = vpack.c.b16 %v6894, %v6890
      %v8495 = vpack.c.b16 %v6895, %v6891
      %v8496 = vpack.c.b16 %v6896, %v6892
      %v8497 = vpack.c.b16 %v6901, %v6897
      %v8498 = vpack.c.b16 %v6902, %v6898
      %v8499 = vpack.c.b16 %v6903, %v6899
      %v8500 = vpack.c.b16 %v6904, %v6900
      %v8501 = vpack.c.b16 %v6909, %v6905
      %v8502 = vpack.c.b16 %v6910, %v6906
      %v8503 = vpack.c.b16 %v6911, %v6907
      %v8504 = vpack.c.b16 %v6912, %v6908
      %v8505 = vpack.c.b16 %v6917, %v6913
      %v8506 = vpack.c.b16 %v6918, %v6914
      %v8507 = vpack.c.b16 %v6919, %v6915
      %v8508 = vpack.c.b16 %v6920, %v6916
      %v8509 = vpack.c.b16 %v6925, %v6921
      %v8510 = vpack.c.b16 %v6926, %v6922
      %v8511 = vpack.c.b16 %v6927, %v6923
      %v8512 = vpack.c.b16 %v6928, %v6924
      %v8513 = vpack.c.b16 %v6933, %v6929
      %v8514 = vpack.c.b16 %v6934, %v6930
      %v8515 = vpack.c.b16 %v6935, %v6931
      %v8516 = vpack.c.b16 %v6936, %v6932
      %v8517 = vpack.c.b16 %v6941, %v6937
      %v8518 = vpack.c.b16 %v6942, %v6938
      %v8519 = vpack.c.b16 %v6943, %v6939
      %v8520 = vpack.c.b16 %v6944, %v6940
      %v8521 = vpack.c.b16 %v6949, %v6945
      %v8522 = vpack.c.b16 %v6950, %v6946
      %v8523 = vpack.c.b16 %v6951, %v6947
      %v8524 = vpack.c.b16 %v6952, %v6948
      %v8525 = vpack.c.b16 %v6957, %v6953
      %v8526 = vpack.c.b16 %v6958, %v6954
      %v8527 = vpack.c.b16 %v6959, %v6955
      %v8528 = vpack.c.b16 %v6960, %v6956
      %10097 = vmatprep.subr.bf16.mxu0 %v6990
      %10098 = vmatpush1.bf16.msra.mxu0 %v6989
      %10099 = vmatprep.subr.bf16.mxu0 %v6986
      %10100 = vmatpush1.bf16.msra.mxu0 %v6985
      %10101 = vmatprep.subr.bf16.mxu0 %v6982
      %10102 = vmatpush1.bf16.msra.mxu0 %v6981
      %10103 = vmatprep.subr.bf16.mxu0 %v6978
      %10104 = vmatpush1.bf16.msra.mxu0 %v6977
      %10105 = vmatprep.subr.bf16.mxu0 %v6974
      %10106 = vmatpush1.bf16.msra.mxu0 %v6973
      %10107 = vmatprep.subr.bf16.mxu0 %v6970
      %10108 = vmatpush1.bf16.msra.mxu0 %v6969
      %10109 = vmatprep.subr.bf16.mxu0 %v6966
      %10110 = vmatpush1.bf16.msra.mxu0 %v6965
      %10111 = vmatprep.subr.bf16.mxu0 %v6962
      %10112 = vmatpush1.bf16.msra.mxu0 %v6961
      %10113 = vmatprep.subr.bf16.mxu0 %v7022
      %10114 = vmatpush2.bf16.msra.mxu0 %v7021
      %10115 = vmatprep.subr.bf16.mxu0 %v7018
      %10116 = vmatpush2.bf16.msra.mxu0 %v7017
      %10117 = vmatprep.subr.bf16.mxu0 %v7014
      %10118 = vmatpush2.bf16.msra.mxu0 %v7013
      %10119 = vmatprep.subr.bf16.mxu0 %v7010
      %10120 = vmatpush2.bf16.msra.mxu0 %v7009
      %10121 = vmatprep.subr.bf16.mxu0 %v7006
      %10122 = vmatpush2.bf16.msra.mxu0 %v7005
      %10123 = vmatprep.subr.bf16.mxu0 %v7002
      %10124 = vmatpush2.bf16.msra.mxu0 %v7001
      %10125 = vmatprep.subr.bf16.mxu0 %v6998
      %10126 = vmatpush2.bf16.msra.mxu0 %v6997
      %10127 = vmatprep.subr.bf16.mxu0 %v6994
      %10128 = vmatpush2.bf16.msra.mxu0 %v6993
      %10129 = vmatprep.mubr.bf16.mxu0 %v1937
      %10130 = vmatmul.mubr.bf16.gmra.mxu0 %v1923
      %v10131 = vpop.f32.mrf.mxu0
      %v10132 = vadd.f32 0.0, %v10131
      %v10133 = vpop.f32.mrf.mxu0
      %v10134 = vadd.f32 0.0, %v10133
      %v10135 = vpop.f32.mrf.mxu0
      %v10136 = vpop.f32.mrf.mxu0
      %10137 = vdwg.mxu0
      %10138 = vmatprep.subr.bf16.mxu0 %v7054
      %10139 = vmatpush1.bf16.msra.mxu0 %v7053
      %10140 = vmatprep.subr.bf16.mxu0 %v7050
      %10141 = vmatpush1.bf16.msra.mxu0 %v7049
      %10142 = vmatprep.subr.bf16.mxu0 %v7046
      %10143 = vmatpush1.bf16.msra.mxu0 %v7045
      %10144 = vmatprep.subr.bf16.mxu0 %v7042
      %10145 = vmatpush1.bf16.msra.mxu0 %v7041
      %10146 = vmatprep.subr.bf16.mxu0 %v7038
      %10147 = vmatpush1.bf16.msra.mxu0 %v7037
      %10148 = vmatprep.subr.bf16.mxu0 %v7034
      %10149 = vmatpush1.bf16.msra.mxu0 %v7033
      %10150 = vmatprep.subr.bf16.mxu0 %v7030
      %10151 = vmatpush1.bf16.msra.mxu0 %v7029
      %10152 = vmatprep.subr.bf16.mxu0 %v7026
      %10153 = vmatpush1.bf16.msra.mxu0 %v7025
      %10154 = vmatprep.subr.bf16.mxu0 %v7086
      %10155 = vmatpush2.bf16.msra.mxu0 %v7085
      %10156 = vmatprep.subr.bf16.mxu0 %v7082
      %10157 = vmatpush2.bf16.msra.mxu0 %v7081
      %10158 = vmatprep.subr.bf16.mxu0 %v7078
      %10159 = vmatpush2.bf16.msra.mxu0 %v7077
      %10160 = vmatprep.subr.bf16.mxu0 %v7074
      %10161 = vmatpush2.bf16.msra.mxu0 %v7073
      %10162 = vmatprep.subr.bf16.mxu0 %v7070
      %10163 = vmatpush2.bf16.msra.mxu0 %v7069
      %10164 = vmatprep.subr.bf16.mxu0 %v7066
      %10165 = vmatpush2.bf16.msra.mxu0 %v7065
      %10166 = vmatprep.subr.bf16.mxu0 %v7062
      %10167 = vmatpush2.bf16.msra.mxu0 %v7061
      %10168 = vmatprep.subr.bf16.mxu0 %v7058
      %10169 = vmatpush2.bf16.msra.mxu0 %v7057
      %10170 = vmatprep.mubr.bf16.mxu0 %v1947
      %10171 = vmatmul.mubr.bf16.gmra.mxu0 %v1945
      %v10172 = vpop.f32.mrf.mxu0
      %v10173 = vadd.f32 %v10132, %v10172
      %v10174 = vpop.f32.mrf.mxu0
      %v10175 = vadd.f32 %v10134, %v10174
      %v10176 = vpop.f32.mrf.mxu0
      %v10177 = vpop.f32.mrf.mxu0
      %10178 = vdwg.mxu0
      %10179 = vmatprep.subr.bf16.mxu0 %v7118
      %10180 = vmatpush1.bf16.msra.mxu0 %v7117
      %10181 = vmatprep.subr.bf16.mxu0 %v7114
      %10182 = vmatpush1.bf16.msra.mxu0 %v7113
      %10183 = vmatprep.subr.bf16.mxu0 %v7110
      %10184 = vmatpush1.bf16.msra.mxu0 %v7109
      %10185 = vmatprep.subr.bf16.mxu0 %v7106
      %10186 = vmatpush1.bf16.msra.mxu0 %v7105
      %10187 = vmatprep.subr.bf16.mxu0 %v7102
      %10188 = vmatpush1.bf16.msra.mxu0 %v7101
      %10189 = vmatprep.subr.bf16.mxu0 %v7098
      %10190 = vmatpush1.bf16.msra.mxu0 %v7097
      %10191 = vmatprep.subr.bf16.mxu0 %v7094
      %10192 = vmatpush1.bf16.msra.mxu0 %v7093
      %10193 = vmatprep.subr.bf16.mxu0 %v7090
      %10194 = vmatpush1.bf16.msra.mxu0 %v7089
      %10195 = vmatprep.subr.bf16.mxu0 %v7150
      %10196 = vmatpush2.bf16.msra.mxu0 %v7149
      %10197 = vmatprep.subr.bf16.mxu0 %v7146
      %10198 = vmatpush2.bf16.msra.mxu0 %v7145
      %10199 = vmatprep.subr.bf16.mxu0 %v7142
      %10200 = vmatpush2.bf16.msra.mxu0 %v7141
      %10201 = vmatprep.subr.bf16.mxu0 %v7138
      %10202 = vmatpush2.bf16.msra.mxu0 %v7137
      %10203 = vmatprep.subr.bf16.mxu0 %v7134
      %10204 = vmatpush2.bf16.msra.mxu0 %v7133
      %10205 = vmatprep.subr.bf16.mxu0 %v7130
      %10206 = vmatpush2.bf16.msra.mxu0 %v7129
      %10207 = vmatprep.subr.bf16.mxu0 %v7126
      %10208 = vmatpush2.bf16.msra.mxu0 %v7125
      %10209 = vmatprep.subr.bf16.mxu0 %v7122
      %10210 = vmatpush2.bf16.msra.mxu0 %v7121
      %10211 = vmatprep.mubr.bf16.mxu0 %v1944
      %10212 = vmatmul.mubr.bf16.gmra.mxu0 %v1930
      %v10213 = vpop.f32.mrf.mxu0
      %v10214 = vadd.f32 %v10173, %v10213
      %v10215 = vpop.f32.mrf.mxu0
      %v10216 = vadd.f32 %v10175, %v10215
      %v10217 = vpop.f32.mrf.mxu0
      %v10218 = vpop.f32.mrf.mxu0
      %10219 = vdwg.mxu0
      %10220 = vmatprep.subr.bf16.mxu0 %v7182
      %10221 = vmatpush1.bf16.msra.mxu0 %v7181
      %10222 = vmatprep.subr.bf16.mxu0 %v7178
      %10223 = vmatpush1.bf16.msra.mxu0 %v7177
      %10224 = vmatprep.subr.bf16.mxu0 %v7174
      %10225 = vmatpush1.bf16.msra.mxu0 %v7173
      %10226 = vmatprep.subr.bf16.mxu0 %v7170
      %10227 = vmatpush1.bf16.msra.mxu0 %v7169
      %10228 = vmatprep.subr.bf16.mxu0 %v7166
      %10229 = vmatpush1.bf16.msra.mxu0 %v7165
      %10230 = vmatprep.subr.bf16.mxu0 %v7162
      %10231 = vmatpush1.bf16.msra.mxu0 %v7161
      %10232 = vmatprep.subr.bf16.mxu0 %v7158
      %10233 = vmatpush1.bf16.msra.mxu0 %v7157
      %10234 = vmatprep.subr.bf16.mxu0 %v7154
      %10235 = vmatpush1.bf16.msra.mxu0 %v7153
      %10236 = vmatprep.subr.bf16.mxu0 %v7214
      %10237 = vmatpush2.bf16.msra.mxu0 %v7213
      %10238 = vmatprep.subr.bf16.mxu0 %v7210
      %10239 = vmatpush2.bf16.msra.mxu0 %v7209
      %10240 = vmatprep.subr.bf16.mxu0 %v7206
      %10241 = vmatpush2.bf16.msra.mxu0 %v7205
      %10242 = vmatprep.subr.bf16.mxu0 %v7202
      %10243 = vmatpush2.bf16.msra.mxu0 %v7201
      %10244 = vmatprep.subr.bf16.mxu0 %v7198
      %10245 = vmatpush2.bf16.msra.mxu0 %v7197
      %10246 = vmatprep.subr.bf16.mxu0 %v7194
      %10247 = vmatpush2.bf16.msra.mxu0 %v7193
      %10248 = vmatprep.subr.bf16.mxu0 %v7190
      %10249 = vmatpush2.bf16.msra.mxu0 %v7189
      %10250 = vmatprep.subr.bf16.mxu0 %v7186
      %10251 = vmatpush2.bf16.msra.mxu0 %v7185
      %10252 = vmatprep.mubr.bf16.mxu0 %v1948
      %10253 = vmatmul.mubr.bf16.gmra.mxu0 %v1946
      %v10254 = vpop.f32.mrf.mxu0
      %v10255 = vadd.f32 %v10214, %v10254
      %v10256 = vpop.f32.mrf.mxu0
      %v10257 = vadd.f32 %v10216, %v10256
      %v10258 = vpop.f32.mrf.mxu0
      %v10259 = vpop.f32.mrf.mxu0
      %10260 = vdwg.mxu0
      %10261 = vmatprep.subr.bf16.mxu0 %v7246
      %10262 = vmatpush1.bf16.msra.mxu0 %v7245
      %10263 = vmatprep.subr.bf16.mxu0 %v7242
      %10264 = vmatpush1.bf16.msra.mxu0 %v7241
      %10265 = vmatprep.subr.bf16.mxu0 %v7238
      %10266 = vmatpush1.bf16.msra.mxu0 %v7237
      %10267 = vmatprep.subr.bf16.mxu0 %v7234
      %10268 = vmatpush1.bf16.msra.mxu0 %v7233
      %10269 = vmatprep.subr.bf16.mxu0 %v7230
      %10270 = vmatpush1.bf16.msra.mxu0 %v7229
      %10271 = vmatprep.subr.bf16.mxu0 %v7226
      %10272 = vmatpush1.bf16.msra.mxu0 %v7225
      %10273 = vmatprep.subr.bf16.mxu0 %v7222
      %10274 = vmatpush1.bf16.msra.mxu0 %v7221
      %10275 = vmatprep.subr.bf16.mxu0 %v7218
      %10276 = vmatpush1.bf16.msra.mxu0 %v7217
      %10277 = vmatprep.subr.bf16.mxu0 %v7278
      %10278 = vmatpush2.bf16.msra.mxu0 %v7277
      %10279 = vmatprep.subr.bf16.mxu0 %v7274
      %10280 = vmatpush2.bf16.msra.mxu0 %v7273
      %10281 = vmatprep.subr.bf16.mxu0 %v7270
      %10282 = vmatpush2.bf16.msra.mxu0 %v7269
      %10283 = vmatprep.subr.bf16.mxu0 %v7266
      %10284 = vmatpush2.bf16.msra.mxu0 %v7265
      %10285 = vmatprep.subr.bf16.mxu0 %v7262
      %10286 = vmatpush2.bf16.msra.mxu0 %v7261
      %10287 = vmatprep.subr.bf16.mxu0 %v7258
      %10288 = vmatpush2.bf16.msra.mxu0 %v7257
      %10289 = vmatprep.subr.bf16.mxu0 %v7254
      %10290 = vmatpush2.bf16.msra.mxu0 %v7253
      %10291 = vmatprep.subr.bf16.mxu0 %v7250
      %10292 = vmatpush2.bf16.msra.mxu0 %v7249
      %10293 = vmatprep.mubr.bf16.mxu0 %v1986
      %10294 = vmatmul.mubr.bf16.gmra.mxu0 %v1972
      %v10295 = vpop.f32.mrf.mxu0
      %v10296 = vadd.f32 %v10255, %v10295
      %v10297 = vpop.f32.mrf.mxu0
      %v10298 = vadd.f32 %v10257, %v10297
      %v10299 = vpop.f32.mrf.mxu0
      %v10300 = vpop.f32.mrf.mxu0
      %10301 = vdwg.mxu0
      %10302 = vmatprep.subr.bf16.mxu0 %v7310
      %10303 = vmatpush1.bf16.msra.mxu0 %v7309
      %10304 = vmatprep.subr.bf16.mxu0 %v7306
      %10305 = vmatpush1.bf16.msra.mxu0 %v7305
      %10306 = vmatprep.subr.bf16.mxu0 %v7302
      %10307 = vmatpush1.bf16.msra.mxu0 %v7301
      %10308 = vmatprep.subr.bf16.mxu0 %v7298
      %10309 = vmatpush1.bf16.msra.mxu0 %v7297
      %10310 = vmatprep.subr.bf16.mxu0 %v7294
      %10311 = vmatpush1.bf16.msra.mxu0 %v7293
      %10312 = vmatprep.subr.bf16.mxu0 %v7290
      %10313 = vmatpush1.bf16.msra.mxu0 %v7289
      %10314 = vmatprep.subr.bf16.mxu0 %v7286
      %10315 = vmatpush1.bf16.msra.mxu0 %v7285
      %10316 = vmatprep.subr.bf16.mxu0 %v7282
      %10317 = vmatpush1.bf16.msra.mxu0 %v7281
      %10318 = vmatprep.subr.bf16.mxu0 %v7342
      %10319 = vmatpush2.bf16.msra.mxu0 %v7341
      %10320 = vmatprep.subr.bf16.mxu0 %v7338
      %10321 = vmatpush2.bf16.msra.mxu0 %v7337
      %10322 = vmatprep.subr.bf16.mxu0 %v7334
      %10323 = vmatpush2.bf16.msra.mxu0 %v7333
      %10324 = vmatprep.subr.bf16.mxu0 %v7330
      %10325 = vmatpush2.bf16.msra.mxu0 %v7329
      %10326 = vmatprep.subr.bf16.mxu0 %v7326
      %10327 = vmatpush2.bf16.msra.mxu0 %v7325
      %10328 = vmatprep.subr.bf16.mxu0 %v7322
      %10329 = vmatpush2.bf16.msra.mxu0 %v7321
      %10330 = vmatprep.subr.bf16.mxu0 %v7318
      %10331 = vmatpush2.bf16.msra.mxu0 %v7317
      %10332 = vmatprep.subr.bf16.mxu0 %v7314
      %10333 = vmatpush2.bf16.msra.mxu0 %v7313
      %10334 = vmatprep.mubr.bf16.mxu0 %v1996
      %10335 = vmatmul.mubr.bf16.gmra.mxu0 %v1994
      %v10336 = vpop.f32.mrf.mxu0
      %v10337 = vadd.f32 %v10296, %v10336
      %v10338 = vpop.f32.mrf.mxu0
      %v10339 = vadd.f32 %v10298, %v10338
      %v10340 = vpop.f32.mrf.mxu0
      %v10341 = vpop.f32.mrf.mxu0
      %10342 = vdwg.mxu0
      %10343 = vmatprep.subr.bf16.mxu0 %v7374
      %10344 = vmatpush1.bf16.msra.mxu0 %v7373
      %10345 = vmatprep.subr.bf16.mxu0 %v7370
      %10346 = vmatpush1.bf16.msra.mxu0 %v7369
      %10347 = vmatprep.subr.bf16.mxu0 %v7366
      %10348 = vmatpush1.bf16.msra.mxu0 %v7365
      %10349 = vmatprep.subr.bf16.mxu0 %v7362
      %10350 = vmatpush1.bf16.msra.mxu0 %v7361
      %10351 = vmatprep.subr.bf16.mxu0 %v7358
      %10352 = vmatpush1.bf16.msra.mxu0 %v7357
      %10353 = vmatprep.subr.bf16.mxu0 %v7354
      %10354 = vmatpush1.bf16.msra.mxu0 %v7353
      %10355 = vmatprep.subr.bf16.mxu0 %v7350
      %10356 = vmatpush1.bf16.msra.mxu0 %v7349
      %10357 = vmatprep.subr.bf16.mxu0 %v7346
      %10358 = vmatpush1.bf16.msra.mxu0 %v7345
      %10359 = vmatprep.subr.bf16.mxu0 %v7406
      %10360 = vmatpush2.bf16.msra.mxu0 %v7405
      %10361 = vmatprep.subr.bf16.mxu0 %v7402
      %10362 = vmatpush2.bf16.msra.mxu0 %v7401
      %10363 = vmatprep.subr.bf16.mxu0 %v7398
      %10364 = vmatpush2.bf16.msra.mxu0 %v7397
      %10365 = vmatprep.subr.bf16.mxu0 %v7394
      %10366 = vmatpush2.bf16.msra.mxu0 %v7393
      %10367 = vmatprep.subr.bf16.mxu0 %v7390
      %10368 = vmatpush2.bf16.msra.mxu0 %v7389
      %10369 = vmatprep.subr.bf16.mxu0 %v7386
      %10370 = vmatpush2.bf16.msra.mxu0 %v7385
      %10371 = vmatprep.subr.bf16.mxu0 %v7382
      %10372 = vmatpush2.bf16.msra.mxu0 %v7381
      %10373 = vmatprep.subr.bf16.mxu0 %v7378
      %10374 = vmatpush2.bf16.msra.mxu0 %v7377
      %10375 = vmatprep.mubr.bf16.mxu0 %v1993
      %10376 = vmatmul.mubr.bf16.gmra.mxu0 %v1979
      %v10377 = vpop.f32.mrf.mxu0
      %v10378 = vadd.f32 %v10337, %v10377
      %v10379 = vpop.f32.mrf.mxu0
      %v10380 = vadd.f32 %v10339, %v10379
      %v10381 = vpop.f32.mrf.mxu0
      %v10382 = vpop.f32.mrf.mxu0
      %10383 = vdwg.mxu0
      %10384 = vmatprep.subr.bf16.mxu0 %v7438
      %10385 = vmatpush1.bf16.msra.mxu0 %v7437
      %10386 = vmatprep.subr.bf16.mxu0 %v7434
      %10387 = vmatpush1.bf16.msra.mxu0 %v7433
      %10388 = vmatprep.subr.bf16.mxu0 %v7430
      %10389 = vmatpush1.bf16.msra.mxu0 %v7429
      %10390 = vmatprep.subr.bf16.mxu0 %v7426
      %10391 = vmatpush1.bf16.msra.mxu0 %v7425
      %10392 = vmatprep.subr.bf16.mxu0 %v7422
      %10393 = vmatpush1.bf16.msra.mxu0 %v7421
      %10394 = vmatprep.subr.bf16.mxu0 %v7418
      %10395 = vmatpush1.bf16.msra.mxu0 %v7417
      %10396 = vmatprep.subr.bf16.mxu0 %v7414
      %10397 = vmatpush1.bf16.msra.mxu0 %v7413
      %10398 = vmatprep.subr.bf16.mxu0 %v7410
      %10399 = vmatpush1.bf16.msra.mxu0 %v7409
      %10400 = vmatprep.subr.bf16.mxu0 %v7470
      %10401 = vmatpush2.bf16.msra.mxu0 %v7469
      %10402 = vmatprep.subr.bf16.mxu0 %v7466
      %10403 = vmatpush2.bf16.msra.mxu0 %v7465
      %10404 = vmatprep.subr.bf16.mxu0 %v7462
      %10405 = vmatpush2.bf16.msra.mxu0 %v7461
      %10406 = vmatprep.subr.bf16.mxu0 %v7458
      %10407 = vmatpush2.bf16.msra.mxu0 %v7457
      %10408 = vmatprep.subr.bf16.mxu0 %v7454
      %10409 = vmatpush2.bf16.msra.mxu0 %v7453
      %10410 = vmatprep.subr.bf16.mxu0 %v7450
      %10411 = vmatpush2.bf16.msra.mxu0 %v7449
      %10412 = vmatprep.subr.bf16.mxu0 %v7446
      %10413 = vmatpush2.bf16.msra.mxu0 %v7445
      %10414 = vmatprep.subr.bf16.mxu0 %v7442
      %10415 = vmatpush2.bf16.msra.mxu0 %v7441
      %10416 = vmatprep.mubr.bf16.mxu0 %v1997
      %10417 = vmatmul.mubr.bf16.gmra.mxu0 %v1995
      %v10418 = vpop.f32.mrf.mxu0
      %v10419 = vadd.f32 %v10378, %v10418
      %v10420 = vpop.f32.mrf.mxu0
      %v10421 = vadd.f32 %v10380, %v10420
      %v10422 = vpop.f32.mrf.mxu0
      %v10423 = vpop.f32.mrf.mxu0
      %10424 = vdwg.mxu0
      %10425 = vmatprep.subr.bf16.mxu0 %v7502
      %10426 = vmatpush1.bf16.msra.mxu0 %v7501
      %10427 = vmatprep.subr.bf16.mxu0 %v7498
      %10428 = vmatpush1.bf16.msra.mxu0 %v7497
      %10429 = vmatprep.subr.bf16.mxu0 %v7494
      %10430 = vmatpush1.bf16.msra.mxu0 %v7493
      %10431 = vmatprep.subr.bf16.mxu0 %v7490
      %10432 = vmatpush1.bf16.msra.mxu0 %v7489
      %10433 = vmatprep.subr.bf16.mxu0 %v7486
      %10434 = vmatpush1.bf16.msra.mxu0 %v7485
      %10435 = vmatprep.subr.bf16.mxu0 %v7482
      %10436 = vmatpush1.bf16.msra.mxu0 %v7481
      %10437 = vmatprep.subr.bf16.mxu0 %v7478
      %10438 = vmatpush1.bf16.msra.mxu0 %v7477
      %10439 = vmatprep.subr.bf16.mxu0 %v7474
      %10440 = vmatpush1.bf16.msra.mxu0 %v7473
      %10441 = vmatprep.subr.bf16.mxu0 %v7534
      %10442 = vmatpush2.bf16.msra.mxu0 %v7533
      %10443 = vmatprep.subr.bf16.mxu0 %v7530
      %10444 = vmatpush2.bf16.msra.mxu0 %v7529
      %10445 = vmatprep.subr.bf16.mxu0 %v7526
      %10446 = vmatpush2.bf16.msra.mxu0 %v7525
      %10447 = vmatprep.subr.bf16.mxu0 %v7522
      %10448 = vmatpush2.bf16.msra.mxu0 %v7521
      %10449 = vmatprep.subr.bf16.mxu0 %v7518
      %10450 = vmatpush2.bf16.msra.mxu0 %v7517
      %10451 = vmatprep.subr.bf16.mxu0 %v7514
      %10452 = vmatpush2.bf16.msra.mxu0 %v7513
      %10453 = vmatprep.subr.bf16.mxu0 %v7510
      %10454 = vmatpush2.bf16.msra.mxu0 %v7509
      %10455 = vmatprep.subr.bf16.mxu0 %v7506
      %10456 = vmatpush2.bf16.msra.mxu0 %v7505
      %10457 = vmatprep.mubr.bf16.mxu0 %v2035
      %10458 = vmatmul.mubr.bf16.gmra.mxu0 %v2021
      %v10459 = vpop.f32.mrf.mxu0
      %v10460 = vadd.f32 %v10419, %v10459
      %v10461 = vpop.f32.mrf.mxu0
      %v10462 = vadd.f32 %v10421, %v10461
      %v10463 = vpop.f32.mrf.mxu0
      %v10464 = vpop.f32.mrf.mxu0
      %10465 = vdwg.mxu0
      %10466 = vmatprep.subr.bf16.mxu0 %v7566
      %10467 = vmatpush1.bf16.msra.mxu0 %v7565
      %10468 = vmatprep.subr.bf16.mxu0 %v7562
      %10469 = vmatpush1.bf16.msra.mxu0 %v7561
      %10470 = vmatprep.subr.bf16.mxu0 %v7558
      %10471 = vmatpush1.bf16.msra.mxu0 %v7557
      %10472 = vmatprep.subr.bf16.mxu0 %v7554
      %10473 = vmatpush1.bf16.msra.mxu0 %v7553
      %10474 = vmatprep.subr.bf16.mxu0 %v7550
      %10475 = vmatpush1.bf16.msra.mxu0 %v7549
      %10476 = vmatprep.subr.bf16.mxu0 %v7546
      %10477 = vmatpush1.bf16.msra.mxu0 %v7545
      %10478 = vmatprep.subr.bf16.mxu0 %v7542
      %10479 = vmatpush1.bf16.msra.mxu0 %v7541
      %10480 = vmatprep.subr.bf16.mxu0 %v7538
      %10481 = vmatpush1.bf16.msra.mxu0 %v7537
      %10482 = vmatprep.subr.bf16.mxu0 %v7598
      %10483 = vmatpush2.bf16.msra.mxu0 %v7597
      %10484 = vmatprep.subr.bf16.mxu0 %v7594
      %10485 = vmatpush2.bf16.msra.mxu0 %v7593
      %10486 = vmatprep.subr.bf16.mxu0 %v7590
      %10487 = vmatpush2.bf16.msra.mxu0 %v7589
      %10488 = vmatprep.subr.bf16.mxu0 %v7586
      %10489 = vmatpush2.bf16.msra.mxu0 %v7585
      %10490 = vmatprep.subr.bf16.mxu0 %v7582
      %10491 = vmatpush2.bf16.msra.mxu0 %v7581
      %10492 = vmatprep.subr.bf16.mxu0 %v7578
      %10493 = vmatpush2.bf16.msra.mxu0 %v7577
      %10494 = vmatprep.subr.bf16.mxu0 %v7574
      %10495 = vmatpush2.bf16.msra.mxu0 %v7573
      %10496 = vmatprep.subr.bf16.mxu0 %v7570
      %10497 = vmatpush2.bf16.msra.mxu0 %v7569
      %10498 = vmatprep.mubr.bf16.mxu0 %v2045
      %10499 = vmatmul.mubr.bf16.gmra.mxu0 %v2043
      %v10500 = vpop.f32.mrf.mxu0
      %v10501 = vadd.f32 %v10460, %v10500
      %v10502 = vpop.f32.mrf.mxu0
      %v10503 = vadd.f32 %v10462, %v10502
      %v10504 = vpop.f32.mrf.mxu0
      %v10505 = vpop.f32.mrf.mxu0
      %10506 = vdwg.mxu0
      %10507 = vmatprep.subr.bf16.mxu0 %v7630
      %10508 = vmatpush1.bf16.msra.mxu0 %v7629
      %10509 = vmatprep.subr.bf16.mxu0 %v7626
      %10510 = vmatpush1.bf16.msra.mxu0 %v7625
      %10511 = vmatprep.subr.bf16.mxu0 %v7622
      %10512 = vmatpush1.bf16.msra.mxu0 %v7621
      %10513 = vmatprep.subr.bf16.mxu0 %v7618
      %10514 = vmatpush1.bf16.msra.mxu0 %v7617
      %10515 = vmatprep.subr.bf16.mxu0 %v7614
      %10516 = vmatpush1.bf16.msra.mxu0 %v7613
      %10517 = vmatprep.subr.bf16.mxu0 %v7610
      %10518 = vmatpush1.bf16.msra.mxu0 %v7609
      %10519 = vmatprep.subr.bf16.mxu0 %v7606
      %10520 = vmatpush1.bf16.msra.mxu0 %v7605
      %10521 = vmatprep.subr.bf16.mxu0 %v7602
      %10522 = vmatpush1.bf16.msra.mxu0 %v7601
      %10523 = vmatprep.subr.bf16.mxu0 %v7662
      %10524 = vmatpush2.bf16.msra.mxu0 %v7661
      %10525 = vmatprep.subr.bf16.mxu0 %v7658
      %10526 = vmatpush2.bf16.msra.mxu0 %v7657
      %10527 = vmatprep.subr.bf16.mxu0 %v7654
      %10528 = vmatpush2.bf16.msra.mxu0 %v7653
      %10529 = vmatprep.subr.bf16.mxu0 %v7650
      %10530 = vmatpush2.bf16.msra.mxu0 %v7649
      %10531 = vmatprep.subr.bf16.mxu0 %v7646
      %10532 = vmatpush2.bf16.msra.mxu0 %v7645
      %10533 = vmatprep.subr.bf16.mxu0 %v7642
      %10534 = vmatpush2.bf16.msra.mxu0 %v7641
      %10535 = vmatprep.subr.bf16.mxu0 %v7638
      %10536 = vmatpush2.bf16.msra.mxu0 %v7637
      %10537 = vmatprep.subr.bf16.mxu0 %v7634
      %10538 = vmatpush2.bf16.msra.mxu0 %v7633
      %10539 = vmatprep.mubr.bf16.mxu0 %v2042
      %10540 = vmatmul.mubr.bf16.gmra.mxu0 %v2028
      %v10541 = vpop.f32.mrf.mxu0
      %v10542 = vadd.f32 %v10501, %v10541
      %v10543 = vpop.f32.mrf.mxu0
      %v10544 = vadd.f32 %v10503, %v10543
      %v10545 = vpop.f32.mrf.mxu0
      %v10546 = vpop.f32.mrf.mxu0
      %10547 = vdwg.mxu0
      %10548 = vmatprep.subr.bf16.mxu0 %v7694
      %10549 = vmatpush1.bf16.msra.mxu0 %v7693
      %10550 = vmatprep.subr.bf16.mxu0 %v7690
      %10551 = vmatpush1.bf16.msra.mxu0 %v7689
      %10552 = vmatprep.subr.bf16.mxu0 %v7686
      %10553 = vmatpush1.bf16.msra.mxu0 %v7685
      %10554 = vmatprep.subr.bf16.mxu0 %v7682
      %10555 = vmatpush1.bf16.msra.mxu0 %v7681
      %10556 = vmatprep.subr.bf16.mxu0 %v7678
      %10557 = vmatpush1.bf16.msra.mxu0 %v7677
      %10558 = vmatprep.subr.bf16.mxu0 %v7674
      %10559 = vmatpush1.bf16.msra.mxu0 %v7673
      %10560 = vmatprep.subr.bf16.mxu0 %v7670
      %10561 = vmatpush1.bf16.msra.mxu0 %v7669
      %10562 = vmatprep.subr.bf16.mxu0 %v7666
      %10563 = vmatpush1.bf16.msra.mxu0 %v7665
      %10564 = vmatprep.subr.bf16.mxu0 %v7726
      %10565 = vmatpush2.bf16.msra.mxu0 %v7725
      %10566 = vmatprep.subr.bf16.mxu0 %v7722
      %10567 = vmatpush2.bf16.msra.mxu0 %v7721
      %10568 = vmatprep.subr.bf16.mxu0 %v7718
      %10569 = vmatpush2.bf16.msra.mxu0 %v7717
      %10570 = vmatprep.subr.bf16.mxu0 %v7714
      %10571 = vmatpush2.bf16.msra.mxu0 %v7713
      %10572 = vmatprep.subr.bf16.mxu0 %v7710
      %10573 = vmatpush2.bf16.msra.mxu0 %v7709
      %10574 = vmatprep.subr.bf16.mxu0 %v7706
      %10575 = vmatpush2.bf16.msra.mxu0 %v7705
      %10576 = vmatprep.subr.bf16.mxu0 %v7702
      %10577 = vmatpush2.bf16.msra.mxu0 %v7701
      %10578 = vmatprep.subr.bf16.mxu0 %v7698
      %10579 = vmatpush2.bf16.msra.mxu0 %v7697
      %10580 = vmatprep.mubr.bf16.mxu0 %v2046
      %10581 = vmatmul.mubr.bf16.gmra.mxu0 %v2044
      %v10582 = vpop.f32.mrf.mxu0
      %v10583 = vadd.f32 %v10542, %v10582
      %v10584 = vpop.f32.mrf.mxu0
      %v10585 = vadd.f32 %v10544, %v10584
      %v10586 = vpop.f32.mrf.mxu0
      %v10587 = vpop.f32.mrf.mxu0
      %10588 = vdwg.mxu0
      %10589 = vmatprep.subr.bf16.mxu0 %v7758
      %10590 = vmatpush1.bf16.msra.mxu0 %v7757
      %10591 = vmatprep.subr.bf16.mxu0 %v7754
      %10592 = vmatpush1.bf16.msra.mxu0 %v7753
      %10593 = vmatprep.subr.bf16.mxu0 %v7750
      %10594 = vmatpush1.bf16.msra.mxu0 %v7749
      %10595 = vmatprep.subr.bf16.mxu0 %v7746
      %10596 = vmatpush1.bf16.msra.mxu0 %v7745
      %10597 = vmatprep.subr.bf16.mxu0 %v7742
      %10598 = vmatpush1.bf16.msra.mxu0 %v7741
      %10599 = vmatprep.subr.bf16.mxu0 %v7738
      %10600 = vmatpush1.bf16.msra.mxu0 %v7737
      %10601 = vmatprep.subr.bf16.mxu0 %v7734
      %10602 = vmatpush1.bf16.msra.mxu0 %v7733
      %10603 = vmatprep.subr.bf16.mxu0 %v7730
      %10604 = vmatpush1.bf16.msra.mxu0 %v7729
      %10605 = vmatprep.subr.bf16.mxu0 %v7790
      %10606 = vmatpush2.bf16.msra.mxu0 %v7789
      %10607 = vmatprep.subr.bf16.mxu0 %v7786
      %10608 = vmatpush2.bf16.msra.mxu0 %v7785
      %10609 = vmatprep.subr.bf16.mxu0 %v7782
      %10610 = vmatpush2.bf16.msra.mxu0 %v7781
      %10611 = vmatprep.subr.bf16.mxu0 %v7778
      %10612 = vmatpush2.bf16.msra.mxu0 %v7777
      %10613 = vmatprep.subr.bf16.mxu0 %v7774
      %10614 = vmatpush2.bf16.msra.mxu0 %v7773
      %10615 = vmatprep.subr.bf16.mxu0 %v7770
      %10616 = vmatpush2.bf16.msra.mxu0 %v7769
      %10617 = vmatprep.subr.bf16.mxu0 %v7766
      %10618 = vmatpush2.bf16.msra.mxu0 %v7765
      %10619 = vmatprep.subr.bf16.mxu0 %v7762
      %10620 = vmatpush2.bf16.msra.mxu0 %v7761
      %10621 = vmatprep.mubr.bf16.mxu0 %v2084
      %10622 = vmatmul.mubr.bf16.gmra.mxu0 %v2070
      %v10623 = vpop.f32.mrf.mxu0
      %v10624 = vadd.f32 %v10583, %v10623
      %v10625 = vpop.f32.mrf.mxu0
      %v10626 = vadd.f32 %v10585, %v10625
      %v10627 = vpop.f32.mrf.mxu0
      %v10628 = vpop.f32.mrf.mxu0
      %10629 = vdwg.mxu0
      %10630 = vmatprep.subr.bf16.mxu0 %v7822
      %10631 = vmatpush1.bf16.msra.mxu0 %v7821
      %10632 = vmatprep.subr.bf16.mxu0 %v7818
      %10633 = vmatpush1.bf16.msra.mxu0 %v7817
      %10634 = vmatprep.subr.bf16.mxu0 %v7814
      %10635 = vmatpush1.bf16.msra.mxu0 %v7813
      %10636 = vmatprep.subr.bf16.mxu0 %v7810
      %10637 = vmatpush1.bf16.msra.mxu0 %v7809
      %10638 = vmatprep.subr.bf16.mxu0 %v7806
      %10639 = vmatpush1.bf16.msra.mxu0 %v7805
      %10640 = vmatprep.subr.bf16.mxu0 %v7802
      %10641 = vmatpush1.bf16.msra.mxu0 %v7801
      %10642 = vmatprep.subr.bf16.mxu0 %v7798
      %10643 = vmatpush1.bf16.msra.mxu0 %v7797
      %10644 = vmatprep.subr.bf16.mxu0 %v7794
      %10645 = vmatpush1.bf16.msra.mxu0 %v7793
      %10646 = vmatprep.subr.bf16.mxu0 %v7854
      %10647 = vmatpush2.bf16.msra.mxu0 %v7853
      %10648 = vmatprep.subr.bf16.mxu0 %v7850
      %10649 = vmatpush2.bf16.msra.mxu0 %v7849
      %10650 = vmatprep.subr.bf16.mxu0 %v7846
      %10651 = vmatpush2.bf16.msra.mxu0 %v7845
      %10652 = vmatprep.subr.bf16.mxu0 %v7842
      %10653 = vmatpush2.bf16.msra.mxu0 %v7841
      %10654 = vmatprep.subr.bf16.mxu0 %v7838
      %10655 = vmatpush2.bf16.msra.mxu0 %v7837
      %10656 = vmatprep.subr.bf16.mxu0 %v7834
      %10657 = vmatpush2.bf16.msra.mxu0 %v7833
      %10658 = vmatprep.subr.bf16.mxu0 %v7830
      %10659 = vmatpush2.bf16.msra.mxu0 %v7829
      %10660 = vmatprep.subr.bf16.mxu0 %v7826
      %10661 = vmatpush2.bf16.msra.mxu0 %v7825
      %10662 = vmatprep.mubr.bf16.mxu0 %v2094
      %10663 = vmatmul.mubr.bf16.gmra.mxu0 %v2092
      %v10664 = vpop.f32.mrf.mxu0
      %v10665 = vadd.f32 %v10624, %v10664
      %v10666 = vpop.f32.mrf.mxu0
      %v10667 = vadd.f32 %v10626, %v10666
      %v10668 = vpop.f32.mrf.mxu0
      %v10669 = vpop.f32.mrf.mxu0
      %10670 = vdwg.mxu0
      %10671 = vmatprep.subr.bf16.mxu0 %v7886
      %10672 = vmatpush1.bf16.msra.mxu0 %v7885
      %10673 = vmatprep.subr.bf16.mxu0 %v7882
      %10674 = vmatpush1.bf16.msra.mxu0 %v7881
      %10675 = vmatprep.subr.bf16.mxu0 %v7878
      %10676 = vmatpush1.bf16.msra.mxu0 %v7877
      %10677 = vmatprep.subr.bf16.mxu0 %v7874
      %10678 = vmatpush1.bf16.msra.mxu0 %v7873
      %10679 = vmatprep.subr.bf16.mxu0 %v7870
      %10680 = vmatpush1.bf16.msra.mxu0 %v7869
      %10681 = vmatprep.subr.bf16.mxu0 %v7866
      %10682 = vmatpush1.bf16.msra.mxu0 %v7865
      %10683 = vmatprep.subr.bf16.mxu0 %v7862
      %10684 = vmatpush1.bf16.msra.mxu0 %v7861
      %10685 = vmatprep.subr.bf16.mxu0 %v7858
      %10686 = vmatpush1.bf16.msra.mxu0 %v7857
      %10687 = vmatprep.subr.bf16.mxu0 %v7918
      %10688 = vmatpush2.bf16.msra.mxu0 %v7917
      %10689 = vmatprep.subr.bf16.mxu0 %v7914
      %10690 = vmatpush2.bf16.msra.mxu0 %v7913
      %10691 = vmatprep.subr.bf16.mxu0 %v7910
      %10692 = vmatpush2.bf16.msra.mxu0 %v7909
      %10693 = vmatprep.subr.bf16.mxu0 %v7906
      %10694 = vmatpush2.bf16.msra.mxu0 %v7905
      %10695 = vmatprep.subr.bf16.mxu0 %v7902
      %10696 = vmatpush2.bf16.msra.mxu0 %v7901
      %10697 = vmatprep.subr.bf16.mxu0 %v7898
      %10698 = vmatpush2.bf16.msra.mxu0 %v7897
      %10699 = vmatprep.subr.bf16.mxu0 %v7894
      %10700 = vmatpush2.bf16.msra.mxu0 %v7893
      %10701 = vmatprep.subr.bf16.mxu0 %v7890
      %10702 = vmatpush2.bf16.msra.mxu0 %v7889
      %10703 = vmatprep.mubr.bf16.mxu0 %v2091
      %10704 = vmatmul.mubr.bf16.gmra.mxu0 %v2077
      %v10705 = vpop.f32.mrf.mxu0
      %v10706 = vadd.f32 %v10665, %v10705
      %v10707 = vpop.f32.mrf.mxu0
      %v10708 = vadd.f32 %v10667, %v10707
      %v10709 = vpop.f32.mrf.mxu0
      %v10710 = vpop.f32.mrf.mxu0
      %10711 = vdwg.mxu0
      %10712 = vmatprep.subr.bf16.mxu0 %v7950
      %10713 = vmatpush1.bf16.msra.mxu0 %v7949
      %10714 = vmatprep.subr.bf16.mxu0 %v7946
      %10715 = vmatpush1.bf16.msra.mxu0 %v7945
      %10716 = vmatprep.subr.bf16.mxu0 %v7942
      %10717 = vmatpush1.bf16.msra.mxu0 %v7941
      %10718 = vmatprep.subr.bf16.mxu0 %v7938
      %10719 = vmatpush1.bf16.msra.mxu0 %v7937
      %10720 = vmatprep.subr.bf16.mxu0 %v7934
      %10721 = vmatpush1.bf16.msra.mxu0 %v7933
      %10722 = vmatprep.subr.bf16.mxu0 %v7930
      %10723 = vmatpush1.bf16.msra.mxu0 %v7929
      %10724 = vmatprep.subr.bf16.mxu0 %v7926
      %10725 = vmatpush1.bf16.msra.mxu0 %v7925
      %10726 = vmatprep.subr.bf16.mxu0 %v7922
      %10727 = vmatpush1.bf16.msra.mxu0 %v7921
      %10728 = vmatprep.subr.bf16.mxu0 %v7982
      %10729 = vmatpush2.bf16.msra.mxu0 %v7981
      %10730 = vmatprep.subr.bf16.mxu0 %v7978
      %10731 = vmatpush2.bf16.msra.mxu0 %v7977
      %10732 = vmatprep.subr.bf16.mxu0 %v7974
      %10733 = vmatpush2.bf16.msra.mxu0 %v7973
      %10734 = vmatprep.subr.bf16.mxu0 %v7970
      %10735 = vmatpush2.bf16.msra.mxu0 %v7969
      %10736 = vmatprep.subr.bf16.mxu0 %v7966
      %10737 = vmatpush2.bf16.msra.mxu0 %v7965
      %10738 = vmatprep.subr.bf16.mxu0 %v7962
      %10739 = vmatpush2.bf16.msra.mxu0 %v7961
      %10740 = vmatprep.subr.bf16.mxu0 %v7958
      %10741 = vmatpush2.bf16.msra.mxu0 %v7957
      %10742 = vmatprep.subr.bf16.mxu0 %v7954
      %10743 = vmatpush2.bf16.msra.mxu0 %v7953
      %10744 = vmatprep.mubr.bf16.mxu0 %v2095
      %10745 = vmatmul.mubr.bf16.gmra.mxu0 %v2093
      %v10746 = vpop.f32.mrf.mxu0
      %v10747 = vadd.f32 %v10706, %v10746
      %v10748 = vpop.f32.mrf.mxu0
      %v10749 = vadd.f32 %v10708, %v10748
      %v10750 = vpop.f32.mrf.mxu0
      %v10751 = vpop.f32.mrf.mxu0
      %10752 = vdwg.mxu0
      %10753 = vmatprep.subr.bf16.mxu0 %v8014
      %10754 = vmatpush1.bf16.msra.mxu0 %v8013
      %10755 = vmatprep.subr.bf16.mxu0 %v8010
      %10756 = vmatpush1.bf16.msra.mxu0 %v8009
      %10757 = vmatprep.subr.bf16.mxu0 %v8006
      %10758 = vmatpush1.bf16.msra.mxu0 %v8005
      %10759 = vmatprep.subr.bf16.mxu0 %v8002
      %10760 = vmatpush1.bf16.msra.mxu0 %v8001
      %10761 = vmatprep.subr.bf16.mxu0 %v7998
      %10762 = vmatpush1.bf16.msra.mxu0 %v7997
      %10763 = vmatprep.subr.bf16.mxu0 %v7994
      %10764 = vmatpush1.bf16.msra.mxu0 %v7993
      %10765 = vmatprep.subr.bf16.mxu0 %v7990
      %10766 = vmatpush1.bf16.msra.mxu0 %v7989
      %10767 = vmatprep.subr.bf16.mxu0 %v7986
      %10768 = vmatpush1.bf16.msra.mxu0 %v7985
      %10769 = vmatprep.subr.bf16.mxu0 %v8046
      %10770 = vmatpush2.bf16.msra.mxu0 %v8045
      %10771 = vmatprep.subr.bf16.mxu0 %v8042
      %10772 = vmatpush2.bf16.msra.mxu0 %v8041
      %10773 = vmatprep.subr.bf16.mxu0 %v8038
      %10774 = vmatpush2.bf16.msra.mxu0 %v8037
      %10775 = vmatprep.subr.bf16.mxu0 %v8034
      %10776 = vmatpush2.bf16.msra.mxu0 %v8033
      %10777 = vmatprep.subr.bf16.mxu0 %v8030
      %10778 = vmatpush2.bf16.msra.mxu0 %v8029
      %10779 = vmatprep.subr.bf16.mxu0 %v8026
      %10780 = vmatpush2.bf16.msra.mxu0 %v8025
      %10781 = vmatprep.subr.bf16.mxu0 %v8022
      %10782 = vmatpush2.bf16.msra.mxu0 %v8021
      %10783 = vmatprep.subr.bf16.mxu0 %v8018
      %10784 = vmatpush2.bf16.msra.mxu0 %v8017
      %10785 = vmatprep.mubr.bf16.mxu0 %v2133
      %10786 = vmatmul.mubr.bf16.gmra.mxu0 %v2119
      %v10787 = vpop.f32.mrf.mxu0
      %v10788 = vadd.f32 %v10747, %v10787
      %v10789 = vpop.f32.mrf.mxu0
      %v10790 = vadd.f32 %v10749, %v10789
      %v10791 = vpop.f32.mrf.mxu0
      %v10792 = vpop.f32.mrf.mxu0
      %10793 = vdwg.mxu0
      %10794 = vmatprep.subr.bf16.mxu0 %v8078
      %10795 = vmatpush1.bf16.msra.mxu0 %v8077
      %10796 = vmatprep.subr.bf16.mxu0 %v8074
      %10797 = vmatpush1.bf16.msra.mxu0 %v8073
      %10798 = vmatprep.subr.bf16.mxu0 %v8070
      %10799 = vmatpush1.bf16.msra.mxu0 %v8069
      %10800 = vmatprep.subr.bf16.mxu0 %v8066
      %10801 = vmatpush1.bf16.msra.mxu0 %v8065
      %10802 = vmatprep.subr.bf16.mxu0 %v8062
      %10803 = vmatpush1.bf16.msra.mxu0 %v8061
      %10804 = vmatprep.subr.bf16.mxu0 %v8058
      %10805 = vmatpush1.bf16.msra.mxu0 %v8057
      %10806 = vmatprep.subr.bf16.mxu0 %v8054
      %10807 = vmatpush1.bf16.msra.mxu0 %v8053
      %10808 = vmatprep.subr.bf16.mxu0 %v8050
      %10809 = vmatpush1.bf16.msra.mxu0 %v8049
      %10810 = vmatprep.subr.bf16.mxu0 %v8110
      %10811 = vmatpush2.bf16.msra.mxu0 %v8109
      %10812 = vmatprep.subr.bf16.mxu0 %v8106
      %10813 = vmatpush2.bf16.msra.mxu0 %v8105
      %10814 = vmatprep.subr.bf16.mxu0 %v8102
      %10815 = vmatpush2.bf16.msra.mxu0 %v8101
      %10816 = vmatprep.subr.bf16.mxu0 %v8098
      %10817 = vmatpush2.bf16.msra.mxu0 %v8097
      %10818 = vmatprep.subr.bf16.mxu0 %v8094
      %10819 = vmatpush2.bf16.msra.mxu0 %v8093
      %10820 = vmatprep.subr.bf16.mxu0 %v8090
      %10821 = vmatpush2.bf16.msra.mxu0 %v8089
      %10822 = vmatprep.subr.bf16.mxu0 %v8086
      %10823 = vmatpush2.bf16.msra.mxu0 %v8085
      %10824 = vmatprep.subr.bf16.mxu0 %v8082
      %10825 = vmatpush2.bf16.msra.mxu0 %v8081
      %10826 = vmatprep.mubr.bf16.mxu0 %v2143
      %10827 = vmatmul.mubr.bf16.gmra.mxu0 %v2141
      %v10828 = vpop.f32.mrf.mxu0
      %v10829 = vadd.f32 %v10788, %v10828
      %v10830 = vpop.f32.mrf.mxu0
      %v10831 = vadd.f32 %v10790, %v10830
      %v10832 = vpop.f32.mrf.mxu0
      %v10833 = vpop.f32.mrf.mxu0
      %10834 = vdwg.mxu0
      %10835 = vmatprep.subr.bf16.mxu0 %v8142
      %10836 = vmatpush1.bf16.msra.mxu0 %v8141
      %10837 = vmatprep.subr.bf16.mxu0 %v8138
      %10838 = vmatpush1.bf16.msra.mxu0 %v8137
      %10839 = vmatprep.subr.bf16.mxu0 %v8134
      %10840 = vmatpush1.bf16.msra.mxu0 %v8133
      %10841 = vmatprep.subr.bf16.mxu0 %v8130
      %10842 = vmatpush1.bf16.msra.mxu0 %v8129
      %10843 = vmatprep.subr.bf16.mxu0 %v8126
      %10844 = vmatpush1.bf16.msra.mxu0 %v8125
      %10845 = vmatprep.subr.bf16.mxu0 %v8122
      %10846 = vmatpush1.bf16.msra.mxu0 %v8121
      %10847 = vmatprep.subr.bf16.mxu0 %v8118
      %10848 = vmatpush1.bf16.msra.mxu0 %v8117
      %10849 = vmatprep.subr.bf16.mxu0 %v8114
      %10850 = vmatpush1.bf16.msra.mxu0 %v8113
      %10851 = vmatprep.subr.bf16.mxu0 %v8174
      %10852 = vmatpush2.bf16.msra.mxu0 %v8173
      %10853 = vmatprep.subr.bf16.mxu0 %v8170
      %10854 = vmatpush2.bf16.msra.mxu0 %v8169
      %10855 = vmatprep.subr.bf16.mxu0 %v8166
      %10856 = vmatpush2.bf16.msra.mxu0 %v8165
      %10857 = vmatprep.subr.bf16.mxu0 %v8162
      %10858 = vmatpush2.bf16.msra.mxu0 %v8161
      %10859 = vmatprep.subr.bf16.mxu0 %v8158
      %10860 = vmatpush2.bf16.msra.mxu0 %v8157
      %10861 = vmatprep.subr.bf16.mxu0 %v8154
      %10862 = vmatpush2.bf16.msra.mxu0 %v8153
      %10863 = vmatprep.subr.bf16.mxu0 %v8150
      %10864 = vmatpush2.bf16.msra.mxu0 %v8149
      %10865 = vmatprep.subr.bf16.mxu0 %v8146
      %10866 = vmatpush2.bf16.msra.mxu0 %v8145
      %10867 = vmatprep.mubr.bf16.mxu0 %v2140
      %10868 = vmatmul.mubr.bf16.gmra.mxu0 %v2126
      %v10869 = vpop.f32.mrf.mxu0
      %v10870 = vadd.f32 %v10829, %v10869
      %v10871 = vpop.f32.mrf.mxu0
      %v10872 = vadd.f32 %v10831, %v10871
      %v10873 = vpop.f32.mrf.mxu0
      %v10874 = vpop.f32.mrf.mxu0
      %10875 = vdwg.mxu0
      %10876 = vmatprep.subr.bf16.mxu0 %v8206
      %10877 = vmatpush1.bf16.msra.mxu0 %v8205
      %10878 = vmatprep.subr.bf16.mxu0 %v8202
      %10879 = vmatpush1.bf16.msra.mxu0 %v8201
      %10880 = vmatprep.subr.bf16.mxu0 %v8198
      %10881 = vmatpush1.bf16.msra.mxu0 %v8197
      %10882 = vmatprep.subr.bf16.mxu0 %v8194
      %10883 = vmatpush1.bf16.msra.mxu0 %v8193
      %10884 = vmatprep.subr.bf16.mxu0 %v8190
      %10885 = vmatpush1.bf16.msra.mxu0 %v8189
      %10886 = vmatprep.subr.bf16.mxu0 %v8186
      %10887 = vmatpush1.bf16.msra.mxu0 %v8185
      %10888 = vmatprep.subr.bf16.mxu0 %v8182
      %10889 = vmatpush1.bf16.msra.mxu0 %v8181
      %10890 = vmatprep.subr.bf16.mxu0 %v8178
      %10891 = vmatpush1.bf16.msra.mxu0 %v8177
      %10892 = vmatprep.subr.bf16.mxu0 %v8238
      %10893 = vmatpush2.bf16.msra.mxu0 %v8237
      %10894 = vmatprep.subr.bf16.mxu0 %v8234
      %10895 = vmatpush2.bf16.msra.mxu0 %v8233
      %10896 = vmatprep.subr.bf16.mxu0 %v8230
      %10897 = vmatpush2.bf16.msra.mxu0 %v8229
      %10898 = vmatprep.subr.bf16.mxu0 %v8226
      %10899 = vmatpush2.bf16.msra.mxu0 %v8225
      %10900 = vmatprep.subr.bf16.mxu0 %v8222
      %10901 = vmatpush2.bf16.msra.mxu0 %v8221
      %10902 = vmatprep.subr.bf16.mxu0 %v8218
      %10903 = vmatpush2.bf16.msra.mxu0 %v8217
      %10904 = vmatprep.subr.bf16.mxu0 %v8214
      %10905 = vmatpush2.bf16.msra.mxu0 %v8213
      %10906 = vmatprep.subr.bf16.mxu0 %v8210
      %10907 = vmatpush2.bf16.msra.mxu0 %v8209
      %10908 = vmatprep.mubr.bf16.mxu0 %v2144
      %10909 = vmatmul.mubr.bf16.gmra.mxu0 %v2142
      %v10910 = vpop.f32.mrf.mxu0
      %v10911 = vadd.f32 %v10870, %v10910
      %v10912 = vpop.f32.mrf.mxu0
      %v10913 = vadd.f32 %v10872, %v10912
      %v10914 = vpop.f32.mrf.mxu0
      %v10915 = vpop.f32.mrf.mxu0
      %10916 = vdwg.mxu0
      %10917 = vmatprep.subr.bf16.mxu0 %v8270
      %10918 = vmatpush1.bf16.msra.mxu0 %v8269
      %10919 = vmatprep.subr.bf16.mxu0 %v8266
      %10920 = vmatpush1.bf16.msra.mxu0 %v8265
      %10921 = vmatprep.subr.bf16.mxu0 %v8262
      %10922 = vmatpush1.bf16.msra.mxu0 %v8261
      %10923 = vmatprep.subr.bf16.mxu0 %v8258
      %10924 = vmatpush1.bf16.msra.mxu0 %v8257
      %10925 = vmatprep.subr.bf16.mxu0 %v8254
      %10926 = vmatpush1.bf16.msra.mxu0 %v8253
      %10927 = vmatprep.subr.bf16.mxu0 %v8250
      %10928 = vmatpush1.bf16.msra.mxu0 %v8249
      %10929 = vmatprep.subr.bf16.mxu0 %v8246
      %10930 = vmatpush1.bf16.msra.mxu0 %v8245
      %10931 = vmatprep.subr.bf16.mxu0 %v8242
      %10932 = vmatpush1.bf16.msra.mxu0 %v8241
      %10933 = vmatprep.subr.bf16.mxu0 %v8302
      %10934 = vmatpush2.bf16.msra.mxu0 %v8301
      %10935 = vmatprep.subr.bf16.mxu0 %v8298
      %10936 = vmatpush2.bf16.msra.mxu0 %v8297
      %10937 = vmatprep.subr.bf16.mxu0 %v8294
      %10938 = vmatpush2.bf16.msra.mxu0 %v8293
      %10939 = vmatprep.subr.bf16.mxu0 %v8290
      %10940 = vmatpush2.bf16.msra.mxu0 %v8289
      %10941 = vmatprep.subr.bf16.mxu0 %v8286
      %10942 = vmatpush2.bf16.msra.mxu0 %v8285
      %10943 = vmatprep.subr.bf16.mxu0 %v8282
      %10944 = vmatpush2.bf16.msra.mxu0 %v8281
      %10945 = vmatprep.subr.bf16.mxu0 %v8278
      %10946 = vmatpush2.bf16.msra.mxu0 %v8277
      %10947 = vmatprep.subr.bf16.mxu0 %v8274
      %10948 = vmatpush2.bf16.msra.mxu0 %v8273
      %10949 = vmatprep.mubr.bf16.mxu0 %v2182
      %10950 = vmatmul.mubr.bf16.gmra.mxu0 %v2168
      %v10951 = vpop.f32.mrf.mxu0
      %v10952 = vadd.f32 %v10911, %v10951
      %v10953 = vpop.f32.mrf.mxu0
      %v10954 = vadd.f32 %v10913, %v10953
      %v10955 = vpop.f32.mrf.mxu0
      %v10956 = vpop.f32.mrf.mxu0
      %10957 = vdwg.mxu0
      %10958 = vmatprep.subr.bf16.mxu0 %v8334
      %10959 = vmatpush1.bf16.msra.mxu0 %v8333
      %10960 = vmatprep.subr.bf16.mxu0 %v8330
      %10961 = vmatpush1.bf16.msra.mxu0 %v8329
      %10962 = vmatprep.subr.bf16.mxu0 %v8326
      %10963 = vmatpush1.bf16.msra.mxu0 %v8325
      %10964 = vmatprep.subr.bf16.mxu0 %v8322
      %10965 = vmatpush1.bf16.msra.mxu0 %v8321
      %10966 = vmatprep.subr.bf16.mxu0 %v8318
      %10967 = vmatpush1.bf16.msra.mxu0 %v8317
      %10968 = vmatprep.subr.bf16.mxu0 %v8314
      %10969 = vmatpush1.bf16.msra.mxu0 %v8313
      %10970 = vmatprep.subr.bf16.mxu0 %v8310
      %10971 = vmatpush1.bf16.msra.mxu0 %v8309
      %10972 = vmatprep.subr.bf16.mxu0 %v8306
      %10973 = vmatpush1.bf16.msra.mxu0 %v8305
      %10974 = vmatprep.subr.bf16.mxu0 %v8366
      %10975 = vmatpush2.bf16.msra.mxu0 %v8365
      %10976 = vmatprep.subr.bf16.mxu0 %v8362
      %10977 = vmatpush2.bf16.msra.mxu0 %v8361
      %10978 = vmatprep.subr.bf16.mxu0 %v8358
      %10979 = vmatpush2.bf16.msra.mxu0 %v8357
      %10980 = vmatprep.subr.bf16.mxu0 %v8354
      %10981 = vmatpush2.bf16.msra.mxu0 %v8353
      %10982 = vmatprep.subr.bf16.mxu0 %v8350
      %10983 = vmatpush2.bf16.msra.mxu0 %v8349
      %10984 = vmatprep.subr.bf16.mxu0 %v8346
      %10985 = vmatpush2.bf16.msra.mxu0 %v8345
      %10986 = vmatprep.subr.bf16.mxu0 %v8342
      %10987 = vmatpush2.bf16.msra.mxu0 %v8341
      %10988 = vmatprep.subr.bf16.mxu0 %v8338
      %10989 = vmatpush2.bf16.msra.mxu0 %v8337
      %10990 = vmatprep.mubr.bf16.mxu0 %v2192
      %10991 = vmatmul.mubr.bf16.gmra.mxu0 %v2190
      %v10992 = vpop.f32.mrf.mxu0
      %v10993 = vadd.f32 %v10952, %v10992
      %v10994 = vpop.f32.mrf.mxu0
      %v10995 = vadd.f32 %v10954, %v10994
      %v10996 = vpop.f32.mrf.mxu0
      %v10997 = vpop.f32.mrf.mxu0
      %10998 = vdwg.mxu0
      %10999 = vmatprep.subr.bf16.mxu0 %v8398
      %11000 = vmatpush1.bf16.msra.mxu0 %v8397
      %11001 = vmatprep.subr.bf16.mxu0 %v8394
      %11002 = vmatpush1.bf16.msra.mxu0 %v8393
      %11003 = vmatprep.subr.bf16.mxu0 %v8390
      %11004 = vmatpush1.bf16.msra.mxu0 %v8389
      %11005 = vmatprep.subr.bf16.mxu0 %v8386
      %11006 = vmatpush1.bf16.msra.mxu0 %v8385
      %11007 = vmatprep.subr.bf16.mxu0 %v8382
      %11008 = vmatpush1.bf16.msra.mxu0 %v8381
      %11009 = vmatprep.subr.bf16.mxu0 %v8378
      %11010 = vmatpush1.bf16.msra.mxu0 %v8377
      %11011 = vmatprep.subr.bf16.mxu0 %v8374
      %11012 = vmatpush1.bf16.msra.mxu0 %v8373
      %11013 = vmatprep.subr.bf16.mxu0 %v8370
      %11014 = vmatpush1.bf16.msra.mxu0 %v8369
      %11015 = vmatprep.subr.bf16.mxu0 %v8430
      %11016 = vmatpush2.bf16.msra.mxu0 %v8429
      %11017 = vmatprep.subr.bf16.mxu0 %v8426
      %11018 = vmatpush2.bf16.msra.mxu0 %v8425
      %11019 = vmatprep.subr.bf16.mxu0 %v8422
      %11020 = vmatpush2.bf16.msra.mxu0 %v8421
      %11021 = vmatprep.subr.bf16.mxu0 %v8418
      %11022 = vmatpush2.bf16.msra.mxu0 %v8417
      %11023 = vmatprep.subr.bf16.mxu0 %v8414
      %11024 = vmatpush2.bf16.msra.mxu0 %v8413
      %11025 = vmatprep.subr.bf16.mxu0 %v8410
      %11026 = vmatpush2.bf16.msra.mxu0 %v8409
      %11027 = vmatprep.subr.bf16.mxu0 %v8406
      %11028 = vmatpush2.bf16.msra.mxu0 %v8405
      %11029 = vmatprep.subr.bf16.mxu0 %v8402
      %11030 = vmatpush2.bf16.msra.mxu0 %v8401
      %11031 = vmatprep.mubr.bf16.mxu0 %v2189
      %11032 = vmatmul.mubr.bf16.gmra.mxu0 %v2175
      %v11033 = vpop.f32.mrf.mxu0
      %v11034 = vadd.f32 %v10993, %v11033
      %v11035 = vpop.f32.mrf.mxu0
      %v11036 = vadd.f32 %v10995, %v11035
      %v11037 = vpop.f32.mrf.mxu0
      %v11038 = vpop.f32.mrf.mxu0
      %11039 = vdwg.mxu0
      %11040 = vmatprep.subr.bf16.mxu0 %v8462
      %11041 = vmatpush1.bf16.msra.mxu0 %v8461
      %11042 = vmatprep.subr.bf16.mxu0 %v8458
      %11043 = vmatpush1.bf16.msra.mxu0 %v8457
      %11044 = vmatprep.subr.bf16.mxu0 %v8454
      %11045 = vmatpush1.bf16.msra.mxu0 %v8453
      %11046 = vmatprep.subr.bf16.mxu0 %v8450
      %11047 = vmatpush1.bf16.msra.mxu0 %v8449
      %11048 = vmatprep.subr.bf16.mxu0 %v8446
      %11049 = vmatpush1.bf16.msra.mxu0 %v8445
      %11050 = vmatprep.subr.bf16.mxu0 %v8442
      %11051 = vmatpush1.bf16.msra.mxu0 %v8441
      %11052 = vmatprep.subr.bf16.mxu0 %v8438
      %11053 = vmatpush1.bf16.msra.mxu0 %v8437
      %11054 = vmatprep.subr.bf16.mxu0 %v8434
      %11055 = vmatpush1.bf16.msra.mxu0 %v8433
      %11056 = vmatprep.subr.bf16.mxu0 %v8494
      %11057 = vmatpush2.bf16.msra.mxu0 %v8493
      %11058 = vmatprep.subr.bf16.mxu0 %v8490
      %11059 = vmatpush2.bf16.msra.mxu0 %v8489
      %11060 = vmatprep.subr.bf16.mxu0 %v8486
      %11061 = vmatpush2.bf16.msra.mxu0 %v8485
      %11062 = vmatprep.subr.bf16.mxu0 %v8482
      %11063 = vmatpush2.bf16.msra.mxu0 %v8481
      %11064 = vmatprep.subr.bf16.mxu0 %v8478
      %11065 = vmatpush2.bf16.msra.mxu0 %v8477
      %11066 = vmatprep.subr.bf16.mxu0 %v8474
      %11067 = vmatpush2.bf16.msra.mxu0 %v8473
      %11068 = vmatprep.subr.bf16.mxu0 %v8470
      %11069 = vmatpush2.bf16.msra.mxu0 %v8469
      %11070 = vmatprep.subr.bf16.mxu0 %v8466
      %11071 = vmatpush2.bf16.msra.mxu0 %v8465
      %11072 = vmatprep.mubr.bf16.mxu0 %v2193
      %11073 = vmatmul.mubr.bf16.gmra.mxu0 %v2191
      %v11074 = vpop.f32.mrf.mxu0
      %v11075 = vadd.f32 %v11034, %v11074
      %v11076 = vpop.f32.mrf.mxu0
      %v11077 = vadd.f32 %v11036, %v11076
      %v11078 = vpop.f32.mrf.mxu0
      %v11079 = vpop.f32.mrf.mxu0
      %11080 = vdwg.mxu0
      %11081 = vmatprep.subr.bf16.mxu0 %v8526
      %11082 = vmatpush1.bf16.msra.mxu0 %v8525
      %11083 = vmatprep.subr.bf16.mxu0 %v8522
      %11084 = vmatpush1.bf16.msra.mxu0 %v8521
      %11085 = vmatprep.subr.bf16.mxu0 %v8518
      %11086 = vmatpush1.bf16.msra.mxu0 %v8517
      %11087 = vmatprep.subr.bf16.mxu0 %v8514
      %11088 = vmatpush1.bf16.msra.mxu0 %v8513
      %11089 = vmatprep.subr.bf16.mxu0 %v8510
      %11090 = vmatpush1.bf16.msra.mxu0 %v8509
      %11091 = vmatprep.subr.bf16.mxu0 %v8506
      %11092 = vmatpush1.bf16.msra.mxu0 %v8505
      %11093 = vmatprep.subr.bf16.mxu0 %v8502
      %11094 = vmatpush1.bf16.msra.mxu0 %v8501
      %11095 = vmatprep.subr.bf16.mxu0 %v8498
      %11096 = vmatpush1.bf16.msra.mxu0 %v8497
      %11097 = vmatprep.subr.bf16.mxu0 0
      %11098 = vmatpush2.bf16.msra.mxu0 0
      %11099 = vmatprep.subr.bf16.mxu0 0
      %11100 = vmatpush2.bf16.msra.mxu0 0
      %11101 = vmatprep.subr.bf16.mxu0 0
      %11102 = vmatpush2.bf16.msra.mxu0 0
      %11103 = vmatprep.subr.bf16.mxu0 0
      %11104 = vmatpush2.bf16.msra.mxu0 0
      %11105 = vmatprep.subr.bf16.mxu0 0
      %11106 = vmatpush2.bf16.msra.mxu0 0
      %11107 = vmatprep.subr.bf16.mxu0 0
      %11108 = vmatpush2.bf16.msra.mxu0 0
      %11109 = vmatprep.subr.bf16.mxu0 0
      %11110 = vmatpush2.bf16.msra.mxu0 0
      %11111 = vmatprep.subr.bf16.mxu0 0
      %11112 = vmatpush2.bf16.msra.mxu0 0
      %11113 = vmatprep.mubr.bf16.mxu0 0
      %11114 = vmatmul.mubr.bf16.gmra.mxu0 %v2207
      %v11115 = vpop.f32.mrf.mxu0
      %v11116 = vadd.f32 %v11075, %v11115
      %v11117 = vpop.f32.mrf.mxu0
      %v11118 = vadd.f32 %v11077, %v11117
      %v11119 = vpop.f32.mrf.mxu0
      %v11120 = vpop.f32.mrf.mxu0
      %11121 = vdwg.mxu0
      %11122 = vmatprep.subr.bf16.mxu0 %v6992
      %11123 = vmatpush1.bf16.msra.mxu0 %v6991
      %11124 = vmatprep.subr.bf16.mxu0 %v6988
      %11125 = vmatpush1.bf16.msra.mxu0 %v6987
      %11126 = vmatprep.subr.bf16.mxu0 %v6984
      %11127 = vmatpush1.bf16.msra.mxu0 %v6983
      %11128 = vmatprep.subr.bf16.mxu0 %v6980
      %11129 = vmatpush1.bf16.msra.mxu0 %v6979
      %11130 = vmatprep.subr.bf16.mxu0 %v6976
      %11131 = vmatpush1.bf16.msra.mxu0 %v6975
      %11132 = vmatprep.subr.bf16.mxu0 %v6972
      %11133 = vmatpush1.bf16.msra.mxu0 %v6971
      %11134 = vmatprep.subr.bf16.mxu0 %v6968
      %11135 = vmatpush1.bf16.msra.mxu0 %v6967
      %11136 = vmatprep.subr.bf16.mxu0 %v6964
      %11137 = vmatpush1.bf16.msra.mxu0 %v6963
      %11138 = vmatprep.subr.bf16.mxu0 %v7024
      %11139 = vmatpush2.bf16.msra.mxu0 %v7023
      %11140 = vmatprep.subr.bf16.mxu0 %v7020
      %11141 = vmatpush2.bf16.msra.mxu0 %v7019
      %11142 = vmatprep.subr.bf16.mxu0 %v7016
      %11143 = vmatpush2.bf16.msra.mxu0 %v7015
      %11144 = vmatprep.subr.bf16.mxu0 %v7012
      %11145 = vmatpush2.bf16.msra.mxu0 %v7011
      %11146 = vmatprep.subr.bf16.mxu0 %v7008
      %11147 = vmatpush2.bf16.msra.mxu0 %v7007
      %11148 = vmatprep.subr.bf16.mxu0 %v7004
      %11149 = vmatpush2.bf16.msra.mxu0 %v7003
      %11150 = vmatprep.subr.bf16.mxu0 %v7000
      %11151 = vmatpush2.bf16.msra.mxu0 %v6999
      %11152 = vmatprep.subr.bf16.mxu0 %v6996
      %11153 = vmatpush2.bf16.msra.mxu0 %v6995
      %11154 = vmatprep.mubr.bf16.mxu0 %v1937
      %11155 = vmatmul.mubr.bf16.gmra.mxu0 %v1923
      %v11156 = vpop.f32.mrf.mxu0
      %v11157 = vadd.f32 0.0, %v11156
      %v11158 = vpop.f32.mrf.mxu0
      %v11159 = vadd.f32 0.0, %v11158
      %v11160 = vpop.f32.mrf.mxu0
      %v11161 = vpop.f32.mrf.mxu0
      %11162 = vdwg.mxu0
      %11163 = vmatprep.subr.bf16.mxu0 %v7056
      %11164 = vmatpush1.bf16.msra.mxu0 %v7055
      %11165 = vmatprep.subr.bf16.mxu0 %v7052
      %11166 = vmatpush1.bf16.msra.mxu0 %v7051
      %11167 = vmatprep.subr.bf16.mxu0 %v7048
      %11168 = vmatpush1.bf16.msra.mxu0 %v7047
      %11169 = vmatprep.subr.bf16.mxu0 %v7044
      %11170 = vmatpush1.bf16.msra.mxu0 %v7043
      %11171 = vmatprep.subr.bf16.mxu0 %v7040
      %11172 = vmatpush1.bf16.msra.mxu0 %v7039
      %11173 = vmatprep.subr.bf16.mxu0 %v7036
      %11174 = vmatpush1.bf16.msra.mxu0 %v7035
      %11175 = vmatprep.subr.bf16.mxu0 %v7032
      %11176 = vmatpush1.bf16.msra.mxu0 %v7031
      %11177 = vmatprep.subr.bf16.mxu0 %v7028
      %11178 = vmatpush1.bf16.msra.mxu0 %v7027
      %11179 = vmatprep.subr.bf16.mxu0 %v7088
      %11180 = vmatpush2.bf16.msra.mxu0 %v7087
      %11181 = vmatprep.subr.bf16.mxu0 %v7084
      %11182 = vmatpush2.bf16.msra.mxu0 %v7083
      %11183 = vmatprep.subr.bf16.mxu0 %v7080
      %11184 = vmatpush2.bf16.msra.mxu0 %v7079
      %11185 = vmatprep.subr.bf16.mxu0 %v7076
      %11186 = vmatpush2.bf16.msra.mxu0 %v7075
      %11187 = vmatprep.subr.bf16.mxu0 %v7072
      %11188 = vmatpush2.bf16.msra.mxu0 %v7071
      %11189 = vmatprep.subr.bf16.mxu0 %v7068
      %11190 = vmatpush2.bf16.msra.mxu0 %v7067
      %11191 = vmatprep.subr.bf16.mxu0 %v7064
      %11192 = vmatpush2.bf16.msra.mxu0 %v7063
      %11193 = vmatprep.subr.bf16.mxu0 %v7060
      %11194 = vmatpush2.bf16.msra.mxu0 %v7059
      %11195 = vmatprep.mubr.bf16.mxu0 %v1947
      %11196 = vmatmul.mubr.bf16.gmra.mxu0 %v1945
      %v11197 = vpop.f32.mrf.mxu0
      %v11198 = vadd.f32 %v11157, %v11197
      %v11199 = vpop.f32.mrf.mxu0
      %v11200 = vadd.f32 %v11159, %v11199
      %v11201 = vpop.f32.mrf.mxu0
      %v11202 = vpop.f32.mrf.mxu0
      %11203 = vdwg.mxu0
      %11204 = vmatprep.subr.bf16.mxu0 %v7120
      %11205 = vmatpush1.bf16.msra.mxu0 %v7119
      %11206 = vmatprep.subr.bf16.mxu0 %v7116
      %11207 = vmatpush1.bf16.msra.mxu0 %v7115
      %11208 = vmatprep.subr.bf16.mxu0 %v7112
      %11209 = vmatpush1.bf16.msra.mxu0 %v7111
      %11210 = vmatprep.subr.bf16.mxu0 %v7108
      %11211 = vmatpush1.bf16.msra.mxu0 %v7107
      %11212 = vmatprep.subr.bf16.mxu0 %v7104
      %11213 = vmatpush1.bf16.msra.mxu0 %v7103
      %11214 = vmatprep.subr.bf16.mxu0 %v7100
      %11215 = vmatpush1.bf16.msra.mxu0 %v7099
      %11216 = vmatprep.subr.bf16.mxu0 %v7096
      %11217 = vmatpush1.bf16.msra.mxu0 %v7095
      %11218 = vmatprep.subr.bf16.mxu0 %v7092
      %11219 = vmatpush1.bf16.msra.mxu0 %v7091
      %11220 = vmatprep.subr.bf16.mxu0 %v7152
      %11221 = vmatpush2.bf16.msra.mxu0 %v7151
      %11222 = vmatprep.subr.bf16.mxu0 %v7148
      %11223 = vmatpush2.bf16.msra.mxu0 %v7147
      %11224 = vmatprep.subr.bf16.mxu0 %v7144
      %11225 = vmatpush2.bf16.msra.mxu0 %v7143
      %11226 = vmatprep.subr.bf16.mxu0 %v7140
      %11227 = vmatpush2.bf16.msra.mxu0 %v7139
      %11228 = vmatprep.subr.bf16.mxu0 %v7136
      %11229 = vmatpush2.bf16.msra.mxu0 %v7135
      %11230 = vmatprep.subr.bf16.mxu0 %v7132
      %11231 = vmatpush2.bf16.msra.mxu0 %v7131
      %11232 = vmatprep.subr.bf16.mxu0 %v7128
      %11233 = vmatpush2.bf16.msra.mxu0 %v7127
      %11234 = vmatprep.subr.bf16.mxu0 %v7124
      %11235 = vmatpush2.bf16.msra.mxu0 %v7123
      %11236 = vmatprep.mubr.bf16.mxu0 %v1944
      %11237 = vmatmul.mubr.bf16.gmra.mxu0 %v1930
      %v11238 = vpop.f32.mrf.mxu0
      %v11239 = vadd.f32 %v11198, %v11238
      %v11240 = vpop.f32.mrf.mxu0
      %v11241 = vadd.f32 %v11200, %v11240
      %v11242 = vpop.f32.mrf.mxu0
      %v11243 = vpop.f32.mrf.mxu0
      %11244 = vdwg.mxu0
      %11245 = vmatprep.subr.bf16.mxu0 %v7184
      %11246 = vmatpush1.bf16.msra.mxu0 %v7183
      %11247 = vmatprep.subr.bf16.mxu0 %v7180
      %11248 = vmatpush1.bf16.msra.mxu0 %v7179
      %11249 = vmatprep.subr.bf16.mxu0 %v7176
      %11250 = vmatpush1.bf16.msra.mxu0 %v7175
      %11251 = vmatprep.subr.bf16.mxu0 %v7172
      %11252 = vmatpush1.bf16.msra.mxu0 %v7171
      %11253 = vmatprep.subr.bf16.mxu0 %v7168
      %11254 = vmatpush1.bf16.msra.mxu0 %v7167
      %11255 = vmatprep.subr.bf16.mxu0 %v7164
      %11256 = vmatpush1.bf16.msra.mxu0 %v7163
      %11257 = vmatprep.subr.bf16.mxu0 %v7160
      %11258 = vmatpush1.bf16.msra.mxu0 %v7159
      %11259 = vmatprep.subr.bf16.mxu0 %v7156
      %11260 = vmatpush1.bf16.msra.mxu0 %v7155
      %11261 = vmatprep.subr.bf16.mxu0 %v7216
      %11262 = vmatpush2.bf16.msra.mxu0 %v7215
      %11263 = vmatprep.subr.bf16.mxu0 %v7212
      %11264 = vmatpush2.bf16.msra.mxu0 %v7211
      %11265 = vmatprep.subr.bf16.mxu0 %v7208
      %11266 = vmatpush2.bf16.msra.mxu0 %v7207
      %11267 = vmatprep.subr.bf16.mxu0 %v7204
      %11268 = vmatpush2.bf16.msra.mxu0 %v7203
      %11269 = vmatprep.subr.bf16.mxu0 %v7200
      %11270 = vmatpush2.bf16.msra.mxu0 %v7199
      %11271 = vmatprep.subr.bf16.mxu0 %v7196
      %11272 = vmatpush2.bf16.msra.mxu0 %v7195
      %11273 = vmatprep.subr.bf16.mxu0 %v7192
      %11274 = vmatpush2.bf16.msra.mxu0 %v7191
      %11275 = vmatprep.subr.bf16.mxu0 %v7188
      %11276 = vmatpush2.bf16.msra.mxu0 %v7187
      %11277 = vmatprep.mubr.bf16.mxu0 %v1948
      %11278 = vmatmul.mubr.bf16.gmra.mxu0 %v1946
      %v11279 = vpop.f32.mrf.mxu0
      %v11280 = vadd.f32 %v11239, %v11279
      %v11281 = vpop.f32.mrf.mxu0
      %v11282 = vadd.f32 %v11241, %v11281
      %v11283 = vpop.f32.mrf.mxu0
      %v11284 = vpop.f32.mrf.mxu0
      %11285 = vdwg.mxu0
      %11286 = vmatprep.subr.bf16.mxu0 %v7248
      %11287 = vmatpush1.bf16.msra.mxu0 %v7247
      %11288 = vmatprep.subr.bf16.mxu0 %v7244
      %11289 = vmatpush1.bf16.msra.mxu0 %v7243
      %11290 = vmatprep.subr.bf16.mxu0 %v7240
      %11291 = vmatpush1.bf16.msra.mxu0 %v7239
      %11292 = vmatprep.subr.bf16.mxu0 %v7236
      %11293 = vmatpush1.bf16.msra.mxu0 %v7235
      %11294 = vmatprep.subr.bf16.mxu0 %v7232
      %11295 = vmatpush1.bf16.msra.mxu0 %v7231
      %11296 = vmatprep.subr.bf16.mxu0 %v7228
      %11297 = vmatpush1.bf16.msra.mxu0 %v7227
      %11298 = vmatprep.subr.bf16.mxu0 %v7224
      %11299 = vmatpush1.bf16.msra.mxu0 %v7223
      %11300 = vmatprep.subr.bf16.mxu0 %v7220
      %11301 = vmatpush1.bf16.msra.mxu0 %v7219
      %11302 = vmatprep.subr.bf16.mxu0 %v7280
      %11303 = vmatpush2.bf16.msra.mxu0 %v7279
      %11304 = vmatprep.subr.bf16.mxu0 %v7276
      %11305 = vmatpush2.bf16.msra.mxu0 %v7275
      %11306 = vmatprep.subr.bf16.mxu0 %v7272
      %11307 = vmatpush2.bf16.msra.mxu0 %v7271
      %11308 = vmatprep.subr.bf16.mxu0 %v7268
      %11309 = vmatpush2.bf16.msra.mxu0 %v7267
      %11310 = vmatprep.subr.bf16.mxu0 %v7264
      %11311 = vmatpush2.bf16.msra.mxu0 %v7263
      %11312 = vmatprep.subr.bf16.mxu0 %v7260
      %11313 = vmatpush2.bf16.msra.mxu0 %v7259
      %11314 = vmatprep.subr.bf16.mxu0 %v7256
      %11315 = vmatpush2.bf16.msra.mxu0 %v7255
      %11316 = vmatprep.subr.bf16.mxu0 %v7252
      %11317 = vmatpush2.bf16.msra.mxu0 %v7251
      %11318 = vmatprep.mubr.bf16.mxu0 %v1986
      %11319 = vmatmul.mubr.bf16.gmra.mxu0 %v1972
      %v11320 = vpop.f32.mrf.mxu0
      %v11321 = vadd.f32 %v11280, %v11320
      %v11322 = vpop.f32.mrf.mxu0
      %v11323 = vadd.f32 %v11282, %v11322
      %v11324 = vpop.f32.mrf.mxu0
      %v11325 = vpop.f32.mrf.mxu0
      %11326 = vdwg.mxu0
      %11327 = vmatprep.subr.bf16.mxu0 %v7312
      %11328 = vmatpush1.bf16.msra.mxu0 %v7311
      %11329 = vmatprep.subr.bf16.mxu0 %v7308
      %11330 = vmatpush1.bf16.msra.mxu0 %v7307
      %11331 = vmatprep.subr.bf16.mxu0 %v7304
      %11332 = vmatpush1.bf16.msra.mxu0 %v7303
      %11333 = vmatprep.subr.bf16.mxu0 %v7300
      %11334 = vmatpush1.bf16.msra.mxu0 %v7299
      %11335 = vmatprep.subr.bf16.mxu0 %v7296
      %11336 = vmatpush1.bf16.msra.mxu0 %v7295
      %11337 = vmatprep.subr.bf16.mxu0 %v7292
      %11338 = vmatpush1.bf16.msra.mxu0 %v7291
      %11339 = vmatprep.subr.bf16.mxu0 %v7288
      %11340 = vmatpush1.bf16.msra.mxu0 %v7287
      %11341 = vmatprep.subr.bf16.mxu0 %v7284
      %11342 = vmatpush1.bf16.msra.mxu0 %v7283
      %11343 = vmatprep.subr.bf16.mxu0 %v7344
      %11344 = vmatpush2.bf16.msra.mxu0 %v7343
      %11345 = vmatprep.subr.bf16.mxu0 %v7340
      %11346 = vmatpush2.bf16.msra.mxu0 %v7339
      %11347 = vmatprep.subr.bf16.mxu0 %v7336
      %11348 = vmatpush2.bf16.msra.mxu0 %v7335
      %11349 = vmatprep.subr.bf16.mxu0 %v7332
      %11350 = vmatpush2.bf16.msra.mxu0 %v7331
      %11351 = vmatprep.subr.bf16.mxu0 %v7328
      %11352 = vmatpush2.bf16.msra.mxu0 %v7327
      %11353 = vmatprep.subr.bf16.mxu0 %v7324
      %11354 = vmatpush2.bf16.msra.mxu0 %v7323
      %11355 = vmatprep.subr.bf16.mxu0 %v7320
      %11356 = vmatpush2.bf16.msra.mxu0 %v7319
      %11357 = vmatprep.subr.bf16.mxu0 %v7316
      %11358 = vmatpush2.bf16.msra.mxu0 %v7315
      %11359 = vmatprep.mubr.bf16.mxu0 %v1996
      %11360 = vmatmul.mubr.bf16.gmra.mxu0 %v1994
      %v11361 = vpop.f32.mrf.mxu0
      %v11362 = vadd.f32 %v11321, %v11361
      %v11363 = vpop.f32.mrf.mxu0
      %v11364 = vadd.f32 %v11323, %v11363
      %v11365 = vpop.f32.mrf.mxu0
      %v11366 = vpop.f32.mrf.mxu0
      %11367 = vdwg.mxu0
      %11368 = vmatprep.subr.bf16.mxu0 %v7376
      %11369 = vmatpush1.bf16.msra.mxu0 %v7375
      %11370 = vmatprep.subr.bf16.mxu0 %v7372
      %11371 = vmatpush1.bf16.msra.mxu0 %v7371
      %11372 = vmatprep.subr.bf16.mxu0 %v7368
      %11373 = vmatpush1.bf16.msra.mxu0 %v7367
      %11374 = vmatprep.subr.bf16.mxu0 %v7364
      %11375 = vmatpush1.bf16.msra.mxu0 %v7363
      %11376 = vmatprep.subr.bf16.mxu0 %v7360
      %11377 = vmatpush1.bf16.msra.mxu0 %v7359
      %11378 = vmatprep.subr.bf16.mxu0 %v7356
      %11379 = vmatpush1.bf16.msra.mxu0 %v7355
      %11380 = vmatprep.subr.bf16.mxu0 %v7352
      %11381 = vmatpush1.bf16.msra.mxu0 %v7351
      %11382 = vmatprep.subr.bf16.mxu0 %v7348
      %11383 = vmatpush1.bf16.msra.mxu0 %v7347
      %11384 = vmatprep.subr.bf16.mxu0 %v7408
      %11385 = vmatpush2.bf16.msra.mxu0 %v7407
      %11386 = vmatprep.subr.bf16.mxu0 %v7404
      %11387 = vmatpush2.bf16.msra.mxu0 %v7403
      %11388 = vmatprep.subr.bf16.mxu0 %v7400
      %11389 = vmatpush2.bf16.msra.mxu0 %v7399
      %11390 = vmatprep.subr.bf16.mxu0 %v7396
      %11391 = vmatpush2.bf16.msra.mxu0 %v7395
      %11392 = vmatprep.subr.bf16.mxu0 %v7392
      %11393 = vmatpush2.bf16.msra.mxu0 %v7391
      %11394 = vmatprep.subr.bf16.mxu0 %v7388
      %11395 = vmatpush2.bf16.msra.mxu0 %v7387
      %11396 = vmatprep.subr.bf16.mxu0 %v7384
      %11397 = vmatpush2.bf16.msra.mxu0 %v7383
      %11398 = vmatprep.subr.bf16.mxu0 %v7380
      %11399 = vmatpush2.bf16.msra.mxu0 %v7379
      %11400 = vmatprep.mubr.bf16.mxu0 %v1993
      %11401 = vmatmul.mubr.bf16.gmra.mxu0 %v1979
      %v11402 = vpop.f32.mrf.mxu0
      %v11403 = vadd.f32 %v11362, %v11402
      %v11404 = vpop.f32.mrf.mxu0
      %v11405 = vadd.f32 %v11364, %v11404
      %v11406 = vpop.f32.mrf.mxu0
      %v11407 = vpop.f32.mrf.mxu0
      %11408 = vdwg.mxu0
      %11409 = vmatprep.subr.bf16.mxu0 %v7440
      %11410 = vmatpush1.bf16.msra.mxu0 %v7439
      %11411 = vmatprep.subr.bf16.mxu0 %v7436
      %11412 = vmatpush1.bf16.msra.mxu0 %v7435
      %11413 = vmatprep.subr.bf16.mxu0 %v7432
      %11414 = vmatpush1.bf16.msra.mxu0 %v7431
      %11415 = vmatprep.subr.bf16.mxu0 %v7428
      %11416 = vmatpush1.bf16.msra.mxu0 %v7427
      %11417 = vmatprep.subr.bf16.mxu0 %v7424
      %11418 = vmatpush1.bf16.msra.mxu0 %v7423
      %11419 = vmatprep.subr.bf16.mxu0 %v7420
      %11420 = vmatpush1.bf16.msra.mxu0 %v7419
      %11421 = vmatprep.subr.bf16.mxu0 %v7416
      %11422 = vmatpush1.bf16.msra.mxu0 %v7415
      %11423 = vmatprep.subr.bf16.mxu0 %v7412
      %11424 = vmatpush1.bf16.msra.mxu0 %v7411
      %11425 = vmatprep.subr.bf16.mxu0 %v7472
      %11426 = vmatpush2.bf16.msra.mxu0 %v7471
      %11427 = vmatprep.subr.bf16.mxu0 %v7468
      %11428 = vmatpush2.bf16.msra.mxu0 %v7467
      %11429 = vmatprep.subr.bf16.mxu0 %v7464
      %11430 = vmatpush2.bf16.msra.mxu0 %v7463
      %11431 = vmatprep.subr.bf16.mxu0 %v7460
      %11432 = vmatpush2.bf16.msra.mxu0 %v7459
      %11433 = vmatprep.subr.bf16.mxu0 %v7456
      %11434 = vmatpush2.bf16.msra.mxu0 %v7455
      %11435 = vmatprep.subr.bf16.mxu0 %v7452
      %11436 = vmatpush2.bf16.msra.mxu0 %v7451
      %11437 = vmatprep.subr.bf16.mxu0 %v7448
      %11438 = vmatpush2.bf16.msra.mxu0 %v7447
      %11439 = vmatprep.subr.bf16.mxu0 %v7444
      %11440 = vmatpush2.bf16.msra.mxu0 %v7443
      %11441 = vmatprep.mubr.bf16.mxu0 %v1997
      %11442 = vmatmul.mubr.bf16.gmra.mxu0 %v1995
      %v11443 = vpop.f32.mrf.mxu0
      %v11444 = vadd.f32 %v11403, %v11443
      %v11445 = vpop.f32.mrf.mxu0
      %v11446 = vadd.f32 %v11405, %v11445
      %v11447 = vpop.f32.mrf.mxu0
      %v11448 = vpop.f32.mrf.mxu0
      %11449 = vdwg.mxu0
      %11450 = vmatprep.subr.bf16.mxu0 %v7504
      %11451 = vmatpush1.bf16.msra.mxu0 %v7503
      %11452 = vmatprep.subr.bf16.mxu0 %v7500
      %11453 = vmatpush1.bf16.msra.mxu0 %v7499
      %11454 = vmatprep.subr.bf16.mxu0 %v7496
      %11455 = vmatpush1.bf16.msra.mxu0 %v7495
      %11456 = vmatprep.subr.bf16.mxu0 %v7492
      %11457 = vmatpush1.bf16.msra.mxu0 %v7491
      %11458 = vmatprep.subr.bf16.mxu0 %v7488
      %11459 = vmatpush1.bf16.msra.mxu0 %v7487
      %11460 = vmatprep.subr.bf16.mxu0 %v7484
      %11461 = vmatpush1.bf16.msra.mxu0 %v7483
      %11462 = vmatprep.subr.bf16.mxu0 %v7480
      %11463 = vmatpush1.bf16.msra.mxu0 %v7479
      %11464 = vmatprep.subr.bf16.mxu0 %v7476
      %11465 = vmatpush1.bf16.msra.mxu0 %v7475
      %11466 = vmatprep.subr.bf16.mxu0 %v7536
      %11467 = vmatpush2.bf16.msra.mxu0 %v7535
      %11468 = vmatprep.subr.bf16.mxu0 %v7532
      %11469 = vmatpush2.bf16.msra.mxu0 %v7531
      %11470 = vmatprep.subr.bf16.mxu0 %v7528
      %11471 = vmatpush2.bf16.msra.mxu0 %v7527
      %11472 = vmatprep.subr.bf16.mxu0 %v7524
      %11473 = vmatpush2.bf16.msra.mxu0 %v7523
      %11474 = vmatprep.subr.bf16.mxu0 %v7520
      %11475 = vmatpush2.bf16.msra.mxu0 %v7519
      %11476 = vmatprep.subr.bf16.mxu0 %v7516
      %11477 = vmatpush2.bf16.msra.mxu0 %v7515
      %11478 = vmatprep.subr.bf16.mxu0 %v7512
      %11479 = vmatpush2.bf16.msra.mxu0 %v7511
      %11480 = vmatprep.subr.bf16.mxu0 %v7508
      %11481 = vmatpush2.bf16.msra.mxu0 %v7507
      %11482 = vmatprep.mubr.bf16.mxu0 %v2035
      %11483 = vmatmul.mubr.bf16.gmra.mxu0 %v2021
      %v11484 = vpop.f32.mrf.mxu0
      %v11485 = vadd.f32 %v11444, %v11484
      %v11486 = vpop.f32.mrf.mxu0
      %v11487 = vadd.f32 %v11446, %v11486
      %v11488 = vpop.f32.mrf.mxu0
      %v11489 = vpop.f32.mrf.mxu0
      %11490 = vdwg.mxu0
      %11491 = vmatprep.subr.bf16.mxu0 %v7568
      %11492 = vmatpush1.bf16.msra.mxu0 %v7567
      %11493 = vmatprep.subr.bf16.mxu0 %v7564
      %11494 = vmatpush1.bf16.msra.mxu0 %v7563
      %11495 = vmatprep.subr.bf16.mxu0 %v7560
      %11496 = vmatpush1.bf16.msra.mxu0 %v7559
      %11497 = vmatprep.subr.bf16.mxu0 %v7556
      %11498 = vmatpush1.bf16.msra.mxu0 %v7555
      %11499 = vmatprep.subr.bf16.mxu0 %v7552
      %11500 = vmatpush1.bf16.msra.mxu0 %v7551
      %11501 = vmatprep.subr.bf16.mxu0 %v7548
      %11502 = vmatpush1.bf16.msra.mxu0 %v7547
      %11503 = vmatprep.subr.bf16.mxu0 %v7544
      %11504 = vmatpush1.bf16.msra.mxu0 %v7543
      %11505 = vmatprep.subr.bf16.mxu0 %v7540
      %11506 = vmatpush1.bf16.msra.mxu0 %v7539
      %11507 = vmatprep.subr.bf16.mxu0 %v7600
      %11508 = vmatpush2.bf16.msra.mxu0 %v7599
      %11509 = vmatprep.subr.bf16.mxu0 %v7596
      %11510 = vmatpush2.bf16.msra.mxu0 %v7595
      %11511 = vmatprep.subr.bf16.mxu0 %v7592
      %11512 = vmatpush2.bf16.msra.mxu0 %v7591
      %11513 = vmatprep.subr.bf16.mxu0 %v7588
      %11514 = vmatpush2.bf16.msra.mxu0 %v7587
      %11515 = vmatprep.subr.bf16.mxu0 %v7584
      %11516 = vmatpush2.bf16.msra.mxu0 %v7583
      %11517 = vmatprep.subr.bf16.mxu0 %v7580
      %11518 = vmatpush2.bf16.msra.mxu0 %v7579
      %11519 = vmatprep.subr.bf16.mxu0 %v7576
      %11520 = vmatpush2.bf16.msra.mxu0 %v7575
      %11521 = vmatprep.subr.bf16.mxu0 %v7572
      %11522 = vmatpush2.bf16.msra.mxu0 %v7571
      %11523 = vmatprep.mubr.bf16.mxu0 %v2045
      %11524 = vmatmul.mubr.bf16.gmra.mxu0 %v2043
      %v11525 = vpop.f32.mrf.mxu0
      %v11526 = vadd.f32 %v11485, %v11525
      %v11527 = vpop.f32.mrf.mxu0
      %v11528 = vadd.f32 %v11487, %v11527
      %v11529 = vpop.f32.mrf.mxu0
      %v11530 = vpop.f32.mrf.mxu0
      %11531 = vdwg.mxu0
      %11532 = vmatprep.subr.bf16.mxu0 %v7632
      %11533 = vmatpush1.bf16.msra.mxu0 %v7631
      %11534 = vmatprep.subr.bf16.mxu0 %v7628
      %11535 = vmatpush1.bf16.msra.mxu0 %v7627
      %11536 = vmatprep.subr.bf16.mxu0 %v7624
      %11537 = vmatpush1.bf16.msra.mxu0 %v7623
      %11538 = vmatprep.subr.bf16.mxu0 %v7620
      %11539 = vmatpush1.bf16.msra.mxu0 %v7619
      %11540 = vmatprep.subr.bf16.mxu0 %v7616
      %11541 = vmatpush1.bf16.msra.mxu0 %v7615
      %11542 = vmatprep.subr.bf16.mxu0 %v7612
      %11543 = vmatpush1.bf16.msra.mxu0 %v7611
      %11544 = vmatprep.subr.bf16.mxu0 %v7608
      %11545 = vmatpush1.bf16.msra.mxu0 %v7607
      %11546 = vmatprep.subr.bf16.mxu0 %v7604
      %11547 = vmatpush1.bf16.msra.mxu0 %v7603
      %11548 = vmatprep.subr.bf16.mxu0 %v7664
      %11549 = vmatpush2.bf16.msra.mxu0 %v7663
      %11550 = vmatprep.subr.bf16.mxu0 %v7660
      %11551 = vmatpush2.bf16.msra.mxu0 %v7659
      %11552 = vmatprep.subr.bf16.mxu0 %v7656
      %11553 = vmatpush2.bf16.msra.mxu0 %v7655
      %11554 = vmatprep.subr.bf16.mxu0 %v7652
      %11555 = vmatpush2.bf16.msra.mxu0 %v7651
      %11556 = vmatprep.subr.bf16.mxu0 %v7648
      %11557 = vmatpush2.bf16.msra.mxu0 %v7647
      %11558 = vmatprep.subr.bf16.mxu0 %v7644
      %11559 = vmatpush2.bf16.msra.mxu0 %v7643
      %11560 = vmatprep.subr.bf16.mxu0 %v7640
      %11561 = vmatpush2.bf16.msra.mxu0 %v7639
      %11562 = vmatprep.subr.bf16.mxu0 %v7636
      %11563 = vmatpush2.bf16.msra.mxu0 %v7635
      %11564 = vmatprep.mubr.bf16.mxu0 %v2042
      %11565 = vmatmul.mubr.bf16.gmra.mxu0 %v2028
      %v11566 = vpop.f32.mrf.mxu0
      %v11567 = vadd.f32 %v11526, %v11566
      %v11568 = vpop.f32.mrf.mxu0
      %v11569 = vadd.f32 %v11528, %v11568
      %v11570 = vpop.f32.mrf.mxu0
      %v11571 = vpop.f32.mrf.mxu0
      %11572 = vdwg.mxu0
      %11573 = vmatprep.subr.bf16.mxu0 %v7696
      %11574 = vmatpush1.bf16.msra.mxu0 %v7695
      %11575 = vmatprep.subr.bf16.mxu0 %v7692
      %11576 = vmatpush1.bf16.msra.mxu0 %v7691
      %11577 = vmatprep.subr.bf16.mxu0 %v7688
      %11578 = vmatpush1.bf16.msra.mxu0 %v7687
      %11579 = vmatprep.subr.bf16.mxu0 %v7684
      %11580 = vmatpush1.bf16.msra.mxu0 %v7683
      %11581 = vmatprep.subr.bf16.mxu0 %v7680
      %11582 = vmatpush1.bf16.msra.mxu0 %v7679
      %11583 = vmatprep.subr.bf16.mxu0 %v7676
      %11584 = vmatpush1.bf16.msra.mxu0 %v7675
      %11585 = vmatprep.subr.bf16.mxu0 %v7672
      %11586 = vmatpush1.bf16.msra.mxu0 %v7671
      %11587 = vmatprep.subr.bf16.mxu0 %v7668
      %11588 = vmatpush1.bf16.msra.mxu0 %v7667
      %11589 = vmatprep.subr.bf16.mxu0 %v7728
      %11590 = vmatpush2.bf16.msra.mxu0 %v7727
      %11591 = vmatprep.subr.bf16.mxu0 %v7724
      %11592 = vmatpush2.bf16.msra.mxu0 %v7723
      %11593 = vmatprep.subr.bf16.mxu0 %v7720
      %11594 = vmatpush2.bf16.msra.mxu0 %v7719
      %11595 = vmatprep.subr.bf16.mxu0 %v7716
      %11596 = vmatpush2.bf16.msra.mxu0 %v7715
      %11597 = vmatprep.subr.bf16.mxu0 %v7712
      %11598 = vmatpush2.bf16.msra.mxu0 %v7711
      %11599 = vmatprep.subr.bf16.mxu0 %v7708
      %11600 = vmatpush2.bf16.msra.mxu0 %v7707
      %11601 = vmatprep.subr.bf16.mxu0 %v7704
      %11602 = vmatpush2.bf16.msra.mxu0 %v7703
      %11603 = vmatprep.subr.bf16.mxu0 %v7700
      %11604 = vmatpush2.bf16.msra.mxu0 %v7699
      %11605 = vmatprep.mubr.bf16.mxu0 %v2046
      %11606 = vmatmul.mubr.bf16.gmra.mxu0 %v2044
      %v11607 = vpop.f32.mrf.mxu0
      %v11608 = vadd.f32 %v11567, %v11607
      %v11609 = vpop.f32.mrf.mxu0
      %v11610 = vadd.f32 %v11569, %v11609
      %v11611 = vpop.f32.mrf.mxu0
      %v11612 = vpop.f32.mrf.mxu0
      %11613 = vdwg.mxu0
      %11614 = vmatprep.subr.bf16.mxu0 %v7760
      %11615 = vmatpush1.bf16.msra.mxu0 %v7759
      %11616 = vmatprep.subr.bf16.mxu0 %v7756
      %11617 = vmatpush1.bf16.msra.mxu0 %v7755
      %11618 = vmatprep.subr.bf16.mxu0 %v7752
      %11619 = vmatpush1.bf16.msra.mxu0 %v7751
      %11620 = vmatprep.subr.bf16.mxu0 %v7748
      %11621 = vmatpush1.bf16.msra.mxu0 %v7747
      %11622 = vmatprep.subr.bf16.mxu0 %v7744
      %11623 = vmatpush1.bf16.msra.mxu0 %v7743
      %11624 = vmatprep.subr.bf16.mxu0 %v7740
      %11625 = vmatpush1.bf16.msra.mxu0 %v7739
      %11626 = vmatprep.subr.bf16.mxu0 %v7736
      %11627 = vmatpush1.bf16.msra.mxu0 %v7735
      %11628 = vmatprep.subr.bf16.mxu0 %v7732
      %11629 = vmatpush1.bf16.msra.mxu0 %v7731
      %11630 = vmatprep.subr.bf16.mxu0 %v7792
      %11631 = vmatpush2.bf16.msra.mxu0 %v7791
      %11632 = vmatprep.subr.bf16.mxu0 %v7788
      %11633 = vmatpush2.bf16.msra.mxu0 %v7787
      %11634 = vmatprep.subr.bf16.mxu0 %v7784
      %11635 = vmatpush2.bf16.msra.mxu0 %v7783
      %11636 = vmatprep.subr.bf16.mxu0 %v7780
      %11637 = vmatpush2.bf16.msra.mxu0 %v7779
      %11638 = vmatprep.subr.bf16.mxu0 %v7776
      %11639 = vmatpush2.bf16.msra.mxu0 %v7775
      %11640 = vmatprep.subr.bf16.mxu0 %v7772
      %11641 = vmatpush2.bf16.msra.mxu0 %v7771
      %11642 = vmatprep.subr.bf16.mxu0 %v7768
      %11643 = vmatpush2.bf16.msra.mxu0 %v7767
      %11644 = vmatprep.subr.bf16.mxu0 %v7764
      %11645 = vmatpush2.bf16.msra.mxu0 %v7763
      %11646 = vmatprep.mubr.bf16.mxu0 %v2084
      %11647 = vmatmul.mubr.bf16.gmra.mxu0 %v2070
      %v11648 = vpop.f32.mrf.mxu0
      %v11649 = vadd.f32 %v11608, %v11648
      %v11650 = vpop.f32.mrf.mxu0
      %v11651 = vadd.f32 %v11610, %v11650
      %v11652 = vpop.f32.mrf.mxu0
      %v11653 = vpop.f32.mrf.mxu0
      %11654 = vdwg.mxu0
      %11655 = vmatprep.subr.bf16.mxu0 %v7824
      %11656 = vmatpush1.bf16.msra.mxu0 %v7823
      %11657 = vmatprep.subr.bf16.mxu0 %v7820
      %11658 = vmatpush1.bf16.msra.mxu0 %v7819
      %11659 = vmatprep.subr.bf16.mxu0 %v7816
      %11660 = vmatpush1.bf16.msra.mxu0 %v7815
      %11661 = vmatprep.subr.bf16.mxu0 %v7812
      %11662 = vmatpush1.bf16.msra.mxu0 %v7811
      %11663 = vmatprep.subr.bf16.mxu0 %v7808
      %11664 = vmatpush1.bf16.msra.mxu0 %v7807
      %11665 = vmatprep.subr.bf16.mxu0 %v7804
      %11666 = vmatpush1.bf16.msra.mxu0 %v7803
      %11667 = vmatprep.subr.bf16.mxu0 %v7800
      %11668 = vmatpush1.bf16.msra.mxu0 %v7799
      %11669 = vmatprep.subr.bf16.mxu0 %v7796
      %11670 = vmatpush1.bf16.msra.mxu0 %v7795
      %11671 = vmatprep.subr.bf16.mxu0 %v7856
      %11672 = vmatpush2.bf16.msra.mxu0 %v7855
      %11673 = vmatprep.subr.bf16.mxu0 %v7852
      %11674 = vmatpush2.bf16.msra.mxu0 %v7851
      %11675 = vmatprep.subr.bf16.mxu0 %v7848
      %11676 = vmatpush2.bf16.msra.mxu0 %v7847
      %11677 = vmatprep.subr.bf16.mxu0 %v7844
      %11678 = vmatpush2.bf16.msra.mxu0 %v7843
      %11679 = vmatprep.subr.bf16.mxu0 %v7840
      %11680 = vmatpush2.bf16.msra.mxu0 %v7839
      %11681 = vmatprep.subr.bf16.mxu0 %v7836
      %11682 = vmatpush2.bf16.msra.mxu0 %v7835
      %11683 = vmatprep.subr.bf16.mxu0 %v7832
      %11684 = vmatpush2.bf16.msra.mxu0 %v7831
      %11685 = vmatprep.subr.bf16.mxu0 %v7828
      %11686 = vmatpush2.bf16.msra.mxu0 %v7827
      %11687 = vmatprep.mubr.bf16.mxu0 %v2094
      %11688 = vmatmul.mubr.bf16.gmra.mxu0 %v2092
      %v11689 = vpop.f32.mrf.mxu0
      %v11690 = vadd.f32 %v11649, %v11689
      %v11691 = vpop.f32.mrf.mxu0
      %v11692 = vadd.f32 %v11651, %v11691
      %v11693 = vpop.f32.mrf.mxu0
      %v11694 = vpop.f32.mrf.mxu0
      %11695 = vdwg.mxu0
      %11696 = vmatprep.subr.bf16.mxu0 %v7888
      %11697 = vmatpush1.bf16.msra.mxu0 %v7887
      %11698 = vmatprep.subr.bf16.mxu0 %v7884
      %11699 = vmatpush1.bf16.msra.mxu0 %v7883
      %11700 = vmatprep.subr.bf16.mxu0 %v7880
      %11701 = vmatpush1.bf16.msra.mxu0 %v7879
      %11702 = vmatprep.subr.bf16.mxu0 %v7876
      %11703 = vmatpush1.bf16.msra.mxu0 %v7875
      %11704 = vmatprep.subr.bf16.mxu0 %v7872
      %11705 = vmatpush1.bf16.msra.mxu0 %v7871
      %11706 = vmatprep.subr.bf16.mxu0 %v7868
      %11707 = vmatpush1.bf16.msra.mxu0 %v7867
      %11708 = vmatprep.subr.bf16.mxu0 %v7864
      %11709 = vmatpush1.bf16.msra.mxu0 %v7863
      %11710 = vmatprep.subr.bf16.mxu0 %v7860
      %11711 = vmatpush1.bf16.msra.mxu0 %v7859
      %11712 = vmatprep.subr.bf16.mxu0 %v7920
      %11713 = vmatpush2.bf16.msra.mxu0 %v7919
      %11714 = vmatprep.subr.bf16.mxu0 %v7916
      %11715 = vmatpush2.bf16.msra.mxu0 %v7915
      %11716 = vmatprep.subr.bf16.mxu0 %v7912
      %11717 = vmatpush2.bf16.msra.mxu0 %v7911
      %11718 = vmatprep.subr.bf16.mxu0 %v7908
      %11719 = vmatpush2.bf16.msra.mxu0 %v7907
      %11720 = vmatprep.subr.bf16.mxu0 %v7904
      %11721 = vmatpush2.bf16.msra.mxu0 %v7903
      %11722 = vmatprep.subr.bf16.mxu0 %v7900
      %11723 = vmatpush2.bf16.msra.mxu0 %v7899
      %11724 = vmatprep.subr.bf16.mxu0 %v7896
      %11725 = vmatpush2.bf16.msra.mxu0 %v7895
      %11726 = vmatprep.subr.bf16.mxu0 %v7892
      %11727 = vmatpush2.bf16.msra.mxu0 %v7891
      %11728 = vmatprep.mubr.bf16.mxu0 %v2091
      %11729 = vmatmul.mubr.bf16.gmra.mxu0 %v2077
      %v11730 = vpop.f32.mrf.mxu0
      %v11731 = vadd.f32 %v11690, %v11730
      %v11732 = vpop.f32.mrf.mxu0
      %v11733 = vadd.f32 %v11692, %v11732
      %v11734 = vpop.f32.mrf.mxu0
      %v11735 = vpop.f32.mrf.mxu0
      %11736 = vdwg.mxu0
      %11737 = vmatprep.subr.bf16.mxu0 %v7952
      %11738 = vmatpush1.bf16.msra.mxu0 %v7951
      %11739 = vmatprep.subr.bf16.mxu0 %v7948
      %11740 = vmatpush1.bf16.msra.mxu0 %v7947
      %11741 = vmatprep.subr.bf16.mxu0 %v7944
      %11742 = vmatpush1.bf16.msra.mxu0 %v7943
      %11743 = vmatprep.subr.bf16.mxu0 %v7940
      %11744 = vmatpush1.bf16.msra.mxu0 %v7939
      %11745 = vmatprep.subr.bf16.mxu0 %v7936
      %11746 = vmatpush1.bf16.msra.mxu0 %v7935
      %11747 = vmatprep.subr.bf16.mxu0 %v7932
      %11748 = vmatpush1.bf16.msra.mxu0 %v7931
      %11749 = vmatprep.subr.bf16.mxu0 %v7928
      %11750 = vmatpush1.bf16.msra.mxu0 %v7927
      %11751 = vmatprep.subr.bf16.mxu0 %v7924
      %11752 = vmatpush1.bf16.msra.mxu0 %v7923
      %11753 = vmatprep.subr.bf16.mxu0 %v7984
      %11754 = vmatpush2.bf16.msra.mxu0 %v7983
      %11755 = vmatprep.subr.bf16.mxu0 %v7980
      %11756 = vmatpush2.bf16.msra.mxu0 %v7979
      %11757 = vmatprep.subr.bf16.mxu0 %v7976
      %11758 = vmatpush2.bf16.msra.mxu0 %v7975
      %11759 = vmatprep.subr.bf16.mxu0 %v7972
      %11760 = vmatpush2.bf16.msra.mxu0 %v7971
      %11761 = vmatprep.subr.bf16.mxu0 %v7968
      %11762 = vmatpush2.bf16.msra.mxu0 %v7967
      %11763 = vmatprep.subr.bf16.mxu0 %v7964
      %11764 = vmatpush2.bf16.msra.mxu0 %v7963
      %11765 = vmatprep.subr.bf16.mxu0 %v7960
      %11766 = vmatpush2.bf16.msra.mxu0 %v7959
      %11767 = vmatprep.subr.bf16.mxu0 %v7956
      %11768 = vmatpush2.bf16.msra.mxu0 %v7955
      %11769 = vmatprep.mubr.bf16.mxu0 %v2095
      %11770 = vmatmul.mubr.bf16.gmra.mxu0 %v2093
      %v11771 = vpop.f32.mrf.mxu0
      %v11772 = vadd.f32 %v11731, %v11771
      %v11773 = vpop.f32.mrf.mxu0
      %v11774 = vadd.f32 %v11733, %v11773
      %v11775 = vpop.f32.mrf.mxu0
      %v11776 = vpop.f32.mrf.mxu0
      %11777 = vdwg.mxu0
      %11778 = vmatprep.subr.bf16.mxu0 %v8016
      %11779 = vmatpush1.bf16.msra.mxu0 %v8015
      %11780 = vmatprep.subr.bf16.mxu0 %v8012
      %11781 = vmatpush1.bf16.msra.mxu0 %v8011
      %11782 = vmatprep.subr.bf16.mxu0 %v8008
      %11783 = vmatpush1.bf16.msra.mxu0 %v8007
      %11784 = vmatprep.subr.bf16.mxu0 %v8004
      %11785 = vmatpush1.bf16.msra.mxu0 %v8003
      %11786 = vmatprep.subr.bf16.mxu0 %v8000
      %11787 = vmatpush1.bf16.msra.mxu0 %v7999
      %11788 = vmatprep.subr.bf16.mxu0 %v7996
      %11789 = vmatpush1.bf16.msra.mxu0 %v7995
      %11790 = vmatprep.subr.bf16.mxu0 %v7992
      %11791 = vmatpush1.bf16.msra.mxu0 %v7991
      %11792 = vmatprep.subr.bf16.mxu0 %v7988
      %11793 = vmatpush1.bf16.msra.mxu0 %v7987
      %11794 = vmatprep.subr.bf16.mxu0 %v8048
      %11795 = vmatpush2.bf16.msra.mxu0 %v8047
      %11796 = vmatprep.subr.bf16.mxu0 %v8044
      %11797 = vmatpush2.bf16.msra.mxu0 %v8043
      %11798 = vmatprep.subr.bf16.mxu0 %v8040
      %11799 = vmatpush2.bf16.msra.mxu0 %v8039
      %11800 = vmatprep.subr.bf16.mxu0 %v8036
      %11801 = vmatpush2.bf16.msra.mxu0 %v8035
      %11802 = vmatprep.subr.bf16.mxu0 %v8032
      %11803 = vmatpush2.bf16.msra.mxu0 %v8031
      %11804 = vmatprep.subr.bf16.mxu0 %v8028
      %11805 = vmatpush2.bf16.msra.mxu0 %v8027
      %11806 = vmatprep.subr.bf16.mxu0 %v8024
      %11807 = vmatpush2.bf16.msra.mxu0 %v8023
      %11808 = vmatprep.subr.bf16.mxu0 %v8020
      %11809 = vmatpush2.bf16.msra.mxu0 %v8019
      %11810 = vmatprep.mubr.bf16.mxu0 %v2133
      %11811 = vmatmul.mubr.bf16.gmra.mxu0 %v2119
      %v11812 = vpop.f32.mrf.mxu0
      %v11813 = vadd.f32 %v11772, %v11812
      %v11814 = vpop.f32.mrf.mxu0
      %v11815 = vadd.f32 %v11774, %v11814
      %v11816 = vpop.f32.mrf.mxu0
      %v11817 = vpop.f32.mrf.mxu0
      %11818 = vdwg.mxu0
      %11819 = vmatprep.subr.bf16.mxu0 %v8080
      %11820 = vmatpush1.bf16.msra.mxu0 %v8079
      %11821 = vmatprep.subr.bf16.mxu0 %v8076
      %11822 = vmatpush1.bf16.msra.mxu0 %v8075
      %11823 = vmatprep.subr.bf16.mxu0 %v8072
      %11824 = vmatpush1.bf16.msra.mxu0 %v8071
      %11825 = vmatprep.subr.bf16.mxu0 %v8068
      %11826 = vmatpush1.bf16.msra.mxu0 %v8067
      %11827 = vmatprep.subr.bf16.mxu0 %v8064
      %11828 = vmatpush1.bf16.msra.mxu0 %v8063
      %11829 = vmatprep.subr.bf16.mxu0 %v8060
      %11830 = vmatpush1.bf16.msra.mxu0 %v8059
      %11831 = vmatprep.subr.bf16.mxu0 %v8056
      %11832 = vmatpush1.bf16.msra.mxu0 %v8055
      %11833 = vmatprep.subr.bf16.mxu0 %v8052
      %11834 = vmatpush1.bf16.msra.mxu0 %v8051
      %11835 = vmatprep.subr.bf16.mxu0 %v8112
      %11836 = vmatpush2.bf16.msra.mxu0 %v8111
      %11837 = vmatprep.subr.bf16.mxu0 %v8108
      %11838 = vmatpush2.bf16.msra.mxu0 %v8107
      %11839 = vmatprep.subr.bf16.mxu0 %v8104
      %11840 = vmatpush2.bf16.msra.mxu0 %v8103
      %11841 = vmatprep.subr.bf16.mxu0 %v8100
      %11842 = vmatpush2.bf16.msra.mxu0 %v8099
      %11843 = vmatprep.subr.bf16.mxu0 %v8096
      %11844 = vmatpush2.bf16.msra.mxu0 %v8095
      %11845 = vmatprep.subr.bf16.mxu0 %v8092
      %11846 = vmatpush2.bf16.msra.mxu0 %v8091
      %11847 = vmatprep.subr.bf16.mxu0 %v8088
      %11848 = vmatpush2.bf16.msra.mxu0 %v8087
      %11849 = vmatprep.subr.bf16.mxu0 %v8084
      %11850 = vmatpush2.bf16.msra.mxu0 %v8083
      %11851 = vmatprep.mubr.bf16.mxu0 %v2143
      %11852 = vmatmul.mubr.bf16.gmra.mxu0 %v2141
      %v11853 = vpop.f32.mrf.mxu0
      %v11854 = vadd.f32 %v11813, %v11853
      %v11855 = vpop.f32.mrf.mxu0
      %v11856 = vadd.f32 %v11815, %v11855
      %v11857 = vpop.f32.mrf.mxu0
      %v11858 = vpop.f32.mrf.mxu0
      %11859 = vdwg.mxu0
      %11860 = vmatprep.subr.bf16.mxu0 %v8144
      %11861 = vmatpush1.bf16.msra.mxu0 %v8143
      %11862 = vmatprep.subr.bf16.mxu0 %v8140
      %11863 = vmatpush1.bf16.msra.mxu0 %v8139
      %11864 = vmatprep.subr.bf16.mxu0 %v8136
      %11865 = vmatpush1.bf16.msra.mxu0 %v8135
      %11866 = vmatprep.subr.bf16.mxu0 %v8132
      %11867 = vmatpush1.bf16.msra.mxu0 %v8131
      %11868 = vmatprep.subr.bf16.mxu0 %v8128
      %11869 = vmatpush1.bf16.msra.mxu0 %v8127
      %11870 = vmatprep.subr.bf16.mxu0 %v8124
      %11871 = vmatpush1.bf16.msra.mxu0 %v8123
      %11872 = vmatprep.subr.bf16.mxu0 %v8120
      %11873 = vmatpush1.bf16.msra.mxu0 %v8119
      %11874 = vmatprep.subr.bf16.mxu0 %v8116
      %11875 = vmatpush1.bf16.msra.mxu0 %v8115
      %11876 = vmatprep.subr.bf16.mxu0 %v8176
      %11877 = vmatpush2.bf16.msra.mxu0 %v8175
      %11878 = vmatprep.subr.bf16.mxu0 %v8172
      %11879 = vmatpush2.bf16.msra.mxu0 %v8171
      %11880 = vmatprep.subr.bf16.mxu0 %v8168
      %11881 = vmatpush2.bf16.msra.mxu0 %v8167
      %11882 = vmatprep.subr.bf16.mxu0 %v8164
      %11883 = vmatpush2.bf16.msra.mxu0 %v8163
      %11884 = vmatprep.subr.bf16.mxu0 %v8160
      %11885 = vmatpush2.bf16.msra.mxu0 %v8159
      %11886 = vmatprep.subr.bf16.mxu0 %v8156
      %11887 = vmatpush2.bf16.msra.mxu0 %v8155
      %11888 = vmatprep.subr.bf16.mxu0 %v8152
      %11889 = vmatpush2.bf16.msra.mxu0 %v8151
      %11890 = vmatprep.subr.bf16.mxu0 %v8148
      %11891 = vmatpush2.bf16.msra.mxu0 %v8147
      %11892 = vmatprep.mubr.bf16.mxu0 %v2140
      %11893 = vmatmul.mubr.bf16.gmra.mxu0 %v2126
      %v11894 = vpop.f32.mrf.mxu0
      %v11895 = vadd.f32 %v11854, %v11894
      %v11896 = vpop.f32.mrf.mxu0
      %v11897 = vadd.f32 %v11856, %v11896
      %v11898 = vpop.f32.mrf.mxu0
      %v11899 = vpop.f32.mrf.mxu0
      %11900 = vdwg.mxu0
      %11901 = vmatprep.subr.bf16.mxu0 %v8208
      %11902 = vmatpush1.bf16.msra.mxu0 %v8207
      %11903 = vmatprep.subr.bf16.mxu0 %v8204
      %11904 = vmatpush1.bf16.msra.mxu0 %v8203
      %11905 = vmatprep.subr.bf16.mxu0 %v8200
      %11906 = vmatpush1.bf16.msra.mxu0 %v8199
      %11907 = vmatprep.subr.bf16.mxu0 %v8196
      %11908 = vmatpush1.bf16.msra.mxu0 %v8195
      %11909 = vmatprep.subr.bf16.mxu0 %v8192
      %11910 = vmatpush1.bf16.msra.mxu0 %v8191
      %11911 = vmatprep.subr.bf16.mxu0 %v8188
      %11912 = vmatpush1.bf16.msra.mxu0 %v8187
      %11913 = vmatprep.subr.bf16.mxu0 %v8184
      %11914 = vmatpush1.bf16.msra.mxu0 %v8183
      %11915 = vmatprep.subr.bf16.mxu0 %v8180
      %11916 = vmatpush1.bf16.msra.mxu0 %v8179
      %11917 = vmatprep.subr.bf16.mxu0 %v8240
      %11918 = vmatpush2.bf16.msra.mxu0 %v8239
      %11919 = vmatprep.subr.bf16.mxu0 %v8236
      %11920 = vmatpush2.bf16.msra.mxu0 %v8235
      %11921 = vmatprep.subr.bf16.mxu0 %v8232
      %11922 = vmatpush2.bf16.msra.mxu0 %v8231
      %11923 = vmatprep.subr.bf16.mxu0 %v8228
      %11924 = vmatpush2.bf16.msra.mxu0 %v8227
      %11925 = vmatprep.subr.bf16.mxu0 %v8224
      %11926 = vmatpush2.bf16.msra.mxu0 %v8223
      %11927 = vmatprep.subr.bf16.mxu0 %v8220
      %11928 = vmatpush2.bf16.msra.mxu0 %v8219
      %11929 = vmatprep.subr.bf16.mxu0 %v8216
      %11930 = vmatpush2.bf16.msra.mxu0 %v8215
      %11931 = vmatprep.subr.bf16.mxu0 %v8212
      %11932 = vmatpush2.bf16.msra.mxu0 %v8211
      %11933 = vmatprep.mubr.bf16.mxu0 %v2144
      %11934 = vmatmul.mubr.bf16.gmra.mxu0 %v2142
      %v11935 = vpop.f32.mrf.mxu0
      %v11936 = vadd.f32 %v11895, %v11935
      %v11937 = vpop.f32.mrf.mxu0
      %v11938 = vadd.f32 %v11897, %v11937
      %v11939 = vpop.f32.mrf.mxu0
      %v11940 = vpop.f32.mrf.mxu0
      %11941 = vdwg.mxu0
      %11942 = vmatprep.subr.bf16.mxu0 %v8272
      %11943 = vmatpush1.bf16.msra.mxu0 %v8271
      %11944 = vmatprep.subr.bf16.mxu0 %v8268
      %11945 = vmatpush1.bf16.msra.mxu0 %v8267
      %11946 = vmatprep.subr.bf16.mxu0 %v8264
      %11947 = vmatpush1.bf16.msra.mxu0 %v8263
      %11948 = vmatprep.subr.bf16.mxu0 %v8260
      %11949 = vmatpush1.bf16.msra.mxu0 %v8259
      %11950 = vmatprep.subr.bf16.mxu0 %v8256
      %11951 = vmatpush1.bf16.msra.mxu0 %v8255
      %11952 = vmatprep.subr.bf16.mxu0 %v8252
      %11953 = vmatpush1.bf16.msra.mxu0 %v8251
      %11954 = vmatprep.subr.bf16.mxu0 %v8248
      %11955 = vmatpush1.bf16.msra.mxu0 %v8247
      %11956 = vmatprep.subr.bf16.mxu0 %v8244
      %11957 = vmatpush1.bf16.msra.mxu0 %v8243
      %11958 = vmatprep.subr.bf16.mxu0 %v8304
      %11959 = vmatpush2.bf16.msra.mxu0 %v8303
      %11960 = vmatprep.subr.bf16.mxu0 %v8300
      %11961 = vmatpush2.bf16.msra.mxu0 %v8299
      %11962 = vmatprep.subr.bf16.mxu0 %v8296
      %11963 = vmatpush2.bf16.msra.mxu0 %v8295
      %11964 = vmatprep.subr.bf16.mxu0 %v8292
      %11965 = vmatpush2.bf16.msra.mxu0 %v8291
      %11966 = vmatprep.subr.bf16.mxu0 %v8288
      %11967 = vmatpush2.bf16.msra.mxu0 %v8287
      %11968 = vmatprep.subr.bf16.mxu0 %v8284
      %11969 = vmatpush2.bf16.msra.mxu0 %v8283
      %11970 = vmatprep.subr.bf16.mxu0 %v8280
      %11971 = vmatpush2.bf16.msra.mxu0 %v8279
      %11972 = vmatprep.subr.bf16.mxu0 %v8276
      %11973 = vmatpush2.bf16.msra.mxu0 %v8275
      %11974 = vmatprep.mubr.bf16.mxu0 %v2182
      %11975 = vmatmul.mubr.bf16.gmra.mxu0 %v2168
      %v11976 = vpop.f32.mrf.mxu0
      %v11977 = vadd.f32 %v11936, %v11976
      %v11978 = vpop.f32.mrf.mxu0
      %v11979 = vadd.f32 %v11938, %v11978
      %v11980 = vpop.f32.mrf.mxu0
      %v11981 = vpop.f32.mrf.mxu0
      %11982 = vdwg.mxu0
      %11983 = vmatprep.subr.bf16.mxu0 %v8336
      %11984 = vmatpush1.bf16.msra.mxu0 %v8335
      %11985 = vmatprep.subr.bf16.mxu0 %v8332
      %11986 = vmatpush1.bf16.msra.mxu0 %v8331
      %11987 = vmatprep.subr.bf16.mxu0 %v8328
      %11988 = vmatpush1.bf16.msra.mxu0 %v8327
      %11989 = vmatprep.subr.bf16.mxu0 %v8324
      %11990 = vmatpush1.bf16.msra.mxu0 %v8323
      %11991 = vmatprep.subr.bf16.mxu0 %v8320
      %11992 = vmatpush1.bf16.msra.mxu0 %v8319
      %11993 = vmatprep.subr.bf16.mxu0 %v8316
      %11994 = vmatpush1.bf16.msra.mxu0 %v8315
      %11995 = vmatprep.subr.bf16.mxu0 %v8312
      %11996 = vmatpush1.bf16.msra.mxu0 %v8311
      %11997 = vmatprep.subr.bf16.mxu0 %v8308
      %11998 = vmatpush1.bf16.msra.mxu0 %v8307
      %11999 = vmatprep.subr.bf16.mxu0 %v8368
      %12000 = vmatpush2.bf16.msra.mxu0 %v8367
      %12001 = vmatprep.subr.bf16.mxu0 %v8364
      %12002 = vmatpush2.bf16.msra.mxu0 %v8363
      %12003 = vmatprep.subr.bf16.mxu0 %v8360
      %12004 = vmatpush2.bf16.msra.mxu0 %v8359
      %12005 = vmatprep.subr.bf16.mxu0 %v8356
      %12006 = vmatpush2.bf16.msra.mxu0 %v8355
      %12007 = vmatprep.subr.bf16.mxu0 %v8352
      %12008 = vmatpush2.bf16.msra.mxu0 %v8351
      %12009 = vmatprep.subr.bf16.mxu0 %v8348
      %12010 = vmatpush2.bf16.msra.mxu0 %v8347
      %12011 = vmatprep.subr.bf16.mxu0 %v8344
      %12012 = vmatpush2.bf16.msra.mxu0 %v8343
      %12013 = vmatprep.subr.bf16.mxu0 %v8340
      %12014 = vmatpush2.bf16.msra.mxu0 %v8339
      %12015 = vmatprep.mubr.bf16.mxu0 %v2192
      %12016 = vmatmul.mubr.bf16.gmra.mxu0 %v2190
      %v12017 = vpop.f32.mrf.mxu0
      %v12018 = vadd.f32 %v11977, %v12017
      %v12019 = vpop.f32.mrf.mxu0
      %v12020 = vadd.f32 %v11979, %v12019
      %v12021 = vpop.f32.mrf.mxu0
      %v12022 = vpop.f32.mrf.mxu0
      %12023 = vdwg.mxu0
      %12024 = vmatprep.subr.bf16.mxu0 %v8400
      %12025 = vmatpush1.bf16.msra.mxu0 %v8399
      %12026 = vmatprep.subr.bf16.mxu0 %v8396
      %12027 = vmatpush1.bf16.msra.mxu0 %v8395
      %12028 = vmatprep.subr.bf16.mxu0 %v8392
      %12029 = vmatpush1.bf16.msra.mxu0 %v8391
      %12030 = vmatprep.subr.bf16.mxu0 %v8388
      %12031 = vmatpush1.bf16.msra.mxu0 %v8387
      %12032 = vmatprep.subr.bf16.mxu0 %v8384
      %12033 = vmatpush1.bf16.msra.mxu0 %v8383
      %12034 = vmatprep.subr.bf16.mxu0 %v8380
      %12035 = vmatpush1.bf16.msra.mxu0 %v8379
      %12036 = vmatprep.subr.bf16.mxu0 %v8376
      %12037 = vmatpush1.bf16.msra.mxu0 %v8375
      %12038 = vmatprep.subr.bf16.mxu0 %v8372
      %12039 = vmatpush1.bf16.msra.mxu0 %v8371
      %12040 = vmatprep.subr.bf16.mxu0 %v8432
      %12041 = vmatpush2.bf16.msra.mxu0 %v8431
      %12042 = vmatprep.subr.bf16.mxu0 %v8428
      %12043 = vmatpush2.bf16.msra.mxu0 %v8427
      %12044 = vmatprep.subr.bf16.mxu0 %v8424
      %12045 = vmatpush2.bf16.msra.mxu0 %v8423
      %12046 = vmatprep.subr.bf16.mxu0 %v8420
      %12047 = vmatpush2.bf16.msra.mxu0 %v8419
      %12048 = vmatprep.subr.bf16.mxu0 %v8416
      %12049 = vmatpush2.bf16.msra.mxu0 %v8415
      %12050 = vmatprep.subr.bf16.mxu0 %v8412
      %12051 = vmatpush2.bf16.msra.mxu0 %v8411
      %12052 = vmatprep.subr.bf16.mxu0 %v8408
      %12053 = vmatpush2.bf16.msra.mxu0 %v8407
      %12054 = vmatprep.subr.bf16.mxu0 %v8404
      %12055 = vmatpush2.bf16.msra.mxu0 %v8403
      %12056 = vmatprep.mubr.bf16.mxu0 %v2189
      %12057 = vmatmul.mubr.bf16.gmra.mxu0 %v2175
      %v12058 = vpop.f32.mrf.mxu0
      %v12059 = vadd.f32 %v12018, %v12058
      %v12060 = vpop.f32.mrf.mxu0
      %v12061 = vadd.f32 %v12020, %v12060
      %v12062 = vpop.f32.mrf.mxu0
      %v12063 = vpop.f32.mrf.mxu0
      %12064 = vdwg.mxu0
      %12065 = vmatprep.subr.bf16.mxu0 %v8464
      %12066 = vmatpush1.bf16.msra.mxu0 %v8463
      %12067 = vmatprep.subr.bf16.mxu0 %v8460
      %12068 = vmatpush1.bf16.msra.mxu0 %v8459
      %12069 = vmatprep.subr.bf16.mxu0 %v8456
      %12070 = vmatpush1.bf16.msra.mxu0 %v8455
      %12071 = vmatprep.subr.bf16.mxu0 %v8452
      %12072 = vmatpush1.bf16.msra.mxu0 %v8451
      %12073 = vmatprep.subr.bf16.mxu0 %v8448
      %12074 = vmatpush1.bf16.msra.mxu0 %v8447
      %12075 = vmatprep.subr.bf16.mxu0 %v8444
      %12076 = vmatpush1.bf16.msra.mxu0 %v8443
      %12077 = vmatprep.subr.bf16.mxu0 %v8440
      %12078 = vmatpush1.bf16.msra.mxu0 %v8439
      %12079 = vmatprep.subr.bf16.mxu0 %v8436
      %12080 = vmatpush1.bf16.msra.mxu0 %v8435
      %12081 = vmatprep.subr.bf16.mxu0 %v8496
      %12082 = vmatpush2.bf16.msra.mxu0 %v8495
      %12083 = vmatprep.subr.bf16.mxu0 %v8492
      %12084 = vmatpush2.bf16.msra.mxu0 %v8491
      %12085 = vmatprep.subr.bf16.mxu0 %v8488
      %12086 = vmatpush2.bf16.msra.mxu0 %v8487
      %12087 = vmatprep.subr.bf16.mxu0 %v8484
      %12088 = vmatpush2.bf16.msra.mxu0 %v8483
      %12089 = vmatprep.subr.bf16.mxu0 %v8480
      %12090 = vmatpush2.bf16.msra.mxu0 %v8479
      %12091 = vmatprep.subr.bf16.mxu0 %v8476
      %12092 = vmatpush2.bf16.msra.mxu0 %v8475
      %12093 = vmatprep.subr.bf16.mxu0 %v8472
      %12094 = vmatpush2.bf16.msra.mxu0 %v8471
      %12095 = vmatprep.subr.bf16.mxu0 %v8468
      %12096 = vmatpush2.bf16.msra.mxu0 %v8467
      %12097 = vmatprep.mubr.bf16.mxu0 %v2193
      %12098 = vmatmul.mubr.bf16.gmra.mxu0 %v2191
      %v12099 = vpop.f32.mrf.mxu0
      %v12100 = vadd.f32 %v12059, %v12099
      %v12101 = vpop.f32.mrf.mxu0
      %v12102 = vadd.f32 %v12061, %v12101
      %v12103 = vpop.f32.mrf.mxu0
      %v12104 = vpop.f32.mrf.mxu0
      %12105 = vdwg.mxu0
      %12106 = vmatprep.subr.bf16.mxu0 %v8528
      %12107 = vmatpush1.bf16.msra.mxu0 %v8527
      %12108 = vmatprep.subr.bf16.mxu0 %v8524
      %12109 = vmatpush1.bf16.msra.mxu0 %v8523
      %12110 = vmatprep.subr.bf16.mxu0 %v8520
      %12111 = vmatpush1.bf16.msra.mxu0 %v8519
      %12112 = vmatprep.subr.bf16.mxu0 %v8516
      %12113 = vmatpush1.bf16.msra.mxu0 %v8515
      %12114 = vmatprep.subr.bf16.mxu0 %v8512
      %12115 = vmatpush1.bf16.msra.mxu0 %v8511
      %12116 = vmatprep.subr.bf16.mxu0 %v8508
      %12117 = vmatpush1.bf16.msra.mxu0 %v8507
      %12118 = vmatprep.subr.bf16.mxu0 %v8504
      %12119 = vmatpush1.bf16.msra.mxu0 %v8503
      %12120 = vmatprep.subr.bf16.mxu0 %v8500
      %12121 = vmatpush1.bf16.msra.mxu0 %v8499
      %12122 = vmatprep.subr.bf16.mxu0 0
      %12123 = vmatpush2.bf16.msra.mxu0 0
      %12124 = vmatprep.subr.bf16.mxu0 0
      %12125 = vmatpush2.bf16.msra.mxu0 0
      %12126 = vmatprep.subr.bf16.mxu0 0
      %12127 = vmatpush2.bf16.msra.mxu0 0
      %12128 = vmatprep.subr.bf16.mxu0 0
      %12129 = vmatpush2.bf16.msra.mxu0 0
      %12130 = vmatprep.subr.bf16.mxu0 0
      %12131 = vmatpush2.bf16.msra.mxu0 0
      %12132 = vmatprep.subr.bf16.mxu0 0
      %12133 = vmatpush2.bf16.msra.mxu0 0
      %12134 = vmatprep.subr.bf16.mxu0 0
      %12135 = vmatpush2.bf16.msra.mxu0 0
      %12136 = vmatprep.subr.bf16.mxu0 0
      %12137 = vmatpush2.bf16.msra.mxu0 0
      %12138 = vmatprep.mubr.bf16.mxu0 0
      %12139 = vmatmul.mubr.bf16.gmra.mxu0 %v2207
      %v12140 = vpop.f32.mrf.mxu0
      %v12141 = vadd.f32 %v12100, %v12140
      %v12142 = vpop.f32.mrf.mxu0
      %v12143 = vadd.f32 %v12102, %v12142
      %v12144 = vpop.f32.mrf.mxu0
      %v12145 = vpop.f32.mrf.mxu0
      %12146 = vdwg.mxu0
      %v12151 = vcombine.low %v11116, %v11118
      %v12152 = vcombine.low %v12141, %v12143
      %v12154 = vunpack.c.l.s4 1983009808
      %v12155 = vunpack.c.0.s8 %v12154
      %v12156 = vlaneseq
      %v12157 = vshrl.u32 %v12156, 7
      %v12158 = vsub.s32 %v12155, %v12157
      %v12159 = vrot.slane %v12151, %v12158
      %v12161 = vunpack.c.l.s4 1983009808
      %v12162 = vunpack.c.0.s8 %v12161
      %v12163 = vlaneseq
      %v12164 = vshrl.u32 %v12163, 7
      %v12165 = vsub.s32 %v12162, %v12164
      %v12166 = vrot.slane %v12152, %v12165
      %v12167 = vcombine.low %v12159, %v12166
      %v12169 = vadd.f32 %v324, %v12167
      %12170 = vst [vmem:[#allocation2] sm:$0xff] %v12169
      %p12171 = scmp.eq.s32.totalorder %s20, 3
      // Predicated region
      $region53: #{discriminator_forward.1} parent=47 // pred_check
        %p12172 = pneg %p12171
      $region54: #{discriminator_forward.1} parent=47 // pred_check_branch
        %12174 = sbr.rel (%p12172) target = $region56
      $region55: #{discriminator_forward.1} parent=47 // pred_region
        %v12175 = vld [vmem:[#allocation2] sm:$0xff]
        %vm12176 = vcmp.gt.f32.partialorder %v12175, 0.0
        %v12177 = vmul.f32 %v12175, 0.2
        %v12178 = vsel %vm12176, %v12175, %v12177
        %v12179 = vld [vmem:[%s3] sm:$0xff]
        %v12180 = vld [vmem:[%s3 + $0x8] sm:$0xff]
        %v12181 = vld [vmem:[%s3 + $0x10] sm:$0xff]
        %v12182 = vld [vmem:[%s3 + $0x18] sm:$0xff]
        %v12183 = vld [vmem:[%s3 + $0x20] sm:$0xff]
        %v12184 = vld [vmem:[%s3 + $0x28] sm:$0xff]
        %v12185 = vld [vmem:[%s3 + $0x30] sm:$0xff]
        %v12186 = vld [vmem:[%s3 + $0x38] sm:$0xff]
        %v12187 = vld [vmem:[%s3 + $0x40] sm:$0xff]
        %v12188 = vld [vmem:[%s3 + $0x48] sm:$0xff]
        %v12189 = vld [vmem:[%s3 + $0x50] sm:$0xff]
        %v12190 = vld [vmem:[%s3 + $0x58] sm:$0xff]
        %v12191 = vld [vmem:[%s3 + $0x60] sm:$0xff]
        %v12192 = vld [vmem:[%s3 + $0x68] sm:$0xff]
        %v12193 = vld [vmem:[%s3 + $0x70] sm:$0xff]
        %v12194 = vld [vmem:[%s3 + $0x78] sm:$0xff]
        %v12195 = vld [vmem:[%s3 + $0x80] sm:$0xff]
        %v12196 = vld [vmem:[%s3 + $0x88] sm:$0xff]
        %v12197 = vld [vmem:[%s3 + $0x90] sm:$0xff]
        %v12198 = vld [vmem:[%s3 + $0x98] sm:$0xff]
        %v12199 = vld [vmem:[%s3 + $0xa0] sm:$0xff]
        %v12200 = vld [vmem:[%s3 + $0xa8] sm:$0xff]
        %v12201 = vld [vmem:[%s3 + $0xb0] sm:$0xff]
        %v12202 = vld [vmem:[%s3 + $0xb8] sm:$0xff]
        %v12203 = vld [vmem:[%s3 + $0xc0] sm:$0xff]
        %v12204 = vld [vmem:[%s3 + $0xc8] sm:$0xff]
        %v12205 = vld [vmem:[%s3 + $0xd0] sm:$0xff]
        %v12206 = vld [vmem:[%s3 + $0xd8] sm:$0xff]
        %v12207 = vld [vmem:[%s3 + $0xe0] sm:$0xff]
        %v12208 = vld [vmem:[%s3 + $0xe8] sm:$0xff]
        %v12209 = vld [vmem:[%s3 + $0xf0] sm:$0xff]
        %v12210 = vld [vmem:[%s3 + $0xf8] sm:$0xff]
        %v12211 = vld [vmem:[%s3 + $0x100] sm:$0xff]
        %v12212 = vld [vmem:[%s3 + $0x108] sm:$0xff]
        %v12213 = vld [vmem:[%s3 + $0x110] sm:$0xff]
        %v12214 = vld [vmem:[%s3 + $0x118] sm:$0xff]
        %v12215 = vld [vmem:[%s3 + $0x120] sm:$0xff]
        %v12216 = vld [vmem:[%s3 + $0x128] sm:$0xff]
        %v12217 = vld [vmem:[%s3 + $0x130] sm:$0xff]
        %v12218 = vld [vmem:[%s3 + $0x138] sm:$0xff]
        %v12219 = vld [vmem:[%s3 + $0x140] sm:$0xff]
        %v12220 = vld [vmem:[%s3 + $0x148] sm:$0xff]
        %v12221 = vld [vmem:[%s3 + $0x150] sm:$0xff]
        %v12222 = vld [vmem:[%s3 + $0x158] sm:$0xff]
        %v12223 = vld [vmem:[%s3 + $0x160] sm:$0xff]
        %v12224 = vld [vmem:[%s3 + $0x168] sm:$0xff]
        %v12225 = vld [vmem:[%s3 + $0x170] sm:$0xff]
        %v12226 = vld [vmem:[%s3 + $0x178] sm:$0xff]
        %v12227 = vld [vmem:[%s3 + $0x180] sm:$0xff]
        %v12228 = vld [vmem:[%s3 + $0x188] sm:$0xff]
        %v12229 = vld [vmem:[%s3 + $0x190] sm:$0xff]
        %v12230 = vld [vmem:[%s3 + $0x198] sm:$0xff]
        %v12231 = vld [vmem:[%s3 + $0x1a0] sm:$0xff]
        %v12232 = vld [vmem:[%s3 + $0x1a8] sm:$0xff]
        %v12233 = vld [vmem:[%s3 + $0x1b0] sm:$0xff]
        %v12234 = vld [vmem:[%s3 + $0x1b8] sm:$0xff]
        %v12235 = vld [vmem:[%s3 + $0x1c0] sm:$0xff]
        %v12236 = vld [vmem:[%s3 + $0x1c8] sm:$0xff]
        %v12237 = vld [vmem:[%s3 + $0x1d0] sm:$0xff]
        %v12238 = vld [vmem:[%s3 + $0x1d8] sm:$0xff]
        %v12239 = vld [vmem:[%s3 + $0x1e0] sm:$0xff]
        %v12240 = vld [vmem:[%s3 + $0x1e8] sm:$0xff]
        %v12241 = vld [vmem:[%s3 + $0x1f0] sm:$0xff]
        %v12242 = vld [vmem:[%s3 + $0x1f8] sm:$0xff]
        %v12243 = vld [vmem:[%s3 + $0x200] sm:$0xff]
        %v12244 = vld [vmem:[%s3 + $0x208] sm:$0xff]
        %v12245 = vld [vmem:[%s3 + $0x210] sm:$0xff]
        %v12246 = vld [vmem:[%s3 + $0x218] sm:$0xff]
        %v12247 = vld [vmem:[%s3 + $0x220] sm:$0xff]
        %v12248 = vld [vmem:[%s3 + $0x228] sm:$0xff]
        %v12249 = vld [vmem:[%s3 + $0x230] sm:$0xff]
        %v12250 = vld [vmem:[%s3 + $0x238] sm:$0xff]
        %v12251 = vld [vmem:[%s3 + $0x240] sm:$0xff]
        %v12252 = vld [vmem:[%s3 + $0x248] sm:$0xff]
        %v12253 = vld [vmem:[%s3 + $0x250] sm:$0xff]
        %v12254 = vld [vmem:[%s3 + $0x258] sm:$0xff]
        %v12255 = vld [vmem:[%s3 + $0x260] sm:$0xff]
        %v12256 = vld [vmem:[%s3 + $0x268] sm:$0xff]
        %v12257 = vld [vmem:[%s3 + $0x270] sm:$0xff]
        %v12258 = vld [vmem:[%s3 + $0x278] sm:$0xff]
        %v12259 = vld [vmem:[%s3 + $0x280] sm:$0xff]
        %v12260 = vld [vmem:[%s3 + $0x288] sm:$0xff]
        %v12261 = vld [vmem:[%s3 + $0x290] sm:$0xff]
        %v12262 = vld [vmem:[%s3 + $0x298] sm:$0xff]
        %v12263 = vld [vmem:[%s3 + $0x2a0] sm:$0xff]
        %v12264 = vld [vmem:[%s3 + $0x2a8] sm:$0xff]
        %v12265 = vld [vmem:[%s3 + $0x2b0] sm:$0xff]
        %v12266 = vld [vmem:[%s3 + $0x2b8] sm:$0xff]
        %v12267 = vld [vmem:[%s3 + $0x2c0] sm:$0xff]
        %v12268 = vld [vmem:[%s3 + $0x2c8] sm:$0xff]
        %v12269 = vld [vmem:[%s3 + $0x2d0] sm:$0xff]
        %v12270 = vld [vmem:[%s3 + $0x2d8] sm:$0xff]
        %v12271 = vld [vmem:[%s3 + $0x2e0] sm:$0xff]
        %v12272 = vld [vmem:[%s3 + $0x2e8] sm:$0xff]
        %v12273 = vld [vmem:[%s3 + $0x2f0] sm:$0xff]
        %v12274 = vld [vmem:[%s3 + $0x2f8] sm:$0xff]
        %v12275 = vld [vmem:[%s3 + $0x300] sm:$0xff]
        %v12276 = vld [vmem:[%s3 + $0x308] sm:$0xff]
        %v12277 = vld [vmem:[%s3 + $0x310] sm:$0xff]
        %v12278 = vld [vmem:[%s3 + $0x318] sm:$0xff]
        %v12279 = vld [vmem:[%s3 + $0x320] sm:$0xff]
        %v12280 = vld [vmem:[%s3 + $0x328] sm:$0xff]
        %v12281 = vld [vmem:[%s3 + $0x330] sm:$0xff]
        %v12282 = vld [vmem:[%s3 + $0x338] sm:$0xff]
        %v12283 = vld [vmem:[%s3 + $0x340] sm:$0xff]
        %v12284 = vld [vmem:[%s3 + $0x348] sm:$0xff]
        %v12285 = vld [vmem:[%s3 + $0x350] sm:$0xff]
        %v12286 = vld [vmem:[%s3 + $0x358] sm:$0xff]
        %v12287 = vld [vmem:[%s3 + $0x360] sm:$0xff]
        %v12288 = vld [vmem:[%s3 + $0x368] sm:$0xff]
        %v12289 = vld [vmem:[%s3 + $0x370] sm:$0xff]
        %v12290 = vld [vmem:[%s3 + $0x378] sm:$0xff]
        %v12291 = vld [vmem:[%s3 + $0x380] sm:$0xff]
        %v12292 = vld [vmem:[%s3 + $0x388] sm:$0xff]
        %v12293 = vld [vmem:[%s3 + $0x390] sm:$0xff]
        %v12294 = vld [vmem:[%s3 + $0x398] sm:$0xff]
        %v12295 = vld [vmem:[%s3 + $0x3a0] sm:$0xff]
        %v12296 = vld [vmem:[%s3 + $0x3a8] sm:$0xff]
        %v12297 = vld [vmem:[%s3 + $0x3b0] sm:$0xff]
        %v12298 = vld [vmem:[%s3 + $0x3b8] sm:$0xff]
        %v12299 = vld [vmem:[%s3 + $0x3c0] sm:$0xff]
        %v12300 = vld [vmem:[%s3 + $0x3c8] sm:$0xff]
        %v12301 = vld [vmem:[%s3 + $0x3d0] sm:$0xff]
        %v12302 = vld [vmem:[%s3 + $0x3d8] sm:$0xff]
        %v12303 = vld [vmem:[%s3 + $0x3e0] sm:$0xff]
        %v12304 = vld [vmem:[%s3 + $0x3e8] sm:$0xff]
        %v12305 = vld [vmem:[%s3 + $0x3f0] sm:$0xff]
        %v12306 = vld [vmem:[%s3 + $0x3f8] sm:$0xff]
        %v12307 = vld [vmem:[%s4] sm:$0x3]
        %v12309 = vlaneseq
        %v12310 = vshrl.u32 %v12309, 7
        %v12311 = vsub.s32 0, %v12310
        %v12312 = vrot.slane %v12307, %v12311
        %v12313 = vlaneseq
        %v12314 = vshrl.u32 %v12313, 7
        %v12315 = vsub.s32 1, %v12314
        %v12316 = vrot.slane %v12307, %v12315
        %v12320 = vcombine.high %v12178, %v12178
        %v12322 = vunpack.c.l.s4 1983009808
        %v12323 = vunpack.c.0.s8 %v12322
        %v12324 = vlaneseq
        %v12325 = vshrl.u32 %v12324, 7
        %v12326 = vsub.s32 %v12323, %v12325
        %v12327 = vrot.slane %v12178, %v12326
        %v12329 = vunpack.c.l.s4 1983009808
        %v12330 = vunpack.c.0.s8 %v12329
        %v12331 = vlaneseq
        %v12332 = vshrl.u32 %v12331, 7
        %v12333 = vsub.s32 %v12330, %v12332
        %v12334 = vrot.slane %v12320, %v12333
        %v12335 = vcombine.high %v12327, %v12327
        %v12336 = vcombine.high %v12334, %v12334
        %12341 = vmatprep.subr.mxu0 %v12210
        %12342 = vmatpush1.msra.mxu0 %v12209
        %12343 = vmatprep.subr.mxu0 %v12208
        %12344 = vmatpush1.msra.mxu0 %v12207
        %12345 = vmatprep.subr.mxu0 %v12206
        %12346 = vmatpush1.msra.mxu0 %v12205
        %12347 = vmatprep.subr.mxu0 %v12204
        %12348 = vmatpush1.msra.mxu0 %v12203
        %12349 = vmatprep.subr.mxu0 %v12202
        %12350 = vmatpush1.msra.mxu0 %v12201
        %12351 = vmatprep.subr.mxu0 %v12200
        %12352 = vmatpush1.msra.mxu0 %v12199
        %12353 = vmatprep.subr.mxu0 %v12198
        %12354 = vmatpush1.msra.mxu0 %v12197
        %12355 = vmatprep.subr.mxu0 %v12196
        %12356 = vmatpush1.msra.mxu0 %v12195
        %12357 = vmatprep.subr.mxu0 %v12194
        %12358 = vmatpush1.msra.mxu0 %v12193
        %12359 = vmatprep.subr.mxu0 %v12192
        %12360 = vmatpush1.msra.mxu0 %v12191
        %12361 = vmatprep.subr.mxu0 %v12190
        %12362 = vmatpush1.msra.mxu0 %v12189
        %12363 = vmatprep.subr.mxu0 %v12188
        %12364 = vmatpush1.msra.mxu0 %v12187
        %12365 = vmatprep.subr.mxu0 %v12186
        %12366 = vmatpush1.msra.mxu0 %v12185
        %12367 = vmatprep.subr.mxu0 %v12184
        %12368 = vmatpush1.msra.mxu0 %v12183
        %12369 = vmatprep.subr.mxu0 %v12182
        %12370 = vmatpush1.msra.mxu0 %v12181
        %12371 = vmatprep.subr.mxu0 %v12180
        %12372 = vmatpush1.msra.mxu0 %v12179
        %12373 = vmatprep.subr.mxu0 %v12242
        %12374 = vmatpush2.msra.mxu0 %v12241
        %12375 = vmatprep.subr.mxu0 %v12240
        %12376 = vmatpush2.msra.mxu0 %v12239
        %12377 = vmatprep.subr.mxu0 %v12238
        %12378 = vmatpush2.msra.mxu0 %v12237
        %12379 = vmatprep.subr.mxu0 %v12236
        %12380 = vmatpush2.msra.mxu0 %v12235
        %12381 = vmatprep.subr.mxu0 %v12234
        %12382 = vmatpush2.msra.mxu0 %v12233
        %12383 = vmatprep.subr.mxu0 %v12232
        %12384 = vmatpush2.msra.mxu0 %v12231
        %12385 = vmatprep.subr.mxu0 %v12230
        %12386 = vmatpush2.msra.mxu0 %v12229
        %12387 = vmatprep.subr.mxu0 %v12228
        %12388 = vmatpush2.msra.mxu0 %v12227
        %12389 = vmatprep.subr.mxu0 %v12226
        %12390 = vmatpush2.msra.mxu0 %v12225
        %12391 = vmatprep.subr.mxu0 %v12224
        %12392 = vmatpush2.msra.mxu0 %v12223
        %12393 = vmatprep.subr.mxu0 %v12222
        %12394 = vmatpush2.msra.mxu0 %v12221
        %12395 = vmatprep.subr.mxu0 %v12220
        %12396 = vmatpush2.msra.mxu0 %v12219
        %12397 = vmatprep.subr.mxu0 %v12218
        %12398 = vmatpush2.msra.mxu0 %v12217
        %12399 = vmatprep.subr.mxu0 %v12216
        %12400 = vmatpush2.msra.mxu0 %v12215
        %12401 = vmatprep.subr.mxu0 %v12214
        %12402 = vmatpush2.msra.mxu0 %v12213
        %12403 = vmatprep.subr.mxu0 %v12212
        %12404 = vmatpush2.msra.mxu0 %v12211
        %12405 = vmatprep.mubr.f32.mxu0 %v12335
        %12406 = vmatmul.mubr.f32.gmra.mxu0 %v12327
        %v12407 = vpop.f32.mrf.mxu0
        %v12408 = vadd.f32 %v12312, %v12407
        %v12409 = vpop.f32.mrf.mxu0
        %v12410 = vadd.f32 %v12316, %v12409
        %12411 = vdwg.mxu0
        %12412 = vmatprep.subr.mxu0 %v12274
        %12413 = vmatpush1.msra.mxu0 %v12273
        %12414 = vmatprep.subr.mxu0 %v12272
        %12415 = vmatpush1.msra.mxu0 %v12271
        %12416 = vmatprep.subr.mxu0 %v12270
        %12417 = vmatpush1.msra.mxu0 %v12269
        %12418 = vmatprep.subr.mxu0 %v12268
        %12419 = vmatpush1.msra.mxu0 %v12267
        %12420 = vmatprep.subr.mxu0 %v12266
        %12421 = vmatpush1.msra.mxu0 %v12265
        %12422 = vmatprep.subr.mxu0 %v12264
        %12423 = vmatpush1.msra.mxu0 %v12263
        %12424 = vmatprep.subr.mxu0 %v12262
        %12425 = vmatpush1.msra.mxu0 %v12261
        %12426 = vmatprep.subr.mxu0 %v12260
        %12427 = vmatpush1.msra.mxu0 %v12259
        %12428 = vmatprep.subr.mxu0 %v12258
        %12429 = vmatpush1.msra.mxu0 %v12257
        %12430 = vmatprep.subr.mxu0 %v12256
        %12431 = vmatpush1.msra.mxu0 %v12255
        %12432 = vmatprep.subr.mxu0 %v12254
        %12433 = vmatpush1.msra.mxu0 %v12253
        %12434 = vmatprep.subr.mxu0 %v12252
        %12435 = vmatpush1.msra.mxu0 %v12251
        %12436 = vmatprep.subr.mxu0 %v12250
        %12437 = vmatpush1.msra.mxu0 %v12249
        %12438 = vmatprep.subr.mxu0 %v12248
        %12439 = vmatpush1.msra.mxu0 %v12247
        %12440 = vmatprep.subr.mxu0 %v12246
        %12441 = vmatpush1.msra.mxu0 %v12245
        %12442 = vmatprep.subr.mxu0 %v12244
        %12443 = vmatpush1.msra.mxu0 %v12243
        %12444 = vmatprep.subr.mxu0 %v12306
        %12445 = vmatpush2.msra.mxu0 %v12305
        %12446 = vmatprep.subr.mxu0 %v12304
        %12447 = vmatpush2.msra.mxu0 %v12303
        %12448 = vmatprep.subr.mxu0 %v12302
        %12449 = vmatpush2.msra.mxu0 %v12301
        %12450 = vmatprep.subr.mxu0 %v12300
        %12451 = vmatpush2.msra.mxu0 %v12299
        %12452 = vmatprep.subr.mxu0 %v12298
        %12453 = vmatpush2.msra.mxu0 %v12297
        %12454 = vmatprep.subr.mxu0 %v12296
        %12455 = vmatpush2.msra.mxu0 %v12295
        %12456 = vmatprep.subr.mxu0 %v12294
        %12457 = vmatpush2.msra.mxu0 %v12293
        %12458 = vmatprep.subr.mxu0 %v12292
        %12459 = vmatpush2.msra.mxu0 %v12291
        %12460 = vmatprep.subr.mxu0 %v12290
        %12461 = vmatpush2.msra.mxu0 %v12289
        %12462 = vmatprep.subr.mxu0 %v12288
        %12463 = vmatpush2.msra.mxu0 %v12287
        %12464 = vmatprep.subr.mxu0 %v12286
        %12465 = vmatpush2.msra.mxu0 %v12285
        %12466 = vmatprep.subr.mxu0 %v12284
        %12467 = vmatpush2.msra.mxu0 %v12283
        %12468 = vmatprep.subr.mxu0 %v12282
        %12469 = vmatpush2.msra.mxu0 %v12281
        %12470 = vmatprep.subr.mxu0 %v12280
        %12471 = vmatpush2.msra.mxu0 %v12279
        %12472 = vmatprep.subr.mxu0 %v12278
        %12473 = vmatpush2.msra.mxu0 %v12277
        %12474 = vmatprep.subr.mxu0 %v12276
        %12475 = vmatpush2.msra.mxu0 %v12275
        %12476 = vmatprep.mubr.f32.mxu0 %v12336
        %12477 = vmatmul.mubr.f32.gmra.mxu0 %v12334
        %v12478 = vpop.f32.mrf.mxu0
        %v12479 = vadd.f32 %v12408, %v12478
        %v12480 = vpop.f32.mrf.mxu0
        %v12481 = vadd.f32 %v12410, %v12480
        %12482 = vdwg.mxu0
        %vm12483 = vcmp.gt.f32.partialorder %v12479, 0.0
        %vm12484 = vcmp.gt.f32.partialorder %v12481, 0.0
        %v12485 = vmul.f32 %v12479, 0.2
        %v12486 = vmul.f32 %v12481, 0.2
        %v12487 = vsel %vm12483, %v12479, %v12485
        %v12488 = vsel %vm12484, %v12481, %v12486
        %v12489 = vld [vmem:[%s5] sm:$0xff]
        %v12490 = vld [vmem:[%s5 + $0x8] sm:$0xff]
        %v12491 = vld [vmem:[%s5 + $0x10] sm:$0xff]
        %v12492 = vld [vmem:[%s5 + $0x18] sm:$0xff]
        %v12493 = vld [vmem:[%s5 + $0x20] sm:$0xff]
        %v12494 = vld [vmem:[%s5 + $0x28] sm:$0xff]
        %v12495 = vld [vmem:[%s5 + $0x30] sm:$0xff]
        %v12496 = vld [vmem:[%s5 + $0x38] sm:$0xff]
        %v12497 = vld [vmem:[%s5 + $0x40] sm:$0xff]
        %v12498 = vld [vmem:[%s5 + $0x48] sm:$0xff]
        %v12499 = vld [vmem:[%s5 + $0x50] sm:$0xff]
        %v12500 = vld [vmem:[%s5 + $0x58] sm:$0xff]
        %v12501 = vld [vmem:[%s5 + $0x60] sm:$0xff]
        %v12502 = vld [vmem:[%s5 + $0x68] sm:$0xff]
        %v12503 = vld [vmem:[%s5 + $0x70] sm:$0xff]
        %v12504 = vld [vmem:[%s5 + $0x78] sm:$0xff]
        %v12505 = vld [vmem:[%s5 + $0x80] sm:$0xff]
        %v12506 = vld [vmem:[%s5 + $0x88] sm:$0xff]
        %v12507 = vld [vmem:[%s5 + $0x90] sm:$0xff]
        %v12508 = vld [vmem:[%s5 + $0x98] sm:$0xff]
        %v12509 = vld [vmem:[%s5 + $0xa0] sm:$0xff]
        %v12510 = vld [vmem:[%s5 + $0xa8] sm:$0xff]
        %v12511 = vld [vmem:[%s5 + $0xb0] sm:$0xff]
        %v12512 = vld [vmem:[%s5 + $0xb8] sm:$0xff]
        %v12513 = vld [vmem:[%s5 + $0xc0] sm:$0xff]
        %v12514 = vld [vmem:[%s5 + $0xc8] sm:$0xff]
        %v12515 = vld [vmem:[%s5 + $0xd0] sm:$0xff]
        %v12516 = vld [vmem:[%s5 + $0xd8] sm:$0xff]
        %v12517 = vld [vmem:[%s5 + $0xe0] sm:$0xff]
        %v12518 = vld [vmem:[%s5 + $0xe8] sm:$0xff]
        %v12519 = vld [vmem:[%s5 + $0xf0] sm:$0xff]
        %v12520 = vld [vmem:[%s5 + $0xf8] sm:$0xff]
        %v12521 = vld [vmem:[#allocation3] sm:$0x1]
        %v12523 = vlaneseq
        %v12524 = vshrl.u32 %v12523, 7
        %v12525 = vsub.s32 0, %v12524
        %v12526 = vrot.slane %v12521, %v12525
        %12528 = vmatprep.subr.mxu0 0.0
        %12529 = vmatpush1.msra.mxu0 %v12504
        %12530 = vmatprep.subr.mxu0 0.0
        %12531 = vmatpush1.msra.mxu0 %v12503
        %12532 = vmatprep.subr.mxu0 0.0
        %12533 = vmatpush1.msra.mxu0 %v12502
        %12534 = vmatprep.subr.mxu0 0.0
        %12535 = vmatpush1.msra.mxu0 %v12501
        %12536 = vmatprep.subr.mxu0 0.0
        %12537 = vmatpush1.msra.mxu0 %v12500
        %12538 = vmatprep.subr.mxu0 0.0
        %12539 = vmatpush1.msra.mxu0 %v12499
        %12540 = vmatprep.subr.mxu0 0.0
        %12541 = vmatpush1.msra.mxu0 %v12498
        %12542 = vmatprep.subr.mxu0 0.0
        %12543 = vmatpush1.msra.mxu0 %v12497
        %12544 = vmatprep.subr.mxu0 0.0
        %12545 = vmatpush1.msra.mxu0 %v12496
        %12546 = vmatprep.subr.mxu0 0.0
        %12547 = vmatpush1.msra.mxu0 %v12495
        %12548 = vmatprep.subr.mxu0 0.0
        %12549 = vmatpush1.msra.mxu0 %v12494
        %12550 = vmatprep.subr.mxu0 0.0
        %12551 = vmatpush1.msra.mxu0 %v12493
        %12552 = vmatprep.subr.mxu0 0.0
        %12553 = vmatpush1.msra.mxu0 %v12492
        %12554 = vmatprep.subr.mxu0 0.0
        %12555 = vmatpush1.msra.mxu0 %v12491
        %12556 = vmatprep.subr.mxu0 0.0
        %12557 = vmatpush1.msra.mxu0 %v12490
        %12558 = vmatprep.subr.mxu0 0.0
        %12559 = vmatpush1.msra.mxu0 %v12489
        %12560 = vmatprep.subr.mxu0 0.0
        %12561 = vmatpush2.msra.mxu0 %v12520
        %12562 = vmatprep.subr.mxu0 0.0
        %12563 = vmatpush2.msra.mxu0 %v12519
        %12564 = vmatprep.subr.mxu0 0.0
        %12565 = vmatpush2.msra.mxu0 %v12518
        %12566 = vmatprep.subr.mxu0 0.0
        %12567 = vmatpush2.msra.mxu0 %v12517
        %12568 = vmatprep.subr.mxu0 0.0
        %12569 = vmatpush2.msra.mxu0 %v12516
        %12570 = vmatprep.subr.mxu0 0.0
        %12571 = vmatpush2.msra.mxu0 %v12515
        %12572 = vmatprep.subr.mxu0 0.0
        %12573 = vmatpush2.msra.mxu0 %v12514
        %12574 = vmatprep.subr.mxu0 0.0
        %12575 = vmatpush2.msra.mxu0 %v12513
        %12576 = vmatprep.subr.mxu0 0.0
        %12577 = vmatpush2.msra.mxu0 %v12512
        %12578 = vmatprep.subr.mxu0 0.0
        %12579 = vmatpush2.msra.mxu0 %v12511
        %12580 = vmatprep.subr.mxu0 0.0
        %12581 = vmatpush2.msra.mxu0 %v12510
        %12582 = vmatprep.subr.mxu0 0.0
        %12583 = vmatpush2.msra.mxu0 %v12509
        %12584 = vmatprep.subr.mxu0 0.0
        %12585 = vmatpush2.msra.mxu0 %v12508
        %12586 = vmatprep.subr.mxu0 0.0
        %12587 = vmatpush2.msra.mxu0 %v12507
        %12588 = vmatprep.subr.mxu0 0.0
        %12589 = vmatpush2.msra.mxu0 %v12506
        %12590 = vmatprep.subr.mxu0 0.0
        %12591 = vmatpush2.msra.mxu0 %v12505
        %12592 = vmatprep.mubr.f32.mxu0 %v12488
        %12593 = vmatmul.mubr.f32.gmra.mxu0 %v12487
        %v12594 = vpop.f32.mrf.mxu0
        %v12595 = vadd.f32 %v12526, %v12594
        %v12596 = vpop.f32.mrf.mxu0
        %12597 = vdwg.mxu0
        %v12598 = vsub.f32 0.0, %v12595
        %v12599 = vmul.f32 %v12598, 1.442695
        %v12600 = vpow.pop %v12599
        %v12601 = vadd.f32 %v12600, 1.0
        %v12602 = vrcp.pop %v12601
        %v12603 = vmul.f32 1.0, %v12602
        %vm12604 = vcmask 1024
        %12605 = vst.msk [vmem:[%s7] sm:$0x3] %vm12604, %v12603
      $region56: #{discriminator_forward.1} parent=47 // pred_fallthru
        _
      // Predicated region
      $region57: #{discriminator_forward.1} parent=47 // pred_check
        %p12606 = pneg %p185
      $region58: #{discriminator_forward.1} parent=47 // pred_check_branch
        %12608 = sbr.rel (%p12606) target = $region60
      $region59: #{discriminator_forward.1} parent=47 // pred_region
        _
      $region60: #{discriminator_forward.1} parent=47 // pred_fallthru
        _
      // Predicated region
      $region61: #{discriminator_forward.1} parent=47 // pred_check
        %p12609 = pneg %p185
      $region62: #{discriminator_forward.1} parent=47 // pred_check_branch
        %12611 = sbr.rel (%p12609) target = $region64
      $region63: #{discriminator_forward.1} parent=47 // pred_region
        _
      $region64: #{discriminator_forward.1} parent=47 // pred_fallthru
        _
    $region48: #{discriminator_forward.1} parent=5 // pred_fallthru
      _
    %p12612 = scmp.le.s32.totalorder 2, %s15
    // Predicated region
    $region65: #{discriminator_forward.1} parent=5 // pred_check
      %p12613 = pneg %p12612
    $region66: #{discriminator_forward.1} parent=5 // pred_check_branch
      %12615 = sbr.rel (%p12613) target = $region68
    $region67: #{discriminator_forward.1} parent=5 // pred_region
      %s12616 = ssub.s32 %s15, 2
    $region68: #{discriminator_forward.1} parent=5 // pred_fallthru
      _
  $region6: #{discriminator_forward.1} parent=0 // loop_footer
    %s19 = sadd.s32 1, %s15
  $region7: #{discriminator_forward.1} parent=0 // loop_footer_branch
    %14 = sbr.rel target = $region3
  $region8: #{discriminator_forward.1} parent=0 // loop_exit
    _

</llo_original>
